<compile_context>
chip_gen: v5e
topology: v5e:2x2
jax: 0.10.0
libtpu: 0.0.40
codegen_flags: <defaults>
</compile_context>

<pallas_src>
import functools

import jax
import jax.numpy as jnp
from jax.experimental import pallas as pl
from jax.experimental.pallas import tpu as pltpu

EPS = 1e-5


def _round_up(x, m):
    return ((x + m - 1) // m) * m


# ----------------------------- Pallas kernels -----------------------------

def _mm_kernel(x_ref, w_ref, s_ref, b_ref, o_ref, acc_ref, *, relu):
    """Gridded matmul + folded-BN affine (+ReLU). Grid = (M/tm, N/tn, K/tk)."""
    k = pl.program_id(2)

    @pl.when(k == 0)
    def _():
        acc_ref[...] = jnp.zeros_like(acc_ref)

    acc_ref[...] += jnp.dot(x_ref[...], w_ref[...],
                            preferred_element_type=jnp.float32)

    @pl.when(k == pl.num_programs(2) - 1)
    def _():
        out = acc_ref[...] * s_ref[...] + b_ref[...]
        if relu:
            out = jnp.maximum(out, 0.0)
        o_ref[...] = out.astype(o_ref.dtype)


def _mm_res_kernel(x_ref, w_ref, s_ref, b_ref, r_ref, o_ref, acc_ref):
    """Gridded matmul + folded-BN affine + residual add + ReLU (2nd conv of a block)."""
    k = pl.program_id(2)

    @pl.when(k == 0)
    def _():
        acc_ref[...] = jnp.zeros_like(acc_ref)

    acc_ref[...] += jnp.dot(x_ref[...], w_ref[...],
                            preferred_element_type=jnp.float32)

    @pl.when(k == pl.num_programs(2) - 1)
    def _():
        out = acc_ref[...] * s_ref[...] + b_ref[...] + r_ref[...]
        o_ref[...] = jnp.maximum(out, 0.0).astype(o_ref.dtype)


def _avgpool_fc_kernel(x_ref, w_ref, b_ref, o_ref):
    """x: (N, HW, C) -> mean over spatial -> (N, C) @ (C, num_class_padded) + bias."""
    pooled = jnp.mean(x_ref[...], axis=1)
    out = jnp.dot(pooled, w_ref[...], preferred_element_type=jnp.float32) + b_ref[...]
    o_ref[...] = out.astype(o_ref.dtype)


# ----------------------------- gridded conv-as-matmul -----------------------------

def _matmul_affine(x, w, scale, bias, residual, relu):
    """out[:M,:N] = [relu]((x @ w) * scale + bias [+ residual]), tiled Pallas matmul.

    x: (M, K) bf16, w: (K, N) bf16, scale/bias: (N,) f32, residual: (M, N) f32 or None.
    """
    M, K = x.shape
    _, N = w.shape

    # Tile sizes: lane-dense N tiles (multiples of 128), 8-aligned M tiles,
    # MXU-friendly K tiles (single block up to 2048, else 512-wide K pipeline).
    tm = min(256, _round_up(M, 8))
    tn = min(256, _round_up(N, 128))
    kr = _round_up(K, 128)
    tk = kr if kr <= 2048 else 512

    Mp = _round_up(M, tm)
    Np = _round_up(N, tn)
    Kp = _round_up(K, tk)

    xp = jnp.pad(x, ((0, Mp - M), (0, Kp - K)))
    wp = jnp.pad(w, ((0, Kp - K), (0, Np - N)))
    sp = jnp.pad(scale.astype(jnp.float32), (0, Np - N)).reshape(1, Np)
    bp = jnp.pad(bias.astype(jnp.float32), (0, Np - N)).reshape(1, Np)

    in_specs = [
        pl.BlockSpec((tm, tk), lambda i, j, k: (i, k)),
        pl.BlockSpec((tk, tn), lambda i, j, k: (k, j)),
        pl.BlockSpec((1, tn), lambda i, j, k: (0, j)),
        pl.BlockSpec((1, tn), lambda i, j, k: (0, j)),
    ]
    args = [xp, wp, sp, bp]

    if residual is None:
        kernel = functools.partial(_mm_kernel, relu=relu)
    else:
        rp = jnp.pad(residual.astype(jnp.float32), ((0, Mp - M), (0, Np - N)))
        in_specs.append(pl.BlockSpec((tm, tn), lambda i, j, k: (i, j)))
        args.append(rp)
        kernel = _mm_res_kernel

    grid = (Mp // tm, Np // tn, Kp // tk)
    bytes_in = xp.size * xp.dtype.itemsize + wp.size * wp.dtype.itemsize
    bytes_out = Mp * Np * 4

    out = pl.pallas_call(
        kernel,
        out_shape=jax.ShapeDtypeStruct((Mp, Np), jnp.float32),
        grid_spec=pltpu.PrefetchScalarGridSpec(
            num_scalar_prefetch=0,
            grid=grid,
            in_specs=in_specs,
            out_specs=pl.BlockSpec((tm, tn), lambda i, j, k: (i, j)),
            scratch_shapes=[pltpu.VMEM((tm, tn), jnp.float32)],
        ),
        compiler_params=pltpu.CompilerParams(
            dimension_semantics=("parallel", "parallel", "arbitrary"),
            vmem_limit_bytes=48 * 1024 * 1024,
        ),
        cost_estimate=pl.CostEstimate(
            flops=2 * Mp * Np * Kp,
            transcendentals=0,
            bytes_accessed=bytes_in + bytes_out,
        ),
    )(*args)
    return out[:M, :N]


# ----------------------------- JAX glue (layout / patches) -----------------------------

def _im2col(x, kh, kw, stride, padding):
    """x: (N, H, W, C) -> patches (N*Ho*Wo, kh*kw*C), plus output spatial dims.

    All slice bounds are static Python ints (stride/padding never traced)."""
    N, H, W, C = x.shape
    xp = jnp.pad(x, ((0, 0), (padding, padding), (padding, padding), (0, 0)))
    Hp, Wp = H + 2 * padding, W + 2 * padding
    Ho = (Hp - kh) // stride + 1
    Wo = (Wp - kw) // stride + 1
    cols = []
    for i in range(kh):
        for j in range(kw):
            cols.append(xp[:, i:i + stride * Ho:stride, j:j + stride * Wo:stride, :])
    patches = jnp.concatenate(cols, axis=-1)            # (N, Ho, Wo, kh*kw*C)
    return patches.reshape(N * Ho * Wo, kh * kw * C), (N, Ho, Wo)


def conv_bn_act(x, w, scale, bias, *, stride, padding, relu, residual=None):
    """Conv2d(bias=False) + folded BatchNorm [+ residual] [+ ReLU] via gridded Pallas matmul.

    x: (N, H, W, Cin) f32; w: (kh, kw, Cin, Cout) f32; scale/bias: (Cout,) f32."""
    kh, kw, cin, cout = w.shape
    # TODO(synk): patches are still built in XLA (im2col); a tap-accumulating
    # in-kernel conv would remove the kh*kw-fold HBM inflation entirely.
    patches, (N, Ho, Wo) = _im2col(x.astype(jnp.bfloat16), kh, kw, stride, padding)
    w2 = w.reshape(kh * kw * cin, cout).astype(jnp.bfloat16)
    res = None
    if residual is not None:
        res = residual.reshape(patches.shape[0], cout)
    out = _matmul_affine(patches, w2, scale, bias, res, relu)
    return out.reshape(N, Ho, Wo, cout)


def maxpool2d(x, *, kernel=3, stride=2, padding=1):
    """MaxPool2d(3, stride=2, padding=1) on NHWC via a fused pairwise-maximum tree
    (no kh*kw stacked copy is materialized in HBM)."""
    N, H, W, C = x.shape
    xp = jnp.pad(
        x, ((0, 0), (padding, padding), (padding, padding), (0, 0)),
        constant_values=-jnp.inf,
    )
    Hp, Wp = H + 2 * padding, W + 2 * padding
    Ho = (Hp - kernel) // stride + 1
    Wo = (Wp - kernel) // stride + 1
    out = None
    for i in range(kernel):
        for j in range(kernel):
            win = xp[:, i:i + stride * Ho:stride, j:j + stride * Wo:stride, :]
            out = win if out is None else jnp.maximum(out, win)
    return out


def avgpool_fc(x, fc_w, fc_b):
    """AdaptiveAvgPool2d((1,1)) + flatten + Linear, fused in one Pallas kernel.

    Class dim is zero-padded to 128 lanes inside the call (lane-dense store) and
    sliced back outside."""
    N, H, W, C = x.shape
    num_class = fc_w.shape[1]
    ncp = _round_up(num_class, 128)
    wp = jnp.pad(fc_w.astype(jnp.float32), ((0, 0), (0, ncp - num_class)))
    bp = jnp.pad(fc_b.astype(jnp.float32), (0, ncp - num_class)).reshape(1, ncp)
    x2 = x.reshape(N, H * W, C).astype(jnp.float32)
    vmem = pl.BlockSpec(memory_space=pltpu.MemorySpace.VMEM)
    out = pl.pallas_call(
        _avgpool_fc_kernel,
        out_shape=jax.ShapeDtypeStruct((N, ncp), jnp.float32),
        in_specs=[vmem, vmem, vmem],
        out_specs=vmem,
    )(x2, wp, bp)
    return out[:, :num_class]


# ----------------------------- parameters -----------------------------

class _Keys:
    def __init__(self, key):
        self._key = key

    def next(self):
        self._key, sub = jax.random.split(self._key)
        return sub


def _kaiming_conv(key, kh, kw, cin, cout):
    # kaiming_normal_(mode='fan_out', nonlinearity='relu'): std = sqrt(2 / (cout*kh*kw))
    fan_out = cout * kh * kw
    std = (2.0 / fan_out) ** 0.5
    return jax.random.normal(key, (kh, kw, cin, cout), jnp.float32) * std


def _bn_params(c):
    # nn.init.constant_(weight, 1), constant_(bias, 0); running_mean=0, running_var=1.
    return dict(gamma=jnp.ones((c,), jnp.float32),
                beta=jnp.zeros((c,), jnp.float32),
                mean=jnp.zeros((c,), jnp.float32),
                var=jnp.ones((c,), jnp.float32))


def _bn_scale_bias(bn):
    # TODO(synk): BatchNorm is evaluated in inference mode (running stats);
    # PyTorch training-mode batch statistics are not reproduced.
    scale = bn['gamma'] / jnp.sqrt(bn['var'] + EPS)
    bias = bn['beta'] - bn['mean'] * scale
    return scale, bias


def _basic_block_params(keys, cin, cout, stride):
    # NOTE: stride is intentionally NOT stored in the (traced) params pytree;
    # it is static architecture info handled in the forward pass.
    p = dict(
        conv1=_kaiming_conv(keys.next(), 3, 3, cin, cout),
        bn1=_bn_params(cout),
        conv2=_kaiming_conv(keys.next(), 3, 3, cout, cout),
        bn2=_bn_params(cout),
    )
    if stride != 1 or cin != cout:
        p['ds_conv'] = _kaiming_conv(keys.next(), 1, 1, cin, cout)
        p['ds_bn'] = _bn_params(cout)
    return p


def init_resnet_params(key, layers=(1, 1, 1, 1), num_class=10):
    keys = _Keys(key)
    params = dict(
        conv1=_kaiming_conv(keys.next(), 7, 7, 3, 64),
        bn1=_bn_params(64),
    )
    in_ch = 64
    for li, (channels, n_blocks, stride) in enumerate(
            zip((64, 128, 256, 512), layers, (1, 2, 2, 2)), start=1):
        blocks = [_basic_block_params(keys, in_ch, channels, stride)]
        in_ch = channels  # expansion = 1
        for _ in range(1, n_blocks):
            blocks.append(_basic_block_params(keys, in_ch, channels, 1))
        params[f'layer{li}'] = blocks
    # Linear default-ish init (deterministic; does not need to match torch RNG)
    bound = 1.0 / (512 ** 0.5)
    params['fc_w'] = jax.random.uniform(keys.next(), (512, num_class), jnp.float32,
                                        minval=-bound, maxval=bound)
    params['fc_b'] = jax.random.uniform(keys.next(), (num_class,), jnp.float32,
                                        minval=-bound, maxval=bound)
    return params


# ----------------------------- forward -----------------------------

_LAYER_STRIDES = (1, 2, 2, 2)  # static architecture info (never traced)


def basic_block_forward(x, p, stride):
    s1, b1 = _bn_scale_bias(p['bn1'])
    out = conv_bn_act(x, p['conv1'], s1, b1, stride=stride, padding=1, relu=True)
    if 'ds_conv' in p:
        sd, bd = _bn_scale_bias(p['ds_bn'])
        identity = conv_bn_act(x, p['ds_conv'], sd, bd, stride=stride, padding=0,
                               relu=False)
    else:
        identity = x
    s2, b2 = _bn_scale_bias(p['bn2'])
    # Residual is fused into the second conv's epilogue (same (tm, tn) tile).
    return conv_bn_act(out, p['conv2'], s2, b2, stride=1, padding=1, relu=True,
                       residual=identity)


def resnet_forward(params, x_nchw):
    x = jnp.transpose(x_nchw, (0, 2, 3, 1))  # NCHW -> NHWC
    s, b = _bn_scale_bias(params['bn1'])
    x = conv_bn_act(x, params['conv1'], s, b, stride=2, padding=3, relu=True)
    x = maxpool2d(x, kernel=3, stride=2, padding=1)
    for li in range(1, 5):
        for bi, blk in enumerate(params[f'layer{li}']):
            stride = _LAYER_STRIDES[li - 1] if bi == 0 else 1
            x = basic_block_forward(x, blk, stride)
    return avgpool_fc(x, params['fc_w'], params['fc_b'])


# ----------------------------- main -----------------------------

if __name__ == "__main__":
    key = jax.random.PRNGKey(0)
    k_param, k_input = jax.random.split(key)

    params = init_resnet_params(k_param, layers=(1, 1, 1, 1), num_class=10)
    x = jax.random.normal(k_input, (2, 3, 32, 32), jnp.float32)  # NCHW like PyTorch

    fwd = jax.jit(resnet_forward)
    out = fwd(params, x)
    out = jax.block_until_ready(out)

    assert out.shape == (2, 10), out.shape
    assert out.dtype == jnp.float32
    assert bool(jnp.all(jnp.isfinite(out)))
    print("KERNEL_OK")
</pallas_src>

<mosaic_0001>
module attributes {stable_mosaic.version = 11 : i64} {
  func.func @_mm_kernel(%arg0: i32, %arg1: i32, %arg2: i32, %arg3: memref<256x256xbf16, #tpu.memory_space<vmem>>, %arg4: memref<256x128xbf16, #tpu.memory_space<vmem>>, %arg5: memref<1x128xf32, #tpu.memory_space<vmem>>, %arg6: memref<1x128xf32, #tpu.memory_space<vmem>>, %arg7: memref<256x128xf32, #tpu.memory_space<vmem>>, %arg8: memref<256x128xf32, #tpu.memory_space<vmem>>) attributes {dimension_semantics = [#tpu.dimension_semantics<parallel>, #tpu.dimension_semantics<parallel>, #tpu.dimension_semantics<arbitrary>], iteration_bounds = array<i64: 2, 1, 1>, scalar_prefetch = 0 : i64, scratch_operands = 1 : i64, tpu.core_type = #tpu.core_type<tc>, window_params = [{transform_indices = @transform_0, window_bounds = array<i64: 256, 256>}, {transform_indices = @transform_1, window_bounds = array<i64: 256, 128>}, {transform_indices = @transform_2, window_bounds = array<i64: 1, 128>}, {transform_indices = @transform_3, window_bounds = array<i64: 1, 128>}, {transform_indices = @transform_4, window_bounds = array<i64: 256, 128>}]} {
    %c0_i32 = arith.constant 0 : i32
    %0 = arith.cmpi eq, %arg2, %c0_i32 : i32
    %1 = arith.extui %0 : i1 to i32
    %c0_i32_0 = arith.constant 0 : i32
    %2 = arith.cmpi ne, %1, %c0_i32_0 : i32
    scf.if %2 {
      %cst_10 = arith.constant 0.000000e+00 : f32
      %12 = vector.broadcast %cst_10 : f32 to vector<256x128xf32>
      %c0_11 = arith.constant 0 : index
      %c0_12 = arith.constant 0 : index
      %13 = vector.load %arg8[%c0_11, %c0_12] : memref<256x128xf32, #tpu.memory_space<vmem>>, vector<256x128xf32>
      tpu.vector_store %arg8[%c0_11, %c0_12], %12 {strides = array<i32>} : memref<256x128xf32, #tpu.memory_space<vmem>>, vector<256x128xf32>,
    } else {
    }
    %c0 = arith.constant 0 : index
    %c0_1 = arith.constant 0 : index
    %3 = vector.load %arg8[%c0, %c0_1] : memref<256x128xf32, #tpu.memory_space<vmem>>, vector<256x128xf32>
    %c0_2 = arith.constant 0 : index
    %c0_3 = arith.constant 0 : index
    %4 = vector.load %arg3[%c0_2, %c0_3] : memref<256x256xbf16, #tpu.memory_space<vmem>>, vector<256x256xbf16>
    %c0_4 = arith.constant 0 : index
    %c0_5 = arith.constant 0 : index
    %5 = vector.load %arg4[%c0_4, %c0_5] : memref<256x128xbf16, #tpu.memory_space<vmem>>, vector<256x128xbf16>
    %cst = arith.constant dense<0.000000e+00> : vector<256x128xf32>
    %6 = tpu.matmul %4, %5, %cst {dimension_numbers = #tpu.dot_dimension_numbers<[1], [0], [0], [1], [0, 0, 1, 1], [], []>} : vector<256x256xbf16>, vector<256x128xbf16>, vector<256x128xf32> -> vector<256x128xf32>
    %7 = arith.addf %3, %6 : vector<256x128xf32>
    %c0_6 = arith.constant 0 : index
    %c0_7 = arith.constant 0 : index
    %8 = vector.load %arg8[%c0_6, %c0_7] : memref<256x128xf32, #tpu.memory_space<vmem>>, vector<256x128xf32>
    tpu.vector_store %arg8[%c0_6, %c0_7], %7 {strides = array<i32>} : memref<256x128xf32, #tpu.memory_space<vmem>>, vector<256x128xf32>,
    %c0_i32_8 = arith.constant 0 : i32
    %9 = arith.cmpi eq, %arg2, %c0_i32_8 : i32
    %10 = arith.extui %9 : i1 to i32
    %c0_i32_9 = arith.constant 0 : i32
    %11 = arith.cmpi ne, %10, %c0_i32_9 : i32
    scf.if %11 {
      %c0_10 = arith.constant 0 : index
      %c0_11 = arith.constant 0 : index
      %12 = vector.load %arg8[%c0_10, %c0_11] : memref<256x128xf32, #tpu.memory_space<vmem>>, vector<256x128xf32>
      %c0_12 = arith.constant 0 : index
      %c0_13 = arith.constant 0 : index
      %13 = vector.load %arg5[%c0_12, %c0_13] : memref<1x128xf32, #tpu.memory_space<vmem>>, vector<1x128xf32>
      %14 = vector.broadcast %13 : vector<1x128xf32> to vector<256x128xf32>
      %15 = arith.mulf %12, %14 : vector<256x128xf32>
      %c0_14 = arith.constant 0 : index
      %c0_15 = arith.constant 0 : index
      %16 = vector.load %arg6[%c0_14, %c0_15] : memref<1x128xf32, #tpu.memory_space<vmem>>, vector<1x128xf32>
      %17 = vector.broadcast %16 : vector<1x128xf32> to vector<256x128xf32>
      %18 = arith.addf %15, %17 : vector<256x128xf32>
      %cst_16 = arith.constant 0.000000e+00 : f32
      %19 = vector.broadcast %cst_16 : f32 to vector<256x128xf32>
      %20 = arith.maximumf %18, %19 : vector<256x128xf32>
      %c0_17 = arith.constant 0 : index
      %c0_18 = arith.constant 0 : index
      %21 = vector.load %arg7[%c0_17, %c0_18] : memref<256x128xf32, #tpu.memory_space<vmem>>, vector<256x128xf32>
      tpu.vector_store %arg7[%c0_17, %c0_18], %20 {strides = array<i32>} : memref<256x128xf32, #tpu.memory_space<vmem>>, vector<256x128xf32>,
    } else {
    }
    return
  }
  func.func @transform_0(%arg0: i32, %arg1: i32, %arg2: i32) -> (i32, i32) {
    %c0_i32 = arith.constant 0 : i32
    return %arg0, %arg2 : i32, i32
  }
  func.func @transform_1(%arg0: i32, %arg1: i32, %arg2: i32) -> (i32, i32) {
    %c0_i32 = arith.constant 0 : i32
    return %arg2, %arg1 : i32, i32
  }
  func.func @transform_2(%arg0: i32, %arg1: i32, %arg2: i32) -> (i32, i32) {
    %c0_i32 = arith.constant 0 : i32
    %c0_i32_0 = arith.constant 0 : i32
    return %c0_i32, %arg1 : i32, i32
  }
  func.func @transform_3(%arg0: i32, %arg1: i32, %arg2: i32) -> (i32, i32) {
    %c0_i32 = arith.constant 0 : i32
    %c0_i32_0 = arith.constant 0 : i32
    return %c0_i32, %arg1 : i32, i32
  }
  func.func @transform_4(%arg0: i32, %arg1: i32, %arg2: i32) -> (i32, i32) {
    %c0_i32 = arith.constant 0 : i32
    return %arg0, %arg1 : i32, i32
  }
}

module attributes {stable_mosaic.version = 11 : i64} {
  func.func @_mm_kernel(%arg0: i32, %arg1: i32, %arg2: i32, %arg3: memref<128x640xbf16, #tpu.memory_space<vmem>>, %arg4: memref<640x128xbf16, #tpu.memory_space<vmem>>, %arg5: memref<1x128xf32, #tpu.memory_space<vmem>>, %arg6: memref<1x128xf32, #tpu.memory_space<vmem>>, %arg7: memref<128x128xf32, #tpu.memory_space<vmem>>, %arg8: memref<128x128xf32, #tpu.memory_space<vmem>>) attributes {dimension_semantics = [#tpu.dimension_semantics<parallel>, #tpu.dimension_semantics<parallel>, #tpu.dimension_semantics<arbitrary>], iteration_bounds = array<i64: 1, 1, 1>, scalar_prefetch = 0 : i64, scratch_operands = 1 : i64, tpu.core_type = #tpu.core_type<tc>, window_params = [{transform_indices = @transform_0, window_bounds = array<i64: 128, 640>}, {transform_indices = @transform_1, window_bounds = array<i64: 640, 128>}, {transform_indices = @transform_2, window_bounds = array<i64: 1, 128>}, {transform_indices = @transform_3, window_bounds = array<i64: 1, 128>}, {transform_indices = @transform_4, window_bounds = array<i64: 128, 128>}]} {
    %c0_i32 = arith.constant 0 : i32
    %0 = arith.cmpi eq, %arg2, %c0_i32 : i32
    %1 = arith.extui %0 : i1 to i32
    %c0_i32_0 = arith.constant 0 : i32
    %2 = arith.cmpi ne, %1, %c0_i32_0 : i32
    scf.if %2 {
      %cst_10 = arith.constant 0.000000e+00 : f32
      %12 = vector.broadcast %cst_10 : f32 to vector<128x128xf32>
      %c0_11 = arith.constant 0 : index
      %c0_12 = arith.constant 0 : index
      %13 = vector.load %arg8[%c0_11, %c0_12] : memref<128x128xf32, #tpu.memory_space<vmem>>, vector<128x128xf32>
      tpu.vector_store %arg8[%c0_11, %c0_12], %12 {strides = array<i32>} : memref<128x128xf32, #tpu.memory_space<vmem>>, vector<128x128xf32>,
    } else {
    }
    %c0 = arith.constant 0 : index
    %c0_1 = arith.constant 0 : index
    %3 = vector.load %arg8[%c0, %c0_1] : memref<128x128xf32, #tpu.memory_space<vmem>>, vector<128x128xf32>
    %c0_2 = arith.constant 0 : index
    %c0_3 = arith.constant 0 : index
    %4 = vector.load %arg3[%c0_2, %c0_3] : memref<128x640xbf16, #tpu.memory_space<vmem>>, vector<128x640xbf16>
    %c0_4 = arith.constant 0 : index
    %c0_5 = arith.constant 0 : index
    %5 = vector.load %arg4[%c0_4, %c0_5] : memref<640x128xbf16, #tpu.memory_space<vmem>>, vector<640x128xbf16>
    %cst = arith.constant dense<0.000000e+00> : vector<128x128xf32>
    %6 = tpu.matmul %4, %5, %cst {dimension_numbers = #tpu.dot_dimension_numbers<[1], [0], [0], [1], [0, 0, 1, 1], [], []>} : vector<128x640xbf16>, vector<640x128xbf16>, vector<128x128xf32> -> vector<128x128xf32>
    %7 = arith.addf %3, %6 : vector<128x128xf32>
    %c0_6 = arith.constant 0 : index
    %c0_7 = arith.constant 0 : index
    %8 = vector.load %arg8[%c0_6, %c0_7] : memref<128x128xf32, #tpu.memory_space<vmem>>, vector<128x128xf32>
    tpu.vector_store %arg8[%c0_6, %c0_7], %7 {strides = array<i32>} : memref<128x128xf32, #tpu.memory_space<vmem>>, vector<128x128xf32>,
    %c0_i32_8 = arith.constant 0 : i32
    %9 = arith.cmpi eq, %arg2, %c0_i32_8 : i32
    %10 = arith.extui %9 : i1 to i32
    %c0_i32_9 = arith.constant 0 : i32
    %11 = arith.cmpi ne, %10, %c0_i32_9 : i32
    scf.if %11 {
      %c0_10 = arith.constant 0 : index
      %c0_11 = arith.constant 0 : index
      %12 = vector.load %arg8[%c0_10, %c0_11] : memref<128x128xf32, #tpu.memory_space<vmem>>, vector<128x128xf32>
      %c0_12 = arith.constant 0 : index
      %c0_13 = arith.constant 0 : index
      %13 = vector.load %arg5[%c0_12, %c0_13] : memref<1x128xf32, #tpu.memory_space<vmem>>, vector<1x128xf32>
      %14 = vector.broadcast %13 : vector<1x128xf32> to vector<128x128xf32>
      %15 = arith.mulf %12, %14 : vector<128x128xf32>
      %c0_14 = arith.constant 0 : index
      %c0_15 = arith.constant 0 : index
      %16 = vector.load %arg6[%c0_14, %c0_15] : memref<1x128xf32, #tpu.memory_space<vmem>>, vector<1x128xf32>
      %17 = vector.broadcast %16 : vector<1x128xf32> to vector<128x128xf32>
      %18 = arith.addf %15, %17 : vector<128x128xf32>
      %cst_16 = arith.constant 0.000000e+00 : f32
      %19 = vector.broadcast %cst_16 : f32 to vector<128x128xf32>
      %20 = arith.maximumf %18, %19 : vector<128x128xf32>
      %c0_17 = arith.constant 0 : index
      %c0_18 = arith.constant 0 : index
      %21 = vector.load %arg7[%c0_17, %c0_18] : memref<128x128xf32, #tpu.memory_space<vmem>>, vector<128x128xf32>
      tpu.vector_store %arg7[%c0_17, %c0_18], %20 {strides = array<i32>} : memref<128x128xf32, #tpu.memory_space<vmem>>, vector<128x128xf32>,
    } else {
    }
    return
  }
  func.func @transform_0(%arg0: i32, %arg1: i32, %arg2: i32) -> (i32, i32) {
    %c0_i32 = arith.constant 0 : i32
    return %arg0, %arg2 : i32, i32
  }
  func.func @transform_1(%arg0: i32, %arg1: i32, %arg2: i32) -> (i32, i32) {
    %c0_i32 = arith.constant 0 : i32
    return %arg2, %arg1 : i32, i32
  }
  func.func @transform_2(%arg0: i32, %arg1: i32, %arg2: i32) -> (i32, i32) {
    %c0_i32 = arith.constant 0 : i32
    %c0_i32_0 = arith.constant 0 : i32
    return %c0_i32, %arg1 : i32, i32
  }
  func.func @transform_3(%arg0: i32, %arg1: i32, %arg2: i32) -> (i32, i32) {
    %c0_i32 = arith.constant 0 : i32
    %c0_i32_0 = arith.constant 0 : i32
    return %c0_i32, %arg1 : i32, i32
  }
  func.func @transform_4(%arg0: i32, %arg1: i32, %arg2: i32) -> (i32, i32) {
    %c0_i32 = arith.constant 0 : i32
    return %arg0, %arg1 : i32, i32
  }
}

module attributes {stable_mosaic.version = 11 : i64} {
  func.func @_mm_res_kernel(%arg0: i32, %arg1: i32, %arg2: i32, %arg3: memref<128x640xbf16, #tpu.memory_space<vmem>>, %arg4: memref<640x128xbf16, #tpu.memory_space<vmem>>, %arg5: memref<1x128xf32, #tpu.memory_space<vmem>>, %arg6: memref<1x128xf32, #tpu.memory_space<vmem>>, %arg7: memref<128x128xf32, #tpu.memory_space<vmem>>, %arg8: memref<128x128xf32, #tpu.memory_space<vmem>>, %arg9: memref<128x128xf32, #tpu.memory_space<vmem>>) attributes {dimension_semantics = [#tpu.dimension_semantics<parallel>, #tpu.dimension_semantics<parallel>, #tpu.dimension_semantics<arbitrary>], iteration_bounds = array<i64: 1, 1, 1>, scalar_prefetch = 0 : i64, scratch_operands = 1 : i64, tpu.core_type = #tpu.core_type<tc>, window_params = [{transform_indices = @transform_0, window_bounds = array<i64: 128, 640>}, {transform_indices = @transform_1, window_bounds = array<i64: 640, 128>}, {transform_indices = @transform_2, window_bounds = array<i64: 1, 128>}, {transform_indices = @transform_3, window_bounds = array<i64: 1, 128>}, {transform_indices = @transform_4, window_bounds = array<i64: 128, 128>}, {transform_indices = @transform_5, window_bounds = array<i64: 128, 128>}]} {
    %c0_i32 = arith.constant 0 : i32
    %0 = arith.cmpi eq, %arg2, %c0_i32 : i32
    %1 = arith.extui %0 : i1 to i32
    %c0_i32_0 = arith.constant 0 : i32
    %2 = arith.cmpi ne, %1, %c0_i32_0 : i32
    scf.if %2 {
      %cst_10 = arith.constant 0.000000e+00 : f32
      %12 = vector.broadcast %cst_10 : f32 to vector<128x128xf32>
      %c0_11 = arith.constant 0 : index
      %c0_12 = arith.constant 0 : index
      %13 = vector.load %arg9[%c0_11, %c0_12] : memref<128x128xf32, #tpu.memory_space<vmem>>, vector<128x128xf32>
      tpu.vector_store %arg9[%c0_11, %c0_12], %12 {strides = array<i32>} : memref<128x128xf32, #tpu.memory_space<vmem>>, vector<128x128xf32>,
    } else {
    }
    %c0 = arith.constant 0 : index
    %c0_1 = arith.constant 0 : index
    %3 = vector.load %arg9[%c0, %c0_1] : memref<128x128xf32, #tpu.memory_space<vmem>>, vector<128x128xf32>
    %c0_2 = arith.constant 0 : index
    %c0_3 = arith.constant 0 : index
    %4 = vector.load %arg3[%c0_2, %c0_3] : memref<128x640xbf16, #tpu.memory_space<vmem>>, vector<128x640xbf16>
    %c0_4 = arith.constant 0 : index
    %c0_5 = arith.constant 0 : index
    %5 = vector.load %arg4[%c0_4, %c0_5] : memref<640x128xbf16, #tpu.memory_space<vmem>>, vector<640x128xbf16>
    %cst = arith.constant dense<0.000000e+00> : vector<128x128xf32>
    %6 = tpu.matmul %4, %5, %cst {dimension_numbers = #tpu.dot_dimension_numbers<[1], [0], [0], [1], [0, 0, 1, 1], [], []>} : vector<128x640xbf16>, vector<640x128xbf16>, vector<128x128xf32> -> vector<128x128xf32>
    %7 = arith.addf %3, %6 : vector<128x128xf32>
    %c0_6 = arith.constant 0 : index
    %c0_7 = arith.constant 0 : index
    %8 = vector.load %arg9[%c0_6, %c0_7] : memref<128x128xf32, #tpu.memory_space<vmem>>, vector<128x128xf32>
    tpu.vector_store %arg9[%c0_6, %c0_7], %7 {strides = array<i32>} : memref<128x128xf32, #tpu.memory_space<vmem>>, vector<128x128xf32>,
    %c0_i32_8 = arith.constant 0 : i32
    %9 = arith.cmpi eq, %arg2, %c0_i32_8 : i32
    %10 = arith.extui %9 : i1 to i32
    %c0_i32_9 = arith.constant 0 : i32
    %11 = arith.cmpi ne, %10, %c0_i32_9 : i32
    scf.if %11 {
      %c0_10 = arith.constant 0 : index
      %c0_11 = arith.constant 0 : index
      %12 = vector.load %arg9[%c0_10, %c0_11] : memref<128x128xf32, #tpu.memory_space<vmem>>, vector<128x128xf32>
      %c0_12 = arith.constant 0 : index
      %c0_13 = arith.constant 0 : index
      %13 = vector.load %arg5[%c0_12, %c0_13] : memref<1x128xf32, #tpu.memory_space<vmem>>, vector<1x128xf32>
      %14 = vector.broadcast %13 : vector<1x128xf32> to vector<128x128xf32>
      %15 = arith.mulf %12, %14 : vector<128x128xf32>
      %c0_14 = arith.constant 0 : index
      %c0_15 = arith.constant 0 : index
      %16 = vector.load %arg6[%c0_14, %c0_15] : memref<1x128xf32, #tpu.memory_space<vmem>>, vector<1x128xf32>
      %17 = vector.broadcast %16 : vector<1x128xf32> to vector<128x128xf32>
      %18 = arith.addf %15, %17 : vector<128x128xf32>
      %c0_16 = arith.constant 0 : index
      %c0_17 = arith.constant 0 : index
      %19 = vector.load %arg7[%c0_16, %c0_17] : memref<128x128xf32, #tpu.memory_space<vmem>>, vector<128x128xf32>
      %20 = arith.addf %18, %19 : vector<128x128xf32>
      %cst_18 = arith.constant 0.000000e+00 : f32
      %21 = vector.broadcast %cst_18 : f32 to vector<128x128xf32>
      %22 = arith.maximumf %20, %21 : vector<128x128xf32>
      %c0_19 = arith.constant 0 : index
      %c0_20 = arith.constant 0 : index
      %23 = vector.load %arg8[%c0_19, %c0_20] : memref<128x128xf32, #tpu.memory_space<vmem>>, vector<128x128xf32>
      tpu.vector_store %arg8[%c0_19, %c0_20], %22 {strides = array<i32>} : memref<128x128xf32, #tpu.memory_space<vmem>>, vector<128x128xf32>,
    } else {
    }
    return
  }
  func.func @transform_0(%arg0: i32, %arg1: i32, %arg2: i32) -> (i32, i32) {
    %c0_i32 = arith.constant 0 : i32
    return %arg0, %arg2 : i32, i32
  }
  func.func @transform_1(%arg0: i32, %arg1: i32, %arg2: i32) -> (i32, i32) {
    %c0_i32 = arith.constant 0 : i32
    return %arg2, %arg1 : i32, i32
  }
  func.func @transform_2(%arg0: i32, %arg1: i32, %arg2: i32) -> (i32, i32) {
    %c0_i32 = arith.constant 0 : i32
    %c0_i32_0 = arith.constant 0 : i32
    return %c0_i32, %arg1 : i32, i32
  }
  func.func @transform_3(%arg0: i32, %arg1: i32, %arg2: i32) -> (i32, i32) {
    %c0_i32 = arith.constant 0 : i32
    %c0_i32_0 = arith.constant 0 : i32
    return %c0_i32, %arg1 : i32, i32
  }
  func.func @transform_4(%arg0: i32, %arg1: i32, %arg2: i32) -> (i32, i32) {
    %c0_i32 = arith.constant 0 : i32
    return %arg0, %arg1 : i32, i32
  }
  func.func @transform_5(%arg0: i32, %arg1: i32, %arg2: i32) -> (i32, i32) {
    %c0_i32 = arith.constant 0 : i32
    return %arg0, %arg1 : i32, i32
  }
}

module attributes {stable_mosaic.version = 11 : i64} {
  func.func @_mm_kernel(%arg0: i32, %arg1: i32, %arg2: i32, %arg3: memref<32x640xbf16, #tpu.memory_space<vmem>>, %arg4: memref<640x128xbf16, #tpu.memory_space<vmem>>, %arg5: memref<1x128xf32, #tpu.memory_space<vmem>>, %arg6: memref<1x128xf32, #tpu.memory_space<vmem>>, %arg7: memref<32x128xf32, #tpu.memory_space<vmem>>, %arg8: memref<32x128xf32, #tpu.memory_space<vmem>>) attributes {dimension_semantics = [#tpu.dimension_semantics<parallel>, #tpu.dimension_semantics<parallel>, #tpu.dimension_semantics<arbitrary>], iteration_bounds = array<i64: 1, 1, 1>, scalar_prefetch = 0 : i64, scratch_operands = 1 : i64, tpu.core_type = #tpu.core_type<tc>, window_params = [{transform_indices = @transform_0, window_bounds = array<i64: 32, 640>}, {transform_indices = @transform_1, window_bounds = array<i64: 640, 128>}, {transform_indices = @transform_2, window_bounds = array<i64: 1, 128>}, {transform_indices = @transform_3, window_bounds = array<i64: 1, 128>}, {transform_indices = @transform_4, window_bounds = array<i64: 32, 128>}]} {
    %c0_i32 = arith.constant 0 : i32
    %0 = arith.cmpi eq, %arg2, %c0_i32 : i32
    %1 = arith.extui %0 : i1 to i32
    %c0_i32_0 = arith.constant 0 : i32
    %2 = arith.cmpi ne, %1, %c0_i32_0 : i32
    scf.if %2 {
      %cst_10 = arith.constant 0.000000e+00 : f32
      %12 = vector.broadcast %cst_10 : f32 to vector<32x128xf32>
      %c0_11 = arith.constant 0 : index
      %c0_12 = arith.constant 0 : index
      %13 = vector.load %arg8[%c0_11, %c0_12] : memref<32x128xf32, #tpu.memory_space<vmem>>, vector<32x128xf32>
      tpu.vector_store %arg8[%c0_11, %c0_12], %12 {strides = array<i32>} : memref<32x128xf32, #tpu.memory_space<vmem>>, vector<32x128xf32>,
    } else {
    }
    %c0 = arith.constant 0 : index
    %c0_1 = arith.constant 0 : index
    %3 = vector.load %arg8[%c0, %c0_1] : memref<32x128xf32, #tpu.memory_space<vmem>>, vector<32x128xf32>
    %c0_2 = arith.constant 0 : index
    %c0_3 = arith.constant 0 : index
    %4 = vector.load %arg3[%c0_2, %c0_3] : memref<32x640xbf16, #tpu.memory_space<vmem>>, vector<32x640xbf16>
    %c0_4 = arith.constant 0 : index
    %c0_5 = arith.constant 0 : index
    %5 = vector.load %arg4[%c0_4, %c0_5] : memref<640x128xbf16, #tpu.memory_space<vmem>>, vector<640x128xbf16>
    %cst = arith.constant dense<0.000000e+00> : vector<32x128xf32>
    %6 = tpu.matmul %4, %5, %cst {dimension_numbers = #tpu.dot_dimension_numbers<[1], [0], [0], [1], [0, 0, 1, 1], [], []>} : vector<32x640xbf16>, vector<640x128xbf16>, vector<32x128xf32> -> vector<32x128xf32>
    %7 = arith.addf %3, %6 : vector<32x128xf32>
    %c0_6 = arith.constant 0 : index
    %c0_7 = arith.constant 0 : index
    %8 = vector.load %arg8[%c0_6, %c0_7] : memref<32x128xf32, #tpu.memory_space<vmem>>, vector<32x128xf32>
    tpu.vector_store %arg8[%c0_6, %c0_7], %7 {strides = array<i32>} : memref<32x128xf32, #tpu.memory_space<vmem>>, vector<32x128xf32>,
    %c0_i32_8 = arith.constant 0 : i32
    %9 = arith.cmpi eq, %arg2, %c0_i32_8 : i32
    %10 = arith.extui %9 : i1 to i32
    %c0_i32_9 = arith.constant 0 : i32
    %11 = arith.cmpi ne, %10, %c0_i32_9 : i32
    scf.if %11 {
      %c0_10 = arith.constant 0 : index
      %c0_11 = arith.constant 0 : index
      %12 = vector.load %arg8[%c0_10, %c0_11] : memref<32x128xf32, #tpu.memory_space<vmem>>, vector<32x128xf32>
      %c0_12 = arith.constant 0 : index
      %c0_13 = arith.constant 0 : index
      %13 = vector.load %arg5[%c0_12, %c0_13] : memref<1x128xf32, #tpu.memory_space<vmem>>, vector<1x128xf32>
      %14 = vector.broadcast %13 : vector<1x128xf32> to vector<32x128xf32>
      %15 = arith.mulf %12, %14 : vector<32x128xf32>
      %c0_14 = arith.constant 0 : index
      %c0_15 = arith.constant 0 : index
      %16 = vector.load %arg6[%c0_14, %c0_15] : memref<1x128xf32, #tpu.memory_space<vmem>>, vector<1x128xf32>
      %17 = vector.broadcast %16 : vector<1x128xf32> to vector<32x128xf32>
      %18 = arith.addf %15, %17 : vector<32x128xf32>
      %cst_16 = arith.constant 0.000000e+00 : f32
      %19 = vector.broadcast %cst_16 : f32 to vector<32x128xf32>
      %20 = arith.maximumf %18, %19 : vector<32x128xf32>
      %c0_17 = arith.constant 0 : index
      %c0_18 = arith.constant 0 : index
      %21 = vector.load %arg7[%c0_17, %c0_18] : memref<32x128xf32, #tpu.memory_space<vmem>>, vector<32x128xf32>
      tpu.vector_store %arg7[%c0_17, %c0_18], %20 {strides = array<i32>} : memref<32x128xf32, #tpu.memory_space<vmem>>, vector<32x128xf32>,
    } else {
    }
    return
  }
  func.func @transform_0(%arg0: i32, %arg1: i32, %arg2: i32) -> (i32, i32) {
    %c0_i32 = arith.constant 0 : i32
    return %arg0, %arg2 : i32, i32
  }
  func.func @transform_1(%arg0: i32, %arg1: i32, %arg2: i32) -> (i32, i32) {
    %c0_i32 = arith.constant 0 : i32
    return %arg2, %arg1 : i32, i32
  }
  func.func @transform_2(%arg0: i32, %arg1: i32, %arg2: i32) -> (i32, i32) {
    %c0_i32 = arith.constant 0 : i32
    %c0_i32_0 = arith.constant 0 : i32
    return %c0_i32, %arg1 : i32, i32
  }
  func.func @transform_3(%arg0: i32, %arg1: i32, %arg2: i32) -> (i32, i32) {
    %c0_i32 = arith.constant 0 : i32
    %c0_i32_0 = arith.constant 0 : i32
    return %c0_i32, %arg1 : i32, i32
  }
  func.func @transform_4(%arg0: i32, %arg1: i32, %arg2: i32) -> (i32, i32) {
    %c0_i32 = arith.constant 0 : i32
    return %arg0, %arg1 : i32, i32
  }
}

module attributes {stable_mosaic.version = 11 : i64} {
  func.func @_mm_kernel(%arg0: i32, %arg1: i32, %arg2: i32, %arg3: memref<32x128xbf16, #tpu.memory_space<vmem>>, %arg4: memref<128x128xbf16, #tpu.memory_space<vmem>>, %arg5: memref<1x128xf32, #tpu.memory_space<vmem>>, %arg6: memref<1x128xf32, #tpu.memory_space<vmem>>, %arg7: memref<32x128xf32, #tpu.memory_space<vmem>>, %arg8: memref<32x128xf32, #tpu.memory_space<vmem>>) attributes {dimension_semantics = [#tpu.dimension_semantics<parallel>, #tpu.dimension_semantics<parallel>, #tpu.dimension_semantics<arbitrary>], iteration_bounds = array<i64: 1, 1, 1>, scalar_prefetch = 0 : i64, scratch_operands = 1 : i64, tpu.core_type = #tpu.core_type<tc>, window_params = [{transform_indices = @transform_0, window_bounds = array<i64: 32, 128>}, {transform_indices = @transform_1, window_bounds = array<i64: 128, 128>}, {transform_indices = @transform_2, window_bounds = array<i64: 1, 128>}, {transform_indices = @transform_3, window_bounds = array<i64: 1, 128>}, {transform_indices = @transform_4, window_bounds = array<i64: 32, 128>}]} {
    %c0_i32 = arith.constant 0 : i32
    %0 = arith.cmpi eq, %arg2, %c0_i32 : i32
    %1 = arith.extui %0 : i1 to i32
    %c0_i32_0 = arith.constant 0 : i32
    %2 = arith.cmpi ne, %1, %c0_i32_0 : i32
    scf.if %2 {
      %cst_10 = arith.constant 0.000000e+00 : f32
      %12 = vector.broadcast %cst_10 : f32 to vector<32x128xf32>
      %c0_11 = arith.constant 0 : index
      %c0_12 = arith.constant 0 : index
      %13 = vector.load %arg8[%c0_11, %c0_12] : memref<32x128xf32, #tpu.memory_space<vmem>>, vector<32x128xf32>
      tpu.vector_store %arg8[%c0_11, %c0_12], %12 {strides = array<i32>} : memref<32x128xf32, #tpu.memory_space<vmem>>, vector<32x128xf32>,
    } else {
    }
    %c0 = arith.constant 0 : index
    %c0_1 = arith.constant 0 : index
    %3 = vector.load %arg8[%c0, %c0_1] : memref<32x128xf32, #tpu.memory_space<vmem>>, vector<32x128xf32>
    %c0_2 = arith.constant 0 : index
    %c0_3 = arith.constant 0 : index
    %4 = vector.load %arg3[%c0_2, %c0_3] : memref<32x128xbf16, #tpu.memory_space<vmem>>, vector<32x128xbf16>
    %c0_4 = arith.constant 0 : index
    %c0_5 = arith.constant 0 : index
    %5 = vector.load %arg4[%c0_4, %c0_5] : memref<128x128xbf16, #tpu.memory_space<vmem>>, vector<128x128xbf16>
    %cst = arith.constant dense<0.000000e+00> : vector<32x128xf32>
    %6 = tpu.matmul %4, %5, %cst {dimension_numbers = #tpu.dot_dimension_numbers<[1], [0], [0], [1], [0, 0, 1, 1], [], []>} : vector<32x128xbf16>, vector<128x128xbf16>, vector<32x128xf32> -> vector<32x128xf32>
    %7 = arith.addf %3, %6 : vector<32x128xf32>
    %c0_6 = arith.constant 0 : index
    %c0_7 = arith.constant 0 : index
    %8 = vector.load %arg8[%c0_6, %c0_7] : memref<32x128xf32, #tpu.memory_space<vmem>>, vector<32x128xf32>
    tpu.vector_store %arg8[%c0_6, %c0_7], %7 {strides = array<i32>} : memref<32x128xf32, #tpu.memory_space<vmem>>, vector<32x128xf32>,
    %c0_i32_8 = arith.constant 0 : i32
    %9 = arith.cmpi eq, %arg2, %c0_i32_8 : i32
    %10 = arith.extui %9 : i1 to i32
    %c0_i32_9 = arith.constant 0 : i32
    %11 = arith.cmpi ne, %10, %c0_i32_9 : i32
    scf.if %11 {
      %c0_10 = arith.constant 0 : index
      %c0_11 = arith.constant 0 : index
      %12 = vector.load %arg8[%c0_10, %c0_11] : memref<32x128xf32, #tpu.memory_space<vmem>>, vector<32x128xf32>
      %c0_12 = arith.constant 0 : index
      %c0_13 = arith.constant 0 : index
      %13 = vector.load %arg5[%c0_12, %c0_13] : memref<1x128xf32, #tpu.memory_space<vmem>>, vector<1x128xf32>
      %14 = vector.broadcast %13 : vector<1x128xf32> to vector<32x128xf32>
      %15 = arith.mulf %12, %14 : vector<32x128xf32>
      %c0_14 = arith.constant 0 : index
      %c0_15 = arith.constant 0 : index
      %16 = vector.load %arg6[%c0_14, %c0_15] : memref<1x128xf32, #tpu.memory_space<vmem>>, vector<1x128xf32>
      %17 = vector.broadcast %16 : vector<1x128xf32> to vector<32x128xf32>
      %18 = arith.addf %15, %17 : vector<32x128xf32>
      %c0_16 = arith.constant 0 : index
      %c0_17 = arith.constant 0 : index
      %19 = vector.load %arg7[%c0_16, %c0_17] : memref<32x128xf32, #tpu.memory_space<vmem>>, vector<32x128xf32>
      tpu.vector_store %arg7[%c0_16, %c0_17], %18 {strides = array<i32>} : memref<32x128xf32, #tpu.memory_space<vmem>>, vector<32x128xf32>,
    } else {
    }
    return
  }
  func.func @transform_0(%arg0: i32, %arg1: i32, %arg2: i32) -> (i32, i32) {
    %c0_i32 = arith.constant 0 : i32
    return %arg0, %arg2 : i32, i32
  }
  func.func @transform_1(%arg0: i32, %arg1: i32, %arg2: i32) -> (i32, i32) {
    %c0_i32 = arith.constant 0 : i32
    return %arg2, %arg1 : i32, i32
  }
  func.func @transform_2(%arg0: i32, %arg1: i32, %arg2: i32) -> (i32, i32) {
    %c0_i32 = arith.constant 0 : i32
    %c0_i32_0 = arith.constant 0 : i32
    return %c0_i32, %arg1 : i32, i32
  }
  func.func @transform_3(%arg0: i32, %arg1: i32, %arg2: i32) -> (i32, i32) {
    %c0_i32 = arith.constant 0 : i32
    %c0_i32_0 = arith.constant 0 : i32
    return %c0_i32, %arg1 : i32, i32
  }
  func.func @transform_4(%arg0: i32, %arg1: i32, %arg2: i32) -> (i32, i32) {
    %c0_i32 = arith.constant 0 : i32
    return %arg0, %arg1 : i32, i32
  }
}

module attributes {stable_mosaic.version = 11 : i64} {
  func.func @_mm_res_kernel(%arg0: i32, %arg1: i32, %arg2: i32, %arg3: memref<32x1152xbf16, #tpu.memory_space<vmem>>, %arg4: memref<1152x128xbf16, #tpu.memory_space<vmem>>, %arg5: memref<1x128xf32, #tpu.memory_space<vmem>>, %arg6: memref<1x128xf32, #tpu.memory_space<vmem>>, %arg7: memref<32x128xf32, #tpu.memory_space<vmem>>, %arg8: memref<32x128xf32, #tpu.memory_space<vmem>>, %arg9: memref<32x128xf32, #tpu.memory_space<vmem>>) attributes {dimension_semantics = [#tpu.dimension_semantics<parallel>, #tpu.dimension_semantics<parallel>, #tpu.dimension_semantics<arbitrary>], iteration_bounds = array<i64: 1, 1, 1>, scalar_prefetch = 0 : i64, scratch_operands = 1 : i64, tpu.core_type = #tpu.core_type<tc>, window_params = [{transform_indices = @transform_0, window_bounds = array<i64: 32, 1152>}, {transform_indices = @transform_1, window_bounds = array<i64: 1152, 128>}, {transform_indices = @transform_2, window_bounds = array<i64: 1, 128>}, {transform_indices = @transform_3, window_bounds = array<i64: 1, 128>}, {transform_indices = @transform_4, window_bounds = array<i64: 32, 128>}, {transform_indices = @transform_5, window_bounds = array<i64: 32, 128>}]} {
    %c0_i32 = arith.constant 0 : i32
    %0 = arith.cmpi eq, %arg2, %c0_i32 : i32
    %1 = arith.extui %0 : i1 to i32
    %c0_i32_0 = arith.constant 0 : i32
    %2 = arith.cmpi ne, %1, %c0_i32_0 : i32
    scf.if %2 {
      %cst_10 = arith.constant 0.000000e+00 : f32
      %12 = vector.broadcast %cst_10 : f32 to vector<32x128xf32>
      %c0_11 = arith.constant 0 : index
      %c0_12 = arith.constant 0 : index
      %13 = vector.load %arg9[%c0_11, %c0_12] : memref<32x128xf32, #tpu.memory_space<vmem>>, vector<32x128xf32>
      tpu.vector_store %arg9[%c0_11, %c0_12], %12 {strides = array<i32>} : memref<32x128xf32, #tpu.memory_space<vmem>>, vector<32x128xf32>,
    } else {
    }
    %c0 = arith.constant 0 : index
    %c0_1 = arith.constant 0 : index
    %3 = vector.load %arg9[%c0, %c0_1] : memref<32x128xf32, #tpu.memory_space<vmem>>, vector<32x128xf32>
    %c0_2 = arith.constant 0 : index
    %c0_3 = arith.constant 0 : index
    %4 = vector.load %arg3[%c0_2, %c0_3] : memref<32x1152xbf16, #tpu.memory_space<vmem>>, vector<32x1152xbf16>
    %c0_4 = arith.constant 0 : index
    %c0_5 = arith.constant 0 : index
    %5 = vector.load %arg4[%c0_4, %c0_5] : memref<1152x128xbf16, #tpu.memory_space<vmem>>, vector<1152x128xbf16>
    %cst = arith.constant dense<0.000000e+00> : vector<32x128xf32>
    %6 = tpu.matmul %4, %5, %cst {dimension_numbers = #tpu.dot_dimension_numbers<[1], [0], [0], [1], [0, 0, 1, 1], [], []>} : vector<32x1152xbf16>, vector<1152x128xbf16>, vector<32x128xf32> -> vector<32x128xf32>
    %7 = arith.addf %3, %6 : vector<32x128xf32>
    %c0_6 = arith.constant 0 : index
    %c0_7 = arith.constant 0 : index
    %8 = vector.load %arg9[%c0_6, %c0_7] : memref<32x128xf32, #tpu.memory_space<vmem>>, vector<32x128xf32>
    tpu.vector_store %arg9[%c0_6, %c0_7], %7 {strides = array<i32>} : memref<32x128xf32, #tpu.memory_space<vmem>>, vector<32x128xf32>,
    %c0_i32_8 = arith.constant 0 : i32
    %9 = arith.cmpi eq, %arg2, %c0_i32_8 : i32
    %10 = arith.extui %9 : i1 to i32
    %c0_i32_9 = arith.constant 0 : i32
    %11 = arith.cmpi ne, %10, %c0_i32_9 : i32
    scf.if %11 {
      %c0_10 = arith.constant 0 : index
      %c0_11 = arith.constant 0 : index
      %12 = vector.load %arg9[%c0_10, %c0_11] : memref<32x128xf32, #tpu.memory_space<vmem>>, vector<32x128xf32>
      %c0_12 = arith.constant 0 : index
      %c0_13 = arith.constant 0 : index
      %13 = vector.load %arg5[%c0_12, %c0_13] : memref<1x128xf32, #tpu.memory_space<vmem>>, vector<1x128xf32>
      %14 = vector.broadcast %13 : vector<1x128xf32> to vector<32x128xf32>
      %15 = arith.mulf %12, %14 : vector<32x128xf32>
      %c0_14 = arith.constant 0 : index
      %c0_15 = arith.constant 0 : index
      %16 = vector.load %arg6[%c0_14, %c0_15] : memref<1x128xf32, #tpu.memory_space<vmem>>, vector<1x128xf32>
      %17 = vector.broadcast %16 : vector<1x128xf32> to vector<32x128xf32>
      %18 = arith.addf %15, %17 : vector<32x128xf32>
      %c0_16 = arith.constant 0 : index
      %c0_17 = arith.constant 0 : index
      %19 = vector.load %arg7[%c0_16, %c0_17] : memref<32x128xf32, #tpu.memory_space<vmem>>, vector<32x128xf32>
      %20 = arith.addf %18, %19 : vector<32x128xf32>
      %cst_18 = arith.constant 0.000000e+00 : f32
      %21 = vector.broadcast %cst_18 : f32 to vector<32x128xf32>
      %22 = arith.maximumf %20, %21 : vector<32x128xf32>
      %c0_19 = arith.constant 0 : index
      %c0_20 = arith.constant 0 : index
      %23 = vector.load %arg8[%c0_19, %c0_20] : memref<32x128xf32, #tpu.memory_space<vmem>>, vector<32x128xf32>
      tpu.vector_store %arg8[%c0_19, %c0_20], %22 {strides = array<i32>} : memref<32x128xf32, #tpu.memory_space<vmem>>, vector<32x128xf32>,
    } else {
    }
    return
  }
  func.func @transform_0(%arg0: i32, %arg1: i32, %arg2: i32) -> (i32, i32) {
    %c0_i32 = arith.constant 0 : i32
    return %arg0, %arg2 : i32, i32
  }
  func.func @transform_1(%arg0: i32, %arg1: i32, %arg2: i32) -> (i32, i32) {
    %c0_i32 = arith.constant 0 : i32
    return %arg2, %arg1 : i32, i32
  }
  func.func @transform_2(%arg0: i32, %arg1: i32, %arg2: i32) -> (i32, i32) {
    %c0_i32 = arith.constant 0 : i32
    %c0_i32_0 = arith.constant 0 : i32
    return %c0_i32, %arg1 : i32, i32
  }
  func.func @transform_3(%arg0: i32, %arg1: i32, %arg2: i32) -> (i32, i32) {
    %c0_i32 = arith.constant 0 : i32
    %c0_i32_0 = arith.constant 0 : i32
    return %c0_i32, %arg1 : i32, i32
  }
  func.func @transform_4(%arg0: i32, %arg1: i32, %arg2: i32) -> (i32, i32) {
    %c0_i32 = arith.constant 0 : i32
    return %arg0, %arg1 : i32, i32
  }
  func.func @transform_5(%arg0: i32, %arg1: i32, %arg2: i32) -> (i32, i32) {
    %c0_i32 = arith.constant 0 : i32
    return %arg0, %arg1 : i32, i32
  }
}

module attributes {stable_mosaic.version = 11 : i64} {
  func.func @_mm_kernel(%arg0: i32, %arg1: i32, %arg2: i32, %arg3: memref<8x1152xbf16, #tpu.memory_space<vmem>>, %arg4: memref<1152x256xbf16, #tpu.memory_space<vmem>>, %arg5: memref<1x256xf32, #tpu.memory_space<vmem>>, %arg6: memref<1x256xf32, #tpu.memory_space<vmem>>, %arg7: memref<8x256xf32, #tpu.memory_space<vmem>>, %arg8: memref<8x256xf32, #tpu.memory_space<vmem>>) attributes {dimension_semantics = [#tpu.dimension_semantics<parallel>, #tpu.dimension_semantics<parallel>, #tpu.dimension_semantics<arbitrary>], iteration_bounds = array<i64: 1, 1, 1>, scalar_prefetch = 0 : i64, scratch_operands = 1 : i64, tpu.core_type = #tpu.core_type<tc>, window_params = [{transform_indices = @transform_0, window_bounds = array<i64: 8, 1152>}, {transform_indices = @transform_1, window_bounds = array<i64: 1152, 256>}, {transform_indices = @transform_2, window_bounds = array<i64: 1, 256>}, {transform_indices = @transform_3, window_bounds = array<i64: 1, 256>}, {transform_indices = @transform_4, window_bounds = array<i64: 8, 256>}]} {
    %c0_i32 = arith.constant 0 : i32
    %0 = arith.cmpi eq, %arg2, %c0_i32 : i32
    %1 = arith.extui %0 : i1 to i32
    %c0_i32_0 = arith.constant 0 : i32
    %2 = arith.cmpi ne, %1, %c0_i32_0 : i32
    scf.if %2 {
      %cst_10 = arith.constant 0.000000e+00 : f32
      %12 = vector.broadcast %cst_10 : f32 to vector<8x256xf32>
      %c0_11 = arith.constant 0 : index
      %c0_12 = arith.constant 0 : index
      %13 = vector.load %arg8[%c0_11, %c0_12] : memref<8x256xf32, #tpu.memory_space<vmem>>, vector<8x256xf32>
      tpu.vector_store %arg8[%c0_11, %c0_12], %12 {strides = array<i32>} : memref<8x256xf32, #tpu.memory_space<vmem>>, vector<8x256xf32>,
    } else {
    }
    %c0 = arith.constant 0 : index
    %c0_1 = arith.constant 0 : index
    %3 = vector.load %arg8[%c0, %c0_1] : memref<8x256xf32, #tpu.memory_space<vmem>>, vector<8x256xf32>
    %c0_2 = arith.constant 0 : index
    %c0_3 = arith.constant 0 : index
    %4 = vector.load %arg3[%c0_2, %c0_3] : memref<8x1152xbf16, #tpu.memory_space<vmem>>, vector<8x1152xbf16>
    %c0_4 = arith.constant 0 : index
    %c0_5 = arith.constant 0 : index
    %5 = vector.load %arg4[%c0_4, %c0_5] : memref<1152x256xbf16, #tpu.memory_space<vmem>>, vector<1152x256xbf16>
    %cst = arith.constant dense<0.000000e+00> : vector<8x256xf32>
    %6 = tpu.matmul %4, %5, %cst {dimension_numbers = #tpu.dot_dimension_numbers<[1], [0], [0], [1], [0, 0, 1, 1], [], []>} : vector<8x1152xbf16>, vector<1152x256xbf16>, vector<8x256xf32> -> vector<8x256xf32>
    %7 = arith.addf %3, %6 : vector<8x256xf32>
    %c0_6 = arith.constant 0 : index
    %c0_7 = arith.constant 0 : index
    %8 = vector.load %arg8[%c0_6, %c0_7] : memref<8x256xf32, #tpu.memory_space<vmem>>, vector<8x256xf32>
    tpu.vector_store %arg8[%c0_6, %c0_7], %7 {strides = array<i32>} : memref<8x256xf32, #tpu.memory_space<vmem>>, vector<8x256xf32>,
    %c0_i32_8 = arith.constant 0 : i32
    %9 = arith.cmpi eq, %arg2, %c0_i32_8 : i32
    %10 = arith.extui %9 : i1 to i32
    %c0_i32_9 = arith.constant 0 : i32
    %11 = arith.cmpi ne, %10, %c0_i32_9 : i32
    scf.if %11 {
      %c0_10 = arith.constant 0 : index
      %c0_11 = arith.constant 0 : index
      %12 = vector.load %arg8[%c0_10, %c0_11] : memref<8x256xf32, #tpu.memory_space<vmem>>, vector<8x256xf32>
      %c0_12 = arith.constant 0 : index
      %c0_13 = arith.constant 0 : index
      %13 = vector.load %arg5[%c0_12, %c0_13] : memref<1x256xf32, #tpu.memory_space<vmem>>, vector<1x256xf32>
      %14 = vector.broadcast %13 : vector<1x256xf32> to vector<8x256xf32>
      %15 = arith.mulf %12, %14 : vector<8x256xf32>
      %c0_14 = arith.constant 0 : index
      %c0_15 = arith.constant 0 : index
      %16 = vector.load %arg6[%c0_14, %c0_15] : memref<1x256xf32, #tpu.memory_space<vmem>>, vector<1x256xf32>
      %17 = vector.broadcast %16 : vector<1x256xf32> to vector<8x256xf32>
      %18 = arith.addf %15, %17 : vector<8x256xf32>
      %cst_16 = arith.constant 0.000000e+00 : f32
      %19 = vector.broadcast %cst_16 : f32 to vector<8x256xf32>
      %20 = arith.maximumf %18, %19 : vector<8x256xf32>
      %c0_17 = arith.constant 0 : index
      %c0_18 = arith.constant 0 : index
      %21 = vector.load %arg7[%c0_17, %c0_18] : memref<8x256xf32, #tpu.memory_space<vmem>>, vector<8x256xf32>
      tpu.vector_store %arg7[%c0_17, %c0_18], %20 {strides = array<i32>} : memref<8x256xf32, #tpu.memory_space<vmem>>, vector<8x256xf32>,
    } else {
    }
    return
  }
  func.func @transform_0(%arg0: i32, %arg1: i32, %arg2: i32) -> (i32, i32) {
    %c0_i32 = arith.constant 0 : i32
    return %arg0, %arg2 : i32, i32
  }
  func.func @transform_1(%arg0: i32, %arg1: i32, %arg2: i32) -> (i32, i32) {
    %c0_i32 = arith.constant 0 : i32
    return %arg2, %arg1 : i32, i32
  }
  func.func @transform_2(%arg0: i32, %arg1: i32, %arg2: i32) -> (i32, i32) {
    %c0_i32 = arith.constant 0 : i32
    %c0_i32_0 = arith.constant 0 : i32
    return %c0_i32, %arg1 : i32, i32
  }
  func.func @transform_3(%arg0: i32, %arg1: i32, %arg2: i32) -> (i32, i32) {
    %c0_i32 = arith.constant 0 : i32
    %c0_i32_0 = arith.constant 0 : i32
    return %c0_i32, %arg1 : i32, i32
  }
  func.func @transform_4(%arg0: i32, %arg1: i32, %arg2: i32) -> (i32, i32) {
    %c0_i32 = arith.constant 0 : i32
    return %arg0, %arg1 : i32, i32
  }
}

module attributes {stable_mosaic.version = 11 : i64} {
  func.func @_mm_kernel(%arg0: i32, %arg1: i32, %arg2: i32, %arg3: memref<8x128xbf16, #tpu.memory_space<vmem>>, %arg4: memref<128x256xbf16, #tpu.memory_space<vmem>>, %arg5: memref<1x256xf32, #tpu.memory_space<vmem>>, %arg6: memref<1x256xf32, #tpu.memory_space<vmem>>, %arg7: memref<8x256xf32, #tpu.memory_space<vmem>>, %arg8: memref<8x256xf32, #tpu.memory_space<vmem>>) attributes {dimension_semantics = [#tpu.dimension_semantics<parallel>, #tpu.dimension_semantics<parallel>, #tpu.dimension_semantics<arbitrary>], iteration_bounds = array<i64: 1, 1, 1>, scalar_prefetch = 0 : i64, scratch_operands = 1 : i64, tpu.core_type = #tpu.core_type<tc>, window_params = [{transform_indices = @transform_0, window_bounds = array<i64: 8, 128>}, {transform_indices = @transform_1, window_bounds = array<i64: 128, 256>}, {transform_indices = @transform_2, window_bounds = array<i64: 1, 256>}, {transform_indices = @transform_3, window_bounds = array<i64: 1, 256>}, {transform_indices = @transform_4, window_bounds = array<i64: 8, 256>}]} {
    %c0_i32 = arith.constant 0 : i32
    %0 = arith.cmpi eq, %arg2, %c0_i32 : i32
    %1 = arith.extui %0 : i1 to i32
    %c0_i32_0 = arith.constant 0 : i32
    %2 = arith.cmpi ne, %1, %c0_i32_0 : i32
    scf.if %2 {
      %cst_10 = arith.constant 0.000000e+00 : f32
      %12 = vector.broadcast %cst_10 : f32 to vector<8x256xf32>
      %c0_11 = arith.constant 0 : index
      %c0_12 = arith.constant 0 : index
      %13 = vector.load %arg8[%c0_11, %c0_12] : memref<8x256xf32, #tpu.memory_space<vmem>>, vector<8x256xf32>
      tpu.vector_store %arg8[%c0_11, %c0_12], %12 {strides = array<i32>} : memref<8x256xf32, #tpu.memory_space<vmem>>, vector<8x256xf32>,
    } else {
    }
    %c0 = arith.constant 0 : index
    %c0_1 = arith.constant 0 : index
    %3 = vector.load %arg8[%c0, %c0_1] : memref<8x256xf32, #tpu.memory_space<vmem>>, vector<8x256xf32>
    %c0_2 = arith.constant 0 : index
    %c0_3 = arith.constant 0 : index
    %4 = vector.load %arg3[%c0_2, %c0_3] : memref<8x128xbf16, #tpu.memory_space<vmem>>, vector<8x128xbf16>
    %c0_4 = arith.constant 0 : index
    %c0_5 = arith.constant 0 : index
    %5 = vector.load %arg4[%c0_4, %c0_5] : memref<128x256xbf16, #tpu.memory_space<vmem>>, vector<128x256xbf16>
    %cst = arith.constant dense<0.000000e+00> : vector<8x256xf32>
    %6 = tpu.matmul %4, %5, %cst {dimension_numbers = #tpu.dot_dimension_numbers<[1], [0], [0], [1], [0, 0, 1, 1], [], []>} : vector<8x128xbf16>, vector<128x256xbf16>, vector<8x256xf32> -> vector<8x256xf32>
    %7 = arith.addf %3, %6 : vector<8x256xf32>
    %c0_6 = arith.constant 0 : index
    %c0_7 = arith.constant 0 : index
    %8 = vector.load %arg8[%c0_6, %c0_7] : memref<8x256xf32, #tpu.memory_space<vmem>>, vector<8x256xf32>
    tpu.vector_store %arg8[%c0_6, %c0_7], %7 {strides = array<i32>} : memref<8x256xf32, #tpu.memory_space<vmem>>, vector<8x256xf32>,
    %c0_i32_8 = arith.constant 0 : i32
    %9 = arith.cmpi eq, %arg2, %c0_i32_8 : i32
    %10 = arith.extui %9 : i1 to i32
    %c0_i32_9 = arith.constant 0 : i32
    %11 = arith.cmpi ne, %10, %c0_i32_9 : i32
    scf.if %11 {
      %c0_10 = arith.constant 0 : index
      %c0_11 = arith.constant 0 : index
      %12 = vector.load %arg8[%c0_10, %c0_11] : memref<8x256xf32, #tpu.memory_space<vmem>>, vector<8x256xf32>
      %c0_12 = arith.constant 0 : index
      %c0_13 = arith.constant 0 : index
      %13 = vector.load %arg5[%c0_12, %c0_13] : memref<1x256xf32, #tpu.memory_space<vmem>>, vector<1x256xf32>
      %14 = vector.broadcast %13 : vector<1x256xf32> to vector<8x256xf32>
      %15 = arith.mulf %12, %14 : vector<8x256xf32>
      %c0_14 = arith.constant 0 : index
      %c0_15 = arith.constant 0 : index
      %16 = vector.load %arg6[%c0_14, %c0_15] : memref<1x256xf32, #tpu.memory_space<vmem>>, vector<1x256xf32>
      %17 = vector.broadcast %16 : vector<1x256xf32> to vector<8x256xf32>
      %18 = arith.addf %15, %17 : vector<8x256xf32>
      %c0_16 = arith.constant 0 : index
      %c0_17 = arith.constant 0 : index
      %19 = vector.load %arg7[%c0_16, %c0_17] : memref<8x256xf32, #tpu.memory_space<vmem>>, vector<8x256xf32>
      tpu.vector_store %arg7[%c0_16, %c0_17], %18 {strides = array<i32>} : memref<8x256xf32, #tpu.memory_space<vmem>>, vector<8x256xf32>,
    } else {
    }
    return
  }
  func.func @transform_0(%arg0: i32, %arg1: i32, %arg2: i32) -> (i32, i32) {
    %c0_i32 = arith.constant 0 : i32
    return %arg0, %arg2 : i32, i32
  }
  func.func @transform_1(%arg0: i32, %arg1: i32, %arg2: i32) -> (i32, i32) {
    %c0_i32 = arith.constant 0 : i32
    return %arg2, %arg1 : i32, i32
  }
  func.func @transform_2(%arg0: i32, %arg1: i32, %arg2: i32) -> (i32, i32) {
    %c0_i32 = arith.constant 0 : i32
    %c0_i32_0 = arith.constant 0 : i32
    return %c0_i32, %arg1 : i32, i32
  }
  func.func @transform_3(%arg0: i32, %arg1: i32, %arg2: i32) -> (i32, i32) {
    %c0_i32 = arith.constant 0 : i32
    %c0_i32_0 = arith.constant 0 : i32
    return %c0_i32, %arg1 : i32, i32
  }
  func.func @transform_4(%arg0: i32, %arg1: i32, %arg2: i32) -> (i32, i32) {
    %c0_i32 = arith.constant 0 : i32
    return %arg0, %arg1 : i32, i32
  }
}

module attributes {stable_mosaic.version = 11 : i64} {
  func.func @_mm_res_kernel(%arg0: i32, %arg1: i32, %arg2: i32, %arg3: memref<8x512xbf16, #tpu.memory_space<vmem>>, %arg4: memref<512x256xbf16, #tpu.memory_space<vmem>>, %arg5: memref<1x256xf32, #tpu.memory_space<vmem>>, %arg6: memref<1x256xf32, #tpu.memory_space<vmem>>, %arg7: memref<8x256xf32, #tpu.memory_space<vmem>>, %arg8: memref<8x256xf32, #tpu.memory_space<vmem>>, %arg9: memref<8x256xf32, #tpu.memory_space<vmem>>) attributes {dimension_semantics = [#tpu.dimension_semantics<parallel>, #tpu.dimension_semantics<parallel>, #tpu.dimension_semantics<arbitrary>], iteration_bounds = array<i64: 1, 1, 5>, scalar_prefetch = 0 : i64, scratch_operands = 1 : i64, tpu.core_type = #tpu.core_type<tc>, window_params = [{transform_indices = @transform_0, window_bounds = array<i64: 8, 512>}, {transform_indices = @transform_1, window_bounds = array<i64: 512, 256>}, {transform_indices = @transform_2, window_bounds = array<i64: 1, 256>}, {transform_indices = @transform_3, window_bounds = array<i64: 1, 256>}, {transform_indices = @transform_4, window_bounds = array<i64: 8, 256>}, {transform_indices = @transform_5, window_bounds = array<i64: 8, 256>}]} {
    %c0_i32 = arith.constant 0 : i32
    %0 = arith.cmpi eq, %arg2, %c0_i32 : i32
    %1 = arith.extui %0 : i1 to i32
    %c0_i32_0 = arith.constant 0 : i32
    %2 = arith.cmpi ne, %1, %c0_i32_0 : i32
    scf.if %2 {
      %cst_9 = arith.constant 0.000000e+00 : f32
      %12 = vector.broadcast %cst_9 : f32 to vector<8x256xf32>
      %c0_10 = arith.constant 0 : index
      %c0_11 = arith.constant 0 : index
      %13 = vector.load %arg9[%c0_10, %c0_11] : memref<8x256xf32, #tpu.memory_space<vmem>>, vector<8x256xf32>
      tpu.vector_store %arg9[%c0_10, %c0_11], %12 {strides = array<i32>} : memref<8x256xf32, #tpu.memory_space<vmem>>, vector<8x256xf32>,
    } else {
    }
    %c0 = arith.constant 0 : index
    %c0_1 = arith.constant 0 : index
    %3 = vector.load %arg9[%c0, %c0_1] : memref<8x256xf32, #tpu.memory_space<vmem>>, vector<8x256xf32>
    %c0_2 = arith.constant 0 : index
    %c0_3 = arith.constant 0 : index
    %4 = vector.load %arg3[%c0_2, %c0_3] : memref<8x512xbf16, #tpu.memory_space<vmem>>, vector<8x512xbf16>
    %c0_4 = arith.constant 0 : index
    %c0_5 = arith.constant 0 : index
    %5 = vector.load %arg4[%c0_4, %c0_5] : memref<512x256xbf16, #tpu.memory_space<vmem>>, vector<512x256xbf16>
    %cst = arith.constant dense<0.000000e+00> : vector<8x256xf32>
    %6 = tpu.matmul %4, %5, %cst {dimension_numbers = #tpu.dot_dimension_numbers<[1], [0], [0], [1], [0, 0, 1, 1], [], []>} : vector<8x512xbf16>, vector<512x256xbf16>, vector<8x256xf32> -> vector<8x256xf32>
    %7 = arith.addf %3, %6 : vector<8x256xf32>
    %c0_6 = arith.constant 0 : index
    %c0_7 = arith.constant 0 : index
    %8 = vector.load %arg9[%c0_6, %c0_7] : memref<8x256xf32, #tpu.memory_space<vmem>>, vector<8x256xf32>
    tpu.vector_store %arg9[%c0_6, %c0_7], %7 {strides = array<i32>} : memref<8x256xf32, #tpu.memory_space<vmem>>, vector<8x256xf32>,
    %c4_i32 = arith.constant 4 : i32
    %9 = arith.cmpi eq, %arg2, %c4_i32 : i32
    %10 = arith.extui %9 : i1 to i32
    %c0_i32_8 = arith.constant 0 : i32
    %11 = arith.cmpi ne, %10, %c0_i32_8 : i32
    scf.if %11 {
      %c0_9 = arith.constant 0 : index
      %c0_10 = arith.constant 0 : index
      %12 = vector.load %arg9[%c0_9, %c0_10] : memref<8x256xf32, #tpu.memory_space<vmem>>, vector<8x256xf32>
      %c0_11 = arith.constant 0 : index
      %c0_12 = arith.constant 0 : index
      %13 = vector.load %arg5[%c0_11, %c0_12] : memref<1x256xf32, #tpu.memory_space<vmem>>, vector<1x256xf32>
      %14 = vector.broadcast %13 : vector<1x256xf32> to vector<8x256xf32>
      %15 = arith.mulf %12, %14 : vector<8x256xf32>
      %c0_13 = arith.constant 0 : index
      %c0_14 = arith.constant 0 : index
      %16 = vector.load %arg6[%c0_13, %c0_14] : memref<1x256xf32, #tpu.memory_space<vmem>>, vector<1x256xf32>
      %17 = vector.broadcast %16 : vector<1x256xf32> to vector<8x256xf32>
      %18 = arith.addf %15, %17 : vector<8x256xf32>
      %c0_15 = arith.constant 0 : index
      %c0_16 = arith.constant 0 : index
      %19 = vector.load %arg7[%c0_15, %c0_16] : memref<8x256xf32, #tpu.memory_space<vmem>>, vector<8x256xf32>
      %20 = arith.addf %18, %19 : vector<8x256xf32>
      %cst_17 = arith.constant 0.000000e+00 : f32
      %21 = vector.broadcast %cst_17 : f32 to vector<8x256xf32>
      %22 = arith.maximumf %20, %21 : vector<8x256xf32>
      %c0_18 = arith.constant 0 : index
      %c0_19 = arith.constant 0 : index
      %23 = vector.load %arg8[%c0_18, %c0_19] : memref<8x256xf32, #tpu.memory_space<vmem>>, vector<8x256xf32>
      tpu.vector_store %arg8[%c0_18, %c0_19], %22 {strides = array<i32>} : memref<8x256xf32, #tpu.memory_space<vmem>>, vector<8x256xf32>,
    } else {
    }
    return
  }
  func.func @transform_0(%arg0: i32, %arg1: i32, %arg2: i32) -> (i32, i32) {
    %c0_i32 = arith.constant 0 : i32
    return %arg0, %arg2 : i32, i32
  }
  func.func @transform_1(%arg0: i32, %arg1: i32, %arg2: i32) -> (i32, i32) {
    %c0_i32 = arith.constant 0 : i32
    return %arg2, %arg1 : i32, i32
  }
  func.func @transform_2(%arg0: i32, %arg1: i32, %arg2: i32) -> (i32, i32) {
    %c0_i32 = arith.constant 0 : i32
    %c0_i32_0 = arith.constant 0 : i32
    return %c0_i32, %arg1 : i32, i32
  }
  func.func @transform_3(%arg0: i32, %arg1: i32, %arg2: i32) -> (i32, i32) {
    %c0_i32 = arith.constant 0 : i32
    %c0_i32_0 = arith.constant 0 : i32
    return %c0_i32, %arg1 : i32, i32
  }
  func.func @transform_4(%arg0: i32, %arg1: i32, %arg2: i32) -> (i32, i32) {
    %c0_i32 = arith.constant 0 : i32
    return %arg0, %arg1 : i32, i32
  }
  func.func @transform_5(%arg0: i32, %arg1: i32, %arg2: i32) -> (i32, i32) {
    %c0_i32 = arith.constant 0 : i32
    return %arg0, %arg1 : i32, i32
  }
}

module attributes {stable_mosaic.version = 11 : i64} {
  func.func @_mm_kernel(%arg0: i32, %arg1: i32, %arg2: i32, %arg3: memref<8x512xbf16, #tpu.memory_space<vmem>>, %arg4: memref<512x256xbf16, #tpu.memory_space<vmem>>, %arg5: memref<1x256xf32, #tpu.memory_space<vmem>>, %arg6: memref<1x256xf32, #tpu.memory_space<vmem>>, %arg7: memref<8x256xf32, #tpu.memory_space<vmem>>, %arg8: memref<8x256xf32, #tpu.memory_space<vmem>>) attributes {dimension_semantics = [#tpu.dimension_semantics<parallel>, #tpu.dimension_semantics<parallel>, #tpu.dimension_semantics<arbitrary>], iteration_bounds = array<i64: 1, 2, 5>, scalar_prefetch = 0 : i64, scratch_operands = 1 : i64, tpu.core_type = #tpu.core_type<tc>, window_params = [{transform_indices = @transform_0, window_bounds = array<i64: 8, 512>}, {transform_indices = @transform_1, window_bounds = array<i64: 512, 256>}, {transform_indices = @transform_2, window_bounds = array<i64: 1, 256>}, {transform_indices = @transform_3, window_bounds = array<i64: 1, 256>}, {transform_indices = @transform_4, window_bounds = array<i64: 8, 256>}]} {
    %c0_i32 = arith.constant 0 : i32
    %0 = arith.cmpi eq, %arg2, %c0_i32 : i32
    %1 = arith.extui %0 : i1 to i32
    %c0_i32_0 = arith.constant 0 : i32
    %2 = arith.cmpi ne, %1, %c0_i32_0 : i32
    scf.if %2 {
      %cst_9 = arith.constant 0.000000e+00 : f32
      %12 = vector.broadcast %cst_9 : f32 to vector<8x256xf32>
      %c0_10 = arith.constant 0 : index
      %c0_11 = arith.constant 0 : index
      %13 = vector.load %arg8[%c0_10, %c0_11] : memref<8x256xf32, #tpu.memory_space<vmem>>, vector<8x256xf32>
      tpu.vector_store %arg8[%c0_10, %c0_11], %12 {strides = array<i32>} : memref<8x256xf32, #tpu.memory_space<vmem>>, vector<8x256xf32>,
    } else {
    }
    %c0 = arith.constant 0 : index
    %c0_1 = arith.constant 0 : index
    %3 = vector.load %arg8[%c0, %c0_1] : memref<8x256xf32, #tpu.memory_space<vmem>>, vector<8x256xf32>
    %c0_2 = arith.constant 0 : index
    %c0_3 = arith.constant 0 : index
    %4 = vector.load %arg3[%c0_2, %c0_3] : memref<8x512xbf16, #tpu.memory_space<vmem>>, vector<8x512xbf16>
    %c0_4 = arith.constant 0 : index
    %c0_5 = arith.constant 0 : index
    %5 = vector.load %arg4[%c0_4, %c0_5] : memref<512x256xbf16, #tpu.memory_space<vmem>>, vector<512x256xbf16>
    %cst = arith.constant dense<0.000000e+00> : vector<8x256xf32>
    %6 = tpu.matmul %4, %5, %cst {dimension_numbers = #tpu.dot_dimension_numbers<[1], [0], [0], [1], [0, 0, 1, 1], [], []>} : vector<8x512xbf16>, vector<512x256xbf16>, vector<8x256xf32> -> vector<8x256xf32>
    %7 = arith.addf %3, %6 : vector<8x256xf32>
    %c0_6 = arith.constant 0 : index
    %c0_7 = arith.constant 0 : index
    %8 = vector.load %arg8[%c0_6, %c0_7] : memref<8x256xf32, #tpu.memory_space<vmem>>, vector<8x256xf32>
    tpu.vector_store %arg8[%c0_6, %c0_7], %7 {strides = array<i32>} : memref<8x256xf32, #tpu.memory_space<vmem>>, vector<8x256xf32>,
    %c4_i32 = arith.constant 4 : i32
    %9 = arith.cmpi eq, %arg2, %c4_i32 : i32
    %10 = arith.extui %9 : i1 to i32
    %c0_i32_8 = arith.constant 0 : i32
    %11 = arith.cmpi ne, %10, %c0_i32_8 : i32
    scf.if %11 {
      %c0_9 = arith.constant 0 : index
      %c0_10 = arith.constant 0 : index
      %12 = vector.load %arg8[%c0_9, %c0_10] : memref<8x256xf32, #tpu.memory_space<vmem>>, vector<8x256xf32>
      %c0_11 = arith.constant 0 : index
      %c0_12 = arith.constant 0 : index
      %13 = vector.load %arg5[%c0_11, %c0_12] : memref<1x256xf32, #tpu.memory_space<vmem>>, vector<1x256xf32>
      %14 = vector.broadcast %13 : vector<1x256xf32> to vector<8x256xf32>
      %15 = arith.mulf %12, %14 : vector<8x256xf32>
      %c0_13 = arith.constant 0 : index
      %c0_14 = arith.constant 0 : index
      %16 = vector.load %arg6[%c0_13, %c0_14] : memref<1x256xf32, #tpu.memory_space<vmem>>, vector<1x256xf32>
      %17 = vector.broadcast %16 : vector<1x256xf32> to vector<8x256xf32>
      %18 = arith.addf %15, %17 : vector<8x256xf32>
      %cst_15 = arith.constant 0.000000e+00 : f32
      %19 = vector.broadcast %cst_15 : f32 to vector<8x256xf32>
      %20 = arith.maximumf %18, %19 : vector<8x256xf32>
      %c0_16 = arith.constant 0 : index
      %c0_17 = arith.constant 0 : index
      %21 = vector.load %arg7[%c0_16, %c0_17] : memref<8x256xf32, #tpu.memory_space<vmem>>, vector<8x256xf32>
      tpu.vector_store %arg7[%c0_16, %c0_17], %20 {strides = array<i32>} : memref<8x256xf32, #tpu.memory_space<vmem>>, vector<8x256xf32>,
    } else {
    }
    return
  }
  func.func @transform_0(%arg0: i32, %arg1: i32, %arg2: i32) -> (i32, i32) {
    %c0_i32 = arith.constant 0 : i32
    return %arg0, %arg2 : i32, i32
  }
  func.func @transform_1(%arg0: i32, %arg1: i32, %arg2: i32) -> (i32, i32) {
    %c0_i32 = arith.constant 0 : i32
    return %arg2, %arg1 : i32, i32
  }
  func.func @transform_2(%arg0: i32, %arg1: i32, %arg2: i32) -> (i32, i32) {
    %c0_i32 = arith.constant 0 : i32
    %c0_i32_0 = arith.constant 0 : i32
    return %c0_i32, %arg1 : i32, i32
  }
  func.func @transform_3(%arg0: i32, %arg1: i32, %arg2: i32) -> (i32, i32) {
    %c0_i32 = arith.constant 0 : i32
    %c0_i32_0 = arith.constant 0 : i32
    return %c0_i32, %arg1 : i32, i32
  }
  func.func @transform_4(%arg0: i32, %arg1: i32, %arg2: i32) -> (i32, i32) {
    %c0_i32 = arith.constant 0 : i32
    return %arg0, %arg1 : i32, i32
  }
}

module attributes {stable_mosaic.version = 11 : i64} {
  func.func @_mm_kernel(%arg0: i32, %arg1: i32, %arg2: i32, %arg3: memref<8x256xbf16, #tpu.memory_space<vmem>>, %arg4: memref<256x256xbf16, #tpu.memory_space<vmem>>, %arg5: memref<1x256xf32, #tpu.memory_space<vmem>>, %arg6: memref<1x256xf32, #tpu.memory_space<vmem>>, %arg7: memref<8x256xf32, #tpu.memory_space<vmem>>, %arg8: memref<8x256xf32, #tpu.memory_space<vmem>>) attributes {dimension_semantics = [#tpu.dimension_semantics<parallel>, #tpu.dimension_semantics<parallel>, #tpu.dimension_semantics<arbitrary>], iteration_bounds = array<i64: 1, 2, 1>, scalar_prefetch = 0 : i64, scratch_operands = 1 : i64, tpu.core_type = #tpu.core_type<tc>, window_params = [{transform_indices = @transform_0, window_bounds = array<i64: 8, 256>}, {transform_indices = @transform_1, window_bounds = array<i64: 256, 256>}, {transform_indices = @transform_2, window_bounds = array<i64: 1, 256>}, {transform_indices = @transform_3, window_bounds = array<i64: 1, 256>}, {transform_indices = @transform_4, window_bounds = array<i64: 8, 256>}]} {
    %c0_i32 = arith.constant 0 : i32
    %0 = arith.cmpi eq, %arg2, %c0_i32 : i32
    %1 = arith.extui %0 : i1 to i32
    %c0_i32_0 = arith.constant 0 : i32
    %2 = arith.cmpi ne, %1, %c0_i32_0 : i32
    scf.if %2 {
      %cst_10 = arith.constant 0.000000e+00 : f32
      %12 = vector.broadcast %cst_10 : f32 to vector<8x256xf32>
      %c0_11 = arith.constant 0 : index
      %c0_12 = arith.constant 0 : index
      %13 = vector.load %arg8[%c0_11, %c0_12] : memref<8x256xf32, #tpu.memory_space<vmem>>, vector<8x256xf32>
      tpu.vector_store %arg8[%c0_11, %c0_12], %12 {strides = array<i32>} : memref<8x256xf32, #tpu.memory_space<vmem>>, vector<8x256xf32>,
    } else {
    }
    %c0 = arith.constant 0 : index
    %c0_1 = arith.constant 0 : index
    %3 = vector.load %arg8[%c0, %c0_1] : memref<8x256xf32, #tpu.memory_space<vmem>>, vector<8x256xf32>
    %c0_2 = arith.constant 0 : index
    %c0_3 = arith.constant 0 : index
    %4 = vector.load %arg3[%c0_2, %c0_3] : memref<8x256xbf16, #tpu.memory_space<vmem>>, vector<8x256xbf16>
    %c0_4 = arith.constant 0 : index
    %c0_5 = arith.constant 0 : index
    %5 = vector.load %arg4[%c0_4, %c0_5] : memref<256x256xbf16, #tpu.memory_space<vmem>>, vector<256x256xbf16>
    %cst = arith.constant dense<0.000000e+00> : vector<8x256xf32>
    %6 = tpu.matmul %4, %5, %cst {dimension_numbers = #tpu.dot_dimension_numbers<[1], [0], [0], [1], [0, 0, 1, 1], [], []>} : vector<8x256xbf16>, vector<256x256xbf16>, vector<8x256xf32> -> vector<8x256xf32>
    %7 = arith.addf %3, %6 : vector<8x256xf32>
    %c0_6 = arith.constant 0 : index
    %c0_7 = arith.constant 0 : index
    %8 = vector.load %arg8[%c0_6, %c0_7] : memref<8x256xf32, #tpu.memory_space<vmem>>, vector<8x256xf32>
    tpu.vector_store %arg8[%c0_6, %c0_7], %7 {strides = array<i32>} : memref<8x256xf32, #tpu.memory_space<vmem>>, vector<8x256xf32>,
    %c0_i32_8 = arith.constant 0 : i32
    %9 = arith.cmpi eq, %arg2, %c0_i32_8 : i32
    %10 = arith.extui %9 : i1 to i32
    %c0_i32_9 = arith.constant 0 : i32
    %11 = arith.cmpi ne, %10, %c0_i32_9 : i32
    scf.if %11 {
      %c0_10 = arith.constant 0 : index
      %c0_11 = arith.constant 0 : index
      %12 = vector.load %arg8[%c0_10, %c0_11] : memref<8x256xf32, #tpu.memory_space<vmem>>, vector<8x256xf32>
      %c0_12 = arith.constant 0 : index
      %c0_13 = arith.constant 0 : index
      %13 = vector.load %arg5[%c0_12, %c0_13] : memref<1x256xf32, #tpu.memory_space<vmem>>, vector<1x256xf32>
      %14 = vector.broadcast %13 : vector<1x256xf32> to vector<8x256xf32>
      %15 = arith.mulf %12, %14 : vector<8x256xf32>
      %c0_14 = arith.constant 0 : index
      %c0_15 = arith.constant 0 : index
      %16 = vector.load %arg6[%c0_14, %c0_15] : memref<1x256xf32, #tpu.memory_space<vmem>>, vector<1x256xf32>
      %17 = vector.broadcast %16 : vector<1x256xf32> to vector<8x256xf32>
      %18 = arith.addf %15, %17 : vector<8x256xf32>
      %c0_16 = arith.constant 0 : index
      %c0_17 = arith.constant 0 : index
      %19 = vector.load %arg7[%c0_16, %c0_17] : memref<8x256xf32, #tpu.memory_space<vmem>>, vector<8x256xf32>
      tpu.vector_store %arg7[%c0_16, %c0_17], %18 {strides = array<i32>} : memref<8x256xf32, #tpu.memory_space<vmem>>, vector<8x256xf32>,
    } else {
    }
    return
  }
  func.func @transform_0(%arg0: i32, %arg1: i32, %arg2: i32) -> (i32, i32) {
    %c0_i32 = arith.constant 0 : i32
    return %arg0, %arg2 : i32, i32
  }
  func.func @transform_1(%arg0: i32, %arg1: i32, %arg2: i32) -> (i32, i32) {
    %c0_i32 = arith.constant 0 : i32
    return %arg2, %arg1 : i32, i32
  }
  func.func @transform_2(%arg0: i32, %arg1: i32, %arg2: i32) -> (i32, i32) {
    %c0_i32 = arith.constant 0 : i32
    %c0_i32_0 = arith.constant 0 : i32
    return %c0_i32, %arg1 : i32, i32
  }
  func.func @transform_3(%arg0: i32, %arg1: i32, %arg2: i32) -> (i32, i32) {
    %c0_i32 = arith.constant 0 : i32
    %c0_i32_0 = arith.constant 0 : i32
    return %c0_i32, %arg1 : i32, i32
  }
  func.func @transform_4(%arg0: i32, %arg1: i32, %arg2: i32) -> (i32, i32) {
    %c0_i32 = arith.constant 0 : i32
    return %arg0, %arg1 : i32, i32
  }
}

module attributes {stable_mosaic.version = 11 : i64} {
  func.func @_mm_res_kernel(%arg0: i32, %arg1: i32, %arg2: i32, %arg3: memref<8x512xbf16, #tpu.memory_space<vmem>>, %arg4: memref<512x256xbf16, #tpu.memory_space<vmem>>, %arg5: memref<1x256xf32, #tpu.memory_space<vmem>>, %arg6: memref<1x256xf32, #tpu.memory_space<vmem>>, %arg7: memref<8x256xf32, #tpu.memory_space<vmem>>, %arg8: memref<8x256xf32, #tpu.memory_space<vmem>>, %arg9: memref<8x256xf32, #tpu.memory_space<vmem>>) attributes {dimension_semantics = [#tpu.dimension_semantics<parallel>, #tpu.dimension_semantics<parallel>, #tpu.dimension_semantics<arbitrary>], iteration_bounds = array<i64: 1, 2, 9>, scalar_prefetch = 0 : i64, scratch_operands = 1 : i64, tpu.core_type = #tpu.core_type<tc>, window_params = [{transform_indices = @transform_0, window_bounds = array<i64: 8, 512>}, {transform_indices = @transform_1, window_bounds = array<i64: 512, 256>}, {transform_indices = @transform_2, window_bounds = array<i64: 1, 256>}, {transform_indices = @transform_3, window_bounds = array<i64: 1, 256>}, {transform_indices = @transform_4, window_bounds = array<i64: 8, 256>}, {transform_indices = @transform_5, window_bounds = array<i64: 8, 256>}]} {
    %c0_i32 = arith.constant 0 : i32
    %0 = arith.cmpi eq, %arg2, %c0_i32 : i32
    %1 = arith.extui %0 : i1 to i32
    %c0_i32_0 = arith.constant 0 : i32
    %2 = arith.cmpi ne, %1, %c0_i32_0 : i32
    scf.if %2 {
      %cst_9 = arith.constant 0.000000e+00 : f32
      %12 = vector.broadcast %cst_9 : f32 to vector<8x256xf32>
      %c0_10 = arith.constant 0 : index
      %c0_11 = arith.constant 0 : index
      %13 = vector.load %arg9[%c0_10, %c0_11] : memref<8x256xf32, #tpu.memory_space<vmem>>, vector<8x256xf32>
      tpu.vector_store %arg9[%c0_10, %c0_11], %12 {strides = array<i32>} : memref<8x256xf32, #tpu.memory_space<vmem>>, vector<8x256xf32>,
    } else {
    }
    %c0 = arith.constant 0 : index
    %c0_1 = arith.constant 0 : index
    %3 = vector.load %arg9[%c0, %c0_1] : memref<8x256xf32, #tpu.memory_space<vmem>>, vector<8x256xf32>
    %c0_2 = arith.constant 0 : index
    %c0_3 = arith.constant 0 : index
    %4 = vector.load %arg3[%c0_2, %c0_3] : memref<8x512xbf16, #tpu.memory_space<vmem>>, vector<8x512xbf16>
    %c0_4 = arith.constant 0 : index
    %c0_5 = arith.constant 0 : index
    %5 = vector.load %arg4[%c0_4, %c0_5] : memref<512x256xbf16, #tpu.memory_space<vmem>>, vector<512x256xbf16>
    %cst = arith.constant dense<0.000000e+00> : vector<8x256xf32>
    %6 = tpu.matmul %4, %5, %cst {dimension_numbers = #tpu.dot_dimension_numbers<[1], [0], [0], [1], [0, 0, 1, 1], [], []>} : vector<8x512xbf16>, vector<512x256xbf16>, vector<8x256xf32> -> vector<8x256xf32>
    %7 = arith.addf %3, %6 : vector<8x256xf32>
    %c0_6 = arith.constant 0 : index
    %c0_7 = arith.constant 0 : index
    %8 = vector.load %arg9[%c0_6, %c0_7] : memref<8x256xf32, #tpu.memory_space<vmem>>, vector<8x256xf32>
    tpu.vector_store %arg9[%c0_6, %c0_7], %7 {strides = array<i32>} : memref<8x256xf32, #tpu.memory_space<vmem>>, vector<8x256xf32>,
    %c8_i32 = arith.constant 8 : i32
    %9 = arith.cmpi eq, %arg2, %c8_i32 : i32
    %10 = arith.extui %9 : i1 to i32
    %c0_i32_8 = arith.constant 0 : i32
    %11 = arith.cmpi ne, %10, %c0_i32_8 : i32
    scf.if %11 {
      %c0_9 = arith.constant 0 : index
      %c0_10 = arith.constant 0 : index
      %12 = vector.load %arg9[%c0_9, %c0_10] : memref<8x256xf32, #tpu.memory_space<vmem>>, vector<8x256xf32>
      %c0_11 = arith.constant 0 : index
      %c0_12 = arith.constant 0 : index
      %13 = vector.load %arg5[%c0_11, %c0_12] : memref<1x256xf32, #tpu.memory_space<vmem>>, vector<1x256xf32>
      %14 = vector.broadcast %13 : vector<1x256xf32> to vector<8x256xf32>
      %15 = arith.mulf %12, %14 : vector<8x256xf32>
      %c0_13 = arith.constant 0 : index
      %c0_14 = arith.constant 0 : index
      %16 = vector.load %arg6[%c0_13, %c0_14] : memref<1x256xf32, #tpu.memory_space<vmem>>, vector<1x256xf32>
      %17 = vector.broadcast %16 : vector<1x256xf32> to vector<8x256xf32>
      %18 = arith.addf %15, %17 : vector<8x256xf32>
      %c0_15 = arith.constant 0 : index
      %c0_16 = arith.constant 0 : index
      %19 = vector.load %arg7[%c0_15, %c0_16] : memref<8x256xf32, #tpu.memory_space<vmem>>, vector<8x256xf32>
      %20 = arith.addf %18, %19 : vector<8x256xf32>
      %cst_17 = arith.constant 0.000000e+00 : f32
      %21 = vector.broadcast %cst_17 : f32 to vector<8x256xf32>
      %22 = arith.maximumf %20, %21 : vector<8x256xf32>
      %c0_18 = arith.constant 0 : index
      %c0_19 = arith.constant 0 : index
      %23 = vector.load %arg8[%c0_18, %c0_19] : memref<8x256xf32, #tpu.memory_space<vmem>>, vector<8x256xf32>
      tpu.vector_store %arg8[%c0_18, %c0_19], %22 {strides = array<i32>} : memref<8x256xf32, #tpu.memory_space<vmem>>, vector<8x256xf32>,
    } else {
    }
    return
  }
  func.func @transform_0(%arg0: i32, %arg1: i32, %arg2: i32) -> (i32, i32) {
    %c0_i32 = arith.constant 0 : i32
    return %arg0, %arg2 : i32, i32
  }
  func.func @transform_1(%arg0: i32, %arg1: i32, %arg2: i32) -> (i32, i32) {
    %c0_i32 = arith.constant 0 : i32
    return %arg2, %arg1 : i32, i32
  }
  func.func @transform_2(%arg0: i32, %arg1: i32, %arg2: i32) -> (i32, i32) {
    %c0_i32 = arith.constant 0 : i32
    %c0_i32_0 = arith.constant 0 : i32
    return %c0_i32, %arg1 : i32, i32
  }
  func.func @transform_3(%arg0: i32, %arg1: i32, %arg2: i32) -> (i32, i32) {
    %c0_i32 = arith.constant 0 : i32
    %c0_i32_0 = arith.constant 0 : i32
    return %c0_i32, %arg1 : i32, i32
  }
  func.func @transform_4(%arg0: i32, %arg1: i32, %arg2: i32) -> (i32, i32) {
    %c0_i32 = arith.constant 0 : i32
    return %arg0, %arg1 : i32, i32
  }
  func.func @transform_5(%arg0: i32, %arg1: i32, %arg2: i32) -> (i32, i32) {
    %c0_i32 = arith.constant 0 : i32
    return %arg0, %arg1 : i32, i32
  }
}

module attributes {stable_mosaic.version = 11 : i64} {
  func.func @_avgpool_fc_kernel(%arg0: memref<2x1x512xf32, #tpu.memory_space<vmem>>, %arg1: memref<512x128xf32, #tpu.memory_space<vmem>>, %arg2: memref<1x128xf32, #tpu.memory_space<vmem>>, %arg3: memref<2x128xf32, #tpu.memory_space<vmem>>) attributes {dimension_semantics = [], scalar_prefetch = 0 : i64, scratch_operands = 0 : i64, tpu.core_type = #tpu.core_type<tc>} {
    %c0 = arith.constant 0 : index
    %c0_0 = arith.constant 0 : index
    %c0_1 = arith.constant 0 : index
    %0 = vector.load %arg0[%c0, %c0_0, %c0_1] : memref<2x1x512xf32, #tpu.memory_space<vmem>>, vector<2x1x512xf32>
    %cst = arith.constant dense<0.000000e+00> : vector<2x512xf32>
    %1 = vector.multi_reduction <add>, %0, %cst [1] : vector<2x1x512xf32> to vector<2x512xf32>
    %cst_2 = arith.constant 1.000000e+00 : f32
    %2 = vector.broadcast %cst_2 : f32 to vector<2x512xf32>
    %3 = arith.divf %1, %2 : vector<2x512xf32>
    %c0_3 = arith.constant 0 : index
    %c0_4 = arith.constant 0 : index
    %4 = vector.load %arg1[%c0_3, %c0_4] : memref<512x128xf32, #tpu.memory_space<vmem>>, vector<512x128xf32>
    %cst_5 = arith.constant dense<0.000000e+00> : vector<2x128xf32>
    %5 = tpu.matmul %3, %4, %cst_5 {dimension_numbers = #tpu.dot_dimension_numbers<[1], [0], [0], [1], [0, 0, 1, 1], [], []>} : vector<2x512xf32>, vector<512x128xf32>, vector<2x128xf32> -> vector<2x128xf32>
    %c0_6 = arith.constant 0 : index
    %c0_7 = arith.constant 0 : index
    %6 = vector.load %arg2[%c0_6, %c0_7] : memref<1x128xf32, #tpu.memory_space<vmem>>, vector<1x128xf32>
    %7 = vector.broadcast %6 : vector<1x128xf32> to vector<2x128xf32>
    %8 = arith.addf %5, %7 : vector<2x128xf32>
    %c0_8 = arith.constant 0 : index
    %c0_9 = arith.constant 0 : index
    %9 = vector.load %arg3[%c0_8, %c0_9] : memref<2x128xf32, #tpu.memory_space<vmem>>, vector<2x128xf32>
    tpu.vector_store %arg3[%c0_8, %c0_9], %8 {strides = array<i32>} : memref<2x128xf32, #tpu.memory_space<vmem>>, vector<2x128xf32>,
    return
  }
}

</mosaic_0001>

<llo_original>
// kernel: resnet_forward.13
$region0: #{resnet_forward.13}
  #allocation0 [shape = 'u32[]', space=smem, size = 0x4, offset = 0x4, fixed_abs, tag = 'smem constant byte address 0x4 - core index']
  #allocation1 [shape = 'u32[72,128]{1,0:T(1,128)}', space=vmem, size = 0x9000, scoped, tag = 'internal scratch']
  #allocation2 [shape = 'f32[256,128]{1,0:T(8,128)}', space=vmem, size = 0x20000, scoped, tag = 'scratch operand']
  %s0 = inlined_call_operand.vmem [shape: bf16[512,256], index: 0, kind: input, shape index: {}]
  %s1 = inlined_call_operand.vmem [shape: bf16[256,128], index: 1, kind: input, shape index: {}]
  %s2 = inlined_call_operand.vmem [shape: f32[1,128], index: 2, kind: input, shape index: {}]
  %s3 = inlined_call_operand.vmem [shape: f32[1,128], index: 3, kind: input, shape index: {}]
  %s4 = inlined_call_operand.vmem [shape: f32[512,128], index: 4, kind: output, shape index: {}]
  %s5 = sld [smem:[#allocation0]]
  $region57: #{resnet_forward.13} parent=0
    _
  %s7 = ssub.s32 1, %s5
  %s8 = scalar_select 0, %s7, %s5
  loop: start=0, step=1, limit=4
  $region2: #{resnet_forward.13} parent=0 // loop_pre_header
    _
  $region3: #{resnet_forward.13} parent=0 // loop_header
    %s10 = sphi 0, %s14
    %p11 = scmp.ge.s32.totalorder %s10, 4
    %s17 = sphi 0, %s36
    %s18 = sphi 0, %s32
    %s19 = sphi 0, %s28
    %s20 = sphi 0, %s17
    %s21 = sphi 0, %s18
    %s22 = sphi 0, %s19
    %s23 = sphi 0, %s20
    %s24 = sphi 0, %s21
    %s25 = sphi 0, %s22
    %s41 = sphi 0, %s43
    %s44 = sphi 0, %s41
    %s45 = sphi 0, %s44
    %s61 = sphi 0, %s45
    %s69 = sphi 0, %s71
    %s72 = sphi 0, %s69
    %s73 = sphi 0, %s72
    %s89 = sphi 0, %s73
    %s95 = sphi 0, %s97
    %s98 = sphi 0, %s95
    %s99 = sphi 0, %s98
    %s115 = sphi 0, %s99
    %s121 = sphi 0, %s123
    %s124 = sphi 0, %s121
    %s125 = sphi 0, %s124
    %s141 = sphi 0, %s125
    %s149 = sphi 0, %s151
    %s152 = sphi 0, %s149
    %s153 = sphi 0, %s152
    %s169 = sphi 0, %s153
  $region4: #{resnet_forward.13} parent=0 // loop_header_branch
    %13 = sbr.rel (%p11) target = $region8
  $region5: #{resnet_forward.13} parent=0 // loop_body
    %s15 = ssub.s32 %s10, 1
    %s16 = ssub.s32 %s10, 2
    %s26 = sadd.s32 1, %s19
    %p27 = scmp.ge.s32.totalorder %s26, 1
    %s28 = scalar_select %p27, 0, %s26
    %s29 = sadd.s32 1, %s18
    %s30 = scalar_select %p27, %s29, %s18
    %p31 = scmp.ge.s32.totalorder %s30, 1
    %s32 = scalar_select %p31, 0, %s30
    %s33 = sadd.s32 1, %s17
    %s34 = scalar_select %p31, %s33, %s17
    %p35 = scmp.ge.s32.totalorder %s34, 2
    %s36 = scalar_select %p35, 0, %s34
    %s37 = ssub.s32 %s17, %s36
    %s38 = ssub.s32 %s19, %s28
    %s39 = sor.u32 %s37, %s38
    %p40 = scmp.eq.s32.totalorder %s39, 0
    %s42 = sadd.s32 %s41, 1
    %s43 = scalar_select %p40, %s41, %s42
    %p46 = pneg %p40
    %p47 = scmp.eq.s32.totalorder %s10, 1
    %p48 = por %p46, %p47
    %p49 = scmp.ne.s32.totalorder %s41, %s44
    %p50 = scmp.eq.s32.totalorder %s10, 0
    %p51 = por %p49, %p50
    %p52 = scmp.ne.s32.totalorder %s41, %s44
    %p53 = scmp.eq.s32.totalorder %s15, 1
    %p54 = por %p52, %p53
    %p55 = scmp.ne.s32.totalorder %s44, %s45
    %p56 = scmp.eq.s32.totalorder %s15, 0
    %p57 = por %p55, %p56
    %p58 = scmp.ne.s32.totalorder %s44, %s45
    %p59 = scmp.eq.s32.totalorder %s16, 1
    %p60 = por %p58, %p59
    %p62 = scmp.ne.s32.totalorder %s45, %s61
    %p63 = scmp.eq.s32.totalorder %s16, 0
    %p64 = por %p62, %p63
    %s65 = ssub.s32 %s19, %s28
    %s66 = ssub.s32 %s18, %s32
    %s67 = sor.u32 %s65, %s66
    %p68 = scmp.eq.s32.totalorder %s67, 0
    %s70 = sadd.s32 %s69, 1
    %s71 = scalar_select %p68, %s69, %s70
    %p74 = pneg %p68
    %p75 = scmp.eq.s32.totalorder %s10, 1
    %p76 = por %p74, %p75
    %p77 = scmp.ne.s32.totalorder %s69, %s72
    %p78 = scmp.eq.s32.totalorder %s10, 0
    %p79 = por %p77, %p78
    %p80 = scmp.ne.s32.totalorder %s69, %s72
    %p81 = scmp.eq.s32.totalorder %s15, 1
    %p82 = por %p80, %p81
    %p83 = scmp.ne.s32.totalorder %s72, %s73
    %p84 = scmp.eq.s32.totalorder %s15, 0
    %p85 = por %p83, %p84
    %p86 = scmp.ne.s32.totalorder %s72, %s73
    %p87 = scmp.eq.s32.totalorder %s16, 1
    %p88 = por %p86, %p87
    %p90 = scmp.ne.s32.totalorder %s73, %s89
    %p91 = scmp.eq.s32.totalorder %s16, 0
    %p92 = por %p90, %p91
    %s93 = ssub.s32 %s18, %s32
    %p94 = scmp.eq.s32.totalorder %s93, 0
    %s96 = sadd.s32 %s95, 1
    %s97 = scalar_select %p94, %s95, %s96
    %p100 = pneg %p94
    %p101 = scmp.eq.s32.totalorder %s10, 1
    %p102 = por %p100, %p101
    %p103 = scmp.ne.s32.totalorder %s95, %s98
    %p104 = scmp.eq.s32.totalorder %s10, 0
    %p105 = por %p103, %p104
    %p106 = scmp.ne.s32.totalorder %s95, %s98
    %p107 = scmp.eq.s32.totalorder %s15, 1
    %p108 = por %p106, %p107
    %p109 = scmp.ne.s32.totalorder %s98, %s99
    %p110 = scmp.eq.s32.totalorder %s15, 0
    %p111 = por %p109, %p110
    %p112 = scmp.ne.s32.totalorder %s98, %s99
    %p113 = scmp.eq.s32.totalorder %s16, 1
    %p114 = por %p112, %p113
    %p116 = scmp.ne.s32.totalorder %s99, %s115
    %p117 = scmp.eq.s32.totalorder %s16, 0
    %p118 = por %p116, %p117
    %s119 = ssub.s32 %s18, %s32
    %p120 = scmp.eq.s32.totalorder %s119, 0
    %s122 = sadd.s32 %s121, 1
    %s123 = scalar_select %p120, %s121, %s122
    %p126 = pneg %p120
    %p127 = scmp.eq.s32.totalorder %s10, 1
    %p128 = por %p126, %p127
    %p129 = scmp.ne.s32.totalorder %s121, %s124
    %p130 = scmp.eq.s32.totalorder %s10, 0
    %p131 = por %p129, %p130
    %p132 = scmp.ne.s32.totalorder %s121, %s124
    %p133 = scmp.eq.s32.totalorder %s15, 1
    %p134 = por %p132, %p133
    %p135 = scmp.ne.s32.totalorder %s124, %s125
    %p136 = scmp.eq.s32.totalorder %s15, 0
    %p137 = por %p135, %p136
    %p138 = scmp.ne.s32.totalorder %s124, %s125
    %p139 = scmp.eq.s32.totalorder %s16, 1
    %p140 = por %p138, %p139
    %p142 = scmp.ne.s32.totalorder %s125, %s141
    %p143 = scmp.eq.s32.totalorder %s16, 0
    %p144 = por %p142, %p143
    %s145 = ssub.s32 %s17, %s36
    %s146 = ssub.s32 %s18, %s32
    %s147 = sor.u32 %s145, %s146
    %p148 = scmp.eq.s32.totalorder %s147, 0
    %s150 = sadd.s32 %s149, 1
    %s151 = scalar_select %p148, %s149, %s150
    %p154 = pneg %p148
    %p155 = scmp.eq.s32.totalorder %s10, 1
    %p156 = por %p154, %p155
    %p157 = scmp.ne.s32.totalorder %s149, %s152
    %p158 = scmp.eq.s32.totalorder %s10, 0
    %p159 = por %p157, %p158
    %p160 = scmp.ne.s32.totalorder %s149, %s152
    %p161 = scmp.eq.s32.totalorder %s15, 1
    %p162 = por %p160, %p161
    %p163 = scmp.ne.s32.totalorder %s152, %s153
    %p164 = scmp.eq.s32.totalorder %s15, 0
    %p165 = por %p163, %p164
    %p166 = scmp.ne.s32.totalorder %s152, %s153
    %p167 = scmp.eq.s32.totalorder %s16, 1
    %p168 = por %p166, %p167
    %p170 = scmp.ne.s32.totalorder %s153, %s169
    %p171 = scmp.eq.s32.totalorder %s16, 0
    %p172 = por %p170, %p171
    %p173 = scmp.le.s32.totalorder 1, %s10
    %p174 = scmp.lt.s32.totalorder %s10, 3
    %p175 = pnand %p173, %p174
    %p176 = pneg %p175
    // Predicated region
    $region9: #{resnet_forward.13} parent=5 // pred_check
      _
    $region10: #{resnet_forward.13} parent=5 // pred_check_branch
      %178 = sbr.rel (%p175) target = $region12
    $region11: #{resnet_forward.13} parent=5 // pred_region
      %s179 = ssub.s32 %s10, 1
      // Predicated region
      $region13: #{resnet_forward.13} parent=11 // pred_check
        %p180 = pneg %p85
      $region14: #{resnet_forward.13} parent=11 // pred_check_branch
        %182 = sbr.rel (%p180) target = $region16
      $region15: #{resnet_forward.13} parent=11 // pred_region
        %s183 = smul.u32 32, %s22
        %p184 = scmp.lt.s32.totalorder %s183, 31
        %s185 = scalar_select %p184, %s183, 31
        %p186 = scmp.lt.s32.totalorder %s21, 0
        %s187 = scalar_select %p186, %s21, 0
        %s188 = sadd.s32 %s187, %s185
        %s189 = smul.addr %s188, 4
        %s190 = scalar_lea.vmem %s1, %s189
        %s191 = smul.u32 32, %s22
      $region16: #{resnet_forward.13} parent=11 // pred_fallthru
        _
      // Predicated region
      $region17: #{resnet_forward.13} parent=11 // pred_check
        %p192 = pneg %p111
      $region18: #{resnet_forward.13} parent=11 // pred_check_branch
        %194 = sbr.rel (%p192) target = $region20
      $region19: #{resnet_forward.13} parent=11 // pred_region
        %p195 = scmp.lt.s32.totalorder %s21, 0
        %s196 = scalar_select %p195, %s21, 0
        %s197 = scalar_lea.vmem %s2, %s196
      $region20: #{resnet_forward.13} parent=11 // pred_fallthru
        _
      // Predicated region
      $region21: #{resnet_forward.13} parent=11 // pred_check
        %p198 = pneg %p137
      $region22: #{resnet_forward.13} parent=11 // pred_check_branch
        %200 = sbr.rel (%p198) target = $region24
      $region23: #{resnet_forward.13} parent=11 // pred_region
        %p201 = scmp.lt.s32.totalorder %s21, 0
        %s202 = scalar_select %p201, %s21, 0
        %s203 = scalar_lea.vmem %s3, %s202
      $region24: #{resnet_forward.13} parent=11 // pred_fallthru
        _
    $region12: #{resnet_forward.13} parent=5 // pred_fallthru
      _
    %p204 = scmp.lt.s32.totalorder %s10, 2
    // Predicated region
    $region25: #{resnet_forward.13} parent=5 // pred_check
      %p205 = pneg %p204
    $region26: #{resnet_forward.13} parent=5 // pred_check_branch
      %207 = sbr.rel (%p205) target = $region28
    $region27: #{resnet_forward.13} parent=5 // pred_region
      // Predicated region
      $region29: #{resnet_forward.13} parent=27 // pred_check
        %p208 = pneg %p51
      $region30: #{resnet_forward.13} parent=27 // pred_check_branch
        %210 = sbr.rel (%p208) target = $region32
      $region31: #{resnet_forward.13} parent=27 // pred_region
        %s211 = smul.u32 32, %s17
        %s212 = smul.u32 2, %s19
        %p213 = scmp.lt.s32.totalorder %s211, 63
        %s214 = scalar_select %p213, %s211, 63
        %p215 = scmp.lt.s32.totalorder %s212, 1
        %s216 = scalar_select %p215, %s212, 1
        %s217 = smul.addr %s214, 2
        %s218 = sadd.s32 %s216, %s217
        %s219 = smul.addr %s218, 4
        %s220 = scalar_lea.vmem %s0, %s219
        %s221 = smul.u32 32, %s17
        %s222 = smul.u32 2, %s19
      $region32: #{resnet_forward.13} parent=27 // pred_fallthru
        _
    $region28: #{resnet_forward.13} parent=5 // pred_fallthru
      _
    %p223 = scmp.le.s32.totalorder 1, %s10
    %p224 = scmp.lt.s32.totalorder %s10, 3
    %p225 = pnand %p223, %p224
    %p226 = pneg %p225
    // Predicated region
    $region33: #{resnet_forward.13} parent=5 // pred_check
      _
    $region34: #{resnet_forward.13} parent=5 // pred_check_branch
      %228 = sbr.rel (%p225) target = $region36
    $region35: #{resnet_forward.13} parent=5 // pred_region
      %s229 = ssub.s32 %s10, 1
      %s230 = smul.u32 32, %s20
      %s231 = smul.u32 2, %s22
      %p232 = scmp.lt.s32.totalorder %s230, 63
      %s233 = scalar_select %p232, %s230, 63
      %p234 = scmp.lt.s32.totalorder %s231, 1
      %s235 = scalar_select %p234, %s231, 1
      %s236 = smul.addr %s233, 2
      %s237 = sadd.s32 %s235, %s236
      %s238 = smul.addr %s237, 4
      %s239 = scalar_lea.vmem %s0, %s238
      %p240 = pneg %p57
      %p241 = pneg %p54
      %s242 = smul.u32 32, %s22
      %p243 = scmp.lt.s32.totalorder %s242, 31
      %s244 = scalar_select %p243, %s242, 31
      %p245 = scmp.lt.s32.totalorder %s21, 0
      %s246 = scalar_select %p245, %s21, 0
      %s247 = sadd.s32 %s246, %s244
      %s248 = smul.addr %s247, 4
      %s249 = scalar_lea.vmem %s1, %s248
      %p250 = pneg %p85
      %p251 = pneg %p82
      %p252 = scmp.lt.s32.totalorder %s21, 0
      %s253 = scalar_select %p252, %s21, 0
      %s254 = scalar_lea.vmem %s2, %s253
      %p255 = pneg %p111
      %p256 = pneg %p108
      %p257 = scmp.lt.s32.totalorder %s21, 0
      %s258 = scalar_select %p257, %s21, 0
      %s259 = scalar_lea.vmem %s3, %s258
      %p260 = pneg %p137
      %p261 = pneg %p134
      %p262 = pneg %p165
      %p263 = pneg %p162
      %s264 = smul.u32 32, %s20
      %p265 = scmp.lt.s32.totalorder %s264, 63
      %s266 = scalar_select %p265, %s264, 63
      %p267 = scmp.lt.s32.totalorder %s21, 0
      %s268 = scalar_select %p267, %s21, 0
      %s269 = sadd.s32 %s268, %s266
      %s270 = smul.addr %s269, 8
      %s271 = scalar_lea.vmem %s4, %s270
      %s272 = smul.u32 32, %s20
      %s273 = smul.u32 2, %s22
      %p274 = scmp.lt.s32.totalorder %s272, 63
      %s275 = scalar_select %p274, %s272, 63
      %p276 = scmp.lt.s32.totalorder %s273, 1
      %s277 = scalar_select %p276, %s273, 1
      %s278 = smul.addr %s275, 2
      %s279 = sadd.s32 %s277, %s278
      %s280 = smul.addr %s279, 4
      %s281 = scalar_lea.vmem %s0, %s280
      %s282 = smul.u32 32, %s20
      %s283 = smul.u32 2, %s22
      %s284 = smul.u32 32, %s22
      %p285 = scmp.lt.s32.totalorder %s284, 31
      %s286 = scalar_select %p285, %s284, 31
      %p287 = scmp.lt.s32.totalorder %s21, 0
      %s288 = scalar_select %p287, %s21, 0
      %s289 = sadd.s32 %s288, %s286
      %s290 = smul.addr %s289, 4
      %s291 = scalar_lea.vmem %s1, %s290
      %s292 = smul.u32 32, %s22
      %p293 = scmp.lt.s32.totalorder %s21, 0
      %s294 = scalar_select %p293, %s21, 0
      %s295 = scalar_lea.vmem %s2, %s294
      %p296 = scmp.lt.s32.totalorder %s21, 0
      %s297 = scalar_select %p296, %s21, 0
      %s298 = scalar_lea.vmem %s3, %s297
      %s299 = smul.u32 32, %s20
      %p300 = scmp.lt.s32.totalorder %s299, 63
      %s301 = scalar_select %p300, %s299, 63
      %p302 = scmp.lt.s32.totalorder %s21, 0
      %s303 = scalar_select %p302, %s21, 0
      %s304 = sadd.s32 %s303, %s301
      %s305 = smul.addr %s304, 8
      %s306 = scalar_lea.vmem %s4, %s305
      %s307 = smul.u32 32, %s20
      %p308 = scmp.eq.s32.totalorder %s22, 0
      // Predicated region
      $region37: #{resnet_forward.13} parent=35 // pred_check
        %p309 = pneg %p308
      $region38: #{resnet_forward.13} parent=35 // pred_check_branch
        %311 = sbr.rel (%p309) target = $region40
      $region39: #{resnet_forward.13} parent=35 // pred_region
        %312 = vst [vmem:[#allocation2] sm:$0xff] 0.0
        %313 = vst [vmem:[#allocation2 + $0x8] sm:$0xff] 0.0
        %314 = vst [vmem:[#allocation2 + $0x10] sm:$0xff] 0.0
        %315 = vst [vmem:[#allocation2 + $0x18] sm:$0xff] 0.0
        %316 = vst [vmem:[#allocation2 + $0x20] sm:$0xff] 0.0
        %317 = vst [vmem:[#allocation2 + $0x28] sm:$0xff] 0.0
        %318 = vst [vmem:[#allocation2 + $0x30] sm:$0xff] 0.0
        %319 = vst [vmem:[#allocation2 + $0x38] sm:$0xff] 0.0
        %320 = vst [vmem:[#allocation2 + $0x40] sm:$0xff] 0.0
        %321 = vst [vmem:[#allocation2 + $0x48] sm:$0xff] 0.0
        %322 = vst [vmem:[#allocation2 + $0x50] sm:$0xff] 0.0
        %323 = vst [vmem:[#allocation2 + $0x58] sm:$0xff] 0.0
        %324 = vst [vmem:[#allocation2 + $0x60] sm:$0xff] 0.0
        %325 = vst [vmem:[#allocation2 + $0x68] sm:$0xff] 0.0
        %326 = vst [vmem:[#allocation2 + $0x70] sm:$0xff] 0.0
        %327 = vst [vmem:[#allocation2 + $0x78] sm:$0xff] 0.0
        %328 = vst [vmem:[#allocation2 + $0x80] sm:$0xff] 0.0
        %329 = vst [vmem:[#allocation2 + $0x88] sm:$0xff] 0.0
        %330 = vst [vmem:[#allocation2 + $0x90] sm:$0xff] 0.0
        %331 = vst [vmem:[#allocation2 + $0x98] sm:$0xff] 0.0
        %332 = vst [vmem:[#allocation2 + $0xa0] sm:$0xff] 0.0
        %333 = vst [vmem:[#allocation2 + $0xa8] sm:$0xff] 0.0
        %334 = vst [vmem:[#allocation2 + $0xb0] sm:$0xff] 0.0
        %335 = vst [vmem:[#allocation2 + $0xb8] sm:$0xff] 0.0
        %336 = vst [vmem:[#allocation2 + $0xc0] sm:$0xff] 0.0
        %337 = vst [vmem:[#allocation2 + $0xc8] sm:$0xff] 0.0
        %338 = vst [vmem:[#allocation2 + $0xd0] sm:$0xff] 0.0
        %339 = vst [vmem:[#allocation2 + $0xd8] sm:$0xff] 0.0
        %340 = vst [vmem:[#allocation2 + $0xe0] sm:$0xff] 0.0
        %341 = vst [vmem:[#allocation2 + $0xe8] sm:$0xff] 0.0
        %342 = vst [vmem:[#allocation2 + $0xf0] sm:$0xff] 0.0
        %343 = vst [vmem:[#allocation2 + $0xf8] sm:$0xff] 0.0
      $region40: #{resnet_forward.13} parent=35 // pred_fallthru
        _
      %v344 = vld [vmem:[#allocation2] sm:$0xff]
      %v345 = vld [vmem:[#allocation2 + $0x8] sm:$0xff]
      %v346 = vld [vmem:[#allocation2 + $0x10] sm:$0xff]
      %v347 = vld [vmem:[#allocation2 + $0x18] sm:$0xff]
      %v348 = vld [vmem:[#allocation2 + $0x20] sm:$0xff]
      %v349 = vld [vmem:[#allocation2 + $0x28] sm:$0xff]
      %v350 = vld [vmem:[#allocation2 + $0x30] sm:$0xff]
      %v351 = vld [vmem:[#allocation2 + $0x38] sm:$0xff]
      %v352 = vld [vmem:[#allocation2 + $0x40] sm:$0xff]
      %v353 = vld [vmem:[#allocation2 + $0x48] sm:$0xff]
      %v354 = vld [vmem:[#allocation2 + $0x50] sm:$0xff]
      %v355 = vld [vmem:[#allocation2 + $0x58] sm:$0xff]
      %v356 = vld [vmem:[#allocation2 + $0x60] sm:$0xff]
      %v357 = vld [vmem:[#allocation2 + $0x68] sm:$0xff]
      %v358 = vld [vmem:[#allocation2 + $0x70] sm:$0xff]
      %v359 = vld [vmem:[#allocation2 + $0x78] sm:$0xff]
      %v360 = vld [vmem:[#allocation2 + $0x80] sm:$0xff]
      %v361 = vld [vmem:[#allocation2 + $0x88] sm:$0xff]
      %v362 = vld [vmem:[#allocation2 + $0x90] sm:$0xff]
      %v363 = vld [vmem:[#allocation2 + $0x98] sm:$0xff]
      %v364 = vld [vmem:[#allocation2 + $0xa0] sm:$0xff]
      %v365 = vld [vmem:[#allocation2 + $0xa8] sm:$0xff]
      %v366 = vld [vmem:[#allocation2 + $0xb0] sm:$0xff]
      %v367 = vld [vmem:[#allocation2 + $0xb8] sm:$0xff]
      %v368 = vld [vmem:[#allocation2 + $0xc0] sm:$0xff]
      %v369 = vld [vmem:[#allocation2 + $0xc8] sm:$0xff]
      %v370 = vld [vmem:[#allocation2 + $0xd0] sm:$0xff]
      %v371 = vld [vmem:[#allocation2 + $0xd8] sm:$0xff]
      %v372 = vld [vmem:[#allocation2 + $0xe0] sm:$0xff]
      %v373 = vld [vmem:[#allocation2 + $0xe8] sm:$0xff]
      %v374 = vld [vmem:[#allocation2 + $0xf0] sm:$0xff]
      %v375 = vld [vmem:[#allocation2 + $0xf8] sm:$0xff]
      %v376 = vld [vmem:[%s281] sm:$0xff]
      %v377 = vld [vmem:[%s281 + $0x8] sm:$0xff]
      %v378 = vld [vmem:[%s281 + $0x10] sm:$0xff]
      %v379 = vld [vmem:[%s281 + $0x18] sm:$0xff]
      %v380 = vld [vmem:[%s281 + $0x20] sm:$0xff]
      %v381 = vld [vmem:[%s281 + $0x28] sm:$0xff]
      %v382 = vld [vmem:[%s281 + $0x30] sm:$0xff]
      %v383 = vld [vmem:[%s281 + $0x38] sm:$0xff]
      %v384 = vld [vmem:[%s281 + $0x40] sm:$0xff]
      %v385 = vld [vmem:[%s281 + $0x48] sm:$0xff]
      %v386 = vld [vmem:[%s281 + $0x50] sm:$0xff]
      %v387 = vld [vmem:[%s281 + $0x58] sm:$0xff]
      %v388 = vld [vmem:[%s281 + $0x60] sm:$0xff]
      %v389 = vld [vmem:[%s281 + $0x68] sm:$0xff]
      %v390 = vld [vmem:[%s281 + $0x70] sm:$0xff]
      %v391 = vld [vmem:[%s281 + $0x78] sm:$0xff]
      %v392 = vld [vmem:[%s281 + $0x80] sm:$0xff]
      %v393 = vld [vmem:[%s281 + $0x88] sm:$0xff]
      %v394 = vld [vmem:[%s281 + $0x90] sm:$0xff]
      %v395 = vld [vmem:[%s281 + $0x98] sm:$0xff]
      %v396 = vld [vmem:[%s281 + $0xa0] sm:$0xff]
      %v397 = vld [vmem:[%s281 + $0xa8] sm:$0xff]
      %v398 = vld [vmem:[%s281 + $0xb0] sm:$0xff]
      %v399 = vld [vmem:[%s281 + $0xb8] sm:$0xff]
      %v400 = vld [vmem:[%s281 + $0xc0] sm:$0xff]
      %v401 = vld [vmem:[%s281 + $0xc8] sm:$0xff]
      %v402 = vld [vmem:[%s281 + $0xd0] sm:$0xff]
      %v403 = vld [vmem:[%s281 + $0xd8] sm:$0xff]
      %v404 = vld [vmem:[%s281 + $0xe0] sm:$0xff]
      %v405 = vld [vmem:[%s281 + $0xe8] sm:$0xff]
      %v406 = vld [vmem:[%s281 + $0xf0] sm:$0xff]
      %v407 = vld [vmem:[%s281 + $0xf8] sm:$0xff]
      %v408 = vld [vmem:[%s291] sm:$0xf]
      %v409 = vld [vmem:[%s291 + $0x4] sm:$0xf]
      %v410 = vld [vmem:[%s291 + $0x8] sm:$0xf]
      %v411 = vld [vmem:[%s291 + $0xc] sm:$0xf]
      %v412 = vld [vmem:[%s291 + $0x10] sm:$0xf]
      %v413 = vld [vmem:[%s291 + $0x14] sm:$0xf]
      %v414 = vld [vmem:[%s291 + $0x18] sm:$0xf]
      %v415 = vld [vmem:[%s291 + $0x1c] sm:$0xf]
      %v416 = vld [vmem:[%s291 + $0x20] sm:$0xf]
      %v417 = vld [vmem:[%s291 + $0x24] sm:$0xf]
      %v418 = vld [vmem:[%s291 + $0x28] sm:$0xf]
      %v419 = vld [vmem:[%s291 + $0x2c] sm:$0xf]
      %v420 = vld [vmem:[%s291 + $0x30] sm:$0xf]
      %v421 = vld [vmem:[%s291 + $0x34] sm:$0xf]
      %v422 = vld [vmem:[%s291 + $0x38] sm:$0xf]
      %v423 = vld [vmem:[%s291 + $0x3c] sm:$0xf]
      %v424 = vld [vmem:[%s291 + $0x40] sm:$0xf]
      %v425 = vld [vmem:[%s291 + $0x44] sm:$0xf]
      %v426 = vld [vmem:[%s291 + $0x48] sm:$0xf]
      %v427 = vld [vmem:[%s291 + $0x4c] sm:$0xf]
      %v428 = vld [vmem:[%s291 + $0x50] sm:$0xf]
      %v429 = vld [vmem:[%s291 + $0x54] sm:$0xf]
      %v430 = vld [vmem:[%s291 + $0x58] sm:$0xf]
      %v431 = vld [vmem:[%s291 + $0x5c] sm:$0xf]
      %v432 = vld [vmem:[%s291 + $0x60] sm:$0xf]
      %v433 = vld [vmem:[%s291 + $0x64] sm:$0xf]
      %v434 = vld [vmem:[%s291 + $0x68] sm:$0xf]
      %v435 = vld [vmem:[%s291 + $0x6c] sm:$0xf]
      %v436 = vld [vmem:[%s291 + $0x70] sm:$0xf]
      %v437 = vld [vmem:[%s291 + $0x74] sm:$0xf]
      %v438 = vld [vmem:[%s291 + $0x78] sm:$0xf]
      %v439 = vld [vmem:[%s291 + $0x7c] sm:$0xf]
      %v472 = vunpack.c.l.b16 %v376
      %v473 = vunpack.c.h.b16 %v376
      %v474 = vunpack.c.l.b16 %v377
      %v475 = vunpack.c.h.b16 %v377
      %v476 = vunpack.c.l.b16 %v378
      %v477 = vunpack.c.h.b16 %v378
      %v478 = vunpack.c.l.b16 %v379
      %v479 = vunpack.c.h.b16 %v379
      %v480 = vunpack.c.l.b16 %v380
      %v481 = vunpack.c.h.b16 %v380
      %v482 = vunpack.c.l.b16 %v381
      %v483 = vunpack.c.h.b16 %v381
      %v484 = vunpack.c.l.b16 %v382
      %v485 = vunpack.c.h.b16 %v382
      %v486 = vunpack.c.l.b16 %v383
      %v487 = vunpack.c.h.b16 %v383
      %v488 = vunpack.c.l.b16 %v384
      %v489 = vunpack.c.h.b16 %v384
      %v490 = vunpack.c.l.b16 %v385
      %v491 = vunpack.c.h.b16 %v385
      %v492 = vunpack.c.l.b16 %v386
      %v493 = vunpack.c.h.b16 %v386
      %v494 = vunpack.c.l.b16 %v387
      %v495 = vunpack.c.h.b16 %v387
      %v496 = vunpack.c.l.b16 %v388
      %v497 = vunpack.c.h.b16 %v388
      %v498 = vunpack.c.l.b16 %v389
      %v499 = vunpack.c.h.b16 %v389
      %v500 = vunpack.c.l.b16 %v390
      %v501 = vunpack.c.h.b16 %v390
      %v502 = vunpack.c.l.b16 %v391
      %v503 = vunpack.c.h.b16 %v391
      %v504 = vunpack.c.l.b16 %v392
      %v505 = vunpack.c.h.b16 %v392
      %v506 = vunpack.c.l.b16 %v393
      %v507 = vunpack.c.h.b16 %v393
      %v508 = vunpack.c.l.b16 %v394
      %v509 = vunpack.c.h.b16 %v394
      %v510 = vunpack.c.l.b16 %v395
      %v511 = vunpack.c.h.b16 %v395
      %v512 = vunpack.c.l.b16 %v396
      %v513 = vunpack.c.h.b16 %v396
      %v514 = vunpack.c.l.b16 %v397
      %v515 = vunpack.c.h.b16 %v397
      %v516 = vunpack.c.l.b16 %v398
      %v517 = vunpack.c.h.b16 %v398
      %v518 = vunpack.c.l.b16 %v399
      %v519 = vunpack.c.h.b16 %v399
      %v520 = vunpack.c.l.b16 %v400
      %v521 = vunpack.c.h.b16 %v400
      %v522 = vunpack.c.l.b16 %v401
      %v523 = vunpack.c.h.b16 %v401
      %v524 = vunpack.c.l.b16 %v402
      %v525 = vunpack.c.h.b16 %v402
      %v526 = vunpack.c.l.b16 %v403
      %v527 = vunpack.c.h.b16 %v403
      %v528 = vunpack.c.l.b16 %v404
      %v529 = vunpack.c.h.b16 %v404
      %v530 = vunpack.c.l.b16 %v405
      %v531 = vunpack.c.h.b16 %v405
      %v532 = vunpack.c.l.b16 %v406
      %v533 = vunpack.c.h.b16 %v406
      %v534 = vunpack.c.l.b16 %v407
      %v535 = vunpack.c.h.b16 %v407
      %v536 = vpack.c.b16 %v474, %v472
      %v537 = vpack.c.b16 %v475, %v473
      %v538 = vpack.c.b16 %v478, %v476
      %v539 = vpack.c.b16 %v479, %v477
      %v540 = vpack.c.b16 %v482, %v480
      %v541 = vpack.c.b16 %v483, %v481
      %v542 = vpack.c.b16 %v486, %v484
      %v543 = vpack.c.b16 %v487, %v485
      %v544 = vpack.c.b16 %v490, %v488
      %v545 = vpack.c.b16 %v491, %v489
      %v546 = vpack.c.b16 %v494, %v492
      %v547 = vpack.c.b16 %v495, %v493
      %v548 = vpack.c.b16 %v498, %v496
      %v549 = vpack.c.b16 %v499, %v497
      %v550 = vpack.c.b16 %v502, %v500
      %v551 = vpack.c.b16 %v503, %v501
      %v552 = vpack.c.b16 %v506, %v504
      %v553 = vpack.c.b16 %v507, %v505
      %v554 = vpack.c.b16 %v510, %v508
      %v555 = vpack.c.b16 %v511, %v509
      %v556 = vpack.c.b16 %v514, %v512
      %v557 = vpack.c.b16 %v515, %v513
      %v558 = vpack.c.b16 %v518, %v516
      %v559 = vpack.c.b16 %v519, %v517
      %v560 = vpack.c.b16 %v522, %v520
      %v561 = vpack.c.b16 %v523, %v521
      %v562 = vpack.c.b16 %v526, %v524
      %v563 = vpack.c.b16 %v527, %v525
      %v564 = vpack.c.b16 %v530, %v528
      %v565 = vpack.c.b16 %v531, %v529
      %v566 = vpack.c.b16 %v534, %v532
      %v567 = vpack.c.b16 %v535, %v533
      %v632 = vunpack.c.l.b16 %v408
      %v633 = vunpack.c.l.b16 %v409
      %v634 = vunpack.c.l.b16 %v410
      %v635 = vunpack.c.l.b16 %v411
      %v636 = vunpack.c.l.b16 %v412
      %v637 = vunpack.c.l.b16 %v413
      %v638 = vunpack.c.l.b16 %v414
      %v639 = vunpack.c.l.b16 %v415
      %v640 = vunpack.c.l.b16 %v416
      %v641 = vunpack.c.l.b16 %v417
      %v642 = vunpack.c.l.b16 %v418
      %v643 = vunpack.c.l.b16 %v419
      %v644 = vunpack.c.l.b16 %v420
      %v645 = vunpack.c.l.b16 %v421
      %v646 = vunpack.c.l.b16 %v422
      %v647 = vunpack.c.l.b16 %v423
      %v648 = vunpack.c.l.b16 %v424
      %v649 = vunpack.c.l.b16 %v425
      %v650 = vunpack.c.l.b16 %v426
      %v651 = vunpack.c.l.b16 %v427
      %v652 = vunpack.c.l.b16 %v428
      %v653 = vunpack.c.l.b16 %v429
      %v654 = vunpack.c.l.b16 %v430
      %v655 = vunpack.c.l.b16 %v431
      %v656 = vunpack.c.l.b16 %v432
      %v657 = vunpack.c.l.b16 %v433
      %v658 = vunpack.c.l.b16 %v434
      %v659 = vunpack.c.l.b16 %v435
      %v660 = vunpack.c.l.b16 %v436
      %v661 = vunpack.c.l.b16 %v437
      %v662 = vunpack.c.l.b16 %v438
      %v663 = vunpack.c.l.b16 %v439
      %v664 = vpack.c.b16 %v633, %v632
      %v665 = vpack.c.b16 %v635, %v634
      %v666 = vpack.c.b16 %v637, %v636
      %v667 = vpack.c.b16 %v639, %v638
      %v668 = vpack.c.b16 %v641, %v640
      %v669 = vpack.c.b16 %v643, %v642
      %v670 = vpack.c.b16 %v645, %v644
      %v671 = vpack.c.b16 %v647, %v646
      %v672 = vpack.c.b16 %v649, %v648
      %v673 = vpack.c.b16 %v651, %v650
      %v674 = vpack.c.b16 %v653, %v652
      %v675 = vpack.c.b16 %v655, %v654
      %v676 = vpack.c.b16 %v657, %v656
      %v677 = vpack.c.b16 %v659, %v658
      %v678 = vpack.c.b16 %v661, %v660
      %v679 = vpack.c.b16 %v663, %v662
      %696 = vmatpush.bf16.msra.mxu0 %v671
      %697 = vmatpush.bf16.msra.mxu0 %v670
      %698 = vmatpush.bf16.msra.mxu0 %v669
      %699 = vmatpush.bf16.msra.mxu0 %v668
      %700 = vmatpush.bf16.msra.mxu0 %v667
      %701 = vmatpush.bf16.msra.mxu0 %v666
      %702 = vmatpush.bf16.msra.mxu0 %v665
      %703 = vmatpush.bf16.msra.mxu0 %v664
      %704 = vmatmul.bf16.gmra.mxu0 %v536
      %v705 = vpop.f32.mrf.mxu0
      %v706 = vadd.f32 0.0, %v705
      %v707 = vpop.f32.mrf.mxu0
      %v708 = vadd.f32 0.0, %v707
      %709 = vmatmul.bf16.gmra.mxu0 %v538
      %v710 = vpop.f32.mrf.mxu0
      %v711 = vadd.f32 0.0, %v710
      %v712 = vpop.f32.mrf.mxu0
      %v713 = vadd.f32 0.0, %v712
      %714 = vmatmul.bf16.gmra.mxu0 %v540
      %v715 = vpop.f32.mrf.mxu0
      %v716 = vadd.f32 0.0, %v715
      %v717 = vpop.f32.mrf.mxu0
      %v718 = vadd.f32 0.0, %v717
      %719 = vmatmul.bf16.gmra.mxu0 %v542
      %v720 = vpop.f32.mrf.mxu0
      %v721 = vadd.f32 0.0, %v720
      %v722 = vpop.f32.mrf.mxu0
      %v723 = vadd.f32 0.0, %v722
      %724 = vmatmul.bf16.gmra.mxu0 %v544
      %v725 = vpop.f32.mrf.mxu0
      %v726 = vadd.f32 0.0, %v725
      %v727 = vpop.f32.mrf.mxu0
      %v728 = vadd.f32 0.0, %v727
      %729 = vmatmul.bf16.gmra.mxu0 %v546
      %v730 = vpop.f32.mrf.mxu0
      %v731 = vadd.f32 0.0, %v730
      %v732 = vpop.f32.mrf.mxu0
      %v733 = vadd.f32 0.0, %v732
      %734 = vmatmul.bf16.gmra.mxu0 %v548
      %v735 = vpop.f32.mrf.mxu0
      %v736 = vadd.f32 0.0, %v735
      %v737 = vpop.f32.mrf.mxu0
      %v738 = vadd.f32 0.0, %v737
      %739 = vmatmul.bf16.gmra.mxu0 %v550
      %v740 = vpop.f32.mrf.mxu0
      %v741 = vadd.f32 0.0, %v740
      %v742 = vpop.f32.mrf.mxu0
      %v743 = vadd.f32 0.0, %v742
      %744 = vmatmul.bf16.gmra.mxu0 %v552
      %v745 = vpop.f32.mrf.mxu0
      %v746 = vadd.f32 0.0, %v745
      %v747 = vpop.f32.mrf.mxu0
      %v748 = vadd.f32 0.0, %v747
      %749 = vmatmul.bf16.gmra.mxu0 %v554
      %v750 = vpop.f32.mrf.mxu0
      %v751 = vadd.f32 0.0, %v750
      %v752 = vpop.f32.mrf.mxu0
      %v753 = vadd.f32 0.0, %v752
      %754 = vmatmul.bf16.gmra.mxu0 %v556
      %v755 = vpop.f32.mrf.mxu0
      %v756 = vadd.f32 0.0, %v755
      %v757 = vpop.f32.mrf.mxu0
      %v758 = vadd.f32 0.0, %v757
      %759 = vmatmul.bf16.gmra.mxu0 %v558
      %v760 = vpop.f32.mrf.mxu0
      %v761 = vadd.f32 0.0, %v760
      %v762 = vpop.f32.mrf.mxu0
      %v763 = vadd.f32 0.0, %v762
      %764 = vmatmul.bf16.gmra.mxu0 %v560
      %v765 = vpop.f32.mrf.mxu0
      %v766 = vadd.f32 0.0, %v765
      %v767 = vpop.f32.mrf.mxu0
      %v768 = vadd.f32 0.0, %v767
      %769 = vmatmul.bf16.gmra.mxu0 %v562
      %v770 = vpop.f32.mrf.mxu0
      %v771 = vadd.f32 0.0, %v770
      %v772 = vpop.f32.mrf.mxu0
      %v773 = vadd.f32 0.0, %v772
      %774 = vmatmul.bf16.gmra.mxu0 %v564
      %v775 = vpop.f32.mrf.mxu0
      %v776 = vadd.f32 0.0, %v775
      %v777 = vpop.f32.mrf.mxu0
      %v778 = vadd.f32 0.0, %v777
      %779 = vmatmul.bf16.gmra.mxu0 %v566
      %v780 = vpop.f32.mrf.mxu0
      %v781 = vadd.f32 0.0, %v780
      %v782 = vpop.f32.mrf.mxu0
      %v783 = vadd.f32 0.0, %v782
      %784 = vdwg.mxu0
      %785 = vmatpush.bf16.msra.mxu0 %v679
      %786 = vmatpush.bf16.msra.mxu0 %v678
      %787 = vmatpush.bf16.msra.mxu0 %v677
      %788 = vmatpush.bf16.msra.mxu0 %v676
      %789 = vmatpush.bf16.msra.mxu0 %v675
      %790 = vmatpush.bf16.msra.mxu0 %v674
      %791 = vmatpush.bf16.msra.mxu0 %v673
      %792 = vmatpush.bf16.msra.mxu0 %v672
      %793 = vmatmul.bf16.gmra.mxu0 %v537
      %v794 = vpop.f32.mrf.mxu0
      %v795 = vadd.f32 %v706, %v794
      %v796 = vpop.f32.mrf.mxu0
      %v797 = vadd.f32 %v708, %v796
      %798 = vmatmul.bf16.gmra.mxu0 %v539
      %v799 = vpop.f32.mrf.mxu0
      %v800 = vadd.f32 %v711, %v799
      %v801 = vpop.f32.mrf.mxu0
      %v802 = vadd.f32 %v713, %v801
      %803 = vmatmul.bf16.gmra.mxu0 %v541
      %v804 = vpop.f32.mrf.mxu0
      %v805 = vadd.f32 %v716, %v804
      %v806 = vpop.f32.mrf.mxu0
      %v807 = vadd.f32 %v718, %v806
      %808 = vmatmul.bf16.gmra.mxu0 %v543
      %v809 = vpop.f32.mrf.mxu0
      %v810 = vadd.f32 %v721, %v809
      %v811 = vpop.f32.mrf.mxu0
      %v812 = vadd.f32 %v723, %v811
      %813 = vmatmul.bf16.gmra.mxu0 %v545
      %v814 = vpop.f32.mrf.mxu0
      %v815 = vadd.f32 %v726, %v814
      %v816 = vpop.f32.mrf.mxu0
      %v817 = vadd.f32 %v728, %v816
      %818 = vmatmul.bf16.gmra.mxu0 %v547
      %v819 = vpop.f32.mrf.mxu0
      %v820 = vadd.f32 %v731, %v819
      %v821 = vpop.f32.mrf.mxu0
      %v822 = vadd.f32 %v733, %v821
      %823 = vmatmul.bf16.gmra.mxu0 %v549
      %v824 = vpop.f32.mrf.mxu0
      %v825 = vadd.f32 %v736, %v824
      %v826 = vpop.f32.mrf.mxu0
      %v827 = vadd.f32 %v738, %v826
      %828 = vmatmul.bf16.gmra.mxu0 %v551
      %v829 = vpop.f32.mrf.mxu0
      %v830 = vadd.f32 %v741, %v829
      %v831 = vpop.f32.mrf.mxu0
      %v832 = vadd.f32 %v743, %v831
      %833 = vmatmul.bf16.gmra.mxu0 %v553
      %v834 = vpop.f32.mrf.mxu0
      %v835 = vadd.f32 %v746, %v834
      %v836 = vpop.f32.mrf.mxu0
      %v837 = vadd.f32 %v748, %v836
      %838 = vmatmul.bf16.gmra.mxu0 %v555
      %v839 = vpop.f32.mrf.mxu0
      %v840 = vadd.f32 %v751, %v839
      %v841 = vpop.f32.mrf.mxu0
      %v842 = vadd.f32 %v753, %v841
      %843 = vmatmul.bf16.gmra.mxu0 %v557
      %v844 = vpop.f32.mrf.mxu0
      %v845 = vadd.f32 %v756, %v844
      %v846 = vpop.f32.mrf.mxu0
      %v847 = vadd.f32 %v758, %v846
      %848 = vmatmul.bf16.gmra.mxu0 %v559
      %v849 = vpop.f32.mrf.mxu0
      %v850 = vadd.f32 %v761, %v849
      %v851 = vpop.f32.mrf.mxu0
      %v852 = vadd.f32 %v763, %v851
      %853 = vmatmul.bf16.gmra.mxu0 %v561
      %v854 = vpop.f32.mrf.mxu0
      %v855 = vadd.f32 %v766, %v854
      %v856 = vpop.f32.mrf.mxu0
      %v857 = vadd.f32 %v768, %v856
      %858 = vmatmul.bf16.gmra.mxu0 %v563
      %v859 = vpop.f32.mrf.mxu0
      %v860 = vadd.f32 %v771, %v859
      %v861 = vpop.f32.mrf.mxu0
      %v862 = vadd.f32 %v773, %v861
      %863 = vmatmul.bf16.gmra.mxu0 %v565
      %v864 = vpop.f32.mrf.mxu0
      %v865 = vadd.f32 %v776, %v864
      %v866 = vpop.f32.mrf.mxu0
      %v867 = vadd.f32 %v778, %v866
      %868 = vmatmul.bf16.gmra.mxu0 %v567
      %v869 = vpop.f32.mrf.mxu0
      %v870 = vadd.f32 %v781, %v869
      %v871 = vpop.f32.mrf.mxu0
      %v872 = vadd.f32 %v783, %v871
      %873 = vdwg.mxu0
      %v874 = vadd.f32 %v344, %v795
      %v875 = vadd.f32 %v345, %v797
      %v876 = vadd.f32 %v346, %v800
      %v877 = vadd.f32 %v347, %v802
      %v878 = vadd.f32 %v348, %v805
      %v879 = vadd.f32 %v349, %v807
      %v880 = vadd.f32 %v350, %v810
      %v881 = vadd.f32 %v351, %v812
      %v882 = vadd.f32 %v352, %v815
      %v883 = vadd.f32 %v353, %v817
      %v884 = vadd.f32 %v354, %v820
      %v885 = vadd.f32 %v355, %v822
      %v886 = vadd.f32 %v356, %v825
      %v887 = vadd.f32 %v357, %v827
      %v888 = vadd.f32 %v358, %v830
      %v889 = vadd.f32 %v359, %v832
      %v890 = vadd.f32 %v360, %v835
      %v891 = vadd.f32 %v361, %v837
      %v892 = vadd.f32 %v362, %v840
      %v893 = vadd.f32 %v363, %v842
      %v894 = vadd.f32 %v364, %v845
      %v895 = vadd.f32 %v365, %v847
      %v896 = vadd.f32 %v366, %v850
      %v897 = vadd.f32 %v367, %v852
      %v898 = vadd.f32 %v368, %v855
      %v899 = vadd.f32 %v369, %v857
      %v900 = vadd.f32 %v370, %v860
      %v901 = vadd.f32 %v371, %v862
      %v902 = vadd.f32 %v372, %v865
      %v903 = vadd.f32 %v373, %v867
      %v904 = vadd.f32 %v374, %v870
      %v905 = vadd.f32 %v375, %v872
      %906 = vst [vmem:[#allocation2] sm:$0xff] %v874
      %907 = vst [vmem:[#allocation2 + $0x8] sm:$0xff] %v875
      %908 = vst [vmem:[#allocation2 + $0x10] sm:$0xff] %v876
      %909 = vst [vmem:[#allocation2 + $0x18] sm:$0xff] %v877
      %910 = vst [vmem:[#allocation2 + $0x20] sm:$0xff] %v878
      %911 = vst [vmem:[#allocation2 + $0x28] sm:$0xff] %v879
      %912 = vst [vmem:[#allocation2 + $0x30] sm:$0xff] %v880
      %913 = vst [vmem:[#allocation2 + $0x38] sm:$0xff] %v881
      %914 = vst [vmem:[#allocation2 + $0x40] sm:$0xff] %v882
      %915 = vst [vmem:[#allocation2 + $0x48] sm:$0xff] %v883
      %916 = vst [vmem:[#allocation2 + $0x50] sm:$0xff] %v884
      %917 = vst [vmem:[#allocation2 + $0x58] sm:$0xff] %v885
      %918 = vst [vmem:[#allocation2 + $0x60] sm:$0xff] %v886
      %919 = vst [vmem:[#allocation2 + $0x68] sm:$0xff] %v887
      %920 = vst [vmem:[#allocation2 + $0x70] sm:$0xff] %v888
      %921 = vst [vmem:[#allocation2 + $0x78] sm:$0xff] %v889
      %922 = vst [vmem:[#allocation2 + $0x80] sm:$0xff] %v890
      %923 = vst [vmem:[#allocation2 + $0x88] sm:$0xff] %v891
      %924 = vst [vmem:[#allocation2 + $0x90] sm:$0xff] %v892
      %925 = vst [vmem:[#allocation2 + $0x98] sm:$0xff] %v893
      %926 = vst [vmem:[#allocation2 + $0xa0] sm:$0xff] %v894
      %927 = vst [vmem:[#allocation2 + $0xa8] sm:$0xff] %v895
      %928 = vst [vmem:[#allocation2 + $0xb0] sm:$0xff] %v896
      %929 = vst [vmem:[#allocation2 + $0xb8] sm:$0xff] %v897
      %930 = vst [vmem:[#allocation2 + $0xc0] sm:$0xff] %v898
      %931 = vst [vmem:[#allocation2 + $0xc8] sm:$0xff] %v899
      %932 = vst [vmem:[#allocation2 + $0xd0] sm:$0xff] %v900
      %933 = vst [vmem:[#allocation2 + $0xd8] sm:$0xff] %v901
      %934 = vst [vmem:[#allocation2 + $0xe0] sm:$0xff] %v902
      %935 = vst [vmem:[#allocation2 + $0xe8] sm:$0xff] %v903
      %936 = vst [vmem:[#allocation2 + $0xf0] sm:$0xff] %v904
      %937 = vst [vmem:[#allocation2 + $0xf8] sm:$0xff] %v905
      // Predicated region
      $region41: #{resnet_forward.13} parent=35 // pred_check
        %p938 = pneg %p308
      $region42: #{resnet_forward.13} parent=35 // pred_check_branch
        %940 = sbr.rel (%p938) target = $region44
      $region43: #{resnet_forward.13} parent=35 // pred_region
        %v941 = vld [vmem:[#allocation2] sm:$0xff]
        %v942 = vld [vmem:[#allocation2 + $0x8] sm:$0xff]
        %v943 = vld [vmem:[#allocation2 + $0x10] sm:$0xff]
        %v944 = vld [vmem:[#allocation2 + $0x18] sm:$0xff]
        %v945 = vld [vmem:[#allocation2 + $0x20] sm:$0xff]
        %v946 = vld [vmem:[#allocation2 + $0x28] sm:$0xff]
        %v947 = vld [vmem:[#allocation2 + $0x30] sm:$0xff]
        %v948 = vld [vmem:[#allocation2 + $0x38] sm:$0xff]
        %v949 = vld [vmem:[#allocation2 + $0x40] sm:$0xff]
        %v950 = vld [vmem:[#allocation2 + $0x48] sm:$0xff]
        %v951 = vld [vmem:[#allocation2 + $0x50] sm:$0xff]
        %v952 = vld [vmem:[#allocation2 + $0x58] sm:$0xff]
        %v953 = vld [vmem:[#allocation2 + $0x60] sm:$0xff]
        %v954 = vld [vmem:[#allocation2 + $0x68] sm:$0xff]
        %v955 = vld [vmem:[#allocation2 + $0x70] sm:$0xff]
        %v956 = vld [vmem:[#allocation2 + $0x78] sm:$0xff]
        %v957 = vld [vmem:[#allocation2 + $0x80] sm:$0xff]
        %v958 = vld [vmem:[#allocation2 + $0x88] sm:$0xff]
        %v959 = vld [vmem:[#allocation2 + $0x90] sm:$0xff]
        %v960 = vld [vmem:[#allocation2 + $0x98] sm:$0xff]
        %v961 = vld [vmem:[#allocation2 + $0xa0] sm:$0xff]
        %v962 = vld [vmem:[#allocation2 + $0xa8] sm:$0xff]
        %v963 = vld [vmem:[#allocation2 + $0xb0] sm:$0xff]
        %v964 = vld [vmem:[#allocation2 + $0xb8] sm:$0xff]
        %v965 = vld [vmem:[#allocation2 + $0xc0] sm:$0xff]
        %v966 = vld [vmem:[#allocation2 + $0xc8] sm:$0xff]
        %v967 = vld [vmem:[#allocation2 + $0xd0] sm:$0xff]
        %v968 = vld [vmem:[#allocation2 + $0xd8] sm:$0xff]
        %v969 = vld [vmem:[#allocation2 + $0xe0] sm:$0xff]
        %v970 = vld [vmem:[#allocation2 + $0xe8] sm:$0xff]
        %v971 = vld [vmem:[#allocation2 + $0xf0] sm:$0xff]
        %v972 = vld [vmem:[#allocation2 + $0xf8] sm:$0xff]
        %v973 = vld [vmem:[%s295] sm:$0x1]
        %v975 = vperm.slane %v973, 0
        %v977 = vmul.f32 %v941, %v975
        %v978 = vmul.f32 %v942, %v975
        %v979 = vmul.f32 %v943, %v975
        %v980 = vmul.f32 %v944, %v975
        %v981 = vmul.f32 %v945, %v975
        %v982 = vmul.f32 %v946, %v975
        %v983 = vmul.f32 %v947, %v975
        %v984 = vmul.f32 %v948, %v975
        %v985 = vmul.f32 %v949, %v975
        %v986 = vmul.f32 %v950, %v975
        %v987 = vmul.f32 %v951, %v975
        %v988 = vmul.f32 %v952, %v975
        %v989 = vmul.f32 %v953, %v975
        %v990 = vmul.f32 %v954, %v975
        %v991 = vmul.f32 %v955, %v975
        %v992 = vmul.f32 %v956, %v975
        %v993 = vmul.f32 %v957, %v975
        %v994 = vmul.f32 %v958, %v975
        %v995 = vmul.f32 %v959, %v975
        %v996 = vmul.f32 %v960, %v975
        %v997 = vmul.f32 %v961, %v975
        %v998 = vmul.f32 %v962, %v975
        %v999 = vmul.f32 %v963, %v975
        %v1000 = vmul.f32 %v964, %v975
        %v1001 = vmul.f32 %v965, %v975
        %v1002 = vmul.f32 %v966, %v975
        %v1003 = vmul.f32 %v967, %v975
        %v1004 = vmul.f32 %v968, %v975
        %v1005 = vmul.f32 %v969, %v975
        %v1006 = vmul.f32 %v970, %v975
        %v1007 = vmul.f32 %v971, %v975
        %v1008 = vmul.f32 %v972, %v975
        %v1009 = vld [vmem:[%s298] sm:$0x1]
        %v1011 = vperm.slane %v1009, 0
        %v1013 = vadd.f32 %v977, %v1011
        %v1014 = vadd.f32 %v978, %v1011
        %v1015 = vadd.f32 %v979, %v1011
        %v1016 = vadd.f32 %v980, %v1011
        %v1017 = vadd.f32 %v981, %v1011
        %v1018 = vadd.f32 %v982, %v1011
        %v1019 = vadd.f32 %v983, %v1011
        %v1020 = vadd.f32 %v984, %v1011
        %v1021 = vadd.f32 %v985, %v1011
        %v1022 = vadd.f32 %v986, %v1011
        %v1023 = vadd.f32 %v987, %v1011
        %v1024 = vadd.f32 %v988, %v1011
        %v1025 = vadd.f32 %v989, %v1011
        %v1026 = vadd.f32 %v990, %v1011
        %v1027 = vadd.f32 %v991, %v1011
        %v1028 = vadd.f32 %v992, %v1011
        %v1029 = vadd.f32 %v993, %v1011
        %v1030 = vadd.f32 %v994, %v1011
        %v1031 = vadd.f32 %v995, %v1011
        %v1032 = vadd.f32 %v996, %v1011
        %v1033 = vadd.f32 %v997, %v1011
        %v1034 = vadd.f32 %v998, %v1011
        %v1035 = vadd.f32 %v999, %v1011
        %v1036 = vadd.f32 %v1000, %v1011
        %v1037 = vadd.f32 %v1001, %v1011
        %v1038 = vadd.f32 %v1002, %v1011
        %v1039 = vadd.f32 %v1003, %v1011
        %v1040 = vadd.f32 %v1004, %v1011
        %v1041 = vadd.f32 %v1005, %v1011
        %v1042 = vadd.f32 %v1006, %v1011
        %v1043 = vadd.f32 %v1007, %v1011
        %v1044 = vadd.f32 %v1008, %v1011
        %v1045 = vmax.f32 %v1013, 0.0
        %v1046 = vmax.f32 %v1014, 0.0
        %v1047 = vmax.f32 %v1015, 0.0
        %v1048 = vmax.f32 %v1016, 0.0
        %v1049 = vmax.f32 %v1017, 0.0
        %v1050 = vmax.f32 %v1018, 0.0
        %v1051 = vmax.f32 %v1019, 0.0
        %v1052 = vmax.f32 %v1020, 0.0
        %v1053 = vmax.f32 %v1021, 0.0
        %v1054 = vmax.f32 %v1022, 0.0
        %v1055 = vmax.f32 %v1023, 0.0
        %v1056 = vmax.f32 %v1024, 0.0
        %v1057 = vmax.f32 %v1025, 0.0
        %v1058 = vmax.f32 %v1026, 0.0
        %v1059 = vmax.f32 %v1027, 0.0
        %v1060 = vmax.f32 %v1028, 0.0
        %v1061 = vmax.f32 %v1029, 0.0
        %v1062 = vmax.f32 %v1030, 0.0
        %v1063 = vmax.f32 %v1031, 0.0
        %v1064 = vmax.f32 %v1032, 0.0
        %v1065 = vmax.f32 %v1033, 0.0
        %v1066 = vmax.f32 %v1034, 0.0
        %v1067 = vmax.f32 %v1035, 0.0
        %v1068 = vmax.f32 %v1036, 0.0
        %v1069 = vmax.f32 %v1037, 0.0
        %v1070 = vmax.f32 %v1038, 0.0
        %v1071 = vmax.f32 %v1039, 0.0
        %v1072 = vmax.f32 %v1040, 0.0
        %v1073 = vmax.f32 %v1041, 0.0
        %v1074 = vmax.f32 %v1042, 0.0
        %v1075 = vmax.f32 %v1043, 0.0
        %v1076 = vmax.f32 %v1044, 0.0
        %1077 = vst [vmem:[%s306] sm:$0xff] %v1045
        %1078 = vst [vmem:[%s306 + $0x8] sm:$0xff] %v1046
        %1079 = vst [vmem:[%s306 + $0x10] sm:$0xff] %v1047
        %1080 = vst [vmem:[%s306 + $0x18] sm:$0xff] %v1048
        %1081 = vst [vmem:[%s306 + $0x20] sm:$0xff] %v1049
        %1082 = vst [vmem:[%s306 + $0x28] sm:$0xff] %v1050
        %1083 = vst [vmem:[%s306 + $0x30] sm:$0xff] %v1051
        %1084 = vst [vmem:[%s306 + $0x38] sm:$0xff] %v1052
        %1085 = vst [vmem:[%s306 + $0x40] sm:$0xff] %v1053
        %1086 = vst [vmem:[%s306 + $0x48] sm:$0xff] %v1054
        %1087 = vst [vmem:[%s306 + $0x50] sm:$0xff] %v1055
        %1088 = vst [vmem:[%s306 + $0x58] sm:$0xff] %v1056
        %1089 = vst [vmem:[%s306 + $0x60] sm:$0xff] %v1057
        %1090 = vst [vmem:[%s306 + $0x68] sm:$0xff] %v1058
        %1091 = vst [vmem:[%s306 + $0x70] sm:$0xff] %v1059
        %1092 = vst [vmem:[%s306 + $0x78] sm:$0xff] %v1060
        %1093 = vst [vmem:[%s306 + $0x80] sm:$0xff] %v1061
        %1094 = vst [vmem:[%s306 + $0x88] sm:$0xff] %v1062
        %1095 = vst [vmem:[%s306 + $0x90] sm:$0xff] %v1063
        %1096 = vst [vmem:[%s306 + $0x98] sm:$0xff] %v1064
        %1097 = vst [vmem:[%s306 + $0xa0] sm:$0xff] %v1065
        %1098 = vst [vmem:[%s306 + $0xa8] sm:$0xff] %v1066
        %1099 = vst [vmem:[%s306 + $0xb0] sm:$0xff] %v1067
        %1100 = vst [vmem:[%s306 + $0xb8] sm:$0xff] %v1068
        %1101 = vst [vmem:[%s306 + $0xc0] sm:$0xff] %v1069
        %1102 = vst [vmem:[%s306 + $0xc8] sm:$0xff] %v1070
        %1103 = vst [vmem:[%s306 + $0xd0] sm:$0xff] %v1071
        %1104 = vst [vmem:[%s306 + $0xd8] sm:$0xff] %v1072
        %1105 = vst [vmem:[%s306 + $0xe0] sm:$0xff] %v1073
        %1106 = vst [vmem:[%s306 + $0xe8] sm:$0xff] %v1074
        %1107 = vst [vmem:[%s306 + $0xf0] sm:$0xff] %v1075
        %1108 = vst [vmem:[%s306 + $0xf8] sm:$0xff] %v1076
      $region44: #{resnet_forward.13} parent=35 // pred_fallthru
        _
      %s1109 = smul.u32 32, %s20
      %p1110 = scmp.lt.s32.totalorder %s1109, 63
      %s1111 = scalar_select %p1110, %s1109, 63
      %p1112 = scmp.lt.s32.totalorder %s21, 0
      %s1113 = scalar_select %p1112, %s21, 0
      %s1114 = sadd.s32 %s1113, %s1111
      %s1115 = smul.addr %s1114, 8
      %s1116 = scalar_lea.vmem %s4, %s1115
      // Predicated region
      $region45: #{resnet_forward.13} parent=35 // pred_check
        %p1117 = pneg %p162
      $region46: #{resnet_forward.13} parent=35 // pred_check_branch
        %1119 = sbr.rel (%p1117) target = $region48
      $region47: #{resnet_forward.13} parent=35 // pred_region
        %s1120 = smul.u32 32, %s20
      $region48: #{resnet_forward.13} parent=35 // pred_fallthru
        _
    $region36: #{resnet_forward.13} parent=5 // pred_fallthru
      _
    %p1121 = scmp.le.s32.totalorder 2, %s10
    // Predicated region
    $region49: #{resnet_forward.13} parent=5 // pred_check
      %p1122 = pneg %p1121
    $region50: #{resnet_forward.13} parent=5 // pred_check_branch
      %1124 = sbr.rel (%p1122) target = $region52
    $region51: #{resnet_forward.13} parent=5 // pred_region
      %s1125 = ssub.s32 %s10, 2
      // Predicated region
      $region53: #{resnet_forward.13} parent=51 // pred_check
        %p1126 = pneg %p168
      $region54: #{resnet_forward.13} parent=51 // pred_check_branch
        %1128 = sbr.rel (%p1126) target = $region56
      $region55: #{resnet_forward.13} parent=51 // pred_region
        %s1129 = smul.u32 32, %s23
        %p1130 = scmp.lt.s32.totalorder %s1129, 63
        %s1131 = scalar_select %p1130, %s1129, 63
        %p1132 = scmp.lt.s32.totalorder %s24, 0
        %s1133 = scalar_select %p1132, %s24, 0
        %s1134 = sadd.s32 %s1133, %s1131
        %s1135 = smul.addr %s1134, 8
        %s1136 = scalar_lea.vmem %s4, %s1135
      $region56: #{resnet_forward.13} parent=51 // pred_fallthru
        _
    $region52: #{resnet_forward.13} parent=5 // pred_fallthru
      _
  $region6: #{resnet_forward.13} parent=0 // loop_footer
    %s14 = sadd.s32 1, %s10
  $region7: #{resnet_forward.13} parent=0 // loop_footer_branch
    %9 = sbr.rel target = $region3
  $region8: #{resnet_forward.13} parent=0 // loop_exit
    _

// kernel: resnet_forward.14
$region0: #{resnet_forward.14}
  #allocation0 [shape = 'u32[]', space=smem, size = 0x4, offset = 0x4, fixed_abs, tag = 'smem constant byte address 0x4 - core index']
  #allocation1 [shape = 'u32[72,128]{1,0:T(1,128)}', space=vmem, size = 0x9000, scoped, tag = 'internal scratch']
  #allocation2 [shape = 'f32[128,128]{1,0:T(8,128)}', space=vmem, size = 0x10000, scoped, tag = 'scratch operand']
  %s0 = inlined_call_operand.vmem [shape: bf16[128,640], index: 0, kind: input, shape index: {}]
  %s1 = inlined_call_operand.vmem [shape: bf16[640,128], index: 1, kind: input, shape index: {}]
  %s2 = inlined_call_operand.vmem [shape: f32[1,128], index: 2, kind: input, shape index: {}]
  %s3 = inlined_call_operand.vmem [shape: f32[1,128], index: 3, kind: input, shape index: {}]
  %s4 = inlined_call_operand.vmem [shape: f32[128,128], index: 4, kind: output, shape index: {}]
  %s5 = sld [smem:[#allocation0]]
  $region34: #{resnet_forward.14} parent=0
    _
  %s7 = ssub.s32 1, %s5
  %s8 = scalar_select 0, %s7, %s5
  // Predicated region
  $region2: #{resnet_forward.14} parent=0 // pred_check
    _
  $region3: #{resnet_forward.14} parent=0 // pred_check_branch
    %10 = sbr.rel (0) target = $region5
  $region4: #{resnet_forward.14} parent=0 // pred_region
    _
  $region5: #{resnet_forward.14} parent=0 // pred_fallthru
    _
  // Predicated region
  $region6: #{resnet_forward.14} parent=0 // pred_check
    _
  $region7: #{resnet_forward.14} parent=0 // pred_check_branch
    %12 = sbr.rel (0) target = $region9
  $region8: #{resnet_forward.14} parent=0 // pred_region
    _
  $region9: #{resnet_forward.14} parent=0 // pred_fallthru
    _
  // Predicated region
  $region10: #{resnet_forward.14} parent=0 // pred_check
    _
  $region11: #{resnet_forward.14} parent=0 // pred_check_branch
    %14 = sbr.rel (0) target = $region13
  $region12: #{resnet_forward.14} parent=0 // pred_region
    _
  $region13: #{resnet_forward.14} parent=0 // pred_fallthru
    _
  // Predicated region
  $region14: #{resnet_forward.14} parent=0 // pred_check
    _
  $region15: #{resnet_forward.14} parent=0 // pred_check_branch
    %16 = sbr.rel (0) target = $region17
  $region16: #{resnet_forward.14} parent=0 // pred_region
    _
  $region17: #{resnet_forward.14} parent=0 // pred_fallthru
    _
  %p17 = scmp.eq.s32.totalorder 0, 0
  // Predicated region
  $region18: #{resnet_forward.14} parent=0 // pred_check
    %p18 = pneg %p17
  $region19: #{resnet_forward.14} parent=0 // pred_check_branch
    %20 = sbr.rel (%p18) target = $region21
  $region20: #{resnet_forward.14} parent=0 // pred_region
    %21 = vst [vmem:[#allocation2] sm:$0xff] 0.0
    %22 = vst [vmem:[#allocation2 + $0x8] sm:$0xff] 0.0
    %23 = vst [vmem:[#allocation2 + $0x10] sm:$0xff] 0.0
    %24 = vst [vmem:[#allocation2 + $0x18] sm:$0xff] 0.0
    %25 = vst [vmem:[#allocation2 + $0x20] sm:$0xff] 0.0
    %26 = vst [vmem:[#allocation2 + $0x28] sm:$0xff] 0.0
    %27 = vst [vmem:[#allocation2 + $0x30] sm:$0xff] 0.0
    %28 = vst [vmem:[#allocation2 + $0x38] sm:$0xff] 0.0
    %29 = vst [vmem:[#allocation2 + $0x40] sm:$0xff] 0.0
    %30 = vst [vmem:[#allocation2 + $0x48] sm:$0xff] 0.0
    %31 = vst [vmem:[#allocation2 + $0x50] sm:$0xff] 0.0
    %32 = vst [vmem:[#allocation2 + $0x58] sm:$0xff] 0.0
    %33 = vst [vmem:[#allocation2 + $0x60] sm:$0xff] 0.0
    %34 = vst [vmem:[#allocation2 + $0x68] sm:$0xff] 0.0
    %35 = vst [vmem:[#allocation2 + $0x70] sm:$0xff] 0.0
    %36 = vst [vmem:[#allocation2 + $0x78] sm:$0xff] 0.0
  $region21: #{resnet_forward.14} parent=0 // pred_fallthru
    _
  %v37 = vld [vmem:[#allocation2] sm:$0xff]
  %v38 = vld [vmem:[#allocation2 + $0x8] sm:$0xff]
  %v39 = vld [vmem:[#allocation2 + $0x10] sm:$0xff]
  %v40 = vld [vmem:[#allocation2 + $0x18] sm:$0xff]
  %v41 = vld [vmem:[#allocation2 + $0x20] sm:$0xff]
  %v42 = vld [vmem:[#allocation2 + $0x28] sm:$0xff]
  %v43 = vld [vmem:[#allocation2 + $0x30] sm:$0xff]
  %v44 = vld [vmem:[#allocation2 + $0x38] sm:$0xff]
  %v45 = vld [vmem:[#allocation2 + $0x40] sm:$0xff]
  %v46 = vld [vmem:[#allocation2 + $0x48] sm:$0xff]
  %v47 = vld [vmem:[#allocation2 + $0x50] sm:$0xff]
  %v48 = vld [vmem:[#allocation2 + $0x58] sm:$0xff]
  %v49 = vld [vmem:[#allocation2 + $0x60] sm:$0xff]
  %v50 = vld [vmem:[#allocation2 + $0x68] sm:$0xff]
  %v51 = vld [vmem:[#allocation2 + $0x70] sm:$0xff]
  %v52 = vld [vmem:[#allocation2 + $0x78] sm:$0xff]
  %v53 = vld [vmem:[%s0] sm:$0xff]
  %v54 = vld [vmem:[%s0 + $0x8] sm:$0xff]
  %v55 = vld [vmem:[%s0 + $0x10] sm:$0xf]
  %v56 = vld [vmem:[%s0 + $0x14] sm:$0xff]
  %v57 = vld [vmem:[%s0 + $0x1c] sm:$0xff]
  %v58 = vld [vmem:[%s0 + $0x24] sm:$0xf]
  %v59 = vld [vmem:[%s0 + $0x28] sm:$0xff]
  %v60 = vld [vmem:[%s0 + $0x30] sm:$0xff]
  %v61 = vld [vmem:[%s0 + $0x38] sm:$0xf]
  %v62 = vld [vmem:[%s0 + $0x3c] sm:$0xff]
  %v63 = vld [vmem:[%s0 + $0x44] sm:$0xff]
  %v64 = vld [vmem:[%s0 + $0x4c] sm:$0xf]
  %v65 = vld [vmem:[%s0 + $0x50] sm:$0xff]
  %v66 = vld [vmem:[%s0 + $0x58] sm:$0xff]
  %v67 = vld [vmem:[%s0 + $0x60] sm:$0xf]
  %v68 = vld [vmem:[%s0 + $0x64] sm:$0xff]
  %v69 = vld [vmem:[%s0 + $0x6c] sm:$0xff]
  %v70 = vld [vmem:[%s0 + $0x74] sm:$0xf]
  %v71 = vld [vmem:[%s0 + $0x78] sm:$0xff]
  %v72 = vld [vmem:[%s0 + $0x80] sm:$0xff]
  %v73 = vld [vmem:[%s0 + $0x88] sm:$0xf]
  %v74 = vld [vmem:[%s0 + $0x8c] sm:$0xff]
  %v75 = vld [vmem:[%s0 + $0x94] sm:$0xff]
  %v76 = vld [vmem:[%s0 + $0x9c] sm:$0xf]
  %v77 = vld [vmem:[%s0 + $0xa0] sm:$0xff]
  %v78 = vld [vmem:[%s0 + $0xa8] sm:$0xff]
  %v79 = vld [vmem:[%s0 + $0xb0] sm:$0xf]
  %v80 = vld [vmem:[%s0 + $0xb4] sm:$0xff]
  %v81 = vld [vmem:[%s0 + $0xbc] sm:$0xff]
  %v82 = vld [vmem:[%s0 + $0xc4] sm:$0xf]
  %v83 = vld [vmem:[%s0 + $0xc8] sm:$0xff]
  %v84 = vld [vmem:[%s0 + $0xd0] sm:$0xff]
  %v85 = vld [vmem:[%s0 + $0xd8] sm:$0xf]
  %v86 = vld [vmem:[%s0 + $0xdc] sm:$0xff]
  %v87 = vld [vmem:[%s0 + $0xe4] sm:$0xff]
  %v88 = vld [vmem:[%s0 + $0xec] sm:$0xf]
  %v89 = vld [vmem:[%s0 + $0xf0] sm:$0xff]
  %v90 = vld [vmem:[%s0 + $0xf8] sm:$0xff]
  %v91 = vld [vmem:[%s0 + $0x100] sm:$0xf]
  %v92 = vld [vmem:[%s0 + $0x104] sm:$0xff]
  %v93 = vld [vmem:[%s0 + $0x10c] sm:$0xff]
  %v94 = vld [vmem:[%s0 + $0x114] sm:$0xf]
  %v95 = vld [vmem:[%s0 + $0x118] sm:$0xff]
  %v96 = vld [vmem:[%s0 + $0x120] sm:$0xff]
  %v97 = vld [vmem:[%s0 + $0x128] sm:$0xf]
  %v98 = vld [vmem:[%s0 + $0x12c] sm:$0xff]
  %v99 = vld [vmem:[%s0 + $0x134] sm:$0xff]
  %v100 = vld [vmem:[%s0 + $0x13c] sm:$0xf]
  %v101 = vld [vmem:[%s1] sm:$0xf]
  %v102 = vld [vmem:[%s1 + $0x4] sm:$0xf]
  %v103 = vld [vmem:[%s1 + $0x8] sm:$0xf]
  %v104 = vld [vmem:[%s1 + $0xc] sm:$0xf]
  %v105 = vld [vmem:[%s1 + $0x10] sm:$0xf]
  %v106 = vld [vmem:[%s1 + $0x14] sm:$0xf]
  %v107 = vld [vmem:[%s1 + $0x18] sm:$0xf]
  %v108 = vld [vmem:[%s1 + $0x1c] sm:$0xf]
  %v109 = vld [vmem:[%s1 + $0x20] sm:$0xf]
  %v110 = vld [vmem:[%s1 + $0x24] sm:$0xf]
  %v111 = vld [vmem:[%s1 + $0x28] sm:$0xf]
  %v112 = vld [vmem:[%s1 + $0x2c] sm:$0xf]
  %v113 = vld [vmem:[%s1 + $0x30] sm:$0xf]
  %v114 = vld [vmem:[%s1 + $0x34] sm:$0xf]
  %v115 = vld [vmem:[%s1 + $0x38] sm:$0xf]
  %v116 = vld [vmem:[%s1 + $0x3c] sm:$0xf]
  %v117 = vld [vmem:[%s1 + $0x40] sm:$0xf]
  %v118 = vld [vmem:[%s1 + $0x44] sm:$0xf]
  %v119 = vld [vmem:[%s1 + $0x48] sm:$0xf]
  %v120 = vld [vmem:[%s1 + $0x4c] sm:$0xf]
  %v121 = vld [vmem:[%s1 + $0x50] sm:$0xf]
  %v122 = vld [vmem:[%s1 + $0x54] sm:$0xf]
  %v123 = vld [vmem:[%s1 + $0x58] sm:$0xf]
  %v124 = vld [vmem:[%s1 + $0x5c] sm:$0xf]
  %v125 = vld [vmem:[%s1 + $0x60] sm:$0xf]
  %v126 = vld [vmem:[%s1 + $0x64] sm:$0xf]
  %v127 = vld [vmem:[%s1 + $0x68] sm:$0xf]
  %v128 = vld [vmem:[%s1 + $0x6c] sm:$0xf]
  %v129 = vld [vmem:[%s1 + $0x70] sm:$0xf]
  %v130 = vld [vmem:[%s1 + $0x74] sm:$0xf]
  %v131 = vld [vmem:[%s1 + $0x78] sm:$0xf]
  %v132 = vld [vmem:[%s1 + $0x7c] sm:$0xf]
  %v133 = vld [vmem:[%s1 + $0x80] sm:$0xf]
  %v134 = vld [vmem:[%s1 + $0x84] sm:$0xf]
  %v135 = vld [vmem:[%s1 + $0x88] sm:$0xf]
  %v136 = vld [vmem:[%s1 + $0x8c] sm:$0xf]
  %v137 = vld [vmem:[%s1 + $0x90] sm:$0xf]
  %v138 = vld [vmem:[%s1 + $0x94] sm:$0xf]
  %v139 = vld [vmem:[%s1 + $0x98] sm:$0xf]
  %v140 = vld [vmem:[%s1 + $0x9c] sm:$0xf]
  %v141 = vld [vmem:[%s1 + $0xa0] sm:$0xf]
  %v142 = vld [vmem:[%s1 + $0xa4] sm:$0xf]
  %v143 = vld [vmem:[%s1 + $0xa8] sm:$0xf]
  %v144 = vld [vmem:[%s1 + $0xac] sm:$0xf]
  %v145 = vld [vmem:[%s1 + $0xb0] sm:$0xf]
  %v146 = vld [vmem:[%s1 + $0xb4] sm:$0xf]
  %v147 = vld [vmem:[%s1 + $0xb8] sm:$0xf]
  %v148 = vld [vmem:[%s1 + $0xbc] sm:$0xf]
  %v149 = vld [vmem:[%s1 + $0xc0] sm:$0xf]
  %v150 = vld [vmem:[%s1 + $0xc4] sm:$0xf]
  %v151 = vld [vmem:[%s1 + $0xc8] sm:$0xf]
  %v152 = vld [vmem:[%s1 + $0xcc] sm:$0xf]
  %v153 = vld [vmem:[%s1 + $0xd0] sm:$0xf]
  %v154 = vld [vmem:[%s1 + $0xd4] sm:$0xf]
  %v155 = vld [vmem:[%s1 + $0xd8] sm:$0xf]
  %v156 = vld [vmem:[%s1 + $0xdc] sm:$0xf]
  %v157 = vld [vmem:[%s1 + $0xe0] sm:$0xf]
  %v158 = vld [vmem:[%s1 + $0xe4] sm:$0xf]
  %v159 = vld [vmem:[%s1 + $0xe8] sm:$0xf]
  %v160 = vld [vmem:[%s1 + $0xec] sm:$0xf]
  %v161 = vld [vmem:[%s1 + $0xf0] sm:$0xf]
  %v162 = vld [vmem:[%s1 + $0xf4] sm:$0xf]
  %v163 = vld [vmem:[%s1 + $0xf8] sm:$0xf]
  %v164 = vld [vmem:[%s1 + $0xfc] sm:$0xf]
  %v165 = vld [vmem:[%s1 + $0x100] sm:$0xf]
  %v166 = vld [vmem:[%s1 + $0x104] sm:$0xf]
  %v167 = vld [vmem:[%s1 + $0x108] sm:$0xf]
  %v168 = vld [vmem:[%s1 + $0x10c] sm:$0xf]
  %v169 = vld [vmem:[%s1 + $0x110] sm:$0xf]
  %v170 = vld [vmem:[%s1 + $0x114] sm:$0xf]
  %v171 = vld [vmem:[%s1 + $0x118] sm:$0xf]
  %v172 = vld [vmem:[%s1 + $0x11c] sm:$0xf]
  %v173 = vld [vmem:[%s1 + $0x120] sm:$0xf]
  %v174 = vld [vmem:[%s1 + $0x124] sm:$0xf]
  %v175 = vld [vmem:[%s1 + $0x128] sm:$0xf]
  %v176 = vld [vmem:[%s1 + $0x12c] sm:$0xf]
  %v177 = vld [vmem:[%s1 + $0x130] sm:$0xf]
  %v178 = vld [vmem:[%s1 + $0x134] sm:$0xf]
  %v179 = vld [vmem:[%s1 + $0x138] sm:$0xf]
  %v180 = vld [vmem:[%s1 + $0x13c] sm:$0xf]
  %v229 = vunpack.c.l.b16 %v53
  %v230 = vunpack.c.h.b16 %v53
  %v231 = vunpack.c.l.b16 %v54
  %v232 = vunpack.c.h.b16 %v54
  %v233 = vunpack.c.l.b16 %v55
  %v234 = vunpack.c.l.b16 %v56
  %v235 = vunpack.c.h.b16 %v56
  %v236 = vunpack.c.l.b16 %v57
  %v237 = vunpack.c.h.b16 %v57
  %v238 = vunpack.c.l.b16 %v58
  %v239 = vunpack.c.l.b16 %v59
  %v240 = vunpack.c.h.b16 %v59
  %v241 = vunpack.c.l.b16 %v60
  %v242 = vunpack.c.h.b16 %v60
  %v243 = vunpack.c.l.b16 %v61
  %v244 = vunpack.c.l.b16 %v62
  %v245 = vunpack.c.h.b16 %v62
  %v246 = vunpack.c.l.b16 %v63
  %v247 = vunpack.c.h.b16 %v63
  %v248 = vunpack.c.l.b16 %v64
  %v249 = vunpack.c.l.b16 %v65
  %v250 = vunpack.c.h.b16 %v65
  %v251 = vunpack.c.l.b16 %v66
  %v252 = vunpack.c.h.b16 %v66
  %v253 = vunpack.c.l.b16 %v67
  %v254 = vunpack.c.l.b16 %v68
  %v255 = vunpack.c.h.b16 %v68
  %v256 = vunpack.c.l.b16 %v69
  %v257 = vunpack.c.h.b16 %v69
  %v258 = vunpack.c.l.b16 %v70
  %v259 = vunpack.c.l.b16 %v71
  %v260 = vunpack.c.h.b16 %v71
  %v261 = vunpack.c.l.b16 %v72
  %v262 = vunpack.c.h.b16 %v72
  %v263 = vunpack.c.l.b16 %v73
  %v264 = vunpack.c.l.b16 %v74
  %v265 = vunpack.c.h.b16 %v74
  %v266 = vunpack.c.l.b16 %v75
  %v267 = vunpack.c.h.b16 %v75
  %v268 = vunpack.c.l.b16 %v76
  %v269 = vunpack.c.l.b16 %v77
  %v270 = vunpack.c.h.b16 %v77
  %v271 = vunpack.c.l.b16 %v78
  %v272 = vunpack.c.h.b16 %v78
  %v273 = vunpack.c.l.b16 %v79
  %v274 = vunpack.c.l.b16 %v80
  %v275 = vunpack.c.h.b16 %v80
  %v276 = vunpack.c.l.b16 %v81
  %v277 = vunpack.c.h.b16 %v81
  %v278 = vunpack.c.l.b16 %v82
  %v279 = vunpack.c.l.b16 %v83
  %v280 = vunpack.c.h.b16 %v83
  %v281 = vunpack.c.l.b16 %v84
  %v282 = vunpack.c.h.b16 %v84
  %v283 = vunpack.c.l.b16 %v85
  %v284 = vunpack.c.l.b16 %v86
  %v285 = vunpack.c.h.b16 %v86
  %v286 = vunpack.c.l.b16 %v87
  %v287 = vunpack.c.h.b16 %v87
  %v288 = vunpack.c.l.b16 %v88
  %v289 = vunpack.c.l.b16 %v89
  %v290 = vunpack.c.h.b16 %v89
  %v291 = vunpack.c.l.b16 %v90
  %v292 = vunpack.c.h.b16 %v90
  %v293 = vunpack.c.l.b16 %v91
  %v294 = vunpack.c.l.b16 %v92
  %v295 = vunpack.c.h.b16 %v92
  %v296 = vunpack.c.l.b16 %v93
  %v297 = vunpack.c.h.b16 %v93
  %v298 = vunpack.c.l.b16 %v94
  %v299 = vunpack.c.l.b16 %v95
  %v300 = vunpack.c.h.b16 %v95
  %v301 = vunpack.c.l.b16 %v96
  %v302 = vunpack.c.h.b16 %v96
  %v303 = vunpack.c.l.b16 %v97
  %v304 = vunpack.c.l.b16 %v98
  %v305 = vunpack.c.h.b16 %v98
  %v306 = vunpack.c.l.b16 %v99
  %v307 = vunpack.c.h.b16 %v99
  %v308 = vunpack.c.l.b16 %v100
  %v309 = vpack.c.b16 %v234, %v229
  %v310 = vpack.c.b16 %v235, %v230
  %v311 = vpack.c.b16 %v236, %v231
  %v312 = vpack.c.b16 %v237, %v232
  %v313 = vpack.c.b16 %v238, %v233
  %v314 = vpack.c.b16 %v244, %v239
  %v315 = vpack.c.b16 %v245, %v240
  %v316 = vpack.c.b16 %v246, %v241
  %v317 = vpack.c.b16 %v247, %v242
  %v318 = vpack.c.b16 %v248, %v243
  %v319 = vpack.c.b16 %v254, %v249
  %v320 = vpack.c.b16 %v255, %v250
  %v321 = vpack.c.b16 %v256, %v251
  %v322 = vpack.c.b16 %v257, %v252
  %v323 = vpack.c.b16 %v258, %v253
  %v324 = vpack.c.b16 %v264, %v259
  %v325 = vpack.c.b16 %v265, %v260
  %v326 = vpack.c.b16 %v266, %v261
  %v327 = vpack.c.b16 %v267, %v262
  %v328 = vpack.c.b16 %v268, %v263
  %v329 = vpack.c.b16 %v274, %v269
  %v330 = vpack.c.b16 %v275, %v270
  %v331 = vpack.c.b16 %v276, %v271
  %v332 = vpack.c.b16 %v277, %v272
  %v333 = vpack.c.b16 %v278, %v273
  %v334 = vpack.c.b16 %v284, %v279
  %v335 = vpack.c.b16 %v285, %v280
  %v336 = vpack.c.b16 %v286, %v281
  %v337 = vpack.c.b16 %v287, %v282
  %v338 = vpack.c.b16 %v288, %v283
  %v339 = vpack.c.b16 %v294, %v289
  %v340 = vpack.c.b16 %v295, %v290
  %v341 = vpack.c.b16 %v296, %v291
  %v342 = vpack.c.b16 %v297, %v292
  %v343 = vpack.c.b16 %v298, %v293
  %v344 = vpack.c.b16 %v304, %v299
  %v345 = vpack.c.b16 %v305, %v300
  %v346 = vpack.c.b16 %v306, %v301
  %v347 = vpack.c.b16 %v307, %v302
  %v348 = vpack.c.b16 %v308, %v303
  %v469 = vunpack.c.l.b16 %v101
  %v470 = vunpack.c.l.b16 %v102
  %v471 = vunpack.c.l.b16 %v103
  %v472 = vunpack.c.l.b16 %v104
  %v473 = vunpack.c.l.b16 %v105
  %v474 = vunpack.c.l.b16 %v106
  %v475 = vunpack.c.l.b16 %v107
  %v476 = vunpack.c.l.b16 %v108
  %v477 = vunpack.c.l.b16 %v109
  %v478 = vunpack.c.l.b16 %v110
  %v479 = vunpack.c.l.b16 %v111
  %v480 = vunpack.c.l.b16 %v112
  %v481 = vunpack.c.l.b16 %v113
  %v482 = vunpack.c.l.b16 %v114
  %v483 = vunpack.c.l.b16 %v115
  %v484 = vunpack.c.l.b16 %v116
  %v485 = vunpack.c.l.b16 %v117
  %v486 = vunpack.c.l.b16 %v118
  %v487 = vunpack.c.l.b16 %v119
  %v488 = vunpack.c.l.b16 %v120
  %v489 = vunpack.c.l.b16 %v121
  %v490 = vunpack.c.l.b16 %v122
  %v491 = vunpack.c.l.b16 %v123
  %v492 = vunpack.c.l.b16 %v124
  %v493 = vunpack.c.l.b16 %v125
  %v494 = vunpack.c.l.b16 %v126
  %v495 = vunpack.c.l.b16 %v127
  %v496 = vunpack.c.l.b16 %v128
  %v497 = vunpack.c.l.b16 %v129
  %v498 = vunpack.c.l.b16 %v130
  %v499 = vunpack.c.l.b16 %v131
  %v500 = vunpack.c.l.b16 %v132
  %v501 = vunpack.c.l.b16 %v133
  %v502 = vunpack.c.l.b16 %v134
  %v503 = vunpack.c.l.b16 %v135
  %v504 = vunpack.c.l.b16 %v136
  %v505 = vunpack.c.l.b16 %v137
  %v506 = vunpack.c.l.b16 %v138
  %v507 = vunpack.c.l.b16 %v139
  %v508 = vunpack.c.l.b16 %v140
  %v509 = vunpack.c.l.b16 %v141
  %v510 = vunpack.c.l.b16 %v142
  %v511 = vunpack.c.l.b16 %v143
  %v512 = vunpack.c.l.b16 %v144
  %v513 = vunpack.c.l.b16 %v145
  %v514 = vunpack.c.l.b16 %v146
  %v515 = vunpack.c.l.b16 %v147
  %v516 = vunpack.c.l.b16 %v148
  %v517 = vunpack.c.l.b16 %v149
  %v518 = vunpack.c.l.b16 %v150
  %v519 = vunpack.c.l.b16 %v151
  %v520 = vunpack.c.l.b16 %v152
  %v521 = vunpack.c.l.b16 %v153
  %v522 = vunpack.c.l.b16 %v154
  %v523 = vunpack.c.l.b16 %v155
  %v524 = vunpack.c.l.b16 %v156
  %v525 = vunpack.c.l.b16 %v157
  %v526 = vunpack.c.l.b16 %v158
  %v527 = vunpack.c.l.b16 %v159
  %v528 = vunpack.c.l.b16 %v160
  %v529 = vunpack.c.l.b16 %v161
  %v530 = vunpack.c.l.b16 %v162
  %v531 = vunpack.c.l.b16 %v163
  %v532 = vunpack.c.l.b16 %v164
  %v533 = vunpack.c.l.b16 %v165
  %v534 = vunpack.c.l.b16 %v166
  %v535 = vunpack.c.l.b16 %v167
  %v536 = vunpack.c.l.b16 %v168
  %v537 = vunpack.c.l.b16 %v169
  %v538 = vunpack.c.l.b16 %v170
  %v539 = vunpack.c.l.b16 %v171
  %v540 = vunpack.c.l.b16 %v172
  %v541 = vunpack.c.l.b16 %v173
  %v542 = vunpack.c.l.b16 %v174
  %v543 = vunpack.c.l.b16 %v175
  %v544 = vunpack.c.l.b16 %v176
  %v545 = vunpack.c.l.b16 %v177
  %v546 = vunpack.c.l.b16 %v178
  %v547 = vunpack.c.l.b16 %v179
  %v548 = vunpack.c.l.b16 %v180
  %v549 = vpack.c.b16 %v470, %v469
  %v550 = vpack.c.b16 %v472, %v471
  %v551 = vpack.c.b16 %v474, %v473
  %v552 = vpack.c.b16 %v476, %v475
  %v553 = vpack.c.b16 %v478, %v477
  %v554 = vpack.c.b16 %v480, %v479
  %v555 = vpack.c.b16 %v482, %v481
  %v556 = vpack.c.b16 %v484, %v483
  %v557 = vpack.c.b16 %v486, %v485
  %v558 = vpack.c.b16 %v488, %v487
  %v559 = vpack.c.b16 %v490, %v489
  %v560 = vpack.c.b16 %v492, %v491
  %v561 = vpack.c.b16 %v494, %v493
  %v562 = vpack.c.b16 %v496, %v495
  %v563 = vpack.c.b16 %v498, %v497
  %v564 = vpack.c.b16 %v500, %v499
  %v565 = vpack.c.b16 %v502, %v501
  %v566 = vpack.c.b16 %v504, %v503
  %v567 = vpack.c.b16 %v506, %v505
  %v568 = vpack.c.b16 %v508, %v507
  %v569 = vpack.c.b16 %v510, %v509
  %v570 = vpack.c.b16 %v512, %v511
  %v571 = vpack.c.b16 %v514, %v513
  %v572 = vpack.c.b16 %v516, %v515
  %v573 = vpack.c.b16 %v518, %v517
  %v574 = vpack.c.b16 %v520, %v519
  %v575 = vpack.c.b16 %v522, %v521
  %v576 = vpack.c.b16 %v524, %v523
  %v577 = vpack.c.b16 %v526, %v525
  %v578 = vpack.c.b16 %v528, %v527
  %v579 = vpack.c.b16 %v530, %v529
  %v580 = vpack.c.b16 %v532, %v531
  %v581 = vpack.c.b16 %v534, %v533
  %v582 = vpack.c.b16 %v536, %v535
  %v583 = vpack.c.b16 %v538, %v537
  %v584 = vpack.c.b16 %v540, %v539
  %v585 = vpack.c.b16 %v542, %v541
  %v586 = vpack.c.b16 %v544, %v543
  %v587 = vpack.c.b16 %v546, %v545
  %v588 = vpack.c.b16 %v548, %v547
  %629 = vmatpush.bf16.msra.mxu0 %v556
  %630 = vmatpush.bf16.msra.mxu0 %v555
  %631 = vmatpush.bf16.msra.mxu0 %v554
  %632 = vmatpush.bf16.msra.mxu0 %v553
  %633 = vmatpush.bf16.msra.mxu0 %v552
  %634 = vmatpush.bf16.msra.mxu0 %v551
  %635 = vmatpush.bf16.msra.mxu0 %v550
  %636 = vmatpush.bf16.msra.mxu0 %v549
  %637 = vmatmul.bf16.gmra.mxu0 %v309
  %v638 = vpop.f32.mrf.mxu0
  %v639 = vadd.f32 0.0, %v638
  %v640 = vpop.f32.mrf.mxu0
  %v641 = vadd.f32 0.0, %v640
  %642 = vmatmul.bf16.gmra.mxu0 %v314
  %v643 = vpop.f32.mrf.mxu0
  %v644 = vadd.f32 0.0, %v643
  %v645 = vpop.f32.mrf.mxu0
  %v646 = vadd.f32 0.0, %v645
  %647 = vmatmul.bf16.gmra.mxu0 %v319
  %v648 = vpop.f32.mrf.mxu0
  %v649 = vadd.f32 0.0, %v648
  %v650 = vpop.f32.mrf.mxu0
  %v651 = vadd.f32 0.0, %v650
  %652 = vmatmul.bf16.gmra.mxu0 %v324
  %v653 = vpop.f32.mrf.mxu0
  %v654 = vadd.f32 0.0, %v653
  %v655 = vpop.f32.mrf.mxu0
  %v656 = vadd.f32 0.0, %v655
  %657 = vmatmul.bf16.gmra.mxu0 %v329
  %v658 = vpop.f32.mrf.mxu0
  %v659 = vadd.f32 0.0, %v658
  %v660 = vpop.f32.mrf.mxu0
  %v661 = vadd.f32 0.0, %v660
  %662 = vmatmul.bf16.gmra.mxu0 %v334
  %v663 = vpop.f32.mrf.mxu0
  %v664 = vadd.f32 0.0, %v663
  %v665 = vpop.f32.mrf.mxu0
  %v666 = vadd.f32 0.0, %v665
  %667 = vmatmul.bf16.gmra.mxu0 %v339
  %v668 = vpop.f32.mrf.mxu0
  %v669 = vadd.f32 0.0, %v668
  %v670 = vpop.f32.mrf.mxu0
  %v671 = vadd.f32 0.0, %v670
  %672 = vmatmul.bf16.gmra.mxu0 %v344
  %v673 = vpop.f32.mrf.mxu0
  %v674 = vadd.f32 0.0, %v673
  %v675 = vpop.f32.mrf.mxu0
  %v676 = vadd.f32 0.0, %v675
  %677 = vdwg.mxu0
  %678 = vmatpush.bf16.msra.mxu0 %v564
  %679 = vmatpush.bf16.msra.mxu0 %v563
  %680 = vmatpush.bf16.msra.mxu0 %v562
  %681 = vmatpush.bf16.msra.mxu0 %v561
  %682 = vmatpush.bf16.msra.mxu0 %v560
  %683 = vmatpush.bf16.msra.mxu0 %v559
  %684 = vmatpush.bf16.msra.mxu0 %v558
  %685 = vmatpush.bf16.msra.mxu0 %v557
  %686 = vmatmul.bf16.gmra.mxu0 %v310
  %v687 = vpop.f32.mrf.mxu0
  %v688 = vadd.f32 %v639, %v687
  %v689 = vpop.f32.mrf.mxu0
  %v690 = vadd.f32 %v641, %v689
  %691 = vmatmul.bf16.gmra.mxu0 %v315
  %v692 = vpop.f32.mrf.mxu0
  %v693 = vadd.f32 %v644, %v692
  %v694 = vpop.f32.mrf.mxu0
  %v695 = vadd.f32 %v646, %v694
  %696 = vmatmul.bf16.gmra.mxu0 %v320
  %v697 = vpop.f32.mrf.mxu0
  %v698 = vadd.f32 %v649, %v697
  %v699 = vpop.f32.mrf.mxu0
  %v700 = vadd.f32 %v651, %v699
  %701 = vmatmul.bf16.gmra.mxu0 %v325
  %v702 = vpop.f32.mrf.mxu0
  %v703 = vadd.f32 %v654, %v702
  %v704 = vpop.f32.mrf.mxu0
  %v705 = vadd.f32 %v656, %v704
  %706 = vmatmul.bf16.gmra.mxu0 %v330
  %v707 = vpop.f32.mrf.mxu0
  %v708 = vadd.f32 %v659, %v707
  %v709 = vpop.f32.mrf.mxu0
  %v710 = vadd.f32 %v661, %v709
  %711 = vmatmul.bf16.gmra.mxu0 %v335
  %v712 = vpop.f32.mrf.mxu0
  %v713 = vadd.f32 %v664, %v712
  %v714 = vpop.f32.mrf.mxu0
  %v715 = vadd.f32 %v666, %v714
  %716 = vmatmul.bf16.gmra.mxu0 %v340
  %v717 = vpop.f32.mrf.mxu0
  %v718 = vadd.f32 %v669, %v717
  %v719 = vpop.f32.mrf.mxu0
  %v720 = vadd.f32 %v671, %v719
  %721 = vmatmul.bf16.gmra.mxu0 %v345
  %v722 = vpop.f32.mrf.mxu0
  %v723 = vadd.f32 %v674, %v722
  %v724 = vpop.f32.mrf.mxu0
  %v725 = vadd.f32 %v676, %v724
  %726 = vdwg.mxu0
  %727 = vmatpush.bf16.msra.mxu0 %v572
  %728 = vmatpush.bf16.msra.mxu0 %v571
  %729 = vmatpush.bf16.msra.mxu0 %v570
  %730 = vmatpush.bf16.msra.mxu0 %v569
  %731 = vmatpush.bf16.msra.mxu0 %v568
  %732 = vmatpush.bf16.msra.mxu0 %v567
  %733 = vmatpush.bf16.msra.mxu0 %v566
  %734 = vmatpush.bf16.msra.mxu0 %v565
  %735 = vmatmul.bf16.gmra.mxu0 %v311
  %v736 = vpop.f32.mrf.mxu0
  %v737 = vadd.f32 %v688, %v736
  %v738 = vpop.f32.mrf.mxu0
  %v739 = vadd.f32 %v690, %v738
  %740 = vmatmul.bf16.gmra.mxu0 %v316
  %v741 = vpop.f32.mrf.mxu0
  %v742 = vadd.f32 %v693, %v741
  %v743 = vpop.f32.mrf.mxu0
  %v744 = vadd.f32 %v695, %v743
  %745 = vmatmul.bf16.gmra.mxu0 %v321
  %v746 = vpop.f32.mrf.mxu0
  %v747 = vadd.f32 %v698, %v746
  %v748 = vpop.f32.mrf.mxu0
  %v749 = vadd.f32 %v700, %v748
  %750 = vmatmul.bf16.gmra.mxu0 %v326
  %v751 = vpop.f32.mrf.mxu0
  %v752 = vadd.f32 %v703, %v751
  %v753 = vpop.f32.mrf.mxu0
  %v754 = vadd.f32 %v705, %v753
  %755 = vmatmul.bf16.gmra.mxu0 %v331
  %v756 = vpop.f32.mrf.mxu0
  %v757 = vadd.f32 %v708, %v756
  %v758 = vpop.f32.mrf.mxu0
  %v759 = vadd.f32 %v710, %v758
  %760 = vmatmul.bf16.gmra.mxu0 %v336
  %v761 = vpop.f32.mrf.mxu0
  %v762 = vadd.f32 %v713, %v761
  %v763 = vpop.f32.mrf.mxu0
  %v764 = vadd.f32 %v715, %v763
  %765 = vmatmul.bf16.gmra.mxu0 %v341
  %v766 = vpop.f32.mrf.mxu0
  %v767 = vadd.f32 %v718, %v766
  %v768 = vpop.f32.mrf.mxu0
  %v769 = vadd.f32 %v720, %v768
  %770 = vmatmul.bf16.gmra.mxu0 %v346
  %v771 = vpop.f32.mrf.mxu0
  %v772 = vadd.f32 %v723, %v771
  %v773 = vpop.f32.mrf.mxu0
  %v774 = vadd.f32 %v725, %v773
  %775 = vdwg.mxu0
  %776 = vmatpush.bf16.msra.mxu0 %v580
  %777 = vmatpush.bf16.msra.mxu0 %v579
  %778 = vmatpush.bf16.msra.mxu0 %v578
  %779 = vmatpush.bf16.msra.mxu0 %v577
  %780 = vmatpush.bf16.msra.mxu0 %v576
  %781 = vmatpush.bf16.msra.mxu0 %v575
  %782 = vmatpush.bf16.msra.mxu0 %v574
  %783 = vmatpush.bf16.msra.mxu0 %v573
  %784 = vmatmul.bf16.gmra.mxu0 %v312
  %v785 = vpop.f32.mrf.mxu0
  %v786 = vadd.f32 %v737, %v785
  %v787 = vpop.f32.mrf.mxu0
  %v788 = vadd.f32 %v739, %v787
  %789 = vmatmul.bf16.gmra.mxu0 %v317
  %v790 = vpop.f32.mrf.mxu0
  %v791 = vadd.f32 %v742, %v790
  %v792 = vpop.f32.mrf.mxu0
  %v793 = vadd.f32 %v744, %v792
  %794 = vmatmul.bf16.gmra.mxu0 %v322
  %v795 = vpop.f32.mrf.mxu0
  %v796 = vadd.f32 %v747, %v795
  %v797 = vpop.f32.mrf.mxu0
  %v798 = vadd.f32 %v749, %v797
  %799 = vmatmul.bf16.gmra.mxu0 %v327
  %v800 = vpop.f32.mrf.mxu0
  %v801 = vadd.f32 %v752, %v800
  %v802 = vpop.f32.mrf.mxu0
  %v803 = vadd.f32 %v754, %v802
  %804 = vmatmul.bf16.gmra.mxu0 %v332
  %v805 = vpop.f32.mrf.mxu0
  %v806 = vadd.f32 %v757, %v805
  %v807 = vpop.f32.mrf.mxu0
  %v808 = vadd.f32 %v759, %v807
  %809 = vmatmul.bf16.gmra.mxu0 %v337
  %v810 = vpop.f32.mrf.mxu0
  %v811 = vadd.f32 %v762, %v810
  %v812 = vpop.f32.mrf.mxu0
  %v813 = vadd.f32 %v764, %v812
  %814 = vmatmul.bf16.gmra.mxu0 %v342
  %v815 = vpop.f32.mrf.mxu0
  %v816 = vadd.f32 %v767, %v815
  %v817 = vpop.f32.mrf.mxu0
  %v818 = vadd.f32 %v769, %v817
  %819 = vmatmul.bf16.gmra.mxu0 %v347
  %v820 = vpop.f32.mrf.mxu0
  %v821 = vadd.f32 %v772, %v820
  %v822 = vpop.f32.mrf.mxu0
  %v823 = vadd.f32 %v774, %v822
  %824 = vdwg.mxu0
  %825 = vmatpush.bf16.msra.mxu0 %v588
  %826 = vmatpush.bf16.msra.mxu0 %v587
  %827 = vmatpush.bf16.msra.mxu0 %v586
  %828 = vmatpush.bf16.msra.mxu0 %v585
  %829 = vmatpush.bf16.msra.mxu0 %v584
  %830 = vmatpush.bf16.msra.mxu0 %v583
  %831 = vmatpush.bf16.msra.mxu0 %v582
  %832 = vmatpush.bf16.msra.mxu0 %v581
  %833 = vmatmul.bf16.gmra.mxu0 %v313
  %v834 = vpop.f32.mrf.mxu0
  %v835 = vadd.f32 %v786, %v834
  %v836 = vpop.f32.mrf.mxu0
  %v837 = vadd.f32 %v788, %v836
  %838 = vmatmul.bf16.gmra.mxu0 %v318
  %v839 = vpop.f32.mrf.mxu0
  %v840 = vadd.f32 %v791, %v839
  %v841 = vpop.f32.mrf.mxu0
  %v842 = vadd.f32 %v793, %v841
  %843 = vmatmul.bf16.gmra.mxu0 %v323
  %v844 = vpop.f32.mrf.mxu0
  %v845 = vadd.f32 %v796, %v844
  %v846 = vpop.f32.mrf.mxu0
  %v847 = vadd.f32 %v798, %v846
  %848 = vmatmul.bf16.gmra.mxu0 %v328
  %v849 = vpop.f32.mrf.mxu0
  %v850 = vadd.f32 %v801, %v849
  %v851 = vpop.f32.mrf.mxu0
  %v852 = vadd.f32 %v803, %v851
  %853 = vmatmul.bf16.gmra.mxu0 %v333
  %v854 = vpop.f32.mrf.mxu0
  %v855 = vadd.f32 %v806, %v854
  %v856 = vpop.f32.mrf.mxu0
  %v857 = vadd.f32 %v808, %v856
  %858 = vmatmul.bf16.gmra.mxu0 %v338
  %v859 = vpop.f32.mrf.mxu0
  %v860 = vadd.f32 %v811, %v859
  %v861 = vpop.f32.mrf.mxu0
  %v862 = vadd.f32 %v813, %v861
  %863 = vmatmul.bf16.gmra.mxu0 %v343
  %v864 = vpop.f32.mrf.mxu0
  %v865 = vadd.f32 %v816, %v864
  %v866 = vpop.f32.mrf.mxu0
  %v867 = vadd.f32 %v818, %v866
  %868 = vmatmul.bf16.gmra.mxu0 %v348
  %v869 = vpop.f32.mrf.mxu0
  %v870 = vadd.f32 %v821, %v869
  %v871 = vpop.f32.mrf.mxu0
  %v872 = vadd.f32 %v823, %v871
  %873 = vdwg.mxu0
  %v874 = vadd.f32 %v37, %v835
  %v875 = vadd.f32 %v38, %v837
  %v876 = vadd.f32 %v39, %v840
  %v877 = vadd.f32 %v40, %v842
  %v878 = vadd.f32 %v41, %v845
  %v879 = vadd.f32 %v42, %v847
  %v880 = vadd.f32 %v43, %v850
  %v881 = vadd.f32 %v44, %v852
  %v882 = vadd.f32 %v45, %v855
  %v883 = vadd.f32 %v46, %v857
  %v884 = vadd.f32 %v47, %v860
  %v885 = vadd.f32 %v48, %v862
  %v886 = vadd.f32 %v49, %v865
  %v887 = vadd.f32 %v50, %v867
  %v888 = vadd.f32 %v51, %v870
  %v889 = vadd.f32 %v52, %v872
  %890 = vst [vmem:[#allocation2] sm:$0xff] %v874
  %891 = vst [vmem:[#allocation2 + $0x8] sm:$0xff] %v875
  %892 = vst [vmem:[#allocation2 + $0x10] sm:$0xff] %v876
  %893 = vst [vmem:[#allocation2 + $0x18] sm:$0xff] %v877
  %894 = vst [vmem:[#allocation2 + $0x20] sm:$0xff] %v878
  %895 = vst [vmem:[#allocation2 + $0x28] sm:$0xff] %v879
  %896 = vst [vmem:[#allocation2 + $0x30] sm:$0xff] %v880
  %897 = vst [vmem:[#allocation2 + $0x38] sm:$0xff] %v881
  %898 = vst [vmem:[#allocation2 + $0x40] sm:$0xff] %v882
  %899 = vst [vmem:[#allocation2 + $0x48] sm:$0xff] %v883
  %900 = vst [vmem:[#allocation2 + $0x50] sm:$0xff] %v884
  %901 = vst [vmem:[#allocation2 + $0x58] sm:$0xff] %v885
  %902 = vst [vmem:[#allocation2 + $0x60] sm:$0xff] %v886
  %903 = vst [vmem:[#allocation2 + $0x68] sm:$0xff] %v887
  %904 = vst [vmem:[#allocation2 + $0x70] sm:$0xff] %v888
  %905 = vst [vmem:[#allocation2 + $0x78] sm:$0xff] %v889
  // Predicated region
  $region22: #{resnet_forward.14} parent=0 // pred_check
    %p906 = pneg %p17
  $region23: #{resnet_forward.14} parent=0 // pred_check_branch
    %908 = sbr.rel (%p906) target = $region25
  $region24: #{resnet_forward.14} parent=0 // pred_region
    %v909 = vld [vmem:[#allocation2] sm:$0xff]
    %v910 = vld [vmem:[#allocation2 + $0x8] sm:$0xff]
    %v911 = vld [vmem:[#allocation2 + $0x10] sm:$0xff]
    %v912 = vld [vmem:[#allocation2 + $0x18] sm:$0xff]
    %v913 = vld [vmem:[#allocation2 + $0x20] sm:$0xff]
    %v914 = vld [vmem:[#allocation2 + $0x28] sm:$0xff]
    %v915 = vld [vmem:[#allocation2 + $0x30] sm:$0xff]
    %v916 = vld [vmem:[#allocation2 + $0x38] sm:$0xff]
    %v917 = vld [vmem:[#allocation2 + $0x40] sm:$0xff]
    %v918 = vld [vmem:[#allocation2 + $0x48] sm:$0xff]
    %v919 = vld [vmem:[#allocation2 + $0x50] sm:$0xff]
    %v920 = vld [vmem:[#allocation2 + $0x58] sm:$0xff]
    %v921 = vld [vmem:[#allocation2 + $0x60] sm:$0xff]
    %v922 = vld [vmem:[#allocation2 + $0x68] sm:$0xff]
    %v923 = vld [vmem:[#allocation2 + $0x70] sm:$0xff]
    %v924 = vld [vmem:[#allocation2 + $0x78] sm:$0xff]
    %v925 = vld [vmem:[%s2] sm:$0x1]
    %v927 = vperm.slane %v925, 0
    %v929 = vmul.f32 %v909, %v927
    %v930 = vmul.f32 %v910, %v927
    %v931 = vmul.f32 %v911, %v927
    %v932 = vmul.f32 %v912, %v927
    %v933 = vmul.f32 %v913, %v927
    %v934 = vmul.f32 %v914, %v927
    %v935 = vmul.f32 %v915, %v927
    %v936 = vmul.f32 %v916, %v927
    %v937 = vmul.f32 %v917, %v927
    %v938 = vmul.f32 %v918, %v927
    %v939 = vmul.f32 %v919, %v927
    %v940 = vmul.f32 %v920, %v927
    %v941 = vmul.f32 %v921, %v927
    %v942 = vmul.f32 %v922, %v927
    %v943 = vmul.f32 %v923, %v927
    %v944 = vmul.f32 %v924, %v927
    %v945 = vld [vmem:[%s3] sm:$0x1]
    %v947 = vperm.slane %v945, 0
    %v949 = vadd.f32 %v929, %v947
    %v950 = vadd.f32 %v930, %v947
    %v951 = vadd.f32 %v931, %v947
    %v952 = vadd.f32 %v932, %v947
    %v953 = vadd.f32 %v933, %v947
    %v954 = vadd.f32 %v934, %v947
    %v955 = vadd.f32 %v935, %v947
    %v956 = vadd.f32 %v936, %v947
    %v957 = vadd.f32 %v937, %v947
    %v958 = vadd.f32 %v938, %v947
    %v959 = vadd.f32 %v939, %v947
    %v960 = vadd.f32 %v940, %v947
    %v961 = vadd.f32 %v941, %v947
    %v962 = vadd.f32 %v942, %v947
    %v963 = vadd.f32 %v943, %v947
    %v964 = vadd.f32 %v944, %v947
    %v965 = vmax.f32 %v949, 0.0
    %v966 = vmax.f32 %v950, 0.0
    %v967 = vmax.f32 %v951, 0.0
    %v968 = vmax.f32 %v952, 0.0
    %v969 = vmax.f32 %v953, 0.0
    %v970 = vmax.f32 %v954, 0.0
    %v971 = vmax.f32 %v955, 0.0
    %v972 = vmax.f32 %v956, 0.0
    %v973 = vmax.f32 %v957, 0.0
    %v974 = vmax.f32 %v958, 0.0
    %v975 = vmax.f32 %v959, 0.0
    %v976 = vmax.f32 %v960, 0.0
    %v977 = vmax.f32 %v961, 0.0
    %v978 = vmax.f32 %v962, 0.0
    %v979 = vmax.f32 %v963, 0.0
    %v980 = vmax.f32 %v964, 0.0
    %981 = vst [vmem:[%s4] sm:$0xff] %v965
    %982 = vst [vmem:[%s4 + $0x8] sm:$0xff] %v966
    %983 = vst [vmem:[%s4 + $0x10] sm:$0xff] %v967
    %984 = vst [vmem:[%s4 + $0x18] sm:$0xff] %v968
    %985 = vst [vmem:[%s4 + $0x20] sm:$0xff] %v969
    %986 = vst [vmem:[%s4 + $0x28] sm:$0xff] %v970
    %987 = vst [vmem:[%s4 + $0x30] sm:$0xff] %v971
    %988 = vst [vmem:[%s4 + $0x38] sm:$0xff] %v972
    %989 = vst [vmem:[%s4 + $0x40] sm:$0xff] %v973
    %990 = vst [vmem:[%s4 + $0x48] sm:$0xff] %v974
    %991 = vst [vmem:[%s4 + $0x50] sm:$0xff] %v975
    %992 = vst [vmem:[%s4 + $0x58] sm:$0xff] %v976
    %993 = vst [vmem:[%s4 + $0x60] sm:$0xff] %v977
    %994 = vst [vmem:[%s4 + $0x68] sm:$0xff] %v978
    %995 = vst [vmem:[%s4 + $0x70] sm:$0xff] %v979
    %996 = vst [vmem:[%s4 + $0x78] sm:$0xff] %v980
  $region25: #{resnet_forward.14} parent=0 // pred_fallthru
    _
  // Predicated region
  $region26: #{resnet_forward.14} parent=0 // pred_check
    _
  $region27: #{resnet_forward.14} parent=0 // pred_check_branch
    %998 = sbr.rel (0) target = $region29
  $region28: #{resnet_forward.14} parent=0 // pred_region
    _
  $region29: #{resnet_forward.14} parent=0 // pred_fallthru
    _
  // Predicated region
  $region30: #{resnet_forward.14} parent=0 // pred_check
    _
  $region31: #{resnet_forward.14} parent=0 // pred_check_branch
    %1000 = sbr.rel (0) target = $region33
  $region32: #{resnet_forward.14} parent=0 // pred_region
    _
  $region33: #{resnet_forward.14} parent=0 // pred_fallthru
    _

// kernel: resnet_forward.15
$region0: #{resnet_forward.15}
  #allocation0 [shape = 'u32[]', space=smem, size = 0x4, offset = 0x4, fixed_abs, tag = 'smem constant byte address 0x4 - core index']
  #allocation1 [shape = 'u32[72,128]{1,0:T(1,128)}', space=vmem, size = 0x9000, scoped, tag = 'internal scratch']
  #allocation2 [shape = 'f32[128,128]{1,0:T(8,128)}', space=vmem, size = 0x10000, scoped, tag = 'scratch operand']
  %s0 = inlined_call_operand.vmem [shape: bf16[128,640], index: 0, kind: input, shape index: {}]
  %s1 = inlined_call_operand.vmem [shape: bf16[640,128], index: 1, kind: input, shape index: {}]
  %s2 = inlined_call_operand.vmem [shape: f32[1,128], index: 2, kind: input, shape index: {}]
  %s3 = inlined_call_operand.vmem [shape: f32[1,128], index: 3, kind: input, shape index: {}]
  %s4 = inlined_call_operand.vmem [shape: f32[128,128], index: 4, kind: input, shape index: {}]
  %s5 = inlined_call_operand.vmem [shape: f32[128,128], index: 5, kind: output, shape index: {}]
  %s6 = sld [smem:[#allocation0]]
  $region38: #{resnet_forward.15} parent=0
    _
  %s8 = ssub.s32 1, %s6
  %s9 = scalar_select 0, %s8, %s6
  // Predicated region
  $region2: #{resnet_forward.15} parent=0 // pred_check
    _
  $region3: #{resnet_forward.15} parent=0 // pred_check_branch
    %11 = sbr.rel (0) target = $region5
  $region4: #{resnet_forward.15} parent=0 // pred_region
    _
  $region5: #{resnet_forward.15} parent=0 // pred_fallthru
    _
  // Predicated region
  $region6: #{resnet_forward.15} parent=0 // pred_check
    _
  $region7: #{resnet_forward.15} parent=0 // pred_check_branch
    %13 = sbr.rel (0) target = $region9
  $region8: #{resnet_forward.15} parent=0 // pred_region
    _
  $region9: #{resnet_forward.15} parent=0 // pred_fallthru
    _
  // Predicated region
  $region10: #{resnet_forward.15} parent=0 // pred_check
    _
  $region11: #{resnet_forward.15} parent=0 // pred_check_branch
    %15 = sbr.rel (0) target = $region13
  $region12: #{resnet_forward.15} parent=0 // pred_region
    _
  $region13: #{resnet_forward.15} parent=0 // pred_fallthru
    _
  // Predicated region
  $region14: #{resnet_forward.15} parent=0 // pred_check
    _
  $region15: #{resnet_forward.15} parent=0 // pred_check_branch
    %17 = sbr.rel (0) target = $region17
  $region16: #{resnet_forward.15} parent=0 // pred_region
    _
  $region17: #{resnet_forward.15} parent=0 // pred_fallthru
    _
  // Predicated region
  $region18: #{resnet_forward.15} parent=0 // pred_check
    _
  $region19: #{resnet_forward.15} parent=0 // pred_check_branch
    %19 = sbr.rel (0) target = $region21
  $region20: #{resnet_forward.15} parent=0 // pred_region
    _
  $region21: #{resnet_forward.15} parent=0 // pred_fallthru
    _
  %p20 = scmp.eq.s32.totalorder 0, 0
  // Predicated region
  $region22: #{resnet_forward.15} parent=0 // pred_check
    %p21 = pneg %p20
  $region23: #{resnet_forward.15} parent=0 // pred_check_branch
    %23 = sbr.rel (%p21) target = $region25
  $region24: #{resnet_forward.15} parent=0 // pred_region
    %24 = vst [vmem:[#allocation2] sm:$0xff] 0.0
    %25 = vst [vmem:[#allocation2 + $0x8] sm:$0xff] 0.0
    %26 = vst [vmem:[#allocation2 + $0x10] sm:$0xff] 0.0
    %27 = vst [vmem:[#allocation2 + $0x18] sm:$0xff] 0.0
    %28 = vst [vmem:[#allocation2 + $0x20] sm:$0xff] 0.0
    %29 = vst [vmem:[#allocation2 + $0x28] sm:$0xff] 0.0
    %30 = vst [vmem:[#allocation2 + $0x30] sm:$0xff] 0.0
    %31 = vst [vmem:[#allocation2 + $0x38] sm:$0xff] 0.0
    %32 = vst [vmem:[#allocation2 + $0x40] sm:$0xff] 0.0
    %33 = vst [vmem:[#allocation2 + $0x48] sm:$0xff] 0.0
    %34 = vst [vmem:[#allocation2 + $0x50] sm:$0xff] 0.0
    %35 = vst [vmem:[#allocation2 + $0x58] sm:$0xff] 0.0
    %36 = vst [vmem:[#allocation2 + $0x60] sm:$0xff] 0.0
    %37 = vst [vmem:[#allocation2 + $0x68] sm:$0xff] 0.0
    %38 = vst [vmem:[#allocation2 + $0x70] sm:$0xff] 0.0
    %39 = vst [vmem:[#allocation2 + $0x78] sm:$0xff] 0.0
  $region25: #{resnet_forward.15} parent=0 // pred_fallthru
    _
  %v40 = vld [vmem:[#allocation2] sm:$0xff]
  %v41 = vld [vmem:[#allocation2 + $0x8] sm:$0xff]
  %v42 = vld [vmem:[#allocation2 + $0x10] sm:$0xff]
  %v43 = vld [vmem:[#allocation2 + $0x18] sm:$0xff]
  %v44 = vld [vmem:[#allocation2 + $0x20] sm:$0xff]
  %v45 = vld [vmem:[#allocation2 + $0x28] sm:$0xff]
  %v46 = vld [vmem:[#allocation2 + $0x30] sm:$0xff]
  %v47 = vld [vmem:[#allocation2 + $0x38] sm:$0xff]
  %v48 = vld [vmem:[#allocation2 + $0x40] sm:$0xff]
  %v49 = vld [vmem:[#allocation2 + $0x48] sm:$0xff]
  %v50 = vld [vmem:[#allocation2 + $0x50] sm:$0xff]
  %v51 = vld [vmem:[#allocation2 + $0x58] sm:$0xff]
  %v52 = vld [vmem:[#allocation2 + $0x60] sm:$0xff]
  %v53 = vld [vmem:[#allocation2 + $0x68] sm:$0xff]
  %v54 = vld [vmem:[#allocation2 + $0x70] sm:$0xff]
  %v55 = vld [vmem:[#allocation2 + $0x78] sm:$0xff]
  %v56 = vld [vmem:[%s0] sm:$0xff]
  %v57 = vld [vmem:[%s0 + $0x8] sm:$0xff]
  %v58 = vld [vmem:[%s0 + $0x10] sm:$0xf]
  %v59 = vld [vmem:[%s0 + $0x14] sm:$0xff]
  %v60 = vld [vmem:[%s0 + $0x1c] sm:$0xff]
  %v61 = vld [vmem:[%s0 + $0x24] sm:$0xf]
  %v62 = vld [vmem:[%s0 + $0x28] sm:$0xff]
  %v63 = vld [vmem:[%s0 + $0x30] sm:$0xff]
  %v64 = vld [vmem:[%s0 + $0x38] sm:$0xf]
  %v65 = vld [vmem:[%s0 + $0x3c] sm:$0xff]
  %v66 = vld [vmem:[%s0 + $0x44] sm:$0xff]
  %v67 = vld [vmem:[%s0 + $0x4c] sm:$0xf]
  %v68 = vld [vmem:[%s0 + $0x50] sm:$0xff]
  %v69 = vld [vmem:[%s0 + $0x58] sm:$0xff]
  %v70 = vld [vmem:[%s0 + $0x60] sm:$0xf]
  %v71 = vld [vmem:[%s0 + $0x64] sm:$0xff]
  %v72 = vld [vmem:[%s0 + $0x6c] sm:$0xff]
  %v73 = vld [vmem:[%s0 + $0x74] sm:$0xf]
  %v74 = vld [vmem:[%s0 + $0x78] sm:$0xff]
  %v75 = vld [vmem:[%s0 + $0x80] sm:$0xff]
  %v76 = vld [vmem:[%s0 + $0x88] sm:$0xf]
  %v77 = vld [vmem:[%s0 + $0x8c] sm:$0xff]
  %v78 = vld [vmem:[%s0 + $0x94] sm:$0xff]
  %v79 = vld [vmem:[%s0 + $0x9c] sm:$0xf]
  %v80 = vld [vmem:[%s0 + $0xa0] sm:$0xff]
  %v81 = vld [vmem:[%s0 + $0xa8] sm:$0xff]
  %v82 = vld [vmem:[%s0 + $0xb0] sm:$0xf]
  %v83 = vld [vmem:[%s0 + $0xb4] sm:$0xff]
  %v84 = vld [vmem:[%s0 + $0xbc] sm:$0xff]
  %v85 = vld [vmem:[%s0 + $0xc4] sm:$0xf]
  %v86 = vld [vmem:[%s0 + $0xc8] sm:$0xff]
  %v87 = vld [vmem:[%s0 + $0xd0] sm:$0xff]
  %v88 = vld [vmem:[%s0 + $0xd8] sm:$0xf]
  %v89 = vld [vmem:[%s0 + $0xdc] sm:$0xff]
  %v90 = vld [vmem:[%s0 + $0xe4] sm:$0xff]
  %v91 = vld [vmem:[%s0 + $0xec] sm:$0xf]
  %v92 = vld [vmem:[%s0 + $0xf0] sm:$0xff]
  %v93 = vld [vmem:[%s0 + $0xf8] sm:$0xff]
  %v94 = vld [vmem:[%s0 + $0x100] sm:$0xf]
  %v95 = vld [vmem:[%s0 + $0x104] sm:$0xff]
  %v96 = vld [vmem:[%s0 + $0x10c] sm:$0xff]
  %v97 = vld [vmem:[%s0 + $0x114] sm:$0xf]
  %v98 = vld [vmem:[%s0 + $0x118] sm:$0xff]
  %v99 = vld [vmem:[%s0 + $0x120] sm:$0xff]
  %v100 = vld [vmem:[%s0 + $0x128] sm:$0xf]
  %v101 = vld [vmem:[%s0 + $0x12c] sm:$0xff]
  %v102 = vld [vmem:[%s0 + $0x134] sm:$0xff]
  %v103 = vld [vmem:[%s0 + $0x13c] sm:$0xf]
  %v104 = vld [vmem:[%s1] sm:$0xf]
  %v105 = vld [vmem:[%s1 + $0x4] sm:$0xf]
  %v106 = vld [vmem:[%s1 + $0x8] sm:$0xf]
  %v107 = vld [vmem:[%s1 + $0xc] sm:$0xf]
  %v108 = vld [vmem:[%s1 + $0x10] sm:$0xf]
  %v109 = vld [vmem:[%s1 + $0x14] sm:$0xf]
  %v110 = vld [vmem:[%s1 + $0x18] sm:$0xf]
  %v111 = vld [vmem:[%s1 + $0x1c] sm:$0xf]
  %v112 = vld [vmem:[%s1 + $0x20] sm:$0xf]
  %v113 = vld [vmem:[%s1 + $0x24] sm:$0xf]
  %v114 = vld [vmem:[%s1 + $0x28] sm:$0xf]
  %v115 = vld [vmem:[%s1 + $0x2c] sm:$0xf]
  %v116 = vld [vmem:[%s1 + $0x30] sm:$0xf]
  %v117 = vld [vmem:[%s1 + $0x34] sm:$0xf]
  %v118 = vld [vmem:[%s1 + $0x38] sm:$0xf]
  %v119 = vld [vmem:[%s1 + $0x3c] sm:$0xf]
  %v120 = vld [vmem:[%s1 + $0x40] sm:$0xf]
  %v121 = vld [vmem:[%s1 + $0x44] sm:$0xf]
  %v122 = vld [vmem:[%s1 + $0x48] sm:$0xf]
  %v123 = vld [vmem:[%s1 + $0x4c] sm:$0xf]
  %v124 = vld [vmem:[%s1 + $0x50] sm:$0xf]
  %v125 = vld [vmem:[%s1 + $0x54] sm:$0xf]
  %v126 = vld [vmem:[%s1 + $0x58] sm:$0xf]
  %v127 = vld [vmem:[%s1 + $0x5c] sm:$0xf]
  %v128 = vld [vmem:[%s1 + $0x60] sm:$0xf]
  %v129 = vld [vmem:[%s1 + $0x64] sm:$0xf]
  %v130 = vld [vmem:[%s1 + $0x68] sm:$0xf]
  %v131 = vld [vmem:[%s1 + $0x6c] sm:$0xf]
  %v132 = vld [vmem:[%s1 + $0x70] sm:$0xf]
  %v133 = vld [vmem:[%s1 + $0x74] sm:$0xf]
  %v134 = vld [vmem:[%s1 + $0x78] sm:$0xf]
  %v135 = vld [vmem:[%s1 + $0x7c] sm:$0xf]
  %v136 = vld [vmem:[%s1 + $0x80] sm:$0xf]
  %v137 = vld [vmem:[%s1 + $0x84] sm:$0xf]
  %v138 = vld [vmem:[%s1 + $0x88] sm:$0xf]
  %v139 = vld [vmem:[%s1 + $0x8c] sm:$0xf]
  %v140 = vld [vmem:[%s1 + $0x90] sm:$0xf]
  %v141 = vld [vmem:[%s1 + $0x94] sm:$0xf]
  %v142 = vld [vmem:[%s1 + $0x98] sm:$0xf]
  %v143 = vld [vmem:[%s1 + $0x9c] sm:$0xf]
  %v144 = vld [vmem:[%s1 + $0xa0] sm:$0xf]
  %v145 = vld [vmem:[%s1 + $0xa4] sm:$0xf]
  %v146 = vld [vmem:[%s1 + $0xa8] sm:$0xf]
  %v147 = vld [vmem:[%s1 + $0xac] sm:$0xf]
  %v148 = vld [vmem:[%s1 + $0xb0] sm:$0xf]
  %v149 = vld [vmem:[%s1 + $0xb4] sm:$0xf]
  %v150 = vld [vmem:[%s1 + $0xb8] sm:$0xf]
  %v151 = vld [vmem:[%s1 + $0xbc] sm:$0xf]
  %v152 = vld [vmem:[%s1 + $0xc0] sm:$0xf]
  %v153 = vld [vmem:[%s1 + $0xc4] sm:$0xf]
  %v154 = vld [vmem:[%s1 + $0xc8] sm:$0xf]
  %v155 = vld [vmem:[%s1 + $0xcc] sm:$0xf]
  %v156 = vld [vmem:[%s1 + $0xd0] sm:$0xf]
  %v157 = vld [vmem:[%s1 + $0xd4] sm:$0xf]
  %v158 = vld [vmem:[%s1 + $0xd8] sm:$0xf]
  %v159 = vld [vmem:[%s1 + $0xdc] sm:$0xf]
  %v160 = vld [vmem:[%s1 + $0xe0] sm:$0xf]
  %v161 = vld [vmem:[%s1 + $0xe4] sm:$0xf]
  %v162 = vld [vmem:[%s1 + $0xe8] sm:$0xf]
  %v163 = vld [vmem:[%s1 + $0xec] sm:$0xf]
  %v164 = vld [vmem:[%s1 + $0xf0] sm:$0xf]
  %v165 = vld [vmem:[%s1 + $0xf4] sm:$0xf]
  %v166 = vld [vmem:[%s1 + $0xf8] sm:$0xf]
  %v167 = vld [vmem:[%s1 + $0xfc] sm:$0xf]
  %v168 = vld [vmem:[%s1 + $0x100] sm:$0xf]
  %v169 = vld [vmem:[%s1 + $0x104] sm:$0xf]
  %v170 = vld [vmem:[%s1 + $0x108] sm:$0xf]
  %v171 = vld [vmem:[%s1 + $0x10c] sm:$0xf]
  %v172 = vld [vmem:[%s1 + $0x110] sm:$0xf]
  %v173 = vld [vmem:[%s1 + $0x114] sm:$0xf]
  %v174 = vld [vmem:[%s1 + $0x118] sm:$0xf]
  %v175 = vld [vmem:[%s1 + $0x11c] sm:$0xf]
  %v176 = vld [vmem:[%s1 + $0x120] sm:$0xf]
  %v177 = vld [vmem:[%s1 + $0x124] sm:$0xf]
  %v178 = vld [vmem:[%s1 + $0x128] sm:$0xf]
  %v179 = vld [vmem:[%s1 + $0x12c] sm:$0xf]
  %v180 = vld [vmem:[%s1 + $0x130] sm:$0xf]
  %v181 = vld [vmem:[%s1 + $0x134] sm:$0xf]
  %v182 = vld [vmem:[%s1 + $0x138] sm:$0xf]
  %v183 = vld [vmem:[%s1 + $0x13c] sm:$0xf]
  %v232 = vunpack.c.l.b16 %v56
  %v233 = vunpack.c.h.b16 %v56
  %v234 = vunpack.c.l.b16 %v57
  %v235 = vunpack.c.h.b16 %v57
  %v236 = vunpack.c.l.b16 %v58
  %v237 = vunpack.c.l.b16 %v59
  %v238 = vunpack.c.h.b16 %v59
  %v239 = vunpack.c.l.b16 %v60
  %v240 = vunpack.c.h.b16 %v60
  %v241 = vunpack.c.l.b16 %v61
  %v242 = vunpack.c.l.b16 %v62
  %v243 = vunpack.c.h.b16 %v62
  %v244 = vunpack.c.l.b16 %v63
  %v245 = vunpack.c.h.b16 %v63
  %v246 = vunpack.c.l.b16 %v64
  %v247 = vunpack.c.l.b16 %v65
  %v248 = vunpack.c.h.b16 %v65
  %v249 = vunpack.c.l.b16 %v66
  %v250 = vunpack.c.h.b16 %v66
  %v251 = vunpack.c.l.b16 %v67
  %v252 = vunpack.c.l.b16 %v68
  %v253 = vunpack.c.h.b16 %v68
  %v254 = vunpack.c.l.b16 %v69
  %v255 = vunpack.c.h.b16 %v69
  %v256 = vunpack.c.l.b16 %v70
  %v257 = vunpack.c.l.b16 %v71
  %v258 = vunpack.c.h.b16 %v71
  %v259 = vunpack.c.l.b16 %v72
  %v260 = vunpack.c.h.b16 %v72
  %v261 = vunpack.c.l.b16 %v73
  %v262 = vunpack.c.l.b16 %v74
  %v263 = vunpack.c.h.b16 %v74
  %v264 = vunpack.c.l.b16 %v75
  %v265 = vunpack.c.h.b16 %v75
  %v266 = vunpack.c.l.b16 %v76
  %v267 = vunpack.c.l.b16 %v77
  %v268 = vunpack.c.h.b16 %v77
  %v269 = vunpack.c.l.b16 %v78
  %v270 = vunpack.c.h.b16 %v78
  %v271 = vunpack.c.l.b16 %v79
  %v272 = vunpack.c.l.b16 %v80
  %v273 = vunpack.c.h.b16 %v80
  %v274 = vunpack.c.l.b16 %v81
  %v275 = vunpack.c.h.b16 %v81
  %v276 = vunpack.c.l.b16 %v82
  %v277 = vunpack.c.l.b16 %v83
  %v278 = vunpack.c.h.b16 %v83
  %v279 = vunpack.c.l.b16 %v84
  %v280 = vunpack.c.h.b16 %v84
  %v281 = vunpack.c.l.b16 %v85
  %v282 = vunpack.c.l.b16 %v86
  %v283 = vunpack.c.h.b16 %v86
  %v284 = vunpack.c.l.b16 %v87
  %v285 = vunpack.c.h.b16 %v87
  %v286 = vunpack.c.l.b16 %v88
  %v287 = vunpack.c.l.b16 %v89
  %v288 = vunpack.c.h.b16 %v89
  %v289 = vunpack.c.l.b16 %v90
  %v290 = vunpack.c.h.b16 %v90
  %v291 = vunpack.c.l.b16 %v91
  %v292 = vunpack.c.l.b16 %v92
  %v293 = vunpack.c.h.b16 %v92
  %v294 = vunpack.c.l.b16 %v93
  %v295 = vunpack.c.h.b16 %v93
  %v296 = vunpack.c.l.b16 %v94
  %v297 = vunpack.c.l.b16 %v95
  %v298 = vunpack.c.h.b16 %v95
  %v299 = vunpack.c.l.b16 %v96
  %v300 = vunpack.c.h.b16 %v96
  %v301 = vunpack.c.l.b16 %v97
  %v302 = vunpack.c.l.b16 %v98
  %v303 = vunpack.c.h.b16 %v98
  %v304 = vunpack.c.l.b16 %v99
  %v305 = vunpack.c.h.b16 %v99
  %v306 = vunpack.c.l.b16 %v100
  %v307 = vunpack.c.l.b16 %v101
  %v308 = vunpack.c.h.b16 %v101
  %v309 = vunpack.c.l.b16 %v102
  %v310 = vunpack.c.h.b16 %v102
  %v311 = vunpack.c.l.b16 %v103
  %v312 = vpack.c.b16 %v237, %v232
  %v313 = vpack.c.b16 %v238, %v233
  %v314 = vpack.c.b16 %v239, %v234
  %v315 = vpack.c.b16 %v240, %v235
  %v316 = vpack.c.b16 %v241, %v236
  %v317 = vpack.c.b16 %v247, %v242
  %v318 = vpack.c.b16 %v248, %v243
  %v319 = vpack.c.b16 %v249, %v244
  %v320 = vpack.c.b16 %v250, %v245
  %v321 = vpack.c.b16 %v251, %v246
  %v322 = vpack.c.b16 %v257, %v252
  %v323 = vpack.c.b16 %v258, %v253
  %v324 = vpack.c.b16 %v259, %v254
  %v325 = vpack.c.b16 %v260, %v255
  %v326 = vpack.c.b16 %v261, %v256
  %v327 = vpack.c.b16 %v267, %v262
  %v328 = vpack.c.b16 %v268, %v263
  %v329 = vpack.c.b16 %v269, %v264
  %v330 = vpack.c.b16 %v270, %v265
  %v331 = vpack.c.b16 %v271, %v266
  %v332 = vpack.c.b16 %v277, %v272
  %v333 = vpack.c.b16 %v278, %v273
  %v334 = vpack.c.b16 %v279, %v274
  %v335 = vpack.c.b16 %v280, %v275
  %v336 = vpack.c.b16 %v281, %v276
  %v337 = vpack.c.b16 %v287, %v282
  %v338 = vpack.c.b16 %v288, %v283
  %v339 = vpack.c.b16 %v289, %v284
  %v340 = vpack.c.b16 %v290, %v285
  %v341 = vpack.c.b16 %v291, %v286
  %v342 = vpack.c.b16 %v297, %v292
  %v343 = vpack.c.b16 %v298, %v293
  %v344 = vpack.c.b16 %v299, %v294
  %v345 = vpack.c.b16 %v300, %v295
  %v346 = vpack.c.b16 %v301, %v296
  %v347 = vpack.c.b16 %v307, %v302
  %v348 = vpack.c.b16 %v308, %v303
  %v349 = vpack.c.b16 %v309, %v304
  %v350 = vpack.c.b16 %v310, %v305
  %v351 = vpack.c.b16 %v311, %v306
  %v472 = vunpack.c.l.b16 %v104
  %v473 = vunpack.c.l.b16 %v105
  %v474 = vunpack.c.l.b16 %v106
  %v475 = vunpack.c.l.b16 %v107
  %v476 = vunpack.c.l.b16 %v108
  %v477 = vunpack.c.l.b16 %v109
  %v478 = vunpack.c.l.b16 %v110
  %v479 = vunpack.c.l.b16 %v111
  %v480 = vunpack.c.l.b16 %v112
  %v481 = vunpack.c.l.b16 %v113
  %v482 = vunpack.c.l.b16 %v114
  %v483 = vunpack.c.l.b16 %v115
  %v484 = vunpack.c.l.b16 %v116
  %v485 = vunpack.c.l.b16 %v117
  %v486 = vunpack.c.l.b16 %v118
  %v487 = vunpack.c.l.b16 %v119
  %v488 = vunpack.c.l.b16 %v120
  %v489 = vunpack.c.l.b16 %v121
  %v490 = vunpack.c.l.b16 %v122
  %v491 = vunpack.c.l.b16 %v123
  %v492 = vunpack.c.l.b16 %v124
  %v493 = vunpack.c.l.b16 %v125
  %v494 = vunpack.c.l.b16 %v126
  %v495 = vunpack.c.l.b16 %v127
  %v496 = vunpack.c.l.b16 %v128
  %v497 = vunpack.c.l.b16 %v129
  %v498 = vunpack.c.l.b16 %v130
  %v499 = vunpack.c.l.b16 %v131
  %v500 = vunpack.c.l.b16 %v132
  %v501 = vunpack.c.l.b16 %v133
  %v502 = vunpack.c.l.b16 %v134
  %v503 = vunpack.c.l.b16 %v135
  %v504 = vunpack.c.l.b16 %v136
  %v505 = vunpack.c.l.b16 %v137
  %v506 = vunpack.c.l.b16 %v138
  %v507 = vunpack.c.l.b16 %v139
  %v508 = vunpack.c.l.b16 %v140
  %v509 = vunpack.c.l.b16 %v141
  %v510 = vunpack.c.l.b16 %v142
  %v511 = vunpack.c.l.b16 %v143
  %v512 = vunpack.c.l.b16 %v144
  %v513 = vunpack.c.l.b16 %v145
  %v514 = vunpack.c.l.b16 %v146
  %v515 = vunpack.c.l.b16 %v147
  %v516 = vunpack.c.l.b16 %v148
  %v517 = vunpack.c.l.b16 %v149
  %v518 = vunpack.c.l.b16 %v150
  %v519 = vunpack.c.l.b16 %v151
  %v520 = vunpack.c.l.b16 %v152
  %v521 = vunpack.c.l.b16 %v153
  %v522 = vunpack.c.l.b16 %v154
  %v523 = vunpack.c.l.b16 %v155
  %v524 = vunpack.c.l.b16 %v156
  %v525 = vunpack.c.l.b16 %v157
  %v526 = vunpack.c.l.b16 %v158
  %v527 = vunpack.c.l.b16 %v159
  %v528 = vunpack.c.l.b16 %v160
  %v529 = vunpack.c.l.b16 %v161
  %v530 = vunpack.c.l.b16 %v162
  %v531 = vunpack.c.l.b16 %v163
  %v532 = vunpack.c.l.b16 %v164
  %v533 = vunpack.c.l.b16 %v165
  %v534 = vunpack.c.l.b16 %v166
  %v535 = vunpack.c.l.b16 %v167
  %v536 = vunpack.c.l.b16 %v168
  %v537 = vunpack.c.l.b16 %v169
  %v538 = vunpack.c.l.b16 %v170
  %v539 = vunpack.c.l.b16 %v171
  %v540 = vunpack.c.l.b16 %v172
  %v541 = vunpack.c.l.b16 %v173
  %v542 = vunpack.c.l.b16 %v174
  %v543 = vunpack.c.l.b16 %v175
  %v544 = vunpack.c.l.b16 %v176
  %v545 = vunpack.c.l.b16 %v177
  %v546 = vunpack.c.l.b16 %v178
  %v547 = vunpack.c.l.b16 %v179
  %v548 = vunpack.c.l.b16 %v180
  %v549 = vunpack.c.l.b16 %v181
  %v550 = vunpack.c.l.b16 %v182
  %v551 = vunpack.c.l.b16 %v183
  %v552 = vpack.c.b16 %v473, %v472
  %v553 = vpack.c.b16 %v475, %v474
  %v554 = vpack.c.b16 %v477, %v476
  %v555 = vpack.c.b16 %v479, %v478
  %v556 = vpack.c.b16 %v481, %v480
  %v557 = vpack.c.b16 %v483, %v482
  %v558 = vpack.c.b16 %v485, %v484
  %v559 = vpack.c.b16 %v487, %v486
  %v560 = vpack.c.b16 %v489, %v488
  %v561 = vpack.c.b16 %v491, %v490
  %v562 = vpack.c.b16 %v493, %v492
  %v563 = vpack.c.b16 %v495, %v494
  %v564 = vpack.c.b16 %v497, %v496
  %v565 = vpack.c.b16 %v499, %v498
  %v566 = vpack.c.b16 %v501, %v500
  %v567 = vpack.c.b16 %v503, %v502
  %v568 = vpack.c.b16 %v505, %v504
  %v569 = vpack.c.b16 %v507, %v506
  %v570 = vpack.c.b16 %v509, %v508
  %v571 = vpack.c.b16 %v511, %v510
  %v572 = vpack.c.b16 %v513, %v512
  %v573 = vpack.c.b16 %v515, %v514
  %v574 = vpack.c.b16 %v517, %v516
  %v575 = vpack.c.b16 %v519, %v518
  %v576 = vpack.c.b16 %v521, %v520
  %v577 = vpack.c.b16 %v523, %v522
  %v578 = vpack.c.b16 %v525, %v524
  %v579 = vpack.c.b16 %v527, %v526
  %v580 = vpack.c.b16 %v529, %v528
  %v581 = vpack.c.b16 %v531, %v530
  %v582 = vpack.c.b16 %v533, %v532
  %v583 = vpack.c.b16 %v535, %v534
  %v584 = vpack.c.b16 %v537, %v536
  %v585 = vpack.c.b16 %v539, %v538
  %v586 = vpack.c.b16 %v541, %v540
  %v587 = vpack.c.b16 %v543, %v542
  %v588 = vpack.c.b16 %v545, %v544
  %v589 = vpack.c.b16 %v547, %v546
  %v590 = vpack.c.b16 %v549, %v548
  %v591 = vpack.c.b16 %v551, %v550
  %632 = vmatpush.bf16.msra.mxu0 %v559
  %633 = vmatpush.bf16.msra.mxu0 %v558
  %634 = vmatpush.bf16.msra.mxu0 %v557
  %635 = vmatpush.bf16.msra.mxu0 %v556
  %636 = vmatpush.bf16.msra.mxu0 %v555
  %637 = vmatpush.bf16.msra.mxu0 %v554
  %638 = vmatpush.bf16.msra.mxu0 %v553
  %639 = vmatpush.bf16.msra.mxu0 %v552
  %640 = vmatmul.bf16.gmra.mxu0 %v312
  %v641 = vpop.f32.mrf.mxu0
  %v642 = vadd.f32 0.0, %v641
  %v643 = vpop.f32.mrf.mxu0
  %v644 = vadd.f32 0.0, %v643
  %645 = vmatmul.bf16.gmra.mxu0 %v317
  %v646 = vpop.f32.mrf.mxu0
  %v647 = vadd.f32 0.0, %v646
  %v648 = vpop.f32.mrf.mxu0
  %v649 = vadd.f32 0.0, %v648
  %650 = vmatmul.bf16.gmra.mxu0 %v322
  %v651 = vpop.f32.mrf.mxu0
  %v652 = vadd.f32 0.0, %v651
  %v653 = vpop.f32.mrf.mxu0
  %v654 = vadd.f32 0.0, %v653
  %655 = vmatmul.bf16.gmra.mxu0 %v327
  %v656 = vpop.f32.mrf.mxu0
  %v657 = vadd.f32 0.0, %v656
  %v658 = vpop.f32.mrf.mxu0
  %v659 = vadd.f32 0.0, %v658
  %660 = vmatmul.bf16.gmra.mxu0 %v332
  %v661 = vpop.f32.mrf.mxu0
  %v662 = vadd.f32 0.0, %v661
  %v663 = vpop.f32.mrf.mxu0
  %v664 = vadd.f32 0.0, %v663
  %665 = vmatmul.bf16.gmra.mxu0 %v337
  %v666 = vpop.f32.mrf.mxu0
  %v667 = vadd.f32 0.0, %v666
  %v668 = vpop.f32.mrf.mxu0
  %v669 = vadd.f32 0.0, %v668
  %670 = vmatmul.bf16.gmra.mxu0 %v342
  %v671 = vpop.f32.mrf.mxu0
  %v672 = vadd.f32 0.0, %v671
  %v673 = vpop.f32.mrf.mxu0
  %v674 = vadd.f32 0.0, %v673
  %675 = vmatmul.bf16.gmra.mxu0 %v347
  %v676 = vpop.f32.mrf.mxu0
  %v677 = vadd.f32 0.0, %v676
  %v678 = vpop.f32.mrf.mxu0
  %v679 = vadd.f32 0.0, %v678
  %680 = vdwg.mxu0
  %681 = vmatpush.bf16.msra.mxu0 %v567
  %682 = vmatpush.bf16.msra.mxu0 %v566
  %683 = vmatpush.bf16.msra.mxu0 %v565
  %684 = vmatpush.bf16.msra.mxu0 %v564
  %685 = vmatpush.bf16.msra.mxu0 %v563
  %686 = vmatpush.bf16.msra.mxu0 %v562
  %687 = vmatpush.bf16.msra.mxu0 %v561
  %688 = vmatpush.bf16.msra.mxu0 %v560
  %689 = vmatmul.bf16.gmra.mxu0 %v313
  %v690 = vpop.f32.mrf.mxu0
  %v691 = vadd.f32 %v642, %v690
  %v692 = vpop.f32.mrf.mxu0
  %v693 = vadd.f32 %v644, %v692
  %694 = vmatmul.bf16.gmra.mxu0 %v318
  %v695 = vpop.f32.mrf.mxu0
  %v696 = vadd.f32 %v647, %v695
  %v697 = vpop.f32.mrf.mxu0
  %v698 = vadd.f32 %v649, %v697
  %699 = vmatmul.bf16.gmra.mxu0 %v323
  %v700 = vpop.f32.mrf.mxu0
  %v701 = vadd.f32 %v652, %v700
  %v702 = vpop.f32.mrf.mxu0
  %v703 = vadd.f32 %v654, %v702
  %704 = vmatmul.bf16.gmra.mxu0 %v328
  %v705 = vpop.f32.mrf.mxu0
  %v706 = vadd.f32 %v657, %v705
  %v707 = vpop.f32.mrf.mxu0
  %v708 = vadd.f32 %v659, %v707
  %709 = vmatmul.bf16.gmra.mxu0 %v333
  %v710 = vpop.f32.mrf.mxu0
  %v711 = vadd.f32 %v662, %v710
  %v712 = vpop.f32.mrf.mxu0
  %v713 = vadd.f32 %v664, %v712
  %714 = vmatmul.bf16.gmra.mxu0 %v338
  %v715 = vpop.f32.mrf.mxu0
  %v716 = vadd.f32 %v667, %v715
  %v717 = vpop.f32.mrf.mxu0
  %v718 = vadd.f32 %v669, %v717
  %719 = vmatmul.bf16.gmra.mxu0 %v343
  %v720 = vpop.f32.mrf.mxu0
  %v721 = vadd.f32 %v672, %v720
  %v722 = vpop.f32.mrf.mxu0
  %v723 = vadd.f32 %v674, %v722
  %724 = vmatmul.bf16.gmra.mxu0 %v348
  %v725 = vpop.f32.mrf.mxu0
  %v726 = vadd.f32 %v677, %v725
  %v727 = vpop.f32.mrf.mxu0
  %v728 = vadd.f32 %v679, %v727
  %729 = vdwg.mxu0
  %730 = vmatpush.bf16.msra.mxu0 %v575
  %731 = vmatpush.bf16.msra.mxu0 %v574
  %732 = vmatpush.bf16.msra.mxu0 %v573
  %733 = vmatpush.bf16.msra.mxu0 %v572
  %734 = vmatpush.bf16.msra.mxu0 %v571
  %735 = vmatpush.bf16.msra.mxu0 %v570
  %736 = vmatpush.bf16.msra.mxu0 %v569
  %737 = vmatpush.bf16.msra.mxu0 %v568
  %738 = vmatmul.bf16.gmra.mxu0 %v314
  %v739 = vpop.f32.mrf.mxu0
  %v740 = vadd.f32 %v691, %v739
  %v741 = vpop.f32.mrf.mxu0
  %v742 = vadd.f32 %v693, %v741
  %743 = vmatmul.bf16.gmra.mxu0 %v319
  %v744 = vpop.f32.mrf.mxu0
  %v745 = vadd.f32 %v696, %v744
  %v746 = vpop.f32.mrf.mxu0
  %v747 = vadd.f32 %v698, %v746
  %748 = vmatmul.bf16.gmra.mxu0 %v324
  %v749 = vpop.f32.mrf.mxu0
  %v750 = vadd.f32 %v701, %v749
  %v751 = vpop.f32.mrf.mxu0
  %v752 = vadd.f32 %v703, %v751
  %753 = vmatmul.bf16.gmra.mxu0 %v329
  %v754 = vpop.f32.mrf.mxu0
  %v755 = vadd.f32 %v706, %v754
  %v756 = vpop.f32.mrf.mxu0
  %v757 = vadd.f32 %v708, %v756
  %758 = vmatmul.bf16.gmra.mxu0 %v334
  %v759 = vpop.f32.mrf.mxu0
  %v760 = vadd.f32 %v711, %v759
  %v761 = vpop.f32.mrf.mxu0
  %v762 = vadd.f32 %v713, %v761
  %763 = vmatmul.bf16.gmra.mxu0 %v339
  %v764 = vpop.f32.mrf.mxu0
  %v765 = vadd.f32 %v716, %v764
  %v766 = vpop.f32.mrf.mxu0
  %v767 = vadd.f32 %v718, %v766
  %768 = vmatmul.bf16.gmra.mxu0 %v344
  %v769 = vpop.f32.mrf.mxu0
  %v770 = vadd.f32 %v721, %v769
  %v771 = vpop.f32.mrf.mxu0
  %v772 = vadd.f32 %v723, %v771
  %773 = vmatmul.bf16.gmra.mxu0 %v349
  %v774 = vpop.f32.mrf.mxu0
  %v775 = vadd.f32 %v726, %v774
  %v776 = vpop.f32.mrf.mxu0
  %v777 = vadd.f32 %v728, %v776
  %778 = vdwg.mxu0
  %779 = vmatpush.bf16.msra.mxu0 %v583
  %780 = vmatpush.bf16.msra.mxu0 %v582
  %781 = vmatpush.bf16.msra.mxu0 %v581
  %782 = vmatpush.bf16.msra.mxu0 %v580
  %783 = vmatpush.bf16.msra.mxu0 %v579
  %784 = vmatpush.bf16.msra.mxu0 %v578
  %785 = vmatpush.bf16.msra.mxu0 %v577
  %786 = vmatpush.bf16.msra.mxu0 %v576
  %787 = vmatmul.bf16.gmra.mxu0 %v315
  %v788 = vpop.f32.mrf.mxu0
  %v789 = vadd.f32 %v740, %v788
  %v790 = vpop.f32.mrf.mxu0
  %v791 = vadd.f32 %v742, %v790
  %792 = vmatmul.bf16.gmra.mxu0 %v320
  %v793 = vpop.f32.mrf.mxu0
  %v794 = vadd.f32 %v745, %v793
  %v795 = vpop.f32.mrf.mxu0
  %v796 = vadd.f32 %v747, %v795
  %797 = vmatmul.bf16.gmra.mxu0 %v325
  %v798 = vpop.f32.mrf.mxu0
  %v799 = vadd.f32 %v750, %v798
  %v800 = vpop.f32.mrf.mxu0
  %v801 = vadd.f32 %v752, %v800
  %802 = vmatmul.bf16.gmra.mxu0 %v330
  %v803 = vpop.f32.mrf.mxu0
  %v804 = vadd.f32 %v755, %v803
  %v805 = vpop.f32.mrf.mxu0
  %v806 = vadd.f32 %v757, %v805
  %807 = vmatmul.bf16.gmra.mxu0 %v335
  %v808 = vpop.f32.mrf.mxu0
  %v809 = vadd.f32 %v760, %v808
  %v810 = vpop.f32.mrf.mxu0
  %v811 = vadd.f32 %v762, %v810
  %812 = vmatmul.bf16.gmra.mxu0 %v340
  %v813 = vpop.f32.mrf.mxu0
  %v814 = vadd.f32 %v765, %v813
  %v815 = vpop.f32.mrf.mxu0
  %v816 = vadd.f32 %v767, %v815
  %817 = vmatmul.bf16.gmra.mxu0 %v345
  %v818 = vpop.f32.mrf.mxu0
  %v819 = vadd.f32 %v770, %v818
  %v820 = vpop.f32.mrf.mxu0
  %v821 = vadd.f32 %v772, %v820
  %822 = vmatmul.bf16.gmra.mxu0 %v350
  %v823 = vpop.f32.mrf.mxu0
  %v824 = vadd.f32 %v775, %v823
  %v825 = vpop.f32.mrf.mxu0
  %v826 = vadd.f32 %v777, %v825
  %827 = vdwg.mxu0
  %828 = vmatpush.bf16.msra.mxu0 %v591
  %829 = vmatpush.bf16.msra.mxu0 %v590
  %830 = vmatpush.bf16.msra.mxu0 %v589
  %831 = vmatpush.bf16.msra.mxu0 %v588
  %832 = vmatpush.bf16.msra.mxu0 %v587
  %833 = vmatpush.bf16.msra.mxu0 %v586
  %834 = vmatpush.bf16.msra.mxu0 %v585
  %835 = vmatpush.bf16.msra.mxu0 %v584
  %836 = vmatmul.bf16.gmra.mxu0 %v316
  %v837 = vpop.f32.mrf.mxu0
  %v838 = vadd.f32 %v789, %v837
  %v839 = vpop.f32.mrf.mxu0
  %v840 = vadd.f32 %v791, %v839
  %841 = vmatmul.bf16.gmra.mxu0 %v321
  %v842 = vpop.f32.mrf.mxu0
  %v843 = vadd.f32 %v794, %v842
  %v844 = vpop.f32.mrf.mxu0
  %v845 = vadd.f32 %v796, %v844
  %846 = vmatmul.bf16.gmra.mxu0 %v326
  %v847 = vpop.f32.mrf.mxu0
  %v848 = vadd.f32 %v799, %v847
  %v849 = vpop.f32.mrf.mxu0
  %v850 = vadd.f32 %v801, %v849
  %851 = vmatmul.bf16.gmra.mxu0 %v331
  %v852 = vpop.f32.mrf.mxu0
  %v853 = vadd.f32 %v804, %v852
  %v854 = vpop.f32.mrf.mxu0
  %v855 = vadd.f32 %v806, %v854
  %856 = vmatmul.bf16.gmra.mxu0 %v336
  %v857 = vpop.f32.mrf.mxu0
  %v858 = vadd.f32 %v809, %v857
  %v859 = vpop.f32.mrf.mxu0
  %v860 = vadd.f32 %v811, %v859
  %861 = vmatmul.bf16.gmra.mxu0 %v341
  %v862 = vpop.f32.mrf.mxu0
  %v863 = vadd.f32 %v814, %v862
  %v864 = vpop.f32.mrf.mxu0
  %v865 = vadd.f32 %v816, %v864
  %866 = vmatmul.bf16.gmra.mxu0 %v346
  %v867 = vpop.f32.mrf.mxu0
  %v868 = vadd.f32 %v819, %v867
  %v869 = vpop.f32.mrf.mxu0
  %v870 = vadd.f32 %v821, %v869
  %871 = vmatmul.bf16.gmra.mxu0 %v351
  %v872 = vpop.f32.mrf.mxu0
  %v873 = vadd.f32 %v824, %v872
  %v874 = vpop.f32.mrf.mxu0
  %v875 = vadd.f32 %v826, %v874
  %876 = vdwg.mxu0
  %v877 = vadd.f32 %v40, %v838
  %v878 = vadd.f32 %v41, %v840
  %v879 = vadd.f32 %v42, %v843
  %v880 = vadd.f32 %v43, %v845
  %v881 = vadd.f32 %v44, %v848
  %v882 = vadd.f32 %v45, %v850
  %v883 = vadd.f32 %v46, %v853
  %v884 = vadd.f32 %v47, %v855
  %v885 = vadd.f32 %v48, %v858
  %v886 = vadd.f32 %v49, %v860
  %v887 = vadd.f32 %v50, %v863
  %v888 = vadd.f32 %v51, %v865
  %v889 = vadd.f32 %v52, %v868
  %v890 = vadd.f32 %v53, %v870
  %v891 = vadd.f32 %v54, %v873
  %v892 = vadd.f32 %v55, %v875
  %893 = vst [vmem:[#allocation2] sm:$0xff] %v877
  %894 = vst [vmem:[#allocation2 + $0x8] sm:$0xff] %v878
  %895 = vst [vmem:[#allocation2 + $0x10] sm:$0xff] %v879
  %896 = vst [vmem:[#allocation2 + $0x18] sm:$0xff] %v880
  %897 = vst [vmem:[#allocation2 + $0x20] sm:$0xff] %v881
  %898 = vst [vmem:[#allocation2 + $0x28] sm:$0xff] %v882
  %899 = vst [vmem:[#allocation2 + $0x30] sm:$0xff] %v883
  %900 = vst [vmem:[#allocation2 + $0x38] sm:$0xff] %v884
  %901 = vst [vmem:[#allocation2 + $0x40] sm:$0xff] %v885
  %902 = vst [vmem:[#allocation2 + $0x48] sm:$0xff] %v886
  %903 = vst [vmem:[#allocation2 + $0x50] sm:$0xff] %v887
  %904 = vst [vmem:[#allocation2 + $0x58] sm:$0xff] %v888
  %905 = vst [vmem:[#allocation2 + $0x60] sm:$0xff] %v889
  %906 = vst [vmem:[#allocation2 + $0x68] sm:$0xff] %v890
  %907 = vst [vmem:[#allocation2 + $0x70] sm:$0xff] %v891
  %908 = vst [vmem:[#allocation2 + $0x78] sm:$0xff] %v892
  // Predicated region
  $region26: #{resnet_forward.15} parent=0 // pred_check
    %p909 = pneg %p20
  $region27: #{resnet_forward.15} parent=0 // pred_check_branch
    %911 = sbr.rel (%p909) target = $region29
  $region28: #{resnet_forward.15} parent=0 // pred_region
    %v912 = vld [vmem:[#allocation2] sm:$0xff]
    %v913 = vld [vmem:[#allocation2 + $0x8] sm:$0xff]
    %v914 = vld [vmem:[#allocation2 + $0x10] sm:$0xff]
    %v915 = vld [vmem:[#allocation2 + $0x18] sm:$0xff]
    %v916 = vld [vmem:[#allocation2 + $0x20] sm:$0xff]
    %v917 = vld [vmem:[#allocation2 + $0x28] sm:$0xff]
    %v918 = vld [vmem:[#allocation2 + $0x30] sm:$0xff]
    %v919 = vld [vmem:[#allocation2 + $0x38] sm:$0xff]
    %v920 = vld [vmem:[#allocation2 + $0x40] sm:$0xff]
    %v921 = vld [vmem:[#allocation2 + $0x48] sm:$0xff]
    %v922 = vld [vmem:[#allocation2 + $0x50] sm:$0xff]
    %v923 = vld [vmem:[#allocation2 + $0x58] sm:$0xff]
    %v924 = vld [vmem:[#allocation2 + $0x60] sm:$0xff]
    %v925 = vld [vmem:[#allocation2 + $0x68] sm:$0xff]
    %v926 = vld [vmem:[#allocation2 + $0x70] sm:$0xff]
    %v927 = vld [vmem:[#allocation2 + $0x78] sm:$0xff]
    %v928 = vld [vmem:[%s2] sm:$0x1]
    %v930 = vperm.slane %v928, 0
    %v932 = vmul.f32 %v912, %v930
    %v933 = vmul.f32 %v913, %v930
    %v934 = vmul.f32 %v914, %v930
    %v935 = vmul.f32 %v915, %v930
    %v936 = vmul.f32 %v916, %v930
    %v937 = vmul.f32 %v917, %v930
    %v938 = vmul.f32 %v918, %v930
    %v939 = vmul.f32 %v919, %v930
    %v940 = vmul.f32 %v920, %v930
    %v941 = vmul.f32 %v921, %v930
    %v942 = vmul.f32 %v922, %v930
    %v943 = vmul.f32 %v923, %v930
    %v944 = vmul.f32 %v924, %v930
    %v945 = vmul.f32 %v925, %v930
    %v946 = vmul.f32 %v926, %v930
    %v947 = vmul.f32 %v927, %v930
    %v948 = vld [vmem:[%s3] sm:$0x1]
    %v950 = vperm.slane %v948, 0
    %v952 = vadd.f32 %v932, %v950
    %v953 = vadd.f32 %v933, %v950
    %v954 = vadd.f32 %v934, %v950
    %v955 = vadd.f32 %v935, %v950
    %v956 = vadd.f32 %v936, %v950
    %v957 = vadd.f32 %v937, %v950
    %v958 = vadd.f32 %v938, %v950
    %v959 = vadd.f32 %v939, %v950
    %v960 = vadd.f32 %v940, %v950
    %v961 = vadd.f32 %v941, %v950
    %v962 = vadd.f32 %v942, %v950
    %v963 = vadd.f32 %v943, %v950
    %v964 = vadd.f32 %v944, %v950
    %v965 = vadd.f32 %v945, %v950
    %v966 = vadd.f32 %v946, %v950
    %v967 = vadd.f32 %v947, %v950
    %v968 = vld [vmem:[%s4] sm:$0xff]
    %v969 = vld [vmem:[%s4 + $0x8] sm:$0xff]
    %v970 = vld [vmem:[%s4 + $0x10] sm:$0xff]
    %v971 = vld [vmem:[%s4 + $0x18] sm:$0xff]
    %v972 = vld [vmem:[%s4 + $0x20] sm:$0xff]
    %v973 = vld [vmem:[%s4 + $0x28] sm:$0xff]
    %v974 = vld [vmem:[%s4 + $0x30] sm:$0xff]
    %v975 = vld [vmem:[%s4 + $0x38] sm:$0xff]
    %v976 = vld [vmem:[%s4 + $0x40] sm:$0xff]
    %v977 = vld [vmem:[%s4 + $0x48] sm:$0xff]
    %v978 = vld [vmem:[%s4 + $0x50] sm:$0xff]
    %v979 = vld [vmem:[%s4 + $0x58] sm:$0xff]
    %v980 = vld [vmem:[%s4 + $0x60] sm:$0xff]
    %v981 = vld [vmem:[%s4 + $0x68] sm:$0xff]
    %v982 = vld [vmem:[%s4 + $0x70] sm:$0xff]
    %v983 = vld [vmem:[%s4 + $0x78] sm:$0xff]
    %v984 = vadd.f32 %v952, %v968
    %v985 = vadd.f32 %v953, %v969
    %v986 = vadd.f32 %v954, %v970
    %v987 = vadd.f32 %v955, %v971
    %v988 = vadd.f32 %v956, %v972
    %v989 = vadd.f32 %v957, %v973
    %v990 = vadd.f32 %v958, %v974
    %v991 = vadd.f32 %v959, %v975
    %v992 = vadd.f32 %v960, %v976
    %v993 = vadd.f32 %v961, %v977
    %v994 = vadd.f32 %v962, %v978
    %v995 = vadd.f32 %v963, %v979
    %v996 = vadd.f32 %v964, %v980
    %v997 = vadd.f32 %v965, %v981
    %v998 = vadd.f32 %v966, %v982
    %v999 = vadd.f32 %v967, %v983
    %v1000 = vmax.f32 %v984, 0.0
    %v1001 = vmax.f32 %v985, 0.0
    %v1002 = vmax.f32 %v986, 0.0
    %v1003 = vmax.f32 %v987, 0.0
    %v1004 = vmax.f32 %v988, 0.0
    %v1005 = vmax.f32 %v989, 0.0
    %v1006 = vmax.f32 %v990, 0.0
    %v1007 = vmax.f32 %v991, 0.0
    %v1008 = vmax.f32 %v992, 0.0
    %v1009 = vmax.f32 %v993, 0.0
    %v1010 = vmax.f32 %v994, 0.0
    %v1011 = vmax.f32 %v995, 0.0
    %v1012 = vmax.f32 %v996, 0.0
    %v1013 = vmax.f32 %v997, 0.0
    %v1014 = vmax.f32 %v998, 0.0
    %v1015 = vmax.f32 %v999, 0.0
    %1016 = vst [vmem:[%s5] sm:$0xff] %v1000
    %1017 = vst [vmem:[%s5 + $0x8] sm:$0xff] %v1001
    %1018 = vst [vmem:[%s5 + $0x10] sm:$0xff] %v1002
    %1019 = vst [vmem:[%s5 + $0x18] sm:$0xff] %v1003
    %1020 = vst [vmem:[%s5 + $0x20] sm:$0xff] %v1004
    %1021 = vst [vmem:[%s5 + $0x28] sm:$0xff] %v1005
    %1022 = vst [vmem:[%s5 + $0x30] sm:$0xff] %v1006
    %1023 = vst [vmem:[%s5 + $0x38] sm:$0xff] %v1007
    %1024 = vst [vmem:[%s5 + $0x40] sm:$0xff] %v1008
    %1025 = vst [vmem:[%s5 + $0x48] sm:$0xff] %v1009
    %1026 = vst [vmem:[%s5 + $0x50] sm:$0xff] %v1010
    %1027 = vst [vmem:[%s5 + $0x58] sm:$0xff] %v1011
    %1028 = vst [vmem:[%s5 + $0x60] sm:$0xff] %v1012
    %1029 = vst [vmem:[%s5 + $0x68] sm:$0xff] %v1013
    %1030 = vst [vmem:[%s5 + $0x70] sm:$0xff] %v1014
    %1031 = vst [vmem:[%s5 + $0x78] sm:$0xff] %v1015
  $region29: #{resnet_forward.15} parent=0 // pred_fallthru
    _
  // Predicated region
  $region30: #{resnet_forward.15} parent=0 // pred_check
    _
  $region31: #{resnet_forward.15} parent=0 // pred_check_branch
    %1033 = sbr.rel (0) target = $region33
  $region32: #{resnet_forward.15} parent=0 // pred_region
    _
  $region33: #{resnet_forward.15} parent=0 // pred_fallthru
    _
  // Predicated region
  $region34: #{resnet_forward.15} parent=0 // pred_check
    _
  $region35: #{resnet_forward.15} parent=0 // pred_check_branch
    %1035 = sbr.rel (0) target = $region37
  $region36: #{resnet_forward.15} parent=0 // pred_region
    _
  $region37: #{resnet_forward.15} parent=0 // pred_fallthru
    _

// kernel: resnet_forward.16
$region0: #{resnet_forward.16}
  #allocation0 [shape = 'u32[]', space=smem, size = 0x4, offset = 0x4, fixed_abs, tag = 'smem constant byte address 0x4 - core index']
  #allocation1 [shape = 'u32[72,128]{1,0:T(1,128)}', space=vmem, size = 0x9000, scoped, tag = 'internal scratch']
  #allocation2 [shape = 'f32[32,128]{1,0:T(8,128)}', space=vmem, size = 0x4000, scoped, tag = 'scratch operand']
  %s0 = inlined_call_operand.vmem [shape: bf16[32,640], index: 0, kind: input, shape index: {}]
  %s1 = inlined_call_operand.vmem [shape: bf16[640,128], index: 1, kind: input, shape index: {}]
  %s2 = inlined_call_operand.vmem [shape: f32[1,128], index: 2, kind: input, shape index: {}]
  %s3 = inlined_call_operand.vmem [shape: f32[1,128], index: 3, kind: input, shape index: {}]
  %s4 = inlined_call_operand.vmem [shape: f32[32,128], index: 4, kind: output, shape index: {}]
  %s5 = sld [smem:[#allocation0]]
  $region34: #{resnet_forward.16} parent=0
    _
  %s7 = ssub.s32 1, %s5
  %s8 = scalar_select 0, %s7, %s5
  // Predicated region
  $region2: #{resnet_forward.16} parent=0 // pred_check
    _
  $region3: #{resnet_forward.16} parent=0 // pred_check_branch
    %10 = sbr.rel (0) target = $region5
  $region4: #{resnet_forward.16} parent=0 // pred_region
    _
  $region5: #{resnet_forward.16} parent=0 // pred_fallthru
    _
  // Predicated region
  $region6: #{resnet_forward.16} parent=0 // pred_check
    _
  $region7: #{resnet_forward.16} parent=0 // pred_check_branch
    %12 = sbr.rel (0) target = $region9
  $region8: #{resnet_forward.16} parent=0 // pred_region
    _
  $region9: #{resnet_forward.16} parent=0 // pred_fallthru
    _
  // Predicated region
  $region10: #{resnet_forward.16} parent=0 // pred_check
    _
  $region11: #{resnet_forward.16} parent=0 // pred_check_branch
    %14 = sbr.rel (0) target = $region13
  $region12: #{resnet_forward.16} parent=0 // pred_region
    _
  $region13: #{resnet_forward.16} parent=0 // pred_fallthru
    _
  // Predicated region
  $region14: #{resnet_forward.16} parent=0 // pred_check
    _
  $region15: #{resnet_forward.16} parent=0 // pred_check_branch
    %16 = sbr.rel (0) target = $region17
  $region16: #{resnet_forward.16} parent=0 // pred_region
    _
  $region17: #{resnet_forward.16} parent=0 // pred_fallthru
    _
  %p17 = scmp.eq.s32.totalorder 0, 0
  // Predicated region
  $region18: #{resnet_forward.16} parent=0 // pred_check
    %p18 = pneg %p17
  $region19: #{resnet_forward.16} parent=0 // pred_check_branch
    %20 = sbr.rel (%p18) target = $region21
  $region20: #{resnet_forward.16} parent=0 // pred_region
    %21 = vst [vmem:[#allocation2] sm:$0xff] 0.0
    %22 = vst [vmem:[#allocation2 + $0x8] sm:$0xff] 0.0
    %23 = vst [vmem:[#allocation2 + $0x10] sm:$0xff] 0.0
    %24 = vst [vmem:[#allocation2 + $0x18] sm:$0xff] 0.0
  $region21: #{resnet_forward.16} parent=0 // pred_fallthru
    _
  %v25 = vld [vmem:[#allocation2] sm:$0xff]
  %v26 = vld [vmem:[#allocation2 + $0x8] sm:$0xff]
  %v27 = vld [vmem:[#allocation2 + $0x10] sm:$0xff]
  %v28 = vld [vmem:[#allocation2 + $0x18] sm:$0xff]
  %v29 = vld [vmem:[%s0] sm:$0xff]
  %v30 = vld [vmem:[%s0 + $0x8] sm:$0xff]
  %v31 = vld [vmem:[%s0 + $0x10] sm:$0xf]
  %v32 = vld [vmem:[%s0 + $0x14] sm:$0xff]
  %v33 = vld [vmem:[%s0 + $0x1c] sm:$0xff]
  %v34 = vld [vmem:[%s0 + $0x24] sm:$0xf]
  %v35 = vld [vmem:[%s0 + $0x28] sm:$0xff]
  %v36 = vld [vmem:[%s0 + $0x30] sm:$0xff]
  %v37 = vld [vmem:[%s0 + $0x38] sm:$0xf]
  %v38 = vld [vmem:[%s0 + $0x3c] sm:$0xff]
  %v39 = vld [vmem:[%s0 + $0x44] sm:$0xff]
  %v40 = vld [vmem:[%s0 + $0x4c] sm:$0xf]
  %v41 = vld [vmem:[%s1] sm:$0xf]
  %v42 = vld [vmem:[%s1 + $0x4] sm:$0xf]
  %v43 = vld [vmem:[%s1 + $0x8] sm:$0xf]
  %v44 = vld [vmem:[%s1 + $0xc] sm:$0xf]
  %v45 = vld [vmem:[%s1 + $0x10] sm:$0xf]
  %v46 = vld [vmem:[%s1 + $0x14] sm:$0xf]
  %v47 = vld [vmem:[%s1 + $0x18] sm:$0xf]
  %v48 = vld [vmem:[%s1 + $0x1c] sm:$0xf]
  %v49 = vld [vmem:[%s1 + $0x20] sm:$0xf]
  %v50 = vld [vmem:[%s1 + $0x24] sm:$0xf]
  %v51 = vld [vmem:[%s1 + $0x28] sm:$0xf]
  %v52 = vld [vmem:[%s1 + $0x2c] sm:$0xf]
  %v53 = vld [vmem:[%s1 + $0x30] sm:$0xf]
  %v54 = vld [vmem:[%s1 + $0x34] sm:$0xf]
  %v55 = vld [vmem:[%s1 + $0x38] sm:$0xf]
  %v56 = vld [vmem:[%s1 + $0x3c] sm:$0xf]
  %v57 = vld [vmem:[%s1 + $0x40] sm:$0xf]
  %v58 = vld [vmem:[%s1 + $0x44] sm:$0xf]
  %v59 = vld [vmem:[%s1 + $0x48] sm:$0xf]
  %v60 = vld [vmem:[%s1 + $0x4c] sm:$0xf]
  %v61 = vld [vmem:[%s1 + $0x50] sm:$0xf]
  %v62 = vld [vmem:[%s1 + $0x54] sm:$0xf]
  %v63 = vld [vmem:[%s1 + $0x58] sm:$0xf]
  %v64 = vld [vmem:[%s1 + $0x5c] sm:$0xf]
  %v65 = vld [vmem:[%s1 + $0x60] sm:$0xf]
  %v66 = vld [vmem:[%s1 + $0x64] sm:$0xf]
  %v67 = vld [vmem:[%s1 + $0x68] sm:$0xf]
  %v68 = vld [vmem:[%s1 + $0x6c] sm:$0xf]
  %v69 = vld [vmem:[%s1 + $0x70] sm:$0xf]
  %v70 = vld [vmem:[%s1 + $0x74] sm:$0xf]
  %v71 = vld [vmem:[%s1 + $0x78] sm:$0xf]
  %v72 = vld [vmem:[%s1 + $0x7c] sm:$0xf]
  %v73 = vld [vmem:[%s1 + $0x80] sm:$0xf]
  %v74 = vld [vmem:[%s1 + $0x84] sm:$0xf]
  %v75 = vld [vmem:[%s1 + $0x88] sm:$0xf]
  %v76 = vld [vmem:[%s1 + $0x8c] sm:$0xf]
  %v77 = vld [vmem:[%s1 + $0x90] sm:$0xf]
  %v78 = vld [vmem:[%s1 + $0x94] sm:$0xf]
  %v79 = vld [vmem:[%s1 + $0x98] sm:$0xf]
  %v80 = vld [vmem:[%s1 + $0x9c] sm:$0xf]
  %v81 = vld [vmem:[%s1 + $0xa0] sm:$0xf]
  %v82 = vld [vmem:[%s1 + $0xa4] sm:$0xf]
  %v83 = vld [vmem:[%s1 + $0xa8] sm:$0xf]
  %v84 = vld [vmem:[%s1 + $0xac] sm:$0xf]
  %v85 = vld [vmem:[%s1 + $0xb0] sm:$0xf]
  %v86 = vld [vmem:[%s1 + $0xb4] sm:$0xf]
  %v87 = vld [vmem:[%s1 + $0xb8] sm:$0xf]
  %v88 = vld [vmem:[%s1 + $0xbc] sm:$0xf]
  %v89 = vld [vmem:[%s1 + $0xc0] sm:$0xf]
  %v90 = vld [vmem:[%s1 + $0xc4] sm:$0xf]
  %v91 = vld [vmem:[%s1 + $0xc8] sm:$0xf]
  %v92 = vld [vmem:[%s1 + $0xcc] sm:$0xf]
  %v93 = vld [vmem:[%s1 + $0xd0] sm:$0xf]
  %v94 = vld [vmem:[%s1 + $0xd4] sm:$0xf]
  %v95 = vld [vmem:[%s1 + $0xd8] sm:$0xf]
  %v96 = vld [vmem:[%s1 + $0xdc] sm:$0xf]
  %v97 = vld [vmem:[%s1 + $0xe0] sm:$0xf]
  %v98 = vld [vmem:[%s1 + $0xe4] sm:$0xf]
  %v99 = vld [vmem:[%s1 + $0xe8] sm:$0xf]
  %v100 = vld [vmem:[%s1 + $0xec] sm:$0xf]
  %v101 = vld [vmem:[%s1 + $0xf0] sm:$0xf]
  %v102 = vld [vmem:[%s1 + $0xf4] sm:$0xf]
  %v103 = vld [vmem:[%s1 + $0xf8] sm:$0xf]
  %v104 = vld [vmem:[%s1 + $0xfc] sm:$0xf]
  %v105 = vld [vmem:[%s1 + $0x100] sm:$0xf]
  %v106 = vld [vmem:[%s1 + $0x104] sm:$0xf]
  %v107 = vld [vmem:[%s1 + $0x108] sm:$0xf]
  %v108 = vld [vmem:[%s1 + $0x10c] sm:$0xf]
  %v109 = vld [vmem:[%s1 + $0x110] sm:$0xf]
  %v110 = vld [vmem:[%s1 + $0x114] sm:$0xf]
  %v111 = vld [vmem:[%s1 + $0x118] sm:$0xf]
  %v112 = vld [vmem:[%s1 + $0x11c] sm:$0xf]
  %v113 = vld [vmem:[%s1 + $0x120] sm:$0xf]
  %v114 = vld [vmem:[%s1 + $0x124] sm:$0xf]
  %v115 = vld [vmem:[%s1 + $0x128] sm:$0xf]
  %v116 = vld [vmem:[%s1 + $0x12c] sm:$0xf]
  %v117 = vld [vmem:[%s1 + $0x130] sm:$0xf]
  %v118 = vld [vmem:[%s1 + $0x134] sm:$0xf]
  %v119 = vld [vmem:[%s1 + $0x138] sm:$0xf]
  %v120 = vld [vmem:[%s1 + $0x13c] sm:$0xf]
  %v133 = vunpack.c.l.b16 %v29
  %v134 = vunpack.c.h.b16 %v29
  %v135 = vunpack.c.l.b16 %v30
  %v136 = vunpack.c.h.b16 %v30
  %v137 = vunpack.c.l.b16 %v31
  %v138 = vunpack.c.l.b16 %v32
  %v139 = vunpack.c.h.b16 %v32
  %v140 = vunpack.c.l.b16 %v33
  %v141 = vunpack.c.h.b16 %v33
  %v142 = vunpack.c.l.b16 %v34
  %v143 = vunpack.c.l.b16 %v35
  %v144 = vunpack.c.h.b16 %v35
  %v145 = vunpack.c.l.b16 %v36
  %v146 = vunpack.c.h.b16 %v36
  %v147 = vunpack.c.l.b16 %v37
  %v148 = vunpack.c.l.b16 %v38
  %v149 = vunpack.c.h.b16 %v38
  %v150 = vunpack.c.l.b16 %v39
  %v151 = vunpack.c.h.b16 %v39
  %v152 = vunpack.c.l.b16 %v40
  %v153 = vpack.c.b16 %v138, %v133
  %v154 = vpack.c.b16 %v139, %v134
  %v155 = vpack.c.b16 %v140, %v135
  %v156 = vpack.c.b16 %v141, %v136
  %v157 = vpack.c.b16 %v142, %v137
  %v158 = vpack.c.b16 %v148, %v143
  %v159 = vpack.c.b16 %v149, %v144
  %v160 = vpack.c.b16 %v150, %v145
  %v161 = vpack.c.b16 %v151, %v146
  %v162 = vpack.c.b16 %v152, %v147
  %v253 = vunpack.c.l.b16 %v41
  %v254 = vunpack.c.l.b16 %v42
  %v255 = vunpack.c.l.b16 %v43
  %v256 = vunpack.c.l.b16 %v44
  %v257 = vunpack.c.l.b16 %v45
  %v258 = vunpack.c.l.b16 %v46
  %v259 = vunpack.c.l.b16 %v47
  %v260 = vunpack.c.l.b16 %v48
  %v261 = vunpack.c.l.b16 %v49
  %v262 = vunpack.c.l.b16 %v50
  %v263 = vunpack.c.l.b16 %v51
  %v264 = vunpack.c.l.b16 %v52
  %v265 = vunpack.c.l.b16 %v53
  %v266 = vunpack.c.l.b16 %v54
  %v267 = vunpack.c.l.b16 %v55
  %v268 = vunpack.c.l.b16 %v56
  %v269 = vunpack.c.l.b16 %v57
  %v270 = vunpack.c.l.b16 %v58
  %v271 = vunpack.c.l.b16 %v59
  %v272 = vunpack.c.l.b16 %v60
  %v273 = vunpack.c.l.b16 %v61
  %v274 = vunpack.c.l.b16 %v62
  %v275 = vunpack.c.l.b16 %v63
  %v276 = vunpack.c.l.b16 %v64
  %v277 = vunpack.c.l.b16 %v65
  %v278 = vunpack.c.l.b16 %v66
  %v279 = vunpack.c.l.b16 %v67
  %v280 = vunpack.c.l.b16 %v68
  %v281 = vunpack.c.l.b16 %v69
  %v282 = vunpack.c.l.b16 %v70
  %v283 = vunpack.c.l.b16 %v71
  %v284 = vunpack.c.l.b16 %v72
  %v285 = vunpack.c.l.b16 %v73
  %v286 = vunpack.c.l.b16 %v74
  %v287 = vunpack.c.l.b16 %v75
  %v288 = vunpack.c.l.b16 %v76
  %v289 = vunpack.c.l.b16 %v77
  %v290 = vunpack.c.l.b16 %v78
  %v291 = vunpack.c.l.b16 %v79
  %v292 = vunpack.c.l.b16 %v80
  %v293 = vunpack.c.l.b16 %v81
  %v294 = vunpack.c.l.b16 %v82
  %v295 = vunpack.c.l.b16 %v83
  %v296 = vunpack.c.l.b16 %v84
  %v297 = vunpack.c.l.b16 %v85
  %v298 = vunpack.c.l.b16 %v86
  %v299 = vunpack.c.l.b16 %v87
  %v300 = vunpack.c.l.b16 %v88
  %v301 = vunpack.c.l.b16 %v89
  %v302 = vunpack.c.l.b16 %v90
  %v303 = vunpack.c.l.b16 %v91
  %v304 = vunpack.c.l.b16 %v92
  %v305 = vunpack.c.l.b16 %v93
  %v306 = vunpack.c.l.b16 %v94
  %v307 = vunpack.c.l.b16 %v95
  %v308 = vunpack.c.l.b16 %v96
  %v309 = vunpack.c.l.b16 %v97
  %v310 = vunpack.c.l.b16 %v98
  %v311 = vunpack.c.l.b16 %v99
  %v312 = vunpack.c.l.b16 %v100
  %v313 = vunpack.c.l.b16 %v101
  %v314 = vunpack.c.l.b16 %v102
  %v315 = vunpack.c.l.b16 %v103
  %v316 = vunpack.c.l.b16 %v104
  %v317 = vunpack.c.l.b16 %v105
  %v318 = vunpack.c.l.b16 %v106
  %v319 = vunpack.c.l.b16 %v107
  %v320 = vunpack.c.l.b16 %v108
  %v321 = vunpack.c.l.b16 %v109
  %v322 = vunpack.c.l.b16 %v110
  %v323 = vunpack.c.l.b16 %v111
  %v324 = vunpack.c.l.b16 %v112
  %v325 = vunpack.c.l.b16 %v113
  %v326 = vunpack.c.l.b16 %v114
  %v327 = vunpack.c.l.b16 %v115
  %v328 = vunpack.c.l.b16 %v116
  %v329 = vunpack.c.l.b16 %v117
  %v330 = vunpack.c.l.b16 %v118
  %v331 = vunpack.c.l.b16 %v119
  %v332 = vunpack.c.l.b16 %v120
  %v333 = vpack.c.b16 %v254, %v253
  %v334 = vpack.c.b16 %v256, %v255
  %v335 = vpack.c.b16 %v258, %v257
  %v336 = vpack.c.b16 %v260, %v259
  %v337 = vpack.c.b16 %v262, %v261
  %v338 = vpack.c.b16 %v264, %v263
  %v339 = vpack.c.b16 %v266, %v265
  %v340 = vpack.c.b16 %v268, %v267
  %v341 = vpack.c.b16 %v270, %v269
  %v342 = vpack.c.b16 %v272, %v271
  %v343 = vpack.c.b16 %v274, %v273
  %v344 = vpack.c.b16 %v276, %v275
  %v345 = vpack.c.b16 %v278, %v277
  %v346 = vpack.c.b16 %v280, %v279
  %v347 = vpack.c.b16 %v282, %v281
  %v348 = vpack.c.b16 %v284, %v283
  %v349 = vpack.c.b16 %v286, %v285
  %v350 = vpack.c.b16 %v288, %v287
  %v351 = vpack.c.b16 %v290, %v289
  %v352 = vpack.c.b16 %v292, %v291
  %v353 = vpack.c.b16 %v294, %v293
  %v354 = vpack.c.b16 %v296, %v295
  %v355 = vpack.c.b16 %v298, %v297
  %v356 = vpack.c.b16 %v300, %v299
  %v357 = vpack.c.b16 %v302, %v301
  %v358 = vpack.c.b16 %v304, %v303
  %v359 = vpack.c.b16 %v306, %v305
  %v360 = vpack.c.b16 %v308, %v307
  %v361 = vpack.c.b16 %v310, %v309
  %v362 = vpack.c.b16 %v312, %v311
  %v363 = vpack.c.b16 %v314, %v313
  %v364 = vpack.c.b16 %v316, %v315
  %v365 = vpack.c.b16 %v318, %v317
  %v366 = vpack.c.b16 %v320, %v319
  %v367 = vpack.c.b16 %v322, %v321
  %v368 = vpack.c.b16 %v324, %v323
  %v369 = vpack.c.b16 %v326, %v325
  %v370 = vpack.c.b16 %v328, %v327
  %v371 = vpack.c.b16 %v330, %v329
  %v372 = vpack.c.b16 %v332, %v331
  %413 = vmatpush.bf16.msra.mxu0 %v340
  %414 = vmatpush.bf16.msra.mxu0 %v339
  %415 = vmatpush.bf16.msra.mxu0 %v338
  %416 = vmatpush.bf16.msra.mxu0 %v337
  %417 = vmatpush.bf16.msra.mxu0 %v336
  %418 = vmatpush.bf16.msra.mxu0 %v335
  %419 = vmatpush.bf16.msra.mxu0 %v334
  %420 = vmatpush.bf16.msra.mxu0 %v333
  %421 = vmatmul.bf16.gmra.mxu0 %v153
  %v422 = vpop.f32.mrf.mxu0
  %v423 = vadd.f32 0.0, %v422
  %v424 = vpop.f32.mrf.mxu0
  %v425 = vadd.f32 0.0, %v424
  %426 = vmatmul.bf16.gmra.mxu0 %v158
  %v427 = vpop.f32.mrf.mxu0
  %v428 = vadd.f32 0.0, %v427
  %v429 = vpop.f32.mrf.mxu0
  %v430 = vadd.f32 0.0, %v429
  %431 = vdwg.mxu0
  %432 = vmatpush.bf16.msra.mxu0 %v348
  %433 = vmatpush.bf16.msra.mxu0 %v347
  %434 = vmatpush.bf16.msra.mxu0 %v346
  %435 = vmatpush.bf16.msra.mxu0 %v345
  %436 = vmatpush.bf16.msra.mxu0 %v344
  %437 = vmatpush.bf16.msra.mxu0 %v343
  %438 = vmatpush.bf16.msra.mxu0 %v342
  %439 = vmatpush.bf16.msra.mxu0 %v341
  %440 = vmatmul.bf16.gmra.mxu0 %v154
  %v441 = vpop.f32.mrf.mxu0
  %v442 = vadd.f32 %v423, %v441
  %v443 = vpop.f32.mrf.mxu0
  %v444 = vadd.f32 %v425, %v443
  %445 = vmatmul.bf16.gmra.mxu0 %v159
  %v446 = vpop.f32.mrf.mxu0
  %v447 = vadd.f32 %v428, %v446
  %v448 = vpop.f32.mrf.mxu0
  %v449 = vadd.f32 %v430, %v448
  %450 = vdwg.mxu0
  %451 = vmatpush.bf16.msra.mxu0 %v356
  %452 = vmatpush.bf16.msra.mxu0 %v355
  %453 = vmatpush.bf16.msra.mxu0 %v354
  %454 = vmatpush.bf16.msra.mxu0 %v353
  %455 = vmatpush.bf16.msra.mxu0 %v352
  %456 = vmatpush.bf16.msra.mxu0 %v351
  %457 = vmatpush.bf16.msra.mxu0 %v350
  %458 = vmatpush.bf16.msra.mxu0 %v349
  %459 = vmatmul.bf16.gmra.mxu0 %v155
  %v460 = vpop.f32.mrf.mxu0
  %v461 = vadd.f32 %v442, %v460
  %v462 = vpop.f32.mrf.mxu0
  %v463 = vadd.f32 %v444, %v462
  %464 = vmatmul.bf16.gmra.mxu0 %v160
  %v465 = vpop.f32.mrf.mxu0
  %v466 = vadd.f32 %v447, %v465
  %v467 = vpop.f32.mrf.mxu0
  %v468 = vadd.f32 %v449, %v467
  %469 = vdwg.mxu0
  %470 = vmatpush.bf16.msra.mxu0 %v364
  %471 = vmatpush.bf16.msra.mxu0 %v363
  %472 = vmatpush.bf16.msra.mxu0 %v362
  %473 = vmatpush.bf16.msra.mxu0 %v361
  %474 = vmatpush.bf16.msra.mxu0 %v360
  %475 = vmatpush.bf16.msra.mxu0 %v359
  %476 = vmatpush.bf16.msra.mxu0 %v358
  %477 = vmatpush.bf16.msra.mxu0 %v357
  %478 = vmatmul.bf16.gmra.mxu0 %v156
  %v479 = vpop.f32.mrf.mxu0
  %v480 = vadd.f32 %v461, %v479
  %v481 = vpop.f32.mrf.mxu0
  %v482 = vadd.f32 %v463, %v481
  %483 = vmatmul.bf16.gmra.mxu0 %v161
  %v484 = vpop.f32.mrf.mxu0
  %v485 = vadd.f32 %v466, %v484
  %v486 = vpop.f32.mrf.mxu0
  %v487 = vadd.f32 %v468, %v486
  %488 = vdwg.mxu0
  %489 = vmatpush.bf16.msra.mxu0 %v372
  %490 = vmatpush.bf16.msra.mxu0 %v371
  %491 = vmatpush.bf16.msra.mxu0 %v370
  %492 = vmatpush.bf16.msra.mxu0 %v369
  %493 = vmatpush.bf16.msra.mxu0 %v368
  %494 = vmatpush.bf16.msra.mxu0 %v367
  %495 = vmatpush.bf16.msra.mxu0 %v366
  %496 = vmatpush.bf16.msra.mxu0 %v365
  %497 = vmatmul.bf16.gmra.mxu0 %v157
  %v498 = vpop.f32.mrf.mxu0
  %v499 = vadd.f32 %v480, %v498
  %v500 = vpop.f32.mrf.mxu0
  %v501 = vadd.f32 %v482, %v500
  %502 = vmatmul.bf16.gmra.mxu0 %v162
  %v503 = vpop.f32.mrf.mxu0
  %v504 = vadd.f32 %v485, %v503
  %v505 = vpop.f32.mrf.mxu0
  %v506 = vadd.f32 %v487, %v505
  %507 = vdwg.mxu0
  %v508 = vadd.f32 %v25, %v499
  %v509 = vadd.f32 %v26, %v501
  %v510 = vadd.f32 %v27, %v504
  %v511 = vadd.f32 %v28, %v506
  %512 = vst [vmem:[#allocation2] sm:$0xff] %v508
  %513 = vst [vmem:[#allocation2 + $0x8] sm:$0xff] %v509
  %514 = vst [vmem:[#allocation2 + $0x10] sm:$0xff] %v510
  %515 = vst [vmem:[#allocation2 + $0x18] sm:$0xff] %v511
  // Predicated region
  $region22: #{resnet_forward.16} parent=0 // pred_check
    %p516 = pneg %p17
  $region23: #{resnet_forward.16} parent=0 // pred_check_branch
    %518 = sbr.rel (%p516) target = $region25
  $region24: #{resnet_forward.16} parent=0 // pred_region
    %v519 = vld [vmem:[#allocation2] sm:$0xff]
    %v520 = vld [vmem:[#allocation2 + $0x8] sm:$0xff]
    %v521 = vld [vmem:[#allocation2 + $0x10] sm:$0xff]
    %v522 = vld [vmem:[#allocation2 + $0x18] sm:$0xff]
    %v523 = vld [vmem:[%s2] sm:$0x1]
    %v525 = vperm.slane %v523, 0
    %v527 = vmul.f32 %v519, %v525
    %v528 = vmul.f32 %v520, %v525
    %v529 = vmul.f32 %v521, %v525
    %v530 = vmul.f32 %v522, %v525
    %v531 = vld [vmem:[%s3] sm:$0x1]
    %v533 = vperm.slane %v531, 0
    %v535 = vadd.f32 %v527, %v533
    %v536 = vadd.f32 %v528, %v533
    %v537 = vadd.f32 %v529, %v533
    %v538 = vadd.f32 %v530, %v533
    %v539 = vmax.f32 %v535, 0.0
    %v540 = vmax.f32 %v536, 0.0
    %v541 = vmax.f32 %v537, 0.0
    %v542 = vmax.f32 %v538, 0.0
    %543 = vst [vmem:[%s4] sm:$0xff] %v539
    %544 = vst [vmem:[%s4 + $0x8] sm:$0xff] %v540
    %545 = vst [vmem:[%s4 + $0x10] sm:$0xff] %v541
    %546 = vst [vmem:[%s4 + $0x18] sm:$0xff] %v542
  $region25: #{resnet_forward.16} parent=0 // pred_fallthru
    _
  // Predicated region
  $region26: #{resnet_forward.16} parent=0 // pred_check
    _
  $region27: #{resnet_forward.16} parent=0 // pred_check_branch
    %548 = sbr.rel (0) target = $region29
  $region28: #{resnet_forward.16} parent=0 // pred_region
    _
  $region29: #{resnet_forward.16} parent=0 // pred_fallthru
    _
  // Predicated region
  $region30: #{resnet_forward.16} parent=0 // pred_check
    _
  $region31: #{resnet_forward.16} parent=0 // pred_check_branch
    %550 = sbr.rel (0) target = $region33
  $region32: #{resnet_forward.16} parent=0 // pred_region
    _
  $region33: #{resnet_forward.16} parent=0 // pred_fallthru
    _

// kernel: resnet_forward.17
$region0: #{resnet_forward.17}
  #allocation0 [shape = 'u32[]', space=smem, size = 0x4, offset = 0x4, fixed_abs, tag = 'smem constant byte address 0x4 - core index']
  #allocation1 [shape = 'u32[72,128]{1,0:T(1,128)}', space=vmem, size = 0x9000, scoped, tag = 'internal scratch']
  #allocation2 [shape = 'f32[32,128]{1,0:T(8,128)}', space=vmem, size = 0x4000, scoped, tag = 'scratch operand']
  %s0 = inlined_call_operand.vmem [shape: bf16[32,128], index: 0, kind: input, shape index: {}]
  %s1 = inlined_call_operand.vmem [shape: bf16[128,128], index: 1, kind: input, shape index: {}]
  %s2 = inlined_call_operand.vmem [shape: f32[1,128], index: 2, kind: input, shape index: {}]
  %s3 = inlined_call_operand.vmem [shape: f32[1,128], index: 3, kind: input, shape index: {}]
  %s4 = inlined_call_operand.vmem [shape: f32[32,128], index: 4, kind: output, shape index: {}]
  %s5 = sld [smem:[#allocation0]]
  $region34: #{resnet_forward.17} parent=0
    _
  %s7 = ssub.s32 1, %s5
  %s8 = scalar_select 0, %s7, %s5
  // Predicated region
  $region2: #{resnet_forward.17} parent=0 // pred_check
    _
  $region3: #{resnet_forward.17} parent=0 // pred_check_branch
    %10 = sbr.rel (0) target = $region5
  $region4: #{resnet_forward.17} parent=0 // pred_region
    _
  $region5: #{resnet_forward.17} parent=0 // pred_fallthru
    _
  // Predicated region
  $region6: #{resnet_forward.17} parent=0 // pred_check
    _
  $region7: #{resnet_forward.17} parent=0 // pred_check_branch
    %12 = sbr.rel (0) target = $region9
  $region8: #{resnet_forward.17} parent=0 // pred_region
    _
  $region9: #{resnet_forward.17} parent=0 // pred_fallthru
    _
  // Predicated region
  $region10: #{resnet_forward.17} parent=0 // pred_check
    _
  $region11: #{resnet_forward.17} parent=0 // pred_check_branch
    %14 = sbr.rel (0) target = $region13
  $region12: #{resnet_forward.17} parent=0 // pred_region
    _
  $region13: #{resnet_forward.17} parent=0 // pred_fallthru
    _
  // Predicated region
  $region14: #{resnet_forward.17} parent=0 // pred_check
    _
  $region15: #{resnet_forward.17} parent=0 // pred_check_branch
    %16 = sbr.rel (0) target = $region17
  $region16: #{resnet_forward.17} parent=0 // pred_region
    _
  $region17: #{resnet_forward.17} parent=0 // pred_fallthru
    _
  %p17 = scmp.eq.s32.totalorder 0, 0
  // Predicated region
  $region18: #{resnet_forward.17} parent=0 // pred_check
    %p18 = pneg %p17
  $region19: #{resnet_forward.17} parent=0 // pred_check_branch
    %20 = sbr.rel (%p18) target = $region21
  $region20: #{resnet_forward.17} parent=0 // pred_region
    %21 = vst [vmem:[#allocation2] sm:$0xff] 0.0
    %22 = vst [vmem:[#allocation2 + $0x8] sm:$0xff] 0.0
    %23 = vst [vmem:[#allocation2 + $0x10] sm:$0xff] 0.0
    %24 = vst [vmem:[#allocation2 + $0x18] sm:$0xff] 0.0
  $region21: #{resnet_forward.17} parent=0 // pred_fallthru
    _
  %v25 = vld [vmem:[#allocation2] sm:$0xff]
  %v26 = vld [vmem:[#allocation2 + $0x8] sm:$0xff]
  %v27 = vld [vmem:[#allocation2 + $0x10] sm:$0xff]
  %v28 = vld [vmem:[#allocation2 + $0x18] sm:$0xff]
  %v29 = vld [vmem:[%s0] sm:$0xf]
  %v30 = vld [vmem:[%s0 + $0x4] sm:$0xf]
  %v31 = vld [vmem:[%s0 + $0x8] sm:$0xf]
  %v32 = vld [vmem:[%s0 + $0xc] sm:$0xf]
  %v33 = vld [vmem:[%s1] sm:$0xf]
  %v34 = vld [vmem:[%s1 + $0x4] sm:$0xf]
  %v35 = vld [vmem:[%s1 + $0x8] sm:$0xf]
  %v36 = vld [vmem:[%s1 + $0xc] sm:$0xf]
  %v37 = vld [vmem:[%s1 + $0x10] sm:$0xf]
  %v38 = vld [vmem:[%s1 + $0x14] sm:$0xf]
  %v39 = vld [vmem:[%s1 + $0x18] sm:$0xf]
  %v40 = vld [vmem:[%s1 + $0x1c] sm:$0xf]
  %v41 = vld [vmem:[%s1 + $0x20] sm:$0xf]
  %v42 = vld [vmem:[%s1 + $0x24] sm:$0xf]
  %v43 = vld [vmem:[%s1 + $0x28] sm:$0xf]
  %v44 = vld [vmem:[%s1 + $0x2c] sm:$0xf]
  %v45 = vld [vmem:[%s1 + $0x30] sm:$0xf]
  %v46 = vld [vmem:[%s1 + $0x34] sm:$0xf]
  %v47 = vld [vmem:[%s1 + $0x38] sm:$0xf]
  %v48 = vld [vmem:[%s1 + $0x3c] sm:$0xf]
  %v53 = vunpack.c.l.b16 %v29
  %v54 = vunpack.c.l.b16 %v30
  %v55 = vunpack.c.l.b16 %v31
  %v56 = vunpack.c.l.b16 %v32
  %v57 = vpack.c.b16 %v54, %v53
  %v58 = vpack.c.b16 %v56, %v55
  %v77 = vunpack.c.l.b16 %v33
  %v78 = vunpack.c.l.b16 %v34
  %v79 = vunpack.c.l.b16 %v35
  %v80 = vunpack.c.l.b16 %v36
  %v81 = vunpack.c.l.b16 %v37
  %v82 = vunpack.c.l.b16 %v38
  %v83 = vunpack.c.l.b16 %v39
  %v84 = vunpack.c.l.b16 %v40
  %v85 = vunpack.c.l.b16 %v41
  %v86 = vunpack.c.l.b16 %v42
  %v87 = vunpack.c.l.b16 %v43
  %v88 = vunpack.c.l.b16 %v44
  %v89 = vunpack.c.l.b16 %v45
  %v90 = vunpack.c.l.b16 %v46
  %v91 = vunpack.c.l.b16 %v47
  %v92 = vunpack.c.l.b16 %v48
  %v93 = vpack.c.b16 %v78, %v77
  %v94 = vpack.c.b16 %v80, %v79
  %v95 = vpack.c.b16 %v82, %v81
  %v96 = vpack.c.b16 %v84, %v83
  %v97 = vpack.c.b16 %v86, %v85
  %v98 = vpack.c.b16 %v88, %v87
  %v99 = vpack.c.b16 %v90, %v89
  %v100 = vpack.c.b16 %v92, %v91
  %109 = vmatpush.bf16.msra.mxu0 %v100
  %110 = vmatpush.bf16.msra.mxu0 %v99
  %111 = vmatpush.bf16.msra.mxu0 %v98
  %112 = vmatpush.bf16.msra.mxu0 %v97
  %113 = vmatpush.bf16.msra.mxu0 %v96
  %114 = vmatpush.bf16.msra.mxu0 %v95
  %115 = vmatpush.bf16.msra.mxu0 %v94
  %116 = vmatpush.bf16.msra.mxu0 %v93
  %117 = vmatmul.bf16.gmra.mxu0 %v57
  %v118 = vpop.f32.mrf.mxu0
  %v119 = vadd.f32 0.0, %v118
  %v120 = vpop.f32.mrf.mxu0
  %v121 = vadd.f32 0.0, %v120
  %122 = vmatmul.bf16.gmra.mxu0 %v58
  %v123 = vpop.f32.mrf.mxu0
  %v124 = vadd.f32 0.0, %v123
  %v125 = vpop.f32.mrf.mxu0
  %v126 = vadd.f32 0.0, %v125
  %127 = vdwg.mxu0
  %v128 = vadd.f32 %v25, %v119
  %v129 = vadd.f32 %v26, %v121
  %v130 = vadd.f32 %v27, %v124
  %v131 = vadd.f32 %v28, %v126
  %132 = vst [vmem:[#allocation2] sm:$0xff] %v128
  %133 = vst [vmem:[#allocation2 + $0x8] sm:$0xff] %v129
  %134 = vst [vmem:[#allocation2 + $0x10] sm:$0xff] %v130
  %135 = vst [vmem:[#allocation2 + $0x18] sm:$0xff] %v131
  // Predicated region
  $region22: #{resnet_forward.17} parent=0 // pred_check
    %p136 = pneg %p17
  $region23: #{resnet_forward.17} parent=0 // pred_check_branch
    %138 = sbr.rel (%p136) target = $region25
  $region24: #{resnet_forward.17} parent=0 // pred_region
    %v139 = vld [vmem:[#allocation2] sm:$0xff]
    %v140 = vld [vmem:[#allocation2 + $0x8] sm:$0xff]
    %v141 = vld [vmem:[#allocation2 + $0x10] sm:$0xff]
    %v142 = vld [vmem:[#allocation2 + $0x18] sm:$0xff]
    %v143 = vld [vmem:[%s2] sm:$0x1]
    %v145 = vperm.slane %v143, 0
    %v147 = vmul.f32 %v139, %v145
    %v148 = vmul.f32 %v140, %v145
    %v149 = vmul.f32 %v141, %v145
    %v150 = vmul.f32 %v142, %v145
    %v151 = vld [vmem:[%s3] sm:$0x1]
    %v153 = vperm.slane %v151, 0
    %v155 = vadd.f32 %v147, %v153
    %v156 = vadd.f32 %v148, %v153
    %v157 = vadd.f32 %v149, %v153
    %v158 = vadd.f32 %v150, %v153
    %159 = vst [vmem:[%s4] sm:$0xff] %v155
    %160 = vst [vmem:[%s4 + $0x8] sm:$0xff] %v156
    %161 = vst [vmem:[%s4 + $0x10] sm:$0xff] %v157
    %162 = vst [vmem:[%s4 + $0x18] sm:$0xff] %v158
  $region25: #{resnet_forward.17} parent=0 // pred_fallthru
    _
  // Predicated region
  $region26: #{resnet_forward.17} parent=0 // pred_check
    _
  $region27: #{resnet_forward.17} parent=0 // pred_check_branch
    %164 = sbr.rel (0) target = $region29
  $region28: #{resnet_forward.17} parent=0 // pred_region
    _
  $region29: #{resnet_forward.17} parent=0 // pred_fallthru
    _
  // Predicated region
  $region30: #{resnet_forward.17} parent=0 // pred_check
    _
  $region31: #{resnet_forward.17} parent=0 // pred_check_branch
    %166 = sbr.rel (0) target = $region33
  $region32: #{resnet_forward.17} parent=0 // pred_region
    _
  $region33: #{resnet_forward.17} parent=0 // pred_fallthru
    _

// kernel: resnet_forward.18
$region0: #{resnet_forward.18}
  #allocation0 [shape = 'u32[]', space=smem, size = 0x4, offset = 0x4, fixed_abs, tag = 'smem constant byte address 0x4 - core index']
  #allocation1 [shape = 'u32[72,128]{1,0:T(1,128)}', space=vmem, size = 0x9000, scoped, tag = 'internal scratch']
  #allocation2 [shape = 'f32[32,128]{1,0:T(8,128)}', space=vmem, size = 0x4000, scoped, tag = 'scratch operand']
  %s0 = inlined_call_operand.vmem [shape: bf16[32,1152], index: 0, kind: input, shape index: {}]
  %s1 = inlined_call_operand.vmem [shape: bf16[1152,128], index: 1, kind: input, shape index: {}]
  %s2 = inlined_call_operand.vmem [shape: f32[1,128], index: 2, kind: input, shape index: {}]
  %s3 = inlined_call_operand.vmem [shape: f32[1,128], index: 3, kind: input, shape index: {}]
  %s4 = inlined_call_operand.vmem [shape: f32[32,128], index: 4, kind: input, shape index: {}]
  %s5 = inlined_call_operand.vmem [shape: f32[32,128], index: 5, kind: output, shape index: {}]
  %s6 = sld [smem:[#allocation0]]
  $region38: #{resnet_forward.18} parent=0
    _
  %s8 = ssub.s32 1, %s6
  %s9 = scalar_select 0, %s8, %s6
  // Predicated region
  $region2: #{resnet_forward.18} parent=0 // pred_check
    _
  $region3: #{resnet_forward.18} parent=0 // pred_check_branch
    %11 = sbr.rel (0) target = $region5
  $region4: #{resnet_forward.18} parent=0 // pred_region
    _
  $region5: #{resnet_forward.18} parent=0 // pred_fallthru
    _
  // Predicated region
  $region6: #{resnet_forward.18} parent=0 // pred_check
    _
  $region7: #{resnet_forward.18} parent=0 // pred_check_branch
    %13 = sbr.rel (0) target = $region9
  $region8: #{resnet_forward.18} parent=0 // pred_region
    _
  $region9: #{resnet_forward.18} parent=0 // pred_fallthru
    _
  // Predicated region
  $region10: #{resnet_forward.18} parent=0 // pred_check
    _
  $region11: #{resnet_forward.18} parent=0 // pred_check_branch
    %15 = sbr.rel (0) target = $region13
  $region12: #{resnet_forward.18} parent=0 // pred_region
    _
  $region13: #{resnet_forward.18} parent=0 // pred_fallthru
    _
  // Predicated region
  $region14: #{resnet_forward.18} parent=0 // pred_check
    _
  $region15: #{resnet_forward.18} parent=0 // pred_check_branch
    %17 = sbr.rel (0) target = $region17
  $region16: #{resnet_forward.18} parent=0 // pred_region
    _
  $region17: #{resnet_forward.18} parent=0 // pred_fallthru
    _
  // Predicated region
  $region18: #{resnet_forward.18} parent=0 // pred_check
    _
  $region19: #{resnet_forward.18} parent=0 // pred_check_branch
    %19 = sbr.rel (0) target = $region21
  $region20: #{resnet_forward.18} parent=0 // pred_region
    _
  $region21: #{resnet_forward.18} parent=0 // pred_fallthru
    _
  %p20 = scmp.eq.s32.totalorder 0, 0
  // Predicated region
  $region22: #{resnet_forward.18} parent=0 // pred_check
    %p21 = pneg %p20
  $region23: #{resnet_forward.18} parent=0 // pred_check_branch
    %23 = sbr.rel (%p21) target = $region25
  $region24: #{resnet_forward.18} parent=0 // pred_region
    %24 = vst [vmem:[#allocation2] sm:$0xff] 0.0
    %25 = vst [vmem:[#allocation2 + $0x8] sm:$0xff] 0.0
    %26 = vst [vmem:[#allocation2 + $0x10] sm:$0xff] 0.0
    %27 = vst [vmem:[#allocation2 + $0x18] sm:$0xff] 0.0
  $region25: #{resnet_forward.18} parent=0 // pred_fallthru
    _
  %v28 = vld [vmem:[#allocation2] sm:$0xff]
  %v29 = vld [vmem:[#allocation2 + $0x8] sm:$0xff]
  %v30 = vld [vmem:[#allocation2 + $0x10] sm:$0xff]
  %v31 = vld [vmem:[#allocation2 + $0x18] sm:$0xff]
  %v32 = vld [vmem:[%s0] sm:$0xff]
  %v33 = vld [vmem:[%s0 + $0x8] sm:$0xff]
  %v34 = vld [vmem:[%s0 + $0x10] sm:$0xff]
  %v35 = vld [vmem:[%s0 + $0x18] sm:$0xff]
  %v36 = vld [vmem:[%s0 + $0x20] sm:$0xf]
  %v37 = vld [vmem:[%s0 + $0x24] sm:$0xff]
  %v38 = vld [vmem:[%s0 + $0x2c] sm:$0xff]
  %v39 = vld [vmem:[%s0 + $0x34] sm:$0xff]
  %v40 = vld [vmem:[%s0 + $0x3c] sm:$0xff]
  %v41 = vld [vmem:[%s0 + $0x44] sm:$0xf]
  %v42 = vld [vmem:[%s0 + $0x48] sm:$0xff]
  %v43 = vld [vmem:[%s0 + $0x50] sm:$0xff]
  %v44 = vld [vmem:[%s0 + $0x58] sm:$0xff]
  %v45 = vld [vmem:[%s0 + $0x60] sm:$0xff]
  %v46 = vld [vmem:[%s0 + $0x68] sm:$0xf]
  %v47 = vld [vmem:[%s0 + $0x6c] sm:$0xff]
  %v48 = vld [vmem:[%s0 + $0x74] sm:$0xff]
  %v49 = vld [vmem:[%s0 + $0x7c] sm:$0xff]
  %v50 = vld [vmem:[%s0 + $0x84] sm:$0xff]
  %v51 = vld [vmem:[%s0 + $0x8c] sm:$0xf]
  %v52 = vld [vmem:[%s1] sm:$0xf]
  %v53 = vld [vmem:[%s1 + $0x4] sm:$0xf]
  %v54 = vld [vmem:[%s1 + $0x8] sm:$0xf]
  %v55 = vld [vmem:[%s1 + $0xc] sm:$0xf]
  %v56 = vld [vmem:[%s1 + $0x10] sm:$0xf]
  %v57 = vld [vmem:[%s1 + $0x14] sm:$0xf]
  %v58 = vld [vmem:[%s1 + $0x18] sm:$0xf]
  %v59 = vld [vmem:[%s1 + $0x1c] sm:$0xf]
  %v60 = vld [vmem:[%s1 + $0x20] sm:$0xf]
  %v61 = vld [vmem:[%s1 + $0x24] sm:$0xf]
  %v62 = vld [vmem:[%s1 + $0x28] sm:$0xf]
  %v63 = vld [vmem:[%s1 + $0x2c] sm:$0xf]
  %v64 = vld [vmem:[%s1 + $0x30] sm:$0xf]
  %v65 = vld [vmem:[%s1 + $0x34] sm:$0xf]
  %v66 = vld [vmem:[%s1 + $0x38] sm:$0xf]
  %v67 = vld [vmem:[%s1 + $0x3c] sm:$0xf]
  %v68 = vld [vmem:[%s1 + $0x40] sm:$0xf]
  %v69 = vld [vmem:[%s1 + $0x44] sm:$0xf]
  %v70 = vld [vmem:[%s1 + $0x48] sm:$0xf]
  %v71 = vld [vmem:[%s1 + $0x4c] sm:$0xf]
  %v72 = vld [vmem:[%s1 + $0x50] sm:$0xf]
  %v73 = vld [vmem:[%s1 + $0x54] sm:$0xf]
  %v74 = vld [vmem:[%s1 + $0x58] sm:$0xf]
  %v75 = vld [vmem:[%s1 + $0x5c] sm:$0xf]
  %v76 = vld [vmem:[%s1 + $0x60] sm:$0xf]
  %v77 = vld [vmem:[%s1 + $0x64] sm:$0xf]
  %v78 = vld [vmem:[%s1 + $0x68] sm:$0xf]
  %v79 = vld [vmem:[%s1 + $0x6c] sm:$0xf]
  %v80 = vld [vmem:[%s1 + $0x70] sm:$0xf]
  %v81 = vld [vmem:[%s1 + $0x74] sm:$0xf]
  %v82 = vld [vmem:[%s1 + $0x78] sm:$0xf]
  %v83 = vld [vmem:[%s1 + $0x7c] sm:$0xf]
  %v84 = vld [vmem:[%s1 + $0x80] sm:$0xf]
  %v85 = vld [vmem:[%s1 + $0x84] sm:$0xf]
  %v86 = vld [vmem:[%s1 + $0x88] sm:$0xf]
  %v87 = vld [vmem:[%s1 + $0x8c] sm:$0xf]
  %v88 = vld [vmem:[%s1 + $0x90] sm:$0xf]
  %v89 = vld [vmem:[%s1 + $0x94] sm:$0xf]
  %v90 = vld [vmem:[%s1 + $0x98] sm:$0xf]
  %v91 = vld [vmem:[%s1 + $0x9c] sm:$0xf]
  %v92 = vld [vmem:[%s1 + $0xa0] sm:$0xf]
  %v93 = vld [vmem:[%s1 + $0xa4] sm:$0xf]
  %v94 = vld [vmem:[%s1 + $0xa8] sm:$0xf]
  %v95 = vld [vmem:[%s1 + $0xac] sm:$0xf]
  %v96 = vld [vmem:[%s1 + $0xb0] sm:$0xf]
  %v97 = vld [vmem:[%s1 + $0xb4] sm:$0xf]
  %v98 = vld [vmem:[%s1 + $0xb8] sm:$0xf]
  %v99 = vld [vmem:[%s1 + $0xbc] sm:$0xf]
  %v100 = vld [vmem:[%s1 + $0xc0] sm:$0xf]
  %v101 = vld [vmem:[%s1 + $0xc4] sm:$0xf]
  %v102 = vld [vmem:[%s1 + $0xc8] sm:$0xf]
  %v103 = vld [vmem:[%s1 + $0xcc] sm:$0xf]
  %v104 = vld [vmem:[%s1 + $0xd0] sm:$0xf]
  %v105 = vld [vmem:[%s1 + $0xd4] sm:$0xf]
  %v106 = vld [vmem:[%s1 + $0xd8] sm:$0xf]
  %v107 = vld [vmem:[%s1 + $0xdc] sm:$0xf]
  %v108 = vld [vmem:[%s1 + $0xe0] sm:$0xf]
  %v109 = vld [vmem:[%s1 + $0xe4] sm:$0xf]
  %v110 = vld [vmem:[%s1 + $0xe8] sm:$0xf]
  %v111 = vld [vmem:[%s1 + $0xec] sm:$0xf]
  %v112 = vld [vmem:[%s1 + $0xf0] sm:$0xf]
  %v113 = vld [vmem:[%s1 + $0xf4] sm:$0xf]
  %v114 = vld [vmem:[%s1 + $0xf8] sm:$0xf]
  %v115 = vld [vmem:[%s1 + $0xfc] sm:$0xf]
  %v116 = vld [vmem:[%s1 + $0x100] sm:$0xf]
  %v117 = vld [vmem:[%s1 + $0x104] sm:$0xf]
  %v118 = vld [vmem:[%s1 + $0x108] sm:$0xf]
  %v119 = vld [vmem:[%s1 + $0x10c] sm:$0xf]
  %v120 = vld [vmem:[%s1 + $0x110] sm:$0xf]
  %v121 = vld [vmem:[%s1 + $0x114] sm:$0xf]
  %v122 = vld [vmem:[%s1 + $0x118] sm:$0xf]
  %v123 = vld [vmem:[%s1 + $0x11c] sm:$0xf]
  %v124 = vld [vmem:[%s1 + $0x120] sm:$0xf]
  %v125 = vld [vmem:[%s1 + $0x124] sm:$0xf]
  %v126 = vld [vmem:[%s1 + $0x128] sm:$0xf]
  %v127 = vld [vmem:[%s1 + $0x12c] sm:$0xf]
  %v128 = vld [vmem:[%s1 + $0x130] sm:$0xf]
  %v129 = vld [vmem:[%s1 + $0x134] sm:$0xf]
  %v130 = vld [vmem:[%s1 + $0x138] sm:$0xf]
  %v131 = vld [vmem:[%s1 + $0x13c] sm:$0xf]
  %v132 = vld [vmem:[%s1 + $0x140] sm:$0xf]
  %v133 = vld [vmem:[%s1 + $0x144] sm:$0xf]
  %v134 = vld [vmem:[%s1 + $0x148] sm:$0xf]
  %v135 = vld [vmem:[%s1 + $0x14c] sm:$0xf]
  %v136 = vld [vmem:[%s1 + $0x150] sm:$0xf]
  %v137 = vld [vmem:[%s1 + $0x154] sm:$0xf]
  %v138 = vld [vmem:[%s1 + $0x158] sm:$0xf]
  %v139 = vld [vmem:[%s1 + $0x15c] sm:$0xf]
  %v140 = vld [vmem:[%s1 + $0x160] sm:$0xf]
  %v141 = vld [vmem:[%s1 + $0x164] sm:$0xf]
  %v142 = vld [vmem:[%s1 + $0x168] sm:$0xf]
  %v143 = vld [vmem:[%s1 + $0x16c] sm:$0xf]
  %v144 = vld [vmem:[%s1 + $0x170] sm:$0xf]
  %v145 = vld [vmem:[%s1 + $0x174] sm:$0xf]
  %v146 = vld [vmem:[%s1 + $0x178] sm:$0xf]
  %v147 = vld [vmem:[%s1 + $0x17c] sm:$0xf]
  %v148 = vld [vmem:[%s1 + $0x180] sm:$0xf]
  %v149 = vld [vmem:[%s1 + $0x184] sm:$0xf]
  %v150 = vld [vmem:[%s1 + $0x188] sm:$0xf]
  %v151 = vld [vmem:[%s1 + $0x18c] sm:$0xf]
  %v152 = vld [vmem:[%s1 + $0x190] sm:$0xf]
  %v153 = vld [vmem:[%s1 + $0x194] sm:$0xf]
  %v154 = vld [vmem:[%s1 + $0x198] sm:$0xf]
  %v155 = vld [vmem:[%s1 + $0x19c] sm:$0xf]
  %v156 = vld [vmem:[%s1 + $0x1a0] sm:$0xf]
  %v157 = vld [vmem:[%s1 + $0x1a4] sm:$0xf]
  %v158 = vld [vmem:[%s1 + $0x1a8] sm:$0xf]
  %v159 = vld [vmem:[%s1 + $0x1ac] sm:$0xf]
  %v160 = vld [vmem:[%s1 + $0x1b0] sm:$0xf]
  %v161 = vld [vmem:[%s1 + $0x1b4] sm:$0xf]
  %v162 = vld [vmem:[%s1 + $0x1b8] sm:$0xf]
  %v163 = vld [vmem:[%s1 + $0x1bc] sm:$0xf]
  %v164 = vld [vmem:[%s1 + $0x1c0] sm:$0xf]
  %v165 = vld [vmem:[%s1 + $0x1c4] sm:$0xf]
  %v166 = vld [vmem:[%s1 + $0x1c8] sm:$0xf]
  %v167 = vld [vmem:[%s1 + $0x1cc] sm:$0xf]
  %v168 = vld [vmem:[%s1 + $0x1d0] sm:$0xf]
  %v169 = vld [vmem:[%s1 + $0x1d4] sm:$0xf]
  %v170 = vld [vmem:[%s1 + $0x1d8] sm:$0xf]
  %v171 = vld [vmem:[%s1 + $0x1dc] sm:$0xf]
  %v172 = vld [vmem:[%s1 + $0x1e0] sm:$0xf]
  %v173 = vld [vmem:[%s1 + $0x1e4] sm:$0xf]
  %v174 = vld [vmem:[%s1 + $0x1e8] sm:$0xf]
  %v175 = vld [vmem:[%s1 + $0x1ec] sm:$0xf]
  %v176 = vld [vmem:[%s1 + $0x1f0] sm:$0xf]
  %v177 = vld [vmem:[%s1 + $0x1f4] sm:$0xf]
  %v178 = vld [vmem:[%s1 + $0x1f8] sm:$0xf]
  %v179 = vld [vmem:[%s1 + $0x1fc] sm:$0xf]
  %v180 = vld [vmem:[%s1 + $0x200] sm:$0xf]
  %v181 = vld [vmem:[%s1 + $0x204] sm:$0xf]
  %v182 = vld [vmem:[%s1 + $0x208] sm:$0xf]
  %v183 = vld [vmem:[%s1 + $0x20c] sm:$0xf]
  %v184 = vld [vmem:[%s1 + $0x210] sm:$0xf]
  %v185 = vld [vmem:[%s1 + $0x214] sm:$0xf]
  %v186 = vld [vmem:[%s1 + $0x218] sm:$0xf]
  %v187 = vld [vmem:[%s1 + $0x21c] sm:$0xf]
  %v188 = vld [vmem:[%s1 + $0x220] sm:$0xf]
  %v189 = vld [vmem:[%s1 + $0x224] sm:$0xf]
  %v190 = vld [vmem:[%s1 + $0x228] sm:$0xf]
  %v191 = vld [vmem:[%s1 + $0x22c] sm:$0xf]
  %v192 = vld [vmem:[%s1 + $0x230] sm:$0xf]
  %v193 = vld [vmem:[%s1 + $0x234] sm:$0xf]
  %v194 = vld [vmem:[%s1 + $0x238] sm:$0xf]
  %v195 = vld [vmem:[%s1 + $0x23c] sm:$0xf]
  %v216 = vunpack.c.l.b16 %v32
  %v217 = vunpack.c.h.b16 %v32
  %v218 = vunpack.c.l.b16 %v33
  %v219 = vunpack.c.h.b16 %v33
  %v220 = vunpack.c.l.b16 %v34
  %v221 = vunpack.c.h.b16 %v34
  %v222 = vunpack.c.l.b16 %v35
  %v223 = vunpack.c.h.b16 %v35
  %v224 = vunpack.c.l.b16 %v36
  %v225 = vunpack.c.l.b16 %v37
  %v226 = vunpack.c.h.b16 %v37
  %v227 = vunpack.c.l.b16 %v38
  %v228 = vunpack.c.h.b16 %v38
  %v229 = vunpack.c.l.b16 %v39
  %v230 = vunpack.c.h.b16 %v39
  %v231 = vunpack.c.l.b16 %v40
  %v232 = vunpack.c.h.b16 %v40
  %v233 = vunpack.c.l.b16 %v41
  %v234 = vunpack.c.l.b16 %v42
  %v235 = vunpack.c.h.b16 %v42
  %v236 = vunpack.c.l.b16 %v43
  %v237 = vunpack.c.h.b16 %v43
  %v238 = vunpack.c.l.b16 %v44
  %v239 = vunpack.c.h.b16 %v44
  %v240 = vunpack.c.l.b16 %v45
  %v241 = vunpack.c.h.b16 %v45
  %v242 = vunpack.c.l.b16 %v46
  %v243 = vunpack.c.l.b16 %v47
  %v244 = vunpack.c.h.b16 %v47
  %v245 = vunpack.c.l.b16 %v48
  %v246 = vunpack.c.h.b16 %v48
  %v247 = vunpack.c.l.b16 %v49
  %v248 = vunpack.c.h.b16 %v49
  %v249 = vunpack.c.l.b16 %v50
  %v250 = vunpack.c.h.b16 %v50
  %v251 = vunpack.c.l.b16 %v51
  %v252 = vpack.c.b16 %v225, %v216
  %v253 = vpack.c.b16 %v226, %v217
  %v254 = vpack.c.b16 %v227, %v218
  %v255 = vpack.c.b16 %v228, %v219
  %v256 = vpack.c.b16 %v229, %v220
  %v257 = vpack.c.b16 %v230, %v221
  %v258 = vpack.c.b16 %v231, %v222
  %v259 = vpack.c.b16 %v232, %v223
  %v260 = vpack.c.b16 %v233, %v224
  %v261 = vpack.c.b16 %v243, %v234
  %v262 = vpack.c.b16 %v244, %v235
  %v263 = vpack.c.b16 %v245, %v236
  %v264 = vpack.c.b16 %v246, %v237
  %v265 = vpack.c.b16 %v247, %v238
  %v266 = vpack.c.b16 %v248, %v239
  %v267 = vpack.c.b16 %v249, %v240
  %v268 = vpack.c.b16 %v250, %v241
  %v269 = vpack.c.b16 %v251, %v242
  %v432 = vunpack.c.l.b16 %v52
  %v433 = vunpack.c.l.b16 %v53
  %v434 = vunpack.c.l.b16 %v54
  %v435 = vunpack.c.l.b16 %v55
  %v436 = vunpack.c.l.b16 %v56
  %v437 = vunpack.c.l.b16 %v57
  %v438 = vunpack.c.l.b16 %v58
  %v439 = vunpack.c.l.b16 %v59
  %v440 = vunpack.c.l.b16 %v60
  %v441 = vunpack.c.l.b16 %v61
  %v442 = vunpack.c.l.b16 %v62
  %v443 = vunpack.c.l.b16 %v63
  %v444 = vunpack.c.l.b16 %v64
  %v445 = vunpack.c.l.b16 %v65
  %v446 = vunpack.c.l.b16 %v66
  %v447 = vunpack.c.l.b16 %v67
  %v448 = vunpack.c.l.b16 %v68
  %v449 = vunpack.c.l.b16 %v69
  %v450 = vunpack.c.l.b16 %v70
  %v451 = vunpack.c.l.b16 %v71
  %v452 = vunpack.c.l.b16 %v72
  %v453 = vunpack.c.l.b16 %v73
  %v454 = vunpack.c.l.b16 %v74
  %v455 = vunpack.c.l.b16 %v75
  %v456 = vunpack.c.l.b16 %v76
  %v457 = vunpack.c.l.b16 %v77
  %v458 = vunpack.c.l.b16 %v78
  %v459 = vunpack.c.l.b16 %v79
  %v460 = vunpack.c.l.b16 %v80
  %v461 = vunpack.c.l.b16 %v81
  %v462 = vunpack.c.l.b16 %v82
  %v463 = vunpack.c.l.b16 %v83
  %v464 = vunpack.c.l.b16 %v84
  %v465 = vunpack.c.l.b16 %v85
  %v466 = vunpack.c.l.b16 %v86
  %v467 = vunpack.c.l.b16 %v87
  %v468 = vunpack.c.l.b16 %v88
  %v469 = vunpack.c.l.b16 %v89
  %v470 = vunpack.c.l.b16 %v90
  %v471 = vunpack.c.l.b16 %v91
  %v472 = vunpack.c.l.b16 %v92
  %v473 = vunpack.c.l.b16 %v93
  %v474 = vunpack.c.l.b16 %v94
  %v475 = vunpack.c.l.b16 %v95
  %v476 = vunpack.c.l.b16 %v96
  %v477 = vunpack.c.l.b16 %v97
  %v478 = vunpack.c.l.b16 %v98
  %v479 = vunpack.c.l.b16 %v99
  %v480 = vunpack.c.l.b16 %v100
  %v481 = vunpack.c.l.b16 %v101
  %v482 = vunpack.c.l.b16 %v102
  %v483 = vunpack.c.l.b16 %v103
  %v484 = vunpack.c.l.b16 %v104
  %v485 = vunpack.c.l.b16 %v105
  %v486 = vunpack.c.l.b16 %v106
  %v487 = vunpack.c.l.b16 %v107
  %v488 = vunpack.c.l.b16 %v108
  %v489 = vunpack.c.l.b16 %v109
  %v490 = vunpack.c.l.b16 %v110
  %v491 = vunpack.c.l.b16 %v111
  %v492 = vunpack.c.l.b16 %v112
  %v493 = vunpack.c.l.b16 %v113
  %v494 = vunpack.c.l.b16 %v114
  %v495 = vunpack.c.l.b16 %v115
  %v496 = vunpack.c.l.b16 %v116
  %v497 = vunpack.c.l.b16 %v117
  %v498 = vunpack.c.l.b16 %v118
  %v499 = vunpack.c.l.b16 %v119
  %v500 = vunpack.c.l.b16 %v120
  %v501 = vunpack.c.l.b16 %v121
  %v502 = vunpack.c.l.b16 %v122
  %v503 = vunpack.c.l.b16 %v123
  %v504 = vunpack.c.l.b16 %v124
  %v505 = vunpack.c.l.b16 %v125
  %v506 = vunpack.c.l.b16 %v126
  %v507 = vunpack.c.l.b16 %v127
  %v508 = vunpack.c.l.b16 %v128
  %v509 = vunpack.c.l.b16 %v129
  %v510 = vunpack.c.l.b16 %v130
  %v511 = vunpack.c.l.b16 %v131
  %v512 = vunpack.c.l.b16 %v132
  %v513 = vunpack.c.l.b16 %v133
  %v514 = vunpack.c.l.b16 %v134
  %v515 = vunpack.c.l.b16 %v135
  %v516 = vunpack.c.l.b16 %v136
  %v517 = vunpack.c.l.b16 %v137
  %v518 = vunpack.c.l.b16 %v138
  %v519 = vunpack.c.l.b16 %v139
  %v520 = vunpack.c.l.b16 %v140
  %v521 = vunpack.c.l.b16 %v141
  %v522 = vunpack.c.l.b16 %v142
  %v523 = vunpack.c.l.b16 %v143
  %v524 = vunpack.c.l.b16 %v144
  %v525 = vunpack.c.l.b16 %v145
  %v526 = vunpack.c.l.b16 %v146
  %v527 = vunpack.c.l.b16 %v147
  %v528 = vunpack.c.l.b16 %v148
  %v529 = vunpack.c.l.b16 %v149
  %v530 = vunpack.c.l.b16 %v150
  %v531 = vunpack.c.l.b16 %v151
  %v532 = vunpack.c.l.b16 %v152
  %v533 = vunpack.c.l.b16 %v153
  %v534 = vunpack.c.l.b16 %v154
  %v535 = vunpack.c.l.b16 %v155
  %v536 = vunpack.c.l.b16 %v156
  %v537 = vunpack.c.l.b16 %v157
  %v538 = vunpack.c.l.b16 %v158
  %v539 = vunpack.c.l.b16 %v159
  %v540 = vunpack.c.l.b16 %v160
  %v541 = vunpack.c.l.b16 %v161
  %v542 = vunpack.c.l.b16 %v162
  %v543 = vunpack.c.l.b16 %v163
  %v544 = vunpack.c.l.b16 %v164
  %v545 = vunpack.c.l.b16 %v165
  %v546 = vunpack.c.l.b16 %v166
  %v547 = vunpack.c.l.b16 %v167
  %v548 = vunpack.c.l.b16 %v168
  %v549 = vunpack.c.l.b16 %v169
  %v550 = vunpack.c.l.b16 %v170
  %v551 = vunpack.c.l.b16 %v171
  %v552 = vunpack.c.l.b16 %v172
  %v553 = vunpack.c.l.b16 %v173
  %v554 = vunpack.c.l.b16 %v174
  %v555 = vunpack.c.l.b16 %v175
  %v556 = vunpack.c.l.b16 %v176
  %v557 = vunpack.c.l.b16 %v177
  %v558 = vunpack.c.l.b16 %v178
  %v559 = vunpack.c.l.b16 %v179
  %v560 = vunpack.c.l.b16 %v180
  %v561 = vunpack.c.l.b16 %v181
  %v562 = vunpack.c.l.b16 %v182
  %v563 = vunpack.c.l.b16 %v183
  %v564 = vunpack.c.l.b16 %v184
  %v565 = vunpack.c.l.b16 %v185
  %v566 = vunpack.c.l.b16 %v186
  %v567 = vunpack.c.l.b16 %v187
  %v568 = vunpack.c.l.b16 %v188
  %v569 = vunpack.c.l.b16 %v189
  %v570 = vunpack.c.l.b16 %v190
  %v571 = vunpack.c.l.b16 %v191
  %v572 = vunpack.c.l.b16 %v192
  %v573 = vunpack.c.l.b16 %v193
  %v574 = vunpack.c.l.b16 %v194
  %v575 = vunpack.c.l.b16 %v195
  %v576 = vpack.c.b16 %v433, %v432
  %v577 = vpack.c.b16 %v435, %v434
  %v578 = vpack.c.b16 %v437, %v436
  %v579 = vpack.c.b16 %v439, %v438
  %v580 = vpack.c.b16 %v441, %v440
  %v581 = vpack.c.b16 %v443, %v442
  %v582 = vpack.c.b16 %v445, %v444
  %v583 = vpack.c.b16 %v447, %v446
  %v584 = vpack.c.b16 %v449, %v448
  %v585 = vpack.c.b16 %v451, %v450
  %v586 = vpack.c.b16 %v453, %v452
  %v587 = vpack.c.b16 %v455, %v454
  %v588 = vpack.c.b16 %v457, %v456
  %v589 = vpack.c.b16 %v459, %v458
  %v590 = vpack.c.b16 %v461, %v460
  %v591 = vpack.c.b16 %v463, %v462
  %v592 = vpack.c.b16 %v465, %v464
  %v593 = vpack.c.b16 %v467, %v466
  %v594 = vpack.c.b16 %v469, %v468
  %v595 = vpack.c.b16 %v471, %v470
  %v596 = vpack.c.b16 %v473, %v472
  %v597 = vpack.c.b16 %v475, %v474
  %v598 = vpack.c.b16 %v477, %v476
  %v599 = vpack.c.b16 %v479, %v478
  %v600 = vpack.c.b16 %v481, %v480
  %v601 = vpack.c.b16 %v483, %v482
  %v602 = vpack.c.b16 %v485, %v484
  %v603 = vpack.c.b16 %v487, %v486
  %v604 = vpack.c.b16 %v489, %v488
  %v605 = vpack.c.b16 %v491, %v490
  %v606 = vpack.c.b16 %v493, %v492
  %v607 = vpack.c.b16 %v495, %v494
  %v608 = vpack.c.b16 %v497, %v496
  %v609 = vpack.c.b16 %v499, %v498
  %v610 = vpack.c.b16 %v501, %v500
  %v611 = vpack.c.b16 %v503, %v502
  %v612 = vpack.c.b16 %v505, %v504
  %v613 = vpack.c.b16 %v507, %v506
  %v614 = vpack.c.b16 %v509, %v508
  %v615 = vpack.c.b16 %v511, %v510
  %v616 = vpack.c.b16 %v513, %v512
  %v617 = vpack.c.b16 %v515, %v514
  %v618 = vpack.c.b16 %v517, %v516
  %v619 = vpack.c.b16 %v519, %v518
  %v620 = vpack.c.b16 %v521, %v520
  %v621 = vpack.c.b16 %v523, %v522
  %v622 = vpack.c.b16 %v525, %v524
  %v623 = vpack.c.b16 %v527, %v526
  %v624 = vpack.c.b16 %v529, %v528
  %v625 = vpack.c.b16 %v531, %v530
  %v626 = vpack.c.b16 %v533, %v532
  %v627 = vpack.c.b16 %v535, %v534
  %v628 = vpack.c.b16 %v537, %v536
  %v629 = vpack.c.b16 %v539, %v538
  %v630 = vpack.c.b16 %v541, %v540
  %v631 = vpack.c.b16 %v543, %v542
  %v632 = vpack.c.b16 %v545, %v544
  %v633 = vpack.c.b16 %v547, %v546
  %v634 = vpack.c.b16 %v549, %v548
  %v635 = vpack.c.b16 %v551, %v550
  %v636 = vpack.c.b16 %v553, %v552
  %v637 = vpack.c.b16 %v555, %v554
  %v638 = vpack.c.b16 %v557, %v556
  %v639 = vpack.c.b16 %v559, %v558
  %v640 = vpack.c.b16 %v561, %v560
  %v641 = vpack.c.b16 %v563, %v562
  %v642 = vpack.c.b16 %v565, %v564
  %v643 = vpack.c.b16 %v567, %v566
  %v644 = vpack.c.b16 %v569, %v568
  %v645 = vpack.c.b16 %v571, %v570
  %v646 = vpack.c.b16 %v573, %v572
  %v647 = vpack.c.b16 %v575, %v574
  %720 = vmatpush.bf16.msra.mxu0 %v583
  %721 = vmatpush.bf16.msra.mxu0 %v582
  %722 = vmatpush.bf16.msra.mxu0 %v581
  %723 = vmatpush.bf16.msra.mxu0 %v580
  %724 = vmatpush.bf16.msra.mxu0 %v579
  %725 = vmatpush.bf16.msra.mxu0 %v578
  %726 = vmatpush.bf16.msra.mxu0 %v577
  %727 = vmatpush.bf16.msra.mxu0 %v576
  %728 = vmatmul.bf16.gmra.mxu0 %v252
  %v729 = vpop.f32.mrf.mxu0
  %v730 = vadd.f32 0.0, %v729
  %v731 = vpop.f32.mrf.mxu0
  %v732 = vadd.f32 0.0, %v731
  %733 = vmatmul.bf16.gmra.mxu0 %v261
  %v734 = vpop.f32.mrf.mxu0
  %v735 = vadd.f32 0.0, %v734
  %v736 = vpop.f32.mrf.mxu0
  %v737 = vadd.f32 0.0, %v736
  %738 = vdwg.mxu0
  %739 = vmatpush.bf16.msra.mxu0 %v591
  %740 = vmatpush.bf16.msra.mxu0 %v590
  %741 = vmatpush.bf16.msra.mxu0 %v589
  %742 = vmatpush.bf16.msra.mxu0 %v588
  %743 = vmatpush.bf16.msra.mxu0 %v587
  %744 = vmatpush.bf16.msra.mxu0 %v586
  %745 = vmatpush.bf16.msra.mxu0 %v585
  %746 = vmatpush.bf16.msra.mxu0 %v584
  %747 = vmatmul.bf16.gmra.mxu0 %v253
  %v748 = vpop.f32.mrf.mxu0
  %v749 = vadd.f32 %v730, %v748
  %v750 = vpop.f32.mrf.mxu0
  %v751 = vadd.f32 %v732, %v750
  %752 = vmatmul.bf16.gmra.mxu0 %v262
  %v753 = vpop.f32.mrf.mxu0
  %v754 = vadd.f32 %v735, %v753
  %v755 = vpop.f32.mrf.mxu0
  %v756 = vadd.f32 %v737, %v755
  %757 = vdwg.mxu0
  %758 = vmatpush.bf16.msra.mxu0 %v599
  %759 = vmatpush.bf16.msra.mxu0 %v598
  %760 = vmatpush.bf16.msra.mxu0 %v597
  %761 = vmatpush.bf16.msra.mxu0 %v596
  %762 = vmatpush.bf16.msra.mxu0 %v595
  %763 = vmatpush.bf16.msra.mxu0 %v594
  %764 = vmatpush.bf16.msra.mxu0 %v593
  %765 = vmatpush.bf16.msra.mxu0 %v592
  %766 = vmatmul.bf16.gmra.mxu0 %v254
  %v767 = vpop.f32.mrf.mxu0
  %v768 = vadd.f32 %v749, %v767
  %v769 = vpop.f32.mrf.mxu0
  %v770 = vadd.f32 %v751, %v769
  %771 = vmatmul.bf16.gmra.mxu0 %v263
  %v772 = vpop.f32.mrf.mxu0
  %v773 = vadd.f32 %v754, %v772
  %v774 = vpop.f32.mrf.mxu0
  %v775 = vadd.f32 %v756, %v774
  %776 = vdwg.mxu0
  %777 = vmatpush.bf16.msra.mxu0 %v607
  %778 = vmatpush.bf16.msra.mxu0 %v606
  %779 = vmatpush.bf16.msra.mxu0 %v605
  %780 = vmatpush.bf16.msra.mxu0 %v604
  %781 = vmatpush.bf16.msra.mxu0 %v603
  %782 = vmatpush.bf16.msra.mxu0 %v602
  %783 = vmatpush.bf16.msra.mxu0 %v601
  %784 = vmatpush.bf16.msra.mxu0 %v600
  %785 = vmatmul.bf16.gmra.mxu0 %v255
  %v786 = vpop.f32.mrf.mxu0
  %v787 = vadd.f32 %v768, %v786
  %v788 = vpop.f32.mrf.mxu0
  %v789 = vadd.f32 %v770, %v788
  %790 = vmatmul.bf16.gmra.mxu0 %v264
  %v791 = vpop.f32.mrf.mxu0
  %v792 = vadd.f32 %v773, %v791
  %v793 = vpop.f32.mrf.mxu0
  %v794 = vadd.f32 %v775, %v793
  %795 = vdwg.mxu0
  %796 = vmatpush.bf16.msra.mxu0 %v615
  %797 = vmatpush.bf16.msra.mxu0 %v614
  %798 = vmatpush.bf16.msra.mxu0 %v613
  %799 = vmatpush.bf16.msra.mxu0 %v612
  %800 = vmatpush.bf16.msra.mxu0 %v611
  %801 = vmatpush.bf16.msra.mxu0 %v610
  %802 = vmatpush.bf16.msra.mxu0 %v609
  %803 = vmatpush.bf16.msra.mxu0 %v608
  %804 = vmatmul.bf16.gmra.mxu0 %v256
  %v805 = vpop.f32.mrf.mxu0
  %v806 = vadd.f32 %v787, %v805
  %v807 = vpop.f32.mrf.mxu0
  %v808 = vadd.f32 %v789, %v807
  %809 = vmatmul.bf16.gmra.mxu0 %v265
  %v810 = vpop.f32.mrf.mxu0
  %v811 = vadd.f32 %v792, %v810
  %v812 = vpop.f32.mrf.mxu0
  %v813 = vadd.f32 %v794, %v812
  %814 = vdwg.mxu0
  %815 = vmatpush.bf16.msra.mxu0 %v623
  %816 = vmatpush.bf16.msra.mxu0 %v622
  %817 = vmatpush.bf16.msra.mxu0 %v621
  %818 = vmatpush.bf16.msra.mxu0 %v620
  %819 = vmatpush.bf16.msra.mxu0 %v619
  %820 = vmatpush.bf16.msra.mxu0 %v618
  %821 = vmatpush.bf16.msra.mxu0 %v617
  %822 = vmatpush.bf16.msra.mxu0 %v616
  %823 = vmatmul.bf16.gmra.mxu0 %v257
  %v824 = vpop.f32.mrf.mxu0
  %v825 = vadd.f32 %v806, %v824
  %v826 = vpop.f32.mrf.mxu0
  %v827 = vadd.f32 %v808, %v826
  %828 = vmatmul.bf16.gmra.mxu0 %v266
  %v829 = vpop.f32.mrf.mxu0
  %v830 = vadd.f32 %v811, %v829
  %v831 = vpop.f32.mrf.mxu0
  %v832 = vadd.f32 %v813, %v831
  %833 = vdwg.mxu0
  %834 = vmatpush.bf16.msra.mxu0 %v631
  %835 = vmatpush.bf16.msra.mxu0 %v630
  %836 = vmatpush.bf16.msra.mxu0 %v629
  %837 = vmatpush.bf16.msra.mxu0 %v628
  %838 = vmatpush.bf16.msra.mxu0 %v627
  %839 = vmatpush.bf16.msra.mxu0 %v626
  %840 = vmatpush.bf16.msra.mxu0 %v625
  %841 = vmatpush.bf16.msra.mxu0 %v624
  %842 = vmatmul.bf16.gmra.mxu0 %v258
  %v843 = vpop.f32.mrf.mxu0
  %v844 = vadd.f32 %v825, %v843
  %v845 = vpop.f32.mrf.mxu0
  %v846 = vadd.f32 %v827, %v845
  %847 = vmatmul.bf16.gmra.mxu0 %v267
  %v848 = vpop.f32.mrf.mxu0
  %v849 = vadd.f32 %v830, %v848
  %v850 = vpop.f32.mrf.mxu0
  %v851 = vadd.f32 %v832, %v850
  %852 = vdwg.mxu0
  %853 = vmatpush.bf16.msra.mxu0 %v639
  %854 = vmatpush.bf16.msra.mxu0 %v638
  %855 = vmatpush.bf16.msra.mxu0 %v637
  %856 = vmatpush.bf16.msra.mxu0 %v636
  %857 = vmatpush.bf16.msra.mxu0 %v635
  %858 = vmatpush.bf16.msra.mxu0 %v634
  %859 = vmatpush.bf16.msra.mxu0 %v633
  %860 = vmatpush.bf16.msra.mxu0 %v632
  %861 = vmatmul.bf16.gmra.mxu0 %v259
  %v862 = vpop.f32.mrf.mxu0
  %v863 = vadd.f32 %v844, %v862
  %v864 = vpop.f32.mrf.mxu0
  %v865 = vadd.f32 %v846, %v864
  %866 = vmatmul.bf16.gmra.mxu0 %v268
  %v867 = vpop.f32.mrf.mxu0
  %v868 = vadd.f32 %v849, %v867
  %v869 = vpop.f32.mrf.mxu0
  %v870 = vadd.f32 %v851, %v869
  %871 = vdwg.mxu0
  %872 = vmatpush.bf16.msra.mxu0 %v647
  %873 = vmatpush.bf16.msra.mxu0 %v646
  %874 = vmatpush.bf16.msra.mxu0 %v645
  %875 = vmatpush.bf16.msra.mxu0 %v644
  %876 = vmatpush.bf16.msra.mxu0 %v643
  %877 = vmatpush.bf16.msra.mxu0 %v642
  %878 = vmatpush.bf16.msra.mxu0 %v641
  %879 = vmatpush.bf16.msra.mxu0 %v640
  %880 = vmatmul.bf16.gmra.mxu0 %v260
  %v881 = vpop.f32.mrf.mxu0
  %v882 = vadd.f32 %v863, %v881
  %v883 = vpop.f32.mrf.mxu0
  %v884 = vadd.f32 %v865, %v883
  %885 = vmatmul.bf16.gmra.mxu0 %v269
  %v886 = vpop.f32.mrf.mxu0
  %v887 = vadd.f32 %v868, %v886
  %v888 = vpop.f32.mrf.mxu0
  %v889 = vadd.f32 %v870, %v888
  %890 = vdwg.mxu0
  %v891 = vadd.f32 %v28, %v882
  %v892 = vadd.f32 %v29, %v884
  %v893 = vadd.f32 %v30, %v887
  %v894 = vadd.f32 %v31, %v889
  %895 = vst [vmem:[#allocation2] sm:$0xff] %v891
  %896 = vst [vmem:[#allocation2 + $0x8] sm:$0xff] %v892
  %897 = vst [vmem:[#allocation2 + $0x10] sm:$0xff] %v893
  %898 = vst [vmem:[#allocation2 + $0x18] sm:$0xff] %v894
  // Predicated region
  $region26: #{resnet_forward.18} parent=0 // pred_check
    %p899 = pneg %p20
  $region27: #{resnet_forward.18} parent=0 // pred_check_branch
    %901 = sbr.rel (%p899) target = $region29
  $region28: #{resnet_forward.18} parent=0 // pred_region
    %v902 = vld [vmem:[#allocation2] sm:$0xff]
    %v903 = vld [vmem:[#allocation2 + $0x8] sm:$0xff]
    %v904 = vld [vmem:[#allocation2 + $0x10] sm:$0xff]
    %v905 = vld [vmem:[#allocation2 + $0x18] sm:$0xff]
    %v906 = vld [vmem:[%s2] sm:$0x1]
    %v908 = vperm.slane %v906, 0
    %v910 = vmul.f32 %v902, %v908
    %v911 = vmul.f32 %v903, %v908
    %v912 = vmul.f32 %v904, %v908
    %v913 = vmul.f32 %v905, %v908
    %v914 = vld [vmem:[%s3] sm:$0x1]
    %v916 = vperm.slane %v914, 0
    %v918 = vadd.f32 %v910, %v916
    %v919 = vadd.f32 %v911, %v916
    %v920 = vadd.f32 %v912, %v916
    %v921 = vadd.f32 %v913, %v916
    %v922 = vld [vmem:[%s4] sm:$0xff]
    %v923 = vld [vmem:[%s4 + $0x8] sm:$0xff]
    %v924 = vld [vmem:[%s4 + $0x10] sm:$0xff]
    %v925 = vld [vmem:[%s4 + $0x18] sm:$0xff]
    %v926 = vadd.f32 %v918, %v922
    %v927 = vadd.f32 %v919, %v923
    %v928 = vadd.f32 %v920, %v924
    %v929 = vadd.f32 %v921, %v925
    %v930 = vmax.f32 %v926, 0.0
    %v931 = vmax.f32 %v927, 0.0
    %v932 = vmax.f32 %v928, 0.0
    %v933 = vmax.f32 %v929, 0.0
    %934 = vst [vmem:[%s5] sm:$0xff] %v930
    %935 = vst [vmem:[%s5 + $0x8] sm:$0xff] %v931
    %936 = vst [vmem:[%s5 + $0x10] sm:$0xff] %v932
    %937 = vst [vmem:[%s5 + $0x18] sm:$0xff] %v933
  $region29: #{resnet_forward.18} parent=0 // pred_fallthru
    _
  // Predicated region
  $region30: #{resnet_forward.18} parent=0 // pred_check
    _
  $region31: #{resnet_forward.18} parent=0 // pred_check_branch
    %939 = sbr.rel (0) target = $region33
  $region32: #{resnet_forward.18} parent=0 // pred_region
    _
  $region33: #{resnet_forward.18} parent=0 // pred_fallthru
    _
  // Predicated region
  $region34: #{resnet_forward.18} parent=0 // pred_check
    _
  $region35: #{resnet_forward.18} parent=0 // pred_check_branch
    %941 = sbr.rel (0) target = $region37
  $region36: #{resnet_forward.18} parent=0 // pred_region
    _
  $region37: #{resnet_forward.18} parent=0 // pred_fallthru
    _

// kernel: resnet_forward.19
$region0: #{resnet_forward.19}
  #allocation0 [shape = 'u32[]', space=smem, size = 0x4, offset = 0x4, fixed_abs, tag = 'smem constant byte address 0x4 - core index']
  #allocation1 [shape = 'u32[72,128]{1,0:T(1,128)}', space=vmem, size = 0x9000, scoped, tag = 'internal scratch']
  #allocation2 [shape = 'f32[8,256]{1,0:T(8,128)}', space=vmem, size = 0x2000, scoped, tag = 'scratch operand']
  %s0 = inlined_call_operand.vmem [shape: bf16[8,1152], index: 0, kind: input, shape index: {}]
  %s1 = inlined_call_operand.vmem [shape: bf16[1152,256], index: 1, kind: input, shape index: {}]
  %s2 = inlined_call_operand.vmem [shape: f32[1,256], index: 2, kind: input, shape index: {}]
  %s3 = inlined_call_operand.vmem [shape: f32[1,256], index: 3, kind: input, shape index: {}]
  %s4 = inlined_call_operand.vmem [shape: f32[8,256], index: 4, kind: output, shape index: {}]
  %s5 = sld [smem:[#allocation0]]
  $region34: #{resnet_forward.19} parent=0
    _
  %s7 = ssub.s32 1, %s5
  %s8 = scalar_select 0, %s7, %s5
  // Predicated region
  $region2: #{resnet_forward.19} parent=0 // pred_check
    _
  $region3: #{resnet_forward.19} parent=0 // pred_check_branch
    %10 = sbr.rel (0) target = $region5
  $region4: #{resnet_forward.19} parent=0 // pred_region
    _
  $region5: #{resnet_forward.19} parent=0 // pred_fallthru
    _
  // Predicated region
  $region6: #{resnet_forward.19} parent=0 // pred_check
    _
  $region7: #{resnet_forward.19} parent=0 // pred_check_branch
    %12 = sbr.rel (0) target = $region9
  $region8: #{resnet_forward.19} parent=0 // pred_region
    _
  $region9: #{resnet_forward.19} parent=0 // pred_fallthru
    _
  // Predicated region
  $region10: #{resnet_forward.19} parent=0 // pred_check
    _
  $region11: #{resnet_forward.19} parent=0 // pred_check_branch
    %14 = sbr.rel (0) target = $region13
  $region12: #{resnet_forward.19} parent=0 // pred_region
    _
  $region13: #{resnet_forward.19} parent=0 // pred_fallthru
    _
  // Predicated region
  $region14: #{resnet_forward.19} parent=0 // pred_check
    _
  $region15: #{resnet_forward.19} parent=0 // pred_check_branch
    %16 = sbr.rel (0) target = $region17
  $region16: #{resnet_forward.19} parent=0 // pred_region
    _
  $region17: #{resnet_forward.19} parent=0 // pred_fallthru
    _
  %p17 = scmp.eq.s32.totalorder 0, 0
  // Predicated region
  $region18: #{resnet_forward.19} parent=0 // pred_check
    %p18 = pneg %p17
  $region19: #{resnet_forward.19} parent=0 // pred_check_branch
    %20 = sbr.rel (%p18) target = $region21
  $region20: #{resnet_forward.19} parent=0 // pred_region
    %21 = vst [vmem:[#allocation2] sm:$0xff] 0.0
    %22 = vst [vmem:[#allocation2 + $0x8] sm:$0xff] 0.0
  $region21: #{resnet_forward.19} parent=0 // pred_fallthru
    _
  %v23 = vld [vmem:[#allocation2] sm:$0xff]
  %v24 = vld [vmem:[#allocation2 + $0x8] sm:$0xff]
  %v25 = vld [vmem:[%s0] sm:$0xff]
  %v26 = vld [vmem:[%s0 + $0x8] sm:$0xff]
  %v27 = vld [vmem:[%s0 + $0x10] sm:$0xff]
  %v28 = vld [vmem:[%s0 + $0x18] sm:$0xff]
  %v29 = vld [vmem:[%s0 + $0x20] sm:$0xf]
  %v30 = vld [vmem:[%s1] sm:$0xff]
  %v31 = vld [vmem:[%s1 + $0x8] sm:$0xff]
  %v32 = vld [vmem:[%s1 + $0x10] sm:$0xff]
  %v33 = vld [vmem:[%s1 + $0x18] sm:$0xff]
  %v34 = vld [vmem:[%s1 + $0x20] sm:$0xff]
  %v35 = vld [vmem:[%s1 + $0x28] sm:$0xff]
  %v36 = vld [vmem:[%s1 + $0x30] sm:$0xff]
  %v37 = vld [vmem:[%s1 + $0x38] sm:$0xff]
  %v38 = vld [vmem:[%s1 + $0x40] sm:$0xff]
  %v39 = vld [vmem:[%s1 + $0x48] sm:$0xff]
  %v40 = vld [vmem:[%s1 + $0x50] sm:$0xff]
  %v41 = vld [vmem:[%s1 + $0x58] sm:$0xff]
  %v42 = vld [vmem:[%s1 + $0x60] sm:$0xff]
  %v43 = vld [vmem:[%s1 + $0x68] sm:$0xff]
  %v44 = vld [vmem:[%s1 + $0x70] sm:$0xff]
  %v45 = vld [vmem:[%s1 + $0x78] sm:$0xff]
  %v46 = vld [vmem:[%s1 + $0x80] sm:$0xff]
  %v47 = vld [vmem:[%s1 + $0x88] sm:$0xff]
  %v48 = vld [vmem:[%s1 + $0x90] sm:$0xff]
  %v49 = vld [vmem:[%s1 + $0x98] sm:$0xff]
  %v50 = vld [vmem:[%s1 + $0xa0] sm:$0xff]
  %v51 = vld [vmem:[%s1 + $0xa8] sm:$0xff]
  %v52 = vld [vmem:[%s1 + $0xb0] sm:$0xff]
  %v53 = vld [vmem:[%s1 + $0xb8] sm:$0xff]
  %v54 = vld [vmem:[%s1 + $0xc0] sm:$0xff]
  %v55 = vld [vmem:[%s1 + $0xc8] sm:$0xff]
  %v56 = vld [vmem:[%s1 + $0xd0] sm:$0xff]
  %v57 = vld [vmem:[%s1 + $0xd8] sm:$0xff]
  %v58 = vld [vmem:[%s1 + $0xe0] sm:$0xff]
  %v59 = vld [vmem:[%s1 + $0xe8] sm:$0xff]
  %v60 = vld [vmem:[%s1 + $0xf0] sm:$0xff]
  %v61 = vld [vmem:[%s1 + $0xf8] sm:$0xff]
  %v62 = vld [vmem:[%s1 + $0x100] sm:$0xff]
  %v63 = vld [vmem:[%s1 + $0x108] sm:$0xff]
  %v64 = vld [vmem:[%s1 + $0x110] sm:$0xff]
  %v65 = vld [vmem:[%s1 + $0x118] sm:$0xff]
  %v66 = vld [vmem:[%s1 + $0x120] sm:$0xff]
  %v67 = vld [vmem:[%s1 + $0x128] sm:$0xff]
  %v68 = vld [vmem:[%s1 + $0x130] sm:$0xff]
  %v69 = vld [vmem:[%s1 + $0x138] sm:$0xff]
  %v70 = vld [vmem:[%s1 + $0x140] sm:$0xff]
  %v71 = vld [vmem:[%s1 + $0x148] sm:$0xff]
  %v72 = vld [vmem:[%s1 + $0x150] sm:$0xff]
  %v73 = vld [vmem:[%s1 + $0x158] sm:$0xff]
  %v74 = vld [vmem:[%s1 + $0x160] sm:$0xff]
  %v75 = vld [vmem:[%s1 + $0x168] sm:$0xff]
  %v76 = vld [vmem:[%s1 + $0x170] sm:$0xff]
  %v77 = vld [vmem:[%s1 + $0x178] sm:$0xff]
  %v78 = vld [vmem:[%s1 + $0x180] sm:$0xff]
  %v79 = vld [vmem:[%s1 + $0x188] sm:$0xff]
  %v80 = vld [vmem:[%s1 + $0x190] sm:$0xff]
  %v81 = vld [vmem:[%s1 + $0x198] sm:$0xff]
  %v82 = vld [vmem:[%s1 + $0x1a0] sm:$0xff]
  %v83 = vld [vmem:[%s1 + $0x1a8] sm:$0xff]
  %v84 = vld [vmem:[%s1 + $0x1b0] sm:$0xff]
  %v85 = vld [vmem:[%s1 + $0x1b8] sm:$0xff]
  %v86 = vld [vmem:[%s1 + $0x1c0] sm:$0xff]
  %v87 = vld [vmem:[%s1 + $0x1c8] sm:$0xff]
  %v88 = vld [vmem:[%s1 + $0x1d0] sm:$0xff]
  %v89 = vld [vmem:[%s1 + $0x1d8] sm:$0xff]
  %v90 = vld [vmem:[%s1 + $0x1e0] sm:$0xff]
  %v91 = vld [vmem:[%s1 + $0x1e8] sm:$0xff]
  %v92 = vld [vmem:[%s1 + $0x1f0] sm:$0xff]
  %v93 = vld [vmem:[%s1 + $0x1f8] sm:$0xff]
  %v94 = vld [vmem:[%s1 + $0x200] sm:$0xff]
  %v95 = vld [vmem:[%s1 + $0x208] sm:$0xff]
  %v96 = vld [vmem:[%s1 + $0x210] sm:$0xff]
  %v97 = vld [vmem:[%s1 + $0x218] sm:$0xff]
  %v98 = vld [vmem:[%s1 + $0x220] sm:$0xff]
  %v99 = vld [vmem:[%s1 + $0x228] sm:$0xff]
  %v100 = vld [vmem:[%s1 + $0x230] sm:$0xff]
  %v101 = vld [vmem:[%s1 + $0x238] sm:$0xff]
  %v102 = vld [vmem:[%s1 + $0x240] sm:$0xff]
  %v103 = vld [vmem:[%s1 + $0x248] sm:$0xff]
  %v104 = vld [vmem:[%s1 + $0x250] sm:$0xff]
  %v105 = vld [vmem:[%s1 + $0x258] sm:$0xff]
  %v106 = vld [vmem:[%s1 + $0x260] sm:$0xff]
  %v107 = vld [vmem:[%s1 + $0x268] sm:$0xff]
  %v108 = vld [vmem:[%s1 + $0x270] sm:$0xff]
  %v109 = vld [vmem:[%s1 + $0x278] sm:$0xff]
  %v110 = vld [vmem:[%s1 + $0x280] sm:$0xff]
  %v111 = vld [vmem:[%s1 + $0x288] sm:$0xff]
  %v112 = vld [vmem:[%s1 + $0x290] sm:$0xff]
  %v113 = vld [vmem:[%s1 + $0x298] sm:$0xff]
  %v114 = vld [vmem:[%s1 + $0x2a0] sm:$0xff]
  %v115 = vld [vmem:[%s1 + $0x2a8] sm:$0xff]
  %v116 = vld [vmem:[%s1 + $0x2b0] sm:$0xff]
  %v117 = vld [vmem:[%s1 + $0x2b8] sm:$0xff]
  %v118 = vld [vmem:[%s1 + $0x2c0] sm:$0xff]
  %v119 = vld [vmem:[%s1 + $0x2c8] sm:$0xff]
  %v120 = vld [vmem:[%s1 + $0x2d0] sm:$0xff]
  %v121 = vld [vmem:[%s1 + $0x2d8] sm:$0xff]
  %v122 = vld [vmem:[%s1 + $0x2e0] sm:$0xff]
  %v123 = vld [vmem:[%s1 + $0x2e8] sm:$0xff]
  %v124 = vld [vmem:[%s1 + $0x2f0] sm:$0xff]
  %v125 = vld [vmem:[%s1 + $0x2f8] sm:$0xff]
  %v126 = vld [vmem:[%s1 + $0x300] sm:$0xff]
  %v127 = vld [vmem:[%s1 + $0x308] sm:$0xff]
  %v128 = vld [vmem:[%s1 + $0x310] sm:$0xff]
  %v129 = vld [vmem:[%s1 + $0x318] sm:$0xff]
  %v130 = vld [vmem:[%s1 + $0x320] sm:$0xff]
  %v131 = vld [vmem:[%s1 + $0x328] sm:$0xff]
  %v132 = vld [vmem:[%s1 + $0x330] sm:$0xff]
  %v133 = vld [vmem:[%s1 + $0x338] sm:$0xff]
  %v134 = vld [vmem:[%s1 + $0x340] sm:$0xff]
  %v135 = vld [vmem:[%s1 + $0x348] sm:$0xff]
  %v136 = vld [vmem:[%s1 + $0x350] sm:$0xff]
  %v137 = vld [vmem:[%s1 + $0x358] sm:$0xff]
  %v138 = vld [vmem:[%s1 + $0x360] sm:$0xff]
  %v139 = vld [vmem:[%s1 + $0x368] sm:$0xff]
  %v140 = vld [vmem:[%s1 + $0x370] sm:$0xff]
  %v141 = vld [vmem:[%s1 + $0x378] sm:$0xff]
  %v142 = vld [vmem:[%s1 + $0x380] sm:$0xff]
  %v143 = vld [vmem:[%s1 + $0x388] sm:$0xff]
  %v144 = vld [vmem:[%s1 + $0x390] sm:$0xff]
  %v145 = vld [vmem:[%s1 + $0x398] sm:$0xff]
  %v146 = vld [vmem:[%s1 + $0x3a0] sm:$0xff]
  %v147 = vld [vmem:[%s1 + $0x3a8] sm:$0xff]
  %v148 = vld [vmem:[%s1 + $0x3b0] sm:$0xff]
  %v149 = vld [vmem:[%s1 + $0x3b8] sm:$0xff]
  %v150 = vld [vmem:[%s1 + $0x3c0] sm:$0xff]
  %v151 = vld [vmem:[%s1 + $0x3c8] sm:$0xff]
  %v152 = vld [vmem:[%s1 + $0x3d0] sm:$0xff]
  %v153 = vld [vmem:[%s1 + $0x3d8] sm:$0xff]
  %v154 = vld [vmem:[%s1 + $0x3e0] sm:$0xff]
  %v155 = vld [vmem:[%s1 + $0x3e8] sm:$0xff]
  %v156 = vld [vmem:[%s1 + $0x3f0] sm:$0xff]
  %v157 = vld [vmem:[%s1 + $0x3f8] sm:$0xff]
  %v158 = vld [vmem:[%s1 + $0x400] sm:$0xff]
  %v159 = vld [vmem:[%s1 + $0x408] sm:$0xff]
  %v160 = vld [vmem:[%s1 + $0x410] sm:$0xff]
  %v161 = vld [vmem:[%s1 + $0x418] sm:$0xff]
  %v162 = vld [vmem:[%s1 + $0x420] sm:$0xff]
  %v163 = vld [vmem:[%s1 + $0x428] sm:$0xff]
  %v164 = vld [vmem:[%s1 + $0x430] sm:$0xff]
  %v165 = vld [vmem:[%s1 + $0x438] sm:$0xff]
  %v166 = vld [vmem:[%s1 + $0x440] sm:$0xff]
  %v167 = vld [vmem:[%s1 + $0x448] sm:$0xff]
  %v168 = vld [vmem:[%s1 + $0x450] sm:$0xff]
  %v169 = vld [vmem:[%s1 + $0x458] sm:$0xff]
  %v170 = vld [vmem:[%s1 + $0x460] sm:$0xff]
  %v171 = vld [vmem:[%s1 + $0x468] sm:$0xff]
  %v172 = vld [vmem:[%s1 + $0x470] sm:$0xff]
  %v173 = vld [vmem:[%s1 + $0x478] sm:$0xff]
  %v179 = vunpack.c.l.b16 %v25
  %v180 = vunpack.c.h.b16 %v25
  %v181 = vunpack.c.l.b16 %v26
  %v182 = vunpack.c.h.b16 %v26
  %v183 = vunpack.c.l.b16 %v27
  %v184 = vunpack.c.h.b16 %v27
  %v185 = vunpack.c.l.b16 %v28
  %v186 = vunpack.c.h.b16 %v28
  %v187 = vunpack.c.l.b16 %v29
  %v188 = vpack.c.b16 %v179, %v179
  %v189 = vpack.c.b16 %v180, %v180
  %v190 = vpack.c.b16 %v181, %v181
  %v191 = vpack.c.b16 %v182, %v182
  %v192 = vpack.c.b16 %v183, %v183
  %v193 = vpack.c.b16 %v184, %v184
  %v194 = vpack.c.b16 %v185, %v185
  %v195 = vpack.c.b16 %v186, %v186
  %v196 = vpack.c.b16 %v187, %v187
  %v350 = vunpack.c.l.b16 %v30
  %v351 = vunpack.c.h.b16 %v30
  %v352 = vunpack.c.l.b16 %v31
  %v353 = vunpack.c.h.b16 %v31
  %v354 = vunpack.c.l.b16 %v32
  %v355 = vunpack.c.h.b16 %v32
  %v356 = vunpack.c.l.b16 %v33
  %v357 = vunpack.c.h.b16 %v33
  %v358 = vunpack.c.l.b16 %v34
  %v359 = vunpack.c.h.b16 %v34
  %v360 = vunpack.c.l.b16 %v35
  %v361 = vunpack.c.h.b16 %v35
  %v362 = vunpack.c.l.b16 %v36
  %v363 = vunpack.c.h.b16 %v36
  %v364 = vunpack.c.l.b16 %v37
  %v365 = vunpack.c.h.b16 %v37
  %v366 = vunpack.c.l.b16 %v38
  %v367 = vunpack.c.h.b16 %v38
  %v368 = vunpack.c.l.b16 %v39
  %v369 = vunpack.c.h.b16 %v39
  %v370 = vunpack.c.l.b16 %v40
  %v371 = vunpack.c.h.b16 %v40
  %v372 = vunpack.c.l.b16 %v41
  %v373 = vunpack.c.h.b16 %v41
  %v374 = vunpack.c.l.b16 %v42
  %v375 = vunpack.c.h.b16 %v42
  %v376 = vunpack.c.l.b16 %v43
  %v377 = vunpack.c.h.b16 %v43
  %v378 = vunpack.c.l.b16 %v44
  %v379 = vunpack.c.h.b16 %v44
  %v380 = vunpack.c.l.b16 %v45
  %v381 = vunpack.c.h.b16 %v45
  %v382 = vunpack.c.l.b16 %v46
  %v383 = vunpack.c.h.b16 %v46
  %v384 = vunpack.c.l.b16 %v47
  %v385 = vunpack.c.h.b16 %v47
  %v386 = vunpack.c.l.b16 %v48
  %v387 = vunpack.c.h.b16 %v48
  %v388 = vunpack.c.l.b16 %v49
  %v389 = vunpack.c.h.b16 %v49
  %v390 = vunpack.c.l.b16 %v50
  %v391 = vunpack.c.h.b16 %v50
  %v392 = vunpack.c.l.b16 %v51
  %v393 = vunpack.c.h.b16 %v51
  %v394 = vunpack.c.l.b16 %v52
  %v395 = vunpack.c.h.b16 %v52
  %v396 = vunpack.c.l.b16 %v53
  %v397 = vunpack.c.h.b16 %v53
  %v398 = vunpack.c.l.b16 %v54
  %v399 = vunpack.c.h.b16 %v54
  %v400 = vunpack.c.l.b16 %v55
  %v401 = vunpack.c.h.b16 %v55
  %v402 = vunpack.c.l.b16 %v56
  %v403 = vunpack.c.h.b16 %v56
  %v404 = vunpack.c.l.b16 %v57
  %v405 = vunpack.c.h.b16 %v57
  %v406 = vunpack.c.l.b16 %v58
  %v407 = vunpack.c.h.b16 %v58
  %v408 = vunpack.c.l.b16 %v59
  %v409 = vunpack.c.h.b16 %v59
  %v410 = vunpack.c.l.b16 %v60
  %v411 = vunpack.c.h.b16 %v60
  %v412 = vunpack.c.l.b16 %v61
  %v413 = vunpack.c.h.b16 %v61
  %v414 = vunpack.c.l.b16 %v62
  %v415 = vunpack.c.h.b16 %v62
  %v416 = vunpack.c.l.b16 %v63
  %v417 = vunpack.c.h.b16 %v63
  %v418 = vunpack.c.l.b16 %v64
  %v419 = vunpack.c.h.b16 %v64
  %v420 = vunpack.c.l.b16 %v65
  %v421 = vunpack.c.h.b16 %v65
  %v422 = vunpack.c.l.b16 %v66
  %v423 = vunpack.c.h.b16 %v66
  %v424 = vunpack.c.l.b16 %v67
  %v425 = vunpack.c.h.b16 %v67
  %v426 = vunpack.c.l.b16 %v68
  %v427 = vunpack.c.h.b16 %v68
  %v428 = vunpack.c.l.b16 %v69
  %v429 = vunpack.c.h.b16 %v69
  %v430 = vunpack.c.l.b16 %v70
  %v431 = vunpack.c.h.b16 %v70
  %v432 = vunpack.c.l.b16 %v71
  %v433 = vunpack.c.h.b16 %v71
  %v434 = vunpack.c.l.b16 %v72
  %v435 = vunpack.c.h.b16 %v72
  %v436 = vunpack.c.l.b16 %v73
  %v437 = vunpack.c.h.b16 %v73
  %v438 = vunpack.c.l.b16 %v74
  %v439 = vunpack.c.h.b16 %v74
  %v440 = vunpack.c.l.b16 %v75
  %v441 = vunpack.c.h.b16 %v75
  %v442 = vunpack.c.l.b16 %v76
  %v443 = vunpack.c.h.b16 %v76
  %v444 = vunpack.c.l.b16 %v77
  %v445 = vunpack.c.h.b16 %v77
  %v446 = vunpack.c.l.b16 %v78
  %v447 = vunpack.c.h.b16 %v78
  %v448 = vunpack.c.l.b16 %v79
  %v449 = vunpack.c.h.b16 %v79
  %v450 = vunpack.c.l.b16 %v80
  %v451 = vunpack.c.h.b16 %v80
  %v452 = vunpack.c.l.b16 %v81
  %v453 = vunpack.c.h.b16 %v81
  %v454 = vunpack.c.l.b16 %v82
  %v455 = vunpack.c.h.b16 %v82
  %v456 = vunpack.c.l.b16 %v83
  %v457 = vunpack.c.h.b16 %v83
  %v458 = vunpack.c.l.b16 %v84
  %v459 = vunpack.c.h.b16 %v84
  %v460 = vunpack.c.l.b16 %v85
  %v461 = vunpack.c.h.b16 %v85
  %v462 = vunpack.c.l.b16 %v86
  %v463 = vunpack.c.h.b16 %v86
  %v464 = vunpack.c.l.b16 %v87
  %v465 = vunpack.c.h.b16 %v87
  %v466 = vunpack.c.l.b16 %v88
  %v467 = vunpack.c.h.b16 %v88
  %v468 = vunpack.c.l.b16 %v89
  %v469 = vunpack.c.h.b16 %v89
  %v470 = vunpack.c.l.b16 %v90
  %v471 = vunpack.c.h.b16 %v90
  %v472 = vunpack.c.l.b16 %v91
  %v473 = vunpack.c.h.b16 %v91
  %v474 = vunpack.c.l.b16 %v92
  %v475 = vunpack.c.h.b16 %v92
  %v476 = vunpack.c.l.b16 %v93
  %v477 = vunpack.c.h.b16 %v93
  %v478 = vunpack.c.l.b16 %v94
  %v479 = vunpack.c.h.b16 %v94
  %v480 = vunpack.c.l.b16 %v95
  %v481 = vunpack.c.h.b16 %v95
  %v482 = vunpack.c.l.b16 %v96
  %v483 = vunpack.c.h.b16 %v96
  %v484 = vunpack.c.l.b16 %v97
  %v485 = vunpack.c.h.b16 %v97
  %v486 = vunpack.c.l.b16 %v98
  %v487 = vunpack.c.h.b16 %v98
  %v488 = vunpack.c.l.b16 %v99
  %v489 = vunpack.c.h.b16 %v99
  %v490 = vunpack.c.l.b16 %v100
  %v491 = vunpack.c.h.b16 %v100
  %v492 = vunpack.c.l.b16 %v101
  %v493 = vunpack.c.h.b16 %v101
  %v494 = vunpack.c.l.b16 %v102
  %v495 = vunpack.c.h.b16 %v102
  %v496 = vunpack.c.l.b16 %v103
  %v497 = vunpack.c.h.b16 %v103
  %v498 = vunpack.c.l.b16 %v104
  %v499 = vunpack.c.h.b16 %v104
  %v500 = vunpack.c.l.b16 %v105
  %v501 = vunpack.c.h.b16 %v105
  %v502 = vunpack.c.l.b16 %v106
  %v503 = vunpack.c.h.b16 %v106
  %v504 = vunpack.c.l.b16 %v107
  %v505 = vunpack.c.h.b16 %v107
  %v506 = vunpack.c.l.b16 %v108
  %v507 = vunpack.c.h.b16 %v108
  %v508 = vunpack.c.l.b16 %v109
  %v509 = vunpack.c.h.b16 %v109
  %v510 = vunpack.c.l.b16 %v110
  %v511 = vunpack.c.h.b16 %v110
  %v512 = vunpack.c.l.b16 %v111
  %v513 = vunpack.c.h.b16 %v111
  %v514 = vunpack.c.l.b16 %v112
  %v515 = vunpack.c.h.b16 %v112
  %v516 = vunpack.c.l.b16 %v113
  %v517 = vunpack.c.h.b16 %v113
  %v518 = vunpack.c.l.b16 %v114
  %v519 = vunpack.c.h.b16 %v114
  %v520 = vunpack.c.l.b16 %v115
  %v521 = vunpack.c.h.b16 %v115
  %v522 = vunpack.c.l.b16 %v116
  %v523 = vunpack.c.h.b16 %v116
  %v524 = vunpack.c.l.b16 %v117
  %v525 = vunpack.c.h.b16 %v117
  %v526 = vunpack.c.l.b16 %v118
  %v527 = vunpack.c.h.b16 %v118
  %v528 = vunpack.c.l.b16 %v119
  %v529 = vunpack.c.h.b16 %v119
  %v530 = vunpack.c.l.b16 %v120
  %v531 = vunpack.c.h.b16 %v120
  %v532 = vunpack.c.l.b16 %v121
  %v533 = vunpack.c.h.b16 %v121
  %v534 = vunpack.c.l.b16 %v122
  %v535 = vunpack.c.h.b16 %v122
  %v536 = vunpack.c.l.b16 %v123
  %v537 = vunpack.c.h.b16 %v123
  %v538 = vunpack.c.l.b16 %v124
  %v539 = vunpack.c.h.b16 %v124
  %v540 = vunpack.c.l.b16 %v125
  %v541 = vunpack.c.h.b16 %v125
  %v542 = vunpack.c.l.b16 %v126
  %v543 = vunpack.c.h.b16 %v126
  %v544 = vunpack.c.l.b16 %v127
  %v545 = vunpack.c.h.b16 %v127
  %v546 = vunpack.c.l.b16 %v128
  %v547 = vunpack.c.h.b16 %v128
  %v548 = vunpack.c.l.b16 %v129
  %v549 = vunpack.c.h.b16 %v129
  %v550 = vunpack.c.l.b16 %v130
  %v551 = vunpack.c.h.b16 %v130
  %v552 = vunpack.c.l.b16 %v131
  %v553 = vunpack.c.h.b16 %v131
  %v554 = vunpack.c.l.b16 %v132
  %v555 = vunpack.c.h.b16 %v132
  %v556 = vunpack.c.l.b16 %v133
  %v557 = vunpack.c.h.b16 %v133
  %v558 = vunpack.c.l.b16 %v134
  %v559 = vunpack.c.h.b16 %v134
  %v560 = vunpack.c.l.b16 %v135
  %v561 = vunpack.c.h.b16 %v135
  %v562 = vunpack.c.l.b16 %v136
  %v563 = vunpack.c.h.b16 %v136
  %v564 = vunpack.c.l.b16 %v137
  %v565 = vunpack.c.h.b16 %v137
  %v566 = vunpack.c.l.b16 %v138
  %v567 = vunpack.c.h.b16 %v138
  %v568 = vunpack.c.l.b16 %v139
  %v569 = vunpack.c.h.b16 %v139
  %v570 = vunpack.c.l.b16 %v140
  %v571 = vunpack.c.h.b16 %v140
  %v572 = vunpack.c.l.b16 %v141
  %v573 = vunpack.c.h.b16 %v141
  %v574 = vunpack.c.l.b16 %v142
  %v575 = vunpack.c.h.b16 %v142
  %v576 = vunpack.c.l.b16 %v143
  %v577 = vunpack.c.h.b16 %v143
  %v578 = vunpack.c.l.b16 %v144
  %v579 = vunpack.c.h.b16 %v144
  %v580 = vunpack.c.l.b16 %v145
  %v581 = vunpack.c.h.b16 %v145
  %v582 = vunpack.c.l.b16 %v146
  %v583 = vunpack.c.h.b16 %v146
  %v584 = vunpack.c.l.b16 %v147
  %v585 = vunpack.c.h.b16 %v147
  %v586 = vunpack.c.l.b16 %v148
  %v587 = vunpack.c.h.b16 %v148
  %v588 = vunpack.c.l.b16 %v149
  %v589 = vunpack.c.h.b16 %v149
  %v590 = vunpack.c.l.b16 %v150
  %v591 = vunpack.c.h.b16 %v150
  %v592 = vunpack.c.l.b16 %v151
  %v593 = vunpack.c.h.b16 %v151
  %v594 = vunpack.c.l.b16 %v152
  %v595 = vunpack.c.h.b16 %v152
  %v596 = vunpack.c.l.b16 %v153
  %v597 = vunpack.c.h.b16 %v153
  %v598 = vunpack.c.l.b16 %v154
  %v599 = vunpack.c.h.b16 %v154
  %v600 = vunpack.c.l.b16 %v155
  %v601 = vunpack.c.h.b16 %v155
  %v602 = vunpack.c.l.b16 %v156
  %v603 = vunpack.c.h.b16 %v156
  %v604 = vunpack.c.l.b16 %v157
  %v605 = vunpack.c.h.b16 %v157
  %v606 = vunpack.c.l.b16 %v158
  %v607 = vunpack.c.h.b16 %v158
  %v608 = vunpack.c.l.b16 %v159
  %v609 = vunpack.c.h.b16 %v159
  %v610 = vunpack.c.l.b16 %v160
  %v611 = vunpack.c.h.b16 %v160
  %v612 = vunpack.c.l.b16 %v161
  %v613 = vunpack.c.h.b16 %v161
  %v614 = vunpack.c.l.b16 %v162
  %v615 = vunpack.c.h.b16 %v162
  %v616 = vunpack.c.l.b16 %v163
  %v617 = vunpack.c.h.b16 %v163
  %v618 = vunpack.c.l.b16 %v164
  %v619 = vunpack.c.h.b16 %v164
  %v620 = vunpack.c.l.b16 %v165
  %v621 = vunpack.c.h.b16 %v165
  %v622 = vunpack.c.l.b16 %v166
  %v623 = vunpack.c.h.b16 %v166
  %v624 = vunpack.c.l.b16 %v167
  %v625 = vunpack.c.h.b16 %v167
  %v626 = vunpack.c.l.b16 %v168
  %v627 = vunpack.c.h.b16 %v168
  %v628 = vunpack.c.l.b16 %v169
  %v629 = vunpack.c.h.b16 %v169
  %v630 = vunpack.c.l.b16 %v170
  %v631 = vunpack.c.h.b16 %v170
  %v632 = vunpack.c.l.b16 %v171
  %v633 = vunpack.c.h.b16 %v171
  %v634 = vunpack.c.l.b16 %v172
  %v635 = vunpack.c.h.b16 %v172
  %v636 = vunpack.c.l.b16 %v173
  %v637 = vunpack.c.h.b16 %v173
  %v638 = vpack.c.b16 %v352, %v350
  %v639 = vpack.c.b16 %v353, %v351
  %v640 = vpack.c.b16 %v356, %v354
  %v641 = vpack.c.b16 %v357, %v355
  %v642 = vpack.c.b16 %v360, %v358
  %v643 = vpack.c.b16 %v361, %v359
  %v644 = vpack.c.b16 %v364, %v362
  %v645 = vpack.c.b16 %v365, %v363
  %v646 = vpack.c.b16 %v368, %v366
  %v647 = vpack.c.b16 %v369, %v367
  %v648 = vpack.c.b16 %v372, %v370
  %v649 = vpack.c.b16 %v373, %v371
  %v650 = vpack.c.b16 %v376, %v374
  %v651 = vpack.c.b16 %v377, %v375
  %v652 = vpack.c.b16 %v380, %v378
  %v653 = vpack.c.b16 %v381, %v379
  %v654 = vpack.c.b16 %v384, %v382
  %v655 = vpack.c.b16 %v385, %v383
  %v656 = vpack.c.b16 %v388, %v386
  %v657 = vpack.c.b16 %v389, %v387
  %v658 = vpack.c.b16 %v392, %v390
  %v659 = vpack.c.b16 %v393, %v391
  %v660 = vpack.c.b16 %v396, %v394
  %v661 = vpack.c.b16 %v397, %v395
  %v662 = vpack.c.b16 %v400, %v398
  %v663 = vpack.c.b16 %v401, %v399
  %v664 = vpack.c.b16 %v404, %v402
  %v665 = vpack.c.b16 %v405, %v403
  %v666 = vpack.c.b16 %v408, %v406
  %v667 = vpack.c.b16 %v409, %v407
  %v668 = vpack.c.b16 %v412, %v410
  %v669 = vpack.c.b16 %v413, %v411
  %v670 = vpack.c.b16 %v416, %v414
  %v671 = vpack.c.b16 %v417, %v415
  %v672 = vpack.c.b16 %v420, %v418
  %v673 = vpack.c.b16 %v421, %v419
  %v674 = vpack.c.b16 %v424, %v422
  %v675 = vpack.c.b16 %v425, %v423
  %v676 = vpack.c.b16 %v428, %v426
  %v677 = vpack.c.b16 %v429, %v427
  %v678 = vpack.c.b16 %v432, %v430
  %v679 = vpack.c.b16 %v433, %v431
  %v680 = vpack.c.b16 %v436, %v434
  %v681 = vpack.c.b16 %v437, %v435
  %v682 = vpack.c.b16 %v440, %v438
  %v683 = vpack.c.b16 %v441, %v439
  %v684 = vpack.c.b16 %v444, %v442
  %v685 = vpack.c.b16 %v445, %v443
  %v686 = vpack.c.b16 %v448, %v446
  %v687 = vpack.c.b16 %v449, %v447
  %v688 = vpack.c.b16 %v452, %v450
  %v689 = vpack.c.b16 %v453, %v451
  %v690 = vpack.c.b16 %v456, %v454
  %v691 = vpack.c.b16 %v457, %v455
  %v692 = vpack.c.b16 %v460, %v458
  %v693 = vpack.c.b16 %v461, %v459
  %v694 = vpack.c.b16 %v464, %v462
  %v695 = vpack.c.b16 %v465, %v463
  %v696 = vpack.c.b16 %v468, %v466
  %v697 = vpack.c.b16 %v469, %v467
  %v698 = vpack.c.b16 %v472, %v470
  %v699 = vpack.c.b16 %v473, %v471
  %v700 = vpack.c.b16 %v476, %v474
  %v701 = vpack.c.b16 %v477, %v475
  %v702 = vpack.c.b16 %v480, %v478
  %v703 = vpack.c.b16 %v481, %v479
  %v704 = vpack.c.b16 %v484, %v482
  %v705 = vpack.c.b16 %v485, %v483
  %v706 = vpack.c.b16 %v488, %v486
  %v707 = vpack.c.b16 %v489, %v487
  %v708 = vpack.c.b16 %v492, %v490
  %v709 = vpack.c.b16 %v493, %v491
  %v710 = vpack.c.b16 %v496, %v494
  %v711 = vpack.c.b16 %v497, %v495
  %v712 = vpack.c.b16 %v500, %v498
  %v713 = vpack.c.b16 %v501, %v499
  %v714 = vpack.c.b16 %v504, %v502
  %v715 = vpack.c.b16 %v505, %v503
  %v716 = vpack.c.b16 %v508, %v506
  %v717 = vpack.c.b16 %v509, %v507
  %v718 = vpack.c.b16 %v512, %v510
  %v719 = vpack.c.b16 %v513, %v511
  %v720 = vpack.c.b16 %v516, %v514
  %v721 = vpack.c.b16 %v517, %v515
  %v722 = vpack.c.b16 %v520, %v518
  %v723 = vpack.c.b16 %v521, %v519
  %v724 = vpack.c.b16 %v524, %v522
  %v725 = vpack.c.b16 %v525, %v523
  %v726 = vpack.c.b16 %v528, %v526
  %v727 = vpack.c.b16 %v529, %v527
  %v728 = vpack.c.b16 %v532, %v530
  %v729 = vpack.c.b16 %v533, %v531
  %v730 = vpack.c.b16 %v536, %v534
  %v731 = vpack.c.b16 %v537, %v535
  %v732 = vpack.c.b16 %v540, %v538
  %v733 = vpack.c.b16 %v541, %v539
  %v734 = vpack.c.b16 %v544, %v542
  %v735 = vpack.c.b16 %v545, %v543
  %v736 = vpack.c.b16 %v548, %v546
  %v737 = vpack.c.b16 %v549, %v547
  %v738 = vpack.c.b16 %v552, %v550
  %v739 = vpack.c.b16 %v553, %v551
  %v740 = vpack.c.b16 %v556, %v554
  %v741 = vpack.c.b16 %v557, %v555
  %v742 = vpack.c.b16 %v560, %v558
  %v743 = vpack.c.b16 %v561, %v559
  %v744 = vpack.c.b16 %v564, %v562
  %v745 = vpack.c.b16 %v565, %v563
  %v746 = vpack.c.b16 %v568, %v566
  %v747 = vpack.c.b16 %v569, %v567
  %v748 = vpack.c.b16 %v572, %v570
  %v749 = vpack.c.b16 %v573, %v571
  %v750 = vpack.c.b16 %v576, %v574
  %v751 = vpack.c.b16 %v577, %v575
  %v752 = vpack.c.b16 %v580, %v578
  %v753 = vpack.c.b16 %v581, %v579
  %v754 = vpack.c.b16 %v584, %v582
  %v755 = vpack.c.b16 %v585, %v583
  %v756 = vpack.c.b16 %v588, %v586
  %v757 = vpack.c.b16 %v589, %v587
  %v758 = vpack.c.b16 %v592, %v590
  %v759 = vpack.c.b16 %v593, %v591
  %v760 = vpack.c.b16 %v596, %v594
  %v761 = vpack.c.b16 %v597, %v595
  %v762 = vpack.c.b16 %v600, %v598
  %v763 = vpack.c.b16 %v601, %v599
  %v764 = vpack.c.b16 %v604, %v602
  %v765 = vpack.c.b16 %v605, %v603
  %v766 = vpack.c.b16 %v608, %v606
  %v767 = vpack.c.b16 %v609, %v607
  %v768 = vpack.c.b16 %v612, %v610
  %v769 = vpack.c.b16 %v613, %v611
  %v770 = vpack.c.b16 %v616, %v614
  %v771 = vpack.c.b16 %v617, %v615
  %v772 = vpack.c.b16 %v620, %v618
  %v773 = vpack.c.b16 %v621, %v619
  %v774 = vpack.c.b16 %v624, %v622
  %v775 = vpack.c.b16 %v625, %v623
  %v776 = vpack.c.b16 %v628, %v626
  %v777 = vpack.c.b16 %v629, %v627
  %v778 = vpack.c.b16 %v632, %v630
  %v779 = vpack.c.b16 %v633, %v631
  %v780 = vpack.c.b16 %v636, %v634
  %v781 = vpack.c.b16 %v637, %v635
  %926 = vmatpush.bf16.msra.mxu0 %v652
  %927 = vmatpush.bf16.msra.mxu0 %v650
  %928 = vmatpush.bf16.msra.mxu0 %v648
  %929 = vmatpush.bf16.msra.mxu0 %v646
  %930 = vmatpush.bf16.msra.mxu0 %v644
  %931 = vmatpush.bf16.msra.mxu0 %v642
  %932 = vmatpush.bf16.msra.mxu0 %v640
  %933 = vmatpush.bf16.msra.mxu0 %v638
  %934 = vmatmul.bf16.gmra.mxu0 %v188
  %v935 = vpop.f32.mrf.mxu0
  %v936 = vadd.f32 0.0, %v935
  %v937 = vpop.f32.mrf.mxu0
  %938 = vdwg.mxu0
  %939 = vmatpush.bf16.msra.mxu0 %v668
  %940 = vmatpush.bf16.msra.mxu0 %v666
  %941 = vmatpush.bf16.msra.mxu0 %v664
  %942 = vmatpush.bf16.msra.mxu0 %v662
  %943 = vmatpush.bf16.msra.mxu0 %v660
  %944 = vmatpush.bf16.msra.mxu0 %v658
  %945 = vmatpush.bf16.msra.mxu0 %v656
  %946 = vmatpush.bf16.msra.mxu0 %v654
  %947 = vmatmul.bf16.gmra.mxu0 %v189
  %v948 = vpop.f32.mrf.mxu0
  %v949 = vadd.f32 %v936, %v948
  %v950 = vpop.f32.mrf.mxu0
  %951 = vdwg.mxu0
  %952 = vmatpush.bf16.msra.mxu0 %v684
  %953 = vmatpush.bf16.msra.mxu0 %v682
  %954 = vmatpush.bf16.msra.mxu0 %v680
  %955 = vmatpush.bf16.msra.mxu0 %v678
  %956 = vmatpush.bf16.msra.mxu0 %v676
  %957 = vmatpush.bf16.msra.mxu0 %v674
  %958 = vmatpush.bf16.msra.mxu0 %v672
  %959 = vmatpush.bf16.msra.mxu0 %v670
  %960 = vmatmul.bf16.gmra.mxu0 %v190
  %v961 = vpop.f32.mrf.mxu0
  %v962 = vadd.f32 %v949, %v961
  %v963 = vpop.f32.mrf.mxu0
  %964 = vdwg.mxu0
  %965 = vmatpush.bf16.msra.mxu0 %v700
  %966 = vmatpush.bf16.msra.mxu0 %v698
  %967 = vmatpush.bf16.msra.mxu0 %v696
  %968 = vmatpush.bf16.msra.mxu0 %v694
  %969 = vmatpush.bf16.msra.mxu0 %v692
  %970 = vmatpush.bf16.msra.mxu0 %v690
  %971 = vmatpush.bf16.msra.mxu0 %v688
  %972 = vmatpush.bf16.msra.mxu0 %v686
  %973 = vmatmul.bf16.gmra.mxu0 %v191
  %v974 = vpop.f32.mrf.mxu0
  %v975 = vadd.f32 %v962, %v974
  %v976 = vpop.f32.mrf.mxu0
  %977 = vdwg.mxu0
  %978 = vmatpush.bf16.msra.mxu0 %v716
  %979 = vmatpush.bf16.msra.mxu0 %v714
  %980 = vmatpush.bf16.msra.mxu0 %v712
  %981 = vmatpush.bf16.msra.mxu0 %v710
  %982 = vmatpush.bf16.msra.mxu0 %v708
  %983 = vmatpush.bf16.msra.mxu0 %v706
  %984 = vmatpush.bf16.msra.mxu0 %v704
  %985 = vmatpush.bf16.msra.mxu0 %v702
  %986 = vmatmul.bf16.gmra.mxu0 %v192
  %v987 = vpop.f32.mrf.mxu0
  %v988 = vadd.f32 %v975, %v987
  %v989 = vpop.f32.mrf.mxu0
  %990 = vdwg.mxu0
  %991 = vmatpush.bf16.msra.mxu0 %v732
  %992 = vmatpush.bf16.msra.mxu0 %v730
  %993 = vmatpush.bf16.msra.mxu0 %v728
  %994 = vmatpush.bf16.msra.mxu0 %v726
  %995 = vmatpush.bf16.msra.mxu0 %v724
  %996 = vmatpush.bf16.msra.mxu0 %v722
  %997 = vmatpush.bf16.msra.mxu0 %v720
  %998 = vmatpush.bf16.msra.mxu0 %v718
  %999 = vmatmul.bf16.gmra.mxu0 %v193
  %v1000 = vpop.f32.mrf.mxu0
  %v1001 = vadd.f32 %v988, %v1000
  %v1002 = vpop.f32.mrf.mxu0
  %1003 = vdwg.mxu0
  %1004 = vmatpush.bf16.msra.mxu0 %v748
  %1005 = vmatpush.bf16.msra.mxu0 %v746
  %1006 = vmatpush.bf16.msra.mxu0 %v744
  %1007 = vmatpush.bf16.msra.mxu0 %v742
  %1008 = vmatpush.bf16.msra.mxu0 %v740
  %1009 = vmatpush.bf16.msra.mxu0 %v738
  %1010 = vmatpush.bf16.msra.mxu0 %v736
  %1011 = vmatpush.bf16.msra.mxu0 %v734
  %1012 = vmatmul.bf16.gmra.mxu0 %v194
  %v1013 = vpop.f32.mrf.mxu0
  %v1014 = vadd.f32 %v1001, %v1013
  %v1015 = vpop.f32.mrf.mxu0
  %1016 = vdwg.mxu0
  %1017 = vmatpush.bf16.msra.mxu0 %v764
  %1018 = vmatpush.bf16.msra.mxu0 %v762
  %1019 = vmatpush.bf16.msra.mxu0 %v760
  %1020 = vmatpush.bf16.msra.mxu0 %v758
  %1021 = vmatpush.bf16.msra.mxu0 %v756
  %1022 = vmatpush.bf16.msra.mxu0 %v754
  %1023 = vmatpush.bf16.msra.mxu0 %v752
  %1024 = vmatpush.bf16.msra.mxu0 %v750
  %1025 = vmatmul.bf16.gmra.mxu0 %v195
  %v1026 = vpop.f32.mrf.mxu0
  %v1027 = vadd.f32 %v1014, %v1026
  %v1028 = vpop.f32.mrf.mxu0
  %1029 = vdwg.mxu0
  %1030 = vmatpush.bf16.msra.mxu0 %v780
  %1031 = vmatpush.bf16.msra.mxu0 %v778
  %1032 = vmatpush.bf16.msra.mxu0 %v776
  %1033 = vmatpush.bf16.msra.mxu0 %v774
  %1034 = vmatpush.bf16.msra.mxu0 %v772
  %1035 = vmatpush.bf16.msra.mxu0 %v770
  %1036 = vmatpush.bf16.msra.mxu0 %v768
  %1037 = vmatpush.bf16.msra.mxu0 %v766
  %1038 = vmatmul.bf16.gmra.mxu0 %v196
  %v1039 = vpop.f32.mrf.mxu0
  %v1040 = vadd.f32 %v1027, %v1039
  %v1041 = vpop.f32.mrf.mxu0
  %1042 = vdwg.mxu0
  %1043 = vmatpush.bf16.msra.mxu0 %v653
  %1044 = vmatpush.bf16.msra.mxu0 %v651
  %1045 = vmatpush.bf16.msra.mxu0 %v649
  %1046 = vmatpush.bf16.msra.mxu0 %v647
  %1047 = vmatpush.bf16.msra.mxu0 %v645
  %1048 = vmatpush.bf16.msra.mxu0 %v643
  %1049 = vmatpush.bf16.msra.mxu0 %v641
  %1050 = vmatpush.bf16.msra.mxu0 %v639
  %1051 = vmatmul.bf16.gmra.mxu0 %v188
  %v1052 = vpop.f32.mrf.mxu0
  %v1053 = vadd.f32 0.0, %v1052
  %v1054 = vpop.f32.mrf.mxu0
  %1055 = vdwg.mxu0
  %1056 = vmatpush.bf16.msra.mxu0 %v669
  %1057 = vmatpush.bf16.msra.mxu0 %v667
  %1058 = vmatpush.bf16.msra.mxu0 %v665
  %1059 = vmatpush.bf16.msra.mxu0 %v663
  %1060 = vmatpush.bf16.msra.mxu0 %v661
  %1061 = vmatpush.bf16.msra.mxu0 %v659
  %1062 = vmatpush.bf16.msra.mxu0 %v657
  %1063 = vmatpush.bf16.msra.mxu0 %v655
  %1064 = vmatmul.bf16.gmra.mxu0 %v189
  %v1065 = vpop.f32.mrf.mxu0
  %v1066 = vadd.f32 %v1053, %v1065
  %v1067 = vpop.f32.mrf.mxu0
  %1068 = vdwg.mxu0
  %1069 = vmatpush.bf16.msra.mxu0 %v685
  %1070 = vmatpush.bf16.msra.mxu0 %v683
  %1071 = vmatpush.bf16.msra.mxu0 %v681
  %1072 = vmatpush.bf16.msra.mxu0 %v679
  %1073 = vmatpush.bf16.msra.mxu0 %v677
  %1074 = vmatpush.bf16.msra.mxu0 %v675
  %1075 = vmatpush.bf16.msra.mxu0 %v673
  %1076 = vmatpush.bf16.msra.mxu0 %v671
  %1077 = vmatmul.bf16.gmra.mxu0 %v190
  %v1078 = vpop.f32.mrf.mxu0
  %v1079 = vadd.f32 %v1066, %v1078
  %v1080 = vpop.f32.mrf.mxu0
  %1081 = vdwg.mxu0
  %1082 = vmatpush.bf16.msra.mxu0 %v701
  %1083 = vmatpush.bf16.msra.mxu0 %v699
  %1084 = vmatpush.bf16.msra.mxu0 %v697
  %1085 = vmatpush.bf16.msra.mxu0 %v695
  %1086 = vmatpush.bf16.msra.mxu0 %v693
  %1087 = vmatpush.bf16.msra.mxu0 %v691
  %1088 = vmatpush.bf16.msra.mxu0 %v689
  %1089 = vmatpush.bf16.msra.mxu0 %v687
  %1090 = vmatmul.bf16.gmra.mxu0 %v191
  %v1091 = vpop.f32.mrf.mxu0
  %v1092 = vadd.f32 %v1079, %v1091
  %v1093 = vpop.f32.mrf.mxu0
  %1094 = vdwg.mxu0
  %1095 = vmatpush.bf16.msra.mxu0 %v717
  %1096 = vmatpush.bf16.msra.mxu0 %v715
  %1097 = vmatpush.bf16.msra.mxu0 %v713
  %1098 = vmatpush.bf16.msra.mxu0 %v711
  %1099 = vmatpush.bf16.msra.mxu0 %v709
  %1100 = vmatpush.bf16.msra.mxu0 %v707
  %1101 = vmatpush.bf16.msra.mxu0 %v705
  %1102 = vmatpush.bf16.msra.mxu0 %v703
  %1103 = vmatmul.bf16.gmra.mxu0 %v192
  %v1104 = vpop.f32.mrf.mxu0
  %v1105 = vadd.f32 %v1092, %v1104
  %v1106 = vpop.f32.mrf.mxu0
  %1107 = vdwg.mxu0
  %1108 = vmatpush.bf16.msra.mxu0 %v733
  %1109 = vmatpush.bf16.msra.mxu0 %v731
  %1110 = vmatpush.bf16.msra.mxu0 %v729
  %1111 = vmatpush.bf16.msra.mxu0 %v727
  %1112 = vmatpush.bf16.msra.mxu0 %v725
  %1113 = vmatpush.bf16.msra.mxu0 %v723
  %1114 = vmatpush.bf16.msra.mxu0 %v721
  %1115 = vmatpush.bf16.msra.mxu0 %v719
  %1116 = vmatmul.bf16.gmra.mxu0 %v193
  %v1117 = vpop.f32.mrf.mxu0
  %v1118 = vadd.f32 %v1105, %v1117
  %v1119 = vpop.f32.mrf.mxu0
  %1120 = vdwg.mxu0
  %1121 = vmatpush.bf16.msra.mxu0 %v749
  %1122 = vmatpush.bf16.msra.mxu0 %v747
  %1123 = vmatpush.bf16.msra.mxu0 %v745
  %1124 = vmatpush.bf16.msra.mxu0 %v743
  %1125 = vmatpush.bf16.msra.mxu0 %v741
  %1126 = vmatpush.bf16.msra.mxu0 %v739
  %1127 = vmatpush.bf16.msra.mxu0 %v737
  %1128 = vmatpush.bf16.msra.mxu0 %v735
  %1129 = vmatmul.bf16.gmra.mxu0 %v194
  %v1130 = vpop.f32.mrf.mxu0
  %v1131 = vadd.f32 %v1118, %v1130
  %v1132 = vpop.f32.mrf.mxu0
  %1133 = vdwg.mxu0
  %1134 = vmatpush.bf16.msra.mxu0 %v765
  %1135 = vmatpush.bf16.msra.mxu0 %v763
  %1136 = vmatpush.bf16.msra.mxu0 %v761
  %1137 = vmatpush.bf16.msra.mxu0 %v759
  %1138 = vmatpush.bf16.msra.mxu0 %v757
  %1139 = vmatpush.bf16.msra.mxu0 %v755
  %1140 = vmatpush.bf16.msra.mxu0 %v753
  %1141 = vmatpush.bf16.msra.mxu0 %v751
  %1142 = vmatmul.bf16.gmra.mxu0 %v195
  %v1143 = vpop.f32.mrf.mxu0
  %v1144 = vadd.f32 %v1131, %v1143
  %v1145 = vpop.f32.mrf.mxu0
  %1146 = vdwg.mxu0
  %1147 = vmatpush.bf16.msra.mxu0 %v781
  %1148 = vmatpush.bf16.msra.mxu0 %v779
  %1149 = vmatpush.bf16.msra.mxu0 %v777
  %1150 = vmatpush.bf16.msra.mxu0 %v775
  %1151 = vmatpush.bf16.msra.mxu0 %v773
  %1152 = vmatpush.bf16.msra.mxu0 %v771
  %1153 = vmatpush.bf16.msra.mxu0 %v769
  %1154 = vmatpush.bf16.msra.mxu0 %v767
  %1155 = vmatmul.bf16.gmra.mxu0 %v196
  %v1156 = vpop.f32.mrf.mxu0
  %v1157 = vadd.f32 %v1144, %v1156
  %v1158 = vpop.f32.mrf.mxu0
  %1159 = vdwg.mxu0
  %v1160 = vadd.f32 %v23, %v1040
  %v1161 = vadd.f32 %v24, %v1157
  %1162 = vst [vmem:[#allocation2] sm:$0xff] %v1160
  %1163 = vst [vmem:[#allocation2 + $0x8] sm:$0xff] %v1161
  // Predicated region
  $region22: #{resnet_forward.19} parent=0 // pred_check
    %p1164 = pneg %p17
  $region23: #{resnet_forward.19} parent=0 // pred_check_branch
    %1166 = sbr.rel (%p1164) target = $region25
  $region24: #{resnet_forward.19} parent=0 // pred_region
    %v1167 = vld [vmem:[#allocation2] sm:$0xff]
    %v1168 = vld [vmem:[#allocation2 + $0x8] sm:$0xff]
    %v1169 = vld [vmem:[%s2] sm:$0x3]
    %v1171 = vperm.slane %v1169, 0
    %v1172 = vperm.slane %v1169, 1
    %v1175 = vmul.f32 %v1167, %v1171
    %v1176 = vmul.f32 %v1168, %v1172
    %v1177 = vld [vmem:[%s3] sm:$0x3]
    %v1179 = vperm.slane %v1177, 0
    %v1180 = vperm.slane %v1177, 1
    %v1183 = vadd.f32 %v1175, %v1179
    %v1184 = vadd.f32 %v1176, %v1180
    %v1185 = vmax.f32 %v1183, 0.0
    %v1186 = vmax.f32 %v1184, 0.0
    %1187 = vst [vmem:[%s4] sm:$0xff] %v1185
    %1188 = vst [vmem:[%s4 + $0x8] sm:$0xff] %v1186
  $region25: #{resnet_forward.19} parent=0 // pred_fallthru
    _
  // Predicated region
  $region26: #{resnet_forward.19} parent=0 // pred_check
    _
  $region27: #{resnet_forward.19} parent=0 // pred_check_branch
    %1190 = sbr.rel (0) target = $region29
  $region28: #{resnet_forward.19} parent=0 // pred_region
    _
  $region29: #{resnet_forward.19} parent=0 // pred_fallthru
    _
  // Predicated region
  $region30: #{resnet_forward.19} parent=0 // pred_check
    _
  $region31: #{resnet_forward.19} parent=0 // pred_check_branch
    %1192 = sbr.rel (0) target = $region33
  $region32: #{resnet_forward.19} parent=0 // pred_region
    _
  $region33: #{resnet_forward.19} parent=0 // pred_fallthru
    _

// kernel: resnet_forward.20
$region0: #{resnet_forward.20}
  #allocation0 [shape = 'u32[]', space=smem, size = 0x4, offset = 0x4, fixed_abs, tag = 'smem constant byte address 0x4 - core index']
  #allocation1 [shape = 'u32[72,128]{1,0:T(1,128)}', space=vmem, size = 0x9000, scoped, tag = 'internal scratch']
  #allocation2 [shape = 'f32[8,256]{1,0:T(8,128)}', space=vmem, size = 0x2000, scoped, tag = 'scratch operand']
  %s0 = inlined_call_operand.vmem [shape: bf16[8,128], index: 0, kind: input, shape index: {}]
  %s1 = inlined_call_operand.vmem [shape: bf16[128,256], index: 1, kind: input, shape index: {}]
  %s2 = inlined_call_operand.vmem [shape: f32[1,256], index: 2, kind: input, shape index: {}]
  %s3 = inlined_call_operand.vmem [shape: f32[1,256], index: 3, kind: input, shape index: {}]
  %s4 = inlined_call_operand.vmem [shape: f32[8,256], index: 4, kind: output, shape index: {}]
  %s5 = sld [smem:[#allocation0]]
  $region34: #{resnet_forward.20} parent=0
    _
  %s7 = ssub.s32 1, %s5
  %s8 = scalar_select 0, %s7, %s5
  // Predicated region
  $region2: #{resnet_forward.20} parent=0 // pred_check
    _
  $region3: #{resnet_forward.20} parent=0 // pred_check_branch
    %10 = sbr.rel (0) target = $region5
  $region4: #{resnet_forward.20} parent=0 // pred_region
    _
  $region5: #{resnet_forward.20} parent=0 // pred_fallthru
    _
  // Predicated region
  $region6: #{resnet_forward.20} parent=0 // pred_check
    _
  $region7: #{resnet_forward.20} parent=0 // pred_check_branch
    %12 = sbr.rel (0) target = $region9
  $region8: #{resnet_forward.20} parent=0 // pred_region
    _
  $region9: #{resnet_forward.20} parent=0 // pred_fallthru
    _
  // Predicated region
  $region10: #{resnet_forward.20} parent=0 // pred_check
    _
  $region11: #{resnet_forward.20} parent=0 // pred_check_branch
    %14 = sbr.rel (0) target = $region13
  $region12: #{resnet_forward.20} parent=0 // pred_region
    _
  $region13: #{resnet_forward.20} parent=0 // pred_fallthru
    _
  // Predicated region
  $region14: #{resnet_forward.20} parent=0 // pred_check
    _
  $region15: #{resnet_forward.20} parent=0 // pred_check_branch
    %16 = sbr.rel (0) target = $region17
  $region16: #{resnet_forward.20} parent=0 // pred_region
    _
  $region17: #{resnet_forward.20} parent=0 // pred_fallthru
    _
  %p17 = scmp.eq.s32.totalorder 0, 0
  // Predicated region
  $region18: #{resnet_forward.20} parent=0 // pred_check
    %p18 = pneg %p17
  $region19: #{resnet_forward.20} parent=0 // pred_check_branch
    %20 = sbr.rel (%p18) target = $region21
  $region20: #{resnet_forward.20} parent=0 // pred_region
    %21 = vst [vmem:[#allocation2] sm:$0xff] 0.0
    %22 = vst [vmem:[#allocation2 + $0x8] sm:$0xff] 0.0
  $region21: #{resnet_forward.20} parent=0 // pred_fallthru
    _
  %v23 = vld [vmem:[#allocation2] sm:$0xff]
  %v24 = vld [vmem:[#allocation2 + $0x8] sm:$0xff]
  %v25 = vld [vmem:[%s0] sm:$0xf]
  %v26 = vld [vmem:[%s1] sm:$0xff]
  %v27 = vld [vmem:[%s1 + $0x8] sm:$0xff]
  %v28 = vld [vmem:[%s1 + $0x10] sm:$0xff]
  %v29 = vld [vmem:[%s1 + $0x18] sm:$0xff]
  %v30 = vld [vmem:[%s1 + $0x20] sm:$0xff]
  %v31 = vld [vmem:[%s1 + $0x28] sm:$0xff]
  %v32 = vld [vmem:[%s1 + $0x30] sm:$0xff]
  %v33 = vld [vmem:[%s1 + $0x38] sm:$0xff]
  %v34 = vld [vmem:[%s1 + $0x40] sm:$0xff]
  %v35 = vld [vmem:[%s1 + $0x48] sm:$0xff]
  %v36 = vld [vmem:[%s1 + $0x50] sm:$0xff]
  %v37 = vld [vmem:[%s1 + $0x58] sm:$0xff]
  %v38 = vld [vmem:[%s1 + $0x60] sm:$0xff]
  %v39 = vld [vmem:[%s1 + $0x68] sm:$0xff]
  %v40 = vld [vmem:[%s1 + $0x70] sm:$0xff]
  %v41 = vld [vmem:[%s1 + $0x78] sm:$0xff]
  %v58 = vunpack.c.l.b16 %v26
  %v59 = vunpack.c.h.b16 %v26
  %v60 = vunpack.c.l.b16 %v27
  %v61 = vunpack.c.h.b16 %v27
  %v62 = vunpack.c.l.b16 %v28
  %v63 = vunpack.c.h.b16 %v28
  %v64 = vunpack.c.l.b16 %v29
  %v65 = vunpack.c.h.b16 %v29
  %v66 = vunpack.c.l.b16 %v30
  %v67 = vunpack.c.h.b16 %v30
  %v68 = vunpack.c.l.b16 %v31
  %v69 = vunpack.c.h.b16 %v31
  %v70 = vunpack.c.l.b16 %v32
  %v71 = vunpack.c.h.b16 %v32
  %v72 = vunpack.c.l.b16 %v33
  %v73 = vunpack.c.h.b16 %v33
  %v74 = vunpack.c.l.b16 %v34
  %v75 = vunpack.c.h.b16 %v34
  %v76 = vunpack.c.l.b16 %v35
  %v77 = vunpack.c.h.b16 %v35
  %v78 = vunpack.c.l.b16 %v36
  %v79 = vunpack.c.h.b16 %v36
  %v80 = vunpack.c.l.b16 %v37
  %v81 = vunpack.c.h.b16 %v37
  %v82 = vunpack.c.l.b16 %v38
  %v83 = vunpack.c.h.b16 %v38
  %v84 = vunpack.c.l.b16 %v39
  %v85 = vunpack.c.h.b16 %v39
  %v86 = vunpack.c.l.b16 %v40
  %v87 = vunpack.c.h.b16 %v40
  %v88 = vunpack.c.l.b16 %v41
  %v89 = vunpack.c.h.b16 %v41
  %v90 = vpack.c.b16 %v60, %v58
  %v91 = vpack.c.b16 %v61, %v59
  %v92 = vpack.c.b16 %v64, %v62
  %v93 = vpack.c.b16 %v65, %v63
  %v94 = vpack.c.b16 %v68, %v66
  %v95 = vpack.c.b16 %v69, %v67
  %v96 = vpack.c.b16 %v72, %v70
  %v97 = vpack.c.b16 %v73, %v71
  %v98 = vpack.c.b16 %v76, %v74
  %v99 = vpack.c.b16 %v77, %v75
  %v100 = vpack.c.b16 %v80, %v78
  %v101 = vpack.c.b16 %v81, %v79
  %v102 = vpack.c.b16 %v84, %v82
  %v103 = vpack.c.b16 %v85, %v83
  %v104 = vpack.c.b16 %v88, %v86
  %v105 = vpack.c.b16 %v89, %v87
  %122 = vmatpush.bf16.msra.mxu0 %v104
  %123 = vmatpush.bf16.msra.mxu0 %v102
  %124 = vmatpush.bf16.msra.mxu0 %v100
  %125 = vmatpush.bf16.msra.mxu0 %v98
  %126 = vmatpush.bf16.msra.mxu0 %v96
  %127 = vmatpush.bf16.msra.mxu0 %v94
  %128 = vmatpush.bf16.msra.mxu0 %v92
  %129 = vmatpush.bf16.msra.mxu0 %v90
  %130 = vmatmul.bf16.gmra.mxu0 %v25
  %v131 = vpop.f32.mrf.mxu0
  %v132 = vadd.f32 0.0, %v131
  %v133 = vpop.f32.mrf.mxu0
  %134 = vdwg.mxu0
  %135 = vmatpush.bf16.msra.mxu0 %v105
  %136 = vmatpush.bf16.msra.mxu0 %v103
  %137 = vmatpush.bf16.msra.mxu0 %v101
  %138 = vmatpush.bf16.msra.mxu0 %v99
  %139 = vmatpush.bf16.msra.mxu0 %v97
  %140 = vmatpush.bf16.msra.mxu0 %v95
  %141 = vmatpush.bf16.msra.mxu0 %v93
  %142 = vmatpush.bf16.msra.mxu0 %v91
  %143 = vmatmul.bf16.gmra.mxu0 %v25
  %v144 = vpop.f32.mrf.mxu0
  %v145 = vadd.f32 0.0, %v144
  %v146 = vpop.f32.mrf.mxu0
  %147 = vdwg.mxu0
  %v148 = vadd.f32 %v23, %v132
  %v149 = vadd.f32 %v24, %v145
  %150 = vst [vmem:[#allocation2] sm:$0xff] %v148
  %151 = vst [vmem:[#allocation2 + $0x8] sm:$0xff] %v149
  // Predicated region
  $region22: #{resnet_forward.20} parent=0 // pred_check
    %p152 = pneg %p17
  $region23: #{resnet_forward.20} parent=0 // pred_check_branch
    %154 = sbr.rel (%p152) target = $region25
  $region24: #{resnet_forward.20} parent=0 // pred_region
    %v155 = vld [vmem:[#allocation2] sm:$0xff]
    %v156 = vld [vmem:[#allocation2 + $0x8] sm:$0xff]
    %v157 = vld [vmem:[%s2] sm:$0x3]
    %v159 = vperm.slane %v157, 0
    %v160 = vperm.slane %v157, 1
    %v163 = vmul.f32 %v155, %v159
    %v164 = vmul.f32 %v156, %v160
    %v165 = vld [vmem:[%s3] sm:$0x3]
    %v167 = vperm.slane %v165, 0
    %v168 = vperm.slane %v165, 1
    %v171 = vadd.f32 %v163, %v167
    %v172 = vadd.f32 %v164, %v168
    %173 = vst [vmem:[%s4] sm:$0xff] %v171
    %174 = vst [vmem:[%s4 + $0x8] sm:$0xff] %v172
  $region25: #{resnet_forward.20} parent=0 // pred_fallthru
    _
  // Predicated region
  $region26: #{resnet_forward.20} parent=0 // pred_check
    _
  $region27: #{resnet_forward.20} parent=0 // pred_check_branch
    %176 = sbr.rel (0) target = $region29
  $region28: #{resnet_forward.20} parent=0 // pred_region
    _
  $region29: #{resnet_forward.20} parent=0 // pred_fallthru
    _
  // Predicated region
  $region30: #{resnet_forward.20} parent=0 // pred_check
    _
  $region31: #{resnet_forward.20} parent=0 // pred_check_branch
    %178 = sbr.rel (0) target = $region33
  $region32: #{resnet_forward.20} parent=0 // pred_region
    _
  $region33: #{resnet_forward.20} parent=0 // pred_fallthru
    _

// kernel: resnet_forward.21
$region0: #{resnet_forward.21}
  #allocation0 [shape = 'u32[]', space=smem, size = 0x4, offset = 0x4, fixed_abs, tag = 'smem constant byte address 0x4 - core index']
  #allocation1 [shape = 'u32[72,128]{1,0:T(1,128)}', space=vmem, size = 0x9000, scoped, tag = 'internal scratch']
  #allocation2 [shape = 'f32[8,256]{1,0:T(8,128)}', space=vmem, size = 0x2000, scoped, tag = 'scratch operand']
  %s0 = inlined_call_operand.vmem [shape: bf16[8,2560], index: 0, kind: input, shape index: {}]
  %s1 = inlined_call_operand.vmem [shape: bf16[2560,256], index: 1, kind: input, shape index: {}]
  %s2 = inlined_call_operand.vmem [shape: f32[1,256], index: 2, kind: input, shape index: {}]
  %s3 = inlined_call_operand.vmem [shape: f32[1,256], index: 3, kind: input, shape index: {}]
  %s4 = inlined_call_operand.vmem [shape: f32[8,256], index: 4, kind: input, shape index: {}]
  %s5 = inlined_call_operand.vmem [shape: f32[8,256], index: 5, kind: output, shape index: {}]
  %s6 = sld [smem:[#allocation0]]
  $region61: #{resnet_forward.21} parent=0
    _
  %s8 = ssub.s32 1, %s6
  %s9 = scalar_select 0, %s8, %s6
  loop: start=0, step=1, limit=7
  $region2: #{resnet_forward.21} parent=0 // loop_pre_header
    _
  $region3: #{resnet_forward.21} parent=0 // loop_header
    %s11 = sphi 0, %s15
    %p12 = scmp.ge.s32.totalorder %s11, 7
    %s18 = sphi 0, %s37
    %s19 = sphi 0, %s33
    %s20 = sphi 0, %s29
    %s21 = sphi 0, %s18
    %s22 = sphi 0, %s19
    %s23 = sphi 0, %s20
    %s24 = sphi 0, %s21
    %s25 = sphi 0, %s22
    %s26 = sphi 0, %s23
    %s42 = sphi 0, %s44
    %s45 = sphi 0, %s42
    %s46 = sphi 0, %s45
    %s62 = sphi 0, %s46
    %s70 = sphi 0, %s72
    %s73 = sphi 0, %s70
    %s74 = sphi 0, %s73
    %s90 = sphi 0, %s74
    %s96 = sphi 0, %s98
    %s99 = sphi 0, %s96
    %s100 = sphi 0, %s99
    %s116 = sphi 0, %s100
    %s122 = sphi 0, %s124
    %s125 = sphi 0, %s122
    %s126 = sphi 0, %s125
    %s142 = sphi 0, %s126
    %s150 = sphi 0, %s152
    %s153 = sphi 0, %s150
    %s154 = sphi 0, %s153
    %s170 = sphi 0, %s154
    %s178 = sphi 0, %s180
    %s181 = sphi 0, %s178
    %s182 = sphi 0, %s181
    %s198 = sphi 0, %s182
  $region4: #{resnet_forward.21} parent=0 // loop_header_branch
    %14 = sbr.rel (%p12) target = $region8
  $region5: #{resnet_forward.21} parent=0 // loop_body
    %s16 = ssub.s32 %s11, 1
    %s17 = ssub.s32 %s11, 2
    %s27 = sadd.s32 1, %s20
    %p28 = scmp.ge.s32.totalorder %s27, 5
    %s29 = scalar_select %p28, 0, %s27
    %s30 = sadd.s32 1, %s19
    %s31 = scalar_select %p28, %s30, %s19
    %p32 = scmp.ge.s32.totalorder %s31, 1
    %s33 = scalar_select %p32, 0, %s31
    %s34 = sadd.s32 1, %s18
    %s35 = scalar_select %p32, %s34, %s18
    %p36 = scmp.ge.s32.totalorder %s35, 1
    %s37 = scalar_select %p36, 0, %s35
    %s38 = ssub.s32 %s18, %s37
    %s39 = ssub.s32 %s20, %s29
    %s40 = sor.u32 %s38, %s39
    %p41 = scmp.eq.s32.totalorder %s40, 0
    %s43 = sadd.s32 %s42, 1
    %s44 = scalar_select %p41, %s42, %s43
    %p47 = pneg %p41
    %p48 = scmp.eq.s32.totalorder %s11, 4
    %p49 = por %p47, %p48
    %p50 = scmp.ne.s32.totalorder %s42, %s45
    %p51 = scmp.eq.s32.totalorder %s11, 0
    %p52 = por %p50, %p51
    %p53 = scmp.ne.s32.totalorder %s42, %s45
    %p54 = scmp.eq.s32.totalorder %s16, 4
    %p55 = por %p53, %p54
    %p56 = scmp.ne.s32.totalorder %s45, %s46
    %p57 = scmp.eq.s32.totalorder %s16, 0
    %p58 = por %p56, %p57
    %p59 = scmp.ne.s32.totalorder %s45, %s46
    %p60 = scmp.eq.s32.totalorder %s17, 4
    %p61 = por %p59, %p60
    %p63 = scmp.ne.s32.totalorder %s46, %s62
    %p64 = scmp.eq.s32.totalorder %s17, 0
    %p65 = por %p63, %p64
    %s66 = ssub.s32 %s20, %s29
    %s67 = ssub.s32 %s19, %s33
    %s68 = sor.u32 %s66, %s67
    %p69 = scmp.eq.s32.totalorder %s68, 0
    %s71 = sadd.s32 %s70, 1
    %s72 = scalar_select %p69, %s70, %s71
    %p75 = pneg %p69
    %p76 = scmp.eq.s32.totalorder %s11, 4
    %p77 = por %p75, %p76
    %p78 = scmp.ne.s32.totalorder %s70, %s73
    %p79 = scmp.eq.s32.totalorder %s11, 0
    %p80 = por %p78, %p79
    %p81 = scmp.ne.s32.totalorder %s70, %s73
    %p82 = scmp.eq.s32.totalorder %s16, 4
    %p83 = por %p81, %p82
    %p84 = scmp.ne.s32.totalorder %s73, %s74
    %p85 = scmp.eq.s32.totalorder %s16, 0
    %p86 = por %p84, %p85
    %p87 = scmp.ne.s32.totalorder %s73, %s74
    %p88 = scmp.eq.s32.totalorder %s17, 4
    %p89 = por %p87, %p88
    %p91 = scmp.ne.s32.totalorder %s74, %s90
    %p92 = scmp.eq.s32.totalorder %s17, 0
    %p93 = por %p91, %p92
    %s94 = ssub.s32 %s19, %s33
    %p95 = scmp.eq.s32.totalorder %s94, 0
    %s97 = sadd.s32 %s96, 1
    %s98 = scalar_select %p95, %s96, %s97
    %p101 = pneg %p95
    %p102 = scmp.eq.s32.totalorder %s11, 4
    %p103 = por %p101, %p102
    %p104 = scmp.ne.s32.totalorder %s96, %s99
    %p105 = scmp.eq.s32.totalorder %s11, 0
    %p106 = por %p104, %p105
    %p107 = scmp.ne.s32.totalorder %s96, %s99
    %p108 = scmp.eq.s32.totalorder %s16, 4
    %p109 = por %p107, %p108
    %p110 = scmp.ne.s32.totalorder %s99, %s100
    %p111 = scmp.eq.s32.totalorder %s16, 0
    %p112 = por %p110, %p111
    %p113 = scmp.ne.s32.totalorder %s99, %s100
    %p114 = scmp.eq.s32.totalorder %s17, 4
    %p115 = por %p113, %p114
    %p117 = scmp.ne.s32.totalorder %s100, %s116
    %p118 = scmp.eq.s32.totalorder %s17, 0
    %p119 = por %p117, %p118
    %s120 = ssub.s32 %s19, %s33
    %p121 = scmp.eq.s32.totalorder %s120, 0
    %s123 = sadd.s32 %s122, 1
    %s124 = scalar_select %p121, %s122, %s123
    %p127 = pneg %p121
    %p128 = scmp.eq.s32.totalorder %s11, 4
    %p129 = por %p127, %p128
    %p130 = scmp.ne.s32.totalorder %s122, %s125
    %p131 = scmp.eq.s32.totalorder %s11, 0
    %p132 = por %p130, %p131
    %p133 = scmp.ne.s32.totalorder %s122, %s125
    %p134 = scmp.eq.s32.totalorder %s16, 4
    %p135 = por %p133, %p134
    %p136 = scmp.ne.s32.totalorder %s125, %s126
    %p137 = scmp.eq.s32.totalorder %s16, 0
    %p138 = por %p136, %p137
    %p139 = scmp.ne.s32.totalorder %s125, %s126
    %p140 = scmp.eq.s32.totalorder %s17, 4
    %p141 = por %p139, %p140
    %p143 = scmp.ne.s32.totalorder %s126, %s142
    %p144 = scmp.eq.s32.totalorder %s17, 0
    %p145 = por %p143, %p144
    %s146 = ssub.s32 %s18, %s37
    %s147 = ssub.s32 %s19, %s33
    %s148 = sor.u32 %s146, %s147
    %p149 = scmp.eq.s32.totalorder %s148, 0
    %s151 = sadd.s32 %s150, 1
    %s152 = scalar_select %p149, %s150, %s151
    %p155 = pneg %p149
    %p156 = scmp.eq.s32.totalorder %s11, 4
    %p157 = por %p155, %p156
    %p158 = scmp.ne.s32.totalorder %s150, %s153
    %p159 = scmp.eq.s32.totalorder %s11, 0
    %p160 = por %p158, %p159
    %p161 = scmp.ne.s32.totalorder %s150, %s153
    %p162 = scmp.eq.s32.totalorder %s16, 4
    %p163 = por %p161, %p162
    %p164 = scmp.ne.s32.totalorder %s153, %s154
    %p165 = scmp.eq.s32.totalorder %s16, 0
    %p166 = por %p164, %p165
    %p167 = scmp.ne.s32.totalorder %s153, %s154
    %p168 = scmp.eq.s32.totalorder %s17, 4
    %p169 = por %p167, %p168
    %p171 = scmp.ne.s32.totalorder %s154, %s170
    %p172 = scmp.eq.s32.totalorder %s17, 0
    %p173 = por %p171, %p172
    %s174 = ssub.s32 %s18, %s37
    %s175 = ssub.s32 %s19, %s33
    %s176 = sor.u32 %s174, %s175
    %p177 = scmp.eq.s32.totalorder %s176, 0
    %s179 = sadd.s32 %s178, 1
    %s180 = scalar_select %p177, %s178, %s179
    %p183 = pneg %p177
    %p184 = scmp.eq.s32.totalorder %s11, 4
    %p185 = por %p183, %p184
    %p186 = scmp.ne.s32.totalorder %s178, %s181
    %p187 = scmp.eq.s32.totalorder %s11, 0
    %p188 = por %p186, %p187
    %p189 = scmp.ne.s32.totalorder %s178, %s181
    %p190 = scmp.eq.s32.totalorder %s16, 4
    %p191 = por %p189, %p190
    %p192 = scmp.ne.s32.totalorder %s181, %s182
    %p193 = scmp.eq.s32.totalorder %s16, 0
    %p194 = por %p192, %p193
    %p195 = scmp.ne.s32.totalorder %s181, %s182
    %p196 = scmp.eq.s32.totalorder %s17, 4
    %p197 = por %p195, %p196
    %p199 = scmp.ne.s32.totalorder %s182, %s198
    %p200 = scmp.eq.s32.totalorder %s17, 0
    %p201 = por %p199, %p200
    %p202 = scmp.le.s32.totalorder 1, %s11
    %p203 = scmp.lt.s32.totalorder %s11, 6
    %p204 = pnand %p202, %p203
    %p205 = pneg %p204
    // Predicated region
    $region9: #{resnet_forward.21} parent=5 // pred_check
      _
    $region10: #{resnet_forward.21} parent=5 // pred_check_branch
      %207 = sbr.rel (%p204) target = $region12
    $region11: #{resnet_forward.21} parent=5 // pred_region
      %s208 = ssub.s32 %s11, 1
      // Predicated region
      $region13: #{resnet_forward.21} parent=11 // pred_check
        %p209 = pneg %p112
      $region14: #{resnet_forward.21} parent=11 // pred_check_branch
        %211 = sbr.rel (%p209) target = $region16
      $region15: #{resnet_forward.21} parent=11 // pred_region
        %s212 = smul.u32 2, %s22
        %p213 = scmp.lt.s32.totalorder %s212, 1
        %s214 = scalar_select %p213, %s212, 1
        %s215 = scalar_lea.vmem %s2, %s214
        %s216 = smul.u32 2, %s22
      $region16: #{resnet_forward.21} parent=11 // pred_fallthru
        _
      // Predicated region
      $region17: #{resnet_forward.21} parent=11 // pred_check
        %p217 = pneg %p138
      $region18: #{resnet_forward.21} parent=11 // pred_check_branch
        %219 = sbr.rel (%p217) target = $region20
      $region19: #{resnet_forward.21} parent=11 // pred_region
        %s220 = smul.u32 2, %s22
        %p221 = scmp.lt.s32.totalorder %s220, 1
        %s222 = scalar_select %p221, %s220, 1
        %s223 = scalar_lea.vmem %s3, %s222
        %s224 = smul.u32 2, %s22
      $region20: #{resnet_forward.21} parent=11 // pred_fallthru
        _
      // Predicated region
      $region21: #{resnet_forward.21} parent=11 // pred_check
        %p225 = pneg %p166
      $region22: #{resnet_forward.21} parent=11 // pred_check_branch
        %227 = sbr.rel (%p225) target = $region24
      $region23: #{resnet_forward.21} parent=11 // pred_region
        %s228 = smul.u32 2, %s22
        %p229 = scmp.lt.s32.totalorder %s21, 0
        %s230 = scalar_select %p229, %s21, 0
        %p231 = scmp.lt.s32.totalorder %s228, 1
        %s232 = scalar_select %p231, %s228, 1
        %s233 = smul.addr %s230, 2
        %s234 = sadd.s32 %s232, %s233
        %s235 = smul.addr %s234, 8
        %s236 = scalar_lea.vmem %s4, %s235
        %s237 = smul.u32 2, %s22
      $region24: #{resnet_forward.21} parent=11 // pred_fallthru
        _
    $region12: #{resnet_forward.21} parent=5 // pred_fallthru
      _
    %p238 = scmp.lt.s32.totalorder %s11, 5
    // Predicated region
    $region25: #{resnet_forward.21} parent=5 // pred_check
      %p239 = pneg %p238
    $region26: #{resnet_forward.21} parent=5 // pred_check_branch
      %241 = sbr.rel (%p239) target = $region28
    $region27: #{resnet_forward.21} parent=5 // pred_region
      // Predicated region
      $region29: #{resnet_forward.21} parent=27 // pred_check
        %p242 = pneg %p52
      $region30: #{resnet_forward.21} parent=27 // pred_check_branch
        %244 = sbr.rel (%p242) target = $region32
      $region31: #{resnet_forward.21} parent=27 // pred_region
        %s245 = smul.u32 4, %s20
        %p246 = scmp.lt.s32.totalorder %s18, 0
        %s247 = scalar_select %p246, %s18, 0
        %p248 = scmp.lt.s32.totalorder %s245, 19
        %s249 = scalar_select %p248, %s245, 19
        %s250 = smul.addr %s247, 20
        %s251 = sadd.s32 %s249, %s250
        %s252 = smul.addr %s251, 4
        %s253 = scalar_lea.vmem %s0, %s252
        %s254 = smul.u32 4, %s20
      $region32: #{resnet_forward.21} parent=27 // pred_fallthru
        _
      // Predicated region
      $region33: #{resnet_forward.21} parent=27 // pred_check
        %p255 = pneg %p80
      $region34: #{resnet_forward.21} parent=27 // pred_check_branch
        %257 = sbr.rel (%p255) target = $region36
      $region35: #{resnet_forward.21} parent=27 // pred_region
        %s258 = smul.u32 64, %s20
        %s259 = smul.u32 2, %s19
        %p260 = scmp.lt.s32.totalorder %s258, 319
        %s261 = scalar_select %p260, %s258, 319
        %p262 = scmp.lt.s32.totalorder %s259, 1
        %s263 = scalar_select %p262, %s259, 1
        %s264 = smul.addr %s261, 2
        %s265 = sadd.s32 %s263, %s264
        %s266 = smul.addr %s265, 4
        %s267 = scalar_lea.vmem %s1, %s266
        %s268 = smul.u32 64, %s20
        %s269 = smul.u32 2, %s19
      $region36: #{resnet_forward.21} parent=27 // pred_fallthru
        _
    $region28: #{resnet_forward.21} parent=5 // pred_fallthru
      _
    %p270 = scmp.le.s32.totalorder 1, %s11
    %p271 = scmp.lt.s32.totalorder %s11, 6
    %p272 = pnand %p270, %p271
    %p273 = pneg %p272
    // Predicated region
    $region37: #{resnet_forward.21} parent=5 // pred_check
      _
    $region38: #{resnet_forward.21} parent=5 // pred_check_branch
      %275 = sbr.rel (%p272) target = $region40
    $region39: #{resnet_forward.21} parent=5 // pred_region
      %s276 = ssub.s32 %s11, 1
      %s277 = smul.u32 4, %s23
      %p278 = scmp.lt.s32.totalorder %s21, 0
      %s279 = scalar_select %p278, %s21, 0
      %p280 = scmp.lt.s32.totalorder %s277, 19
      %s281 = scalar_select %p280, %s277, 19
      %s282 = smul.addr %s279, 20
      %s283 = sadd.s32 %s281, %s282
      %s284 = smul.addr %s283, 4
      %s285 = scalar_lea.vmem %s0, %s284
      %p286 = pneg %p58
      %p287 = pneg %p55
      %s288 = smul.u32 64, %s23
      %s289 = smul.u32 2, %s22
      %p290 = scmp.lt.s32.totalorder %s288, 319
      %s291 = scalar_select %p290, %s288, 319
      %p292 = scmp.lt.s32.totalorder %s289, 1
      %s293 = scalar_select %p292, %s289, 1
      %s294 = smul.addr %s291, 2
      %s295 = sadd.s32 %s293, %s294
      %s296 = smul.addr %s295, 4
      %s297 = scalar_lea.vmem %s1, %s296
      %p298 = pneg %p86
      %p299 = pneg %p83
      %s300 = smul.u32 2, %s22
      %p301 = scmp.lt.s32.totalorder %s300, 1
      %s302 = scalar_select %p301, %s300, 1
      %s303 = scalar_lea.vmem %s2, %s302
      %p304 = pneg %p112
      %p305 = pneg %p109
      %s306 = smul.u32 2, %s22
      %p307 = scmp.lt.s32.totalorder %s306, 1
      %s308 = scalar_select %p307, %s306, 1
      %s309 = scalar_lea.vmem %s3, %s308
      %p310 = pneg %p138
      %p311 = pneg %p135
      %s312 = smul.u32 2, %s22
      %p313 = scmp.lt.s32.totalorder %s21, 0
      %s314 = scalar_select %p313, %s21, 0
      %p315 = scmp.lt.s32.totalorder %s312, 1
      %s316 = scalar_select %p315, %s312, 1
      %s317 = smul.addr %s314, 2
      %s318 = sadd.s32 %s316, %s317
      %s319 = smul.addr %s318, 8
      %s320 = scalar_lea.vmem %s4, %s319
      %p321 = pneg %p166
      %p322 = pneg %p163
      %p323 = pneg %p194
      %p324 = pneg %p191
      %s325 = smul.u32 2, %s22
      %p326 = scmp.lt.s32.totalorder %s21, 0
      %s327 = scalar_select %p326, %s21, 0
      %p328 = scmp.lt.s32.totalorder %s325, 1
      %s329 = scalar_select %p328, %s325, 1
      %s330 = smul.addr %s327, 2
      %s331 = sadd.s32 %s329, %s330
      %s332 = smul.addr %s331, 8
      %s333 = scalar_lea.vmem %s5, %s332
      %s334 = smul.u32 4, %s23
      %p335 = scmp.lt.s32.totalorder %s21, 0
      %s336 = scalar_select %p335, %s21, 0
      %p337 = scmp.lt.s32.totalorder %s334, 19
      %s338 = scalar_select %p337, %s334, 19
      %s339 = smul.addr %s336, 20
      %s340 = sadd.s32 %s338, %s339
      %s341 = smul.addr %s340, 4
      %s342 = scalar_lea.vmem %s0, %s341
      %s343 = smul.u32 4, %s23
      %s344 = smul.u32 64, %s23
      %s345 = smul.u32 2, %s22
      %p346 = scmp.lt.s32.totalorder %s344, 319
      %s347 = scalar_select %p346, %s344, 319
      %p348 = scmp.lt.s32.totalorder %s345, 1
      %s349 = scalar_select %p348, %s345, 1
      %s350 = smul.addr %s347, 2
      %s351 = sadd.s32 %s349, %s350
      %s352 = smul.addr %s351, 4
      %s353 = scalar_lea.vmem %s1, %s352
      %s354 = smul.u32 64, %s23
      %s355 = smul.u32 2, %s22
      %s356 = smul.u32 2, %s22
      %p357 = scmp.lt.s32.totalorder %s356, 1
      %s358 = scalar_select %p357, %s356, 1
      %s359 = scalar_lea.vmem %s2, %s358
      %s360 = smul.u32 2, %s22
      %s361 = smul.u32 2, %s22
      %p362 = scmp.lt.s32.totalorder %s361, 1
      %s363 = scalar_select %p362, %s361, 1
      %s364 = scalar_lea.vmem %s3, %s363
      %s365 = smul.u32 2, %s22
      %s366 = smul.u32 2, %s22
      %p367 = scmp.lt.s32.totalorder %s21, 0
      %s368 = scalar_select %p367, %s21, 0
      %p369 = scmp.lt.s32.totalorder %s366, 1
      %s370 = scalar_select %p369, %s366, 1
      %s371 = smul.addr %s368, 2
      %s372 = sadd.s32 %s370, %s371
      %s373 = smul.addr %s372, 8
      %s374 = scalar_lea.vmem %s4, %s373
      %s375 = smul.u32 2, %s22
      %s376 = smul.u32 2, %s22
      %p377 = scmp.lt.s32.totalorder %s21, 0
      %s378 = scalar_select %p377, %s21, 0
      %p379 = scmp.lt.s32.totalorder %s376, 1
      %s380 = scalar_select %p379, %s376, 1
      %s381 = smul.addr %s378, 2
      %s382 = sadd.s32 %s380, %s381
      %s383 = smul.addr %s382, 8
      %s384 = scalar_lea.vmem %s5, %s383
      %s385 = smul.u32 2, %s22
      %p386 = scmp.eq.s32.totalorder %s23, 0
      // Predicated region
      $region41: #{resnet_forward.21} parent=39 // pred_check
        %p387 = pneg %p386
      $region42: #{resnet_forward.21} parent=39 // pred_check_branch
        %389 = sbr.rel (%p387) target = $region44
      $region43: #{resnet_forward.21} parent=39 // pred_region
        %390 = vst [vmem:[#allocation2] sm:$0xff] 0.0
        %391 = vst [vmem:[#allocation2 + $0x8] sm:$0xff] 0.0
      $region44: #{resnet_forward.21} parent=39 // pred_fallthru
        _
      %v392 = vld [vmem:[#allocation2] sm:$0xff]
      %v393 = vld [vmem:[#allocation2 + $0x8] sm:$0xff]
      %v394 = vld [vmem:[%s342] sm:$0xff]
      %v395 = vld [vmem:[%s342 + $0x8] sm:$0xff]
      %v396 = vld [vmem:[%s353] sm:$0xff]
      %v397 = vld [vmem:[%s353 + $0x8] sm:$0xff]
      %v398 = vld [vmem:[%s353 + $0x10] sm:$0xff]
      %v399 = vld [vmem:[%s353 + $0x18] sm:$0xff]
      %v400 = vld [vmem:[%s353 + $0x20] sm:$0xff]
      %v401 = vld [vmem:[%s353 + $0x28] sm:$0xff]
      %v402 = vld [vmem:[%s353 + $0x30] sm:$0xff]
      %v403 = vld [vmem:[%s353 + $0x38] sm:$0xff]
      %v404 = vld [vmem:[%s353 + $0x40] sm:$0xff]
      %v405 = vld [vmem:[%s353 + $0x48] sm:$0xff]
      %v406 = vld [vmem:[%s353 + $0x50] sm:$0xff]
      %v407 = vld [vmem:[%s353 + $0x58] sm:$0xff]
      %v408 = vld [vmem:[%s353 + $0x60] sm:$0xff]
      %v409 = vld [vmem:[%s353 + $0x68] sm:$0xff]
      %v410 = vld [vmem:[%s353 + $0x70] sm:$0xff]
      %v411 = vld [vmem:[%s353 + $0x78] sm:$0xff]
      %v412 = vld [vmem:[%s353 + $0x80] sm:$0xff]
      %v413 = vld [vmem:[%s353 + $0x88] sm:$0xff]
      %v414 = vld [vmem:[%s353 + $0x90] sm:$0xff]
      %v415 = vld [vmem:[%s353 + $0x98] sm:$0xff]
      %v416 = vld [vmem:[%s353 + $0xa0] sm:$0xff]
      %v417 = vld [vmem:[%s353 + $0xa8] sm:$0xff]
      %v418 = vld [vmem:[%s353 + $0xb0] sm:$0xff]
      %v419 = vld [vmem:[%s353 + $0xb8] sm:$0xff]
      %v420 = vld [vmem:[%s353 + $0xc0] sm:$0xff]
      %v421 = vld [vmem:[%s353 + $0xc8] sm:$0xff]
      %v422 = vld [vmem:[%s353 + $0xd0] sm:$0xff]
      %v423 = vld [vmem:[%s353 + $0xd8] sm:$0xff]
      %v424 = vld [vmem:[%s353 + $0xe0] sm:$0xff]
      %v425 = vld [vmem:[%s353 + $0xe8] sm:$0xff]
      %v426 = vld [vmem:[%s353 + $0xf0] sm:$0xff]
      %v427 = vld [vmem:[%s353 + $0xf8] sm:$0xff]
      %v428 = vld [vmem:[%s353 + $0x100] sm:$0xff]
      %v429 = vld [vmem:[%s353 + $0x108] sm:$0xff]
      %v430 = vld [vmem:[%s353 + $0x110] sm:$0xff]
      %v431 = vld [vmem:[%s353 + $0x118] sm:$0xff]
      %v432 = vld [vmem:[%s353 + $0x120] sm:$0xff]
      %v433 = vld [vmem:[%s353 + $0x128] sm:$0xff]
      %v434 = vld [vmem:[%s353 + $0x130] sm:$0xff]
      %v435 = vld [vmem:[%s353 + $0x138] sm:$0xff]
      %v436 = vld [vmem:[%s353 + $0x140] sm:$0xff]
      %v437 = vld [vmem:[%s353 + $0x148] sm:$0xff]
      %v438 = vld [vmem:[%s353 + $0x150] sm:$0xff]
      %v439 = vld [vmem:[%s353 + $0x158] sm:$0xff]
      %v440 = vld [vmem:[%s353 + $0x160] sm:$0xff]
      %v441 = vld [vmem:[%s353 + $0x168] sm:$0xff]
      %v442 = vld [vmem:[%s353 + $0x170] sm:$0xff]
      %v443 = vld [vmem:[%s353 + $0x178] sm:$0xff]
      %v444 = vld [vmem:[%s353 + $0x180] sm:$0xff]
      %v445 = vld [vmem:[%s353 + $0x188] sm:$0xff]
      %v446 = vld [vmem:[%s353 + $0x190] sm:$0xff]
      %v447 = vld [vmem:[%s353 + $0x198] sm:$0xff]
      %v448 = vld [vmem:[%s353 + $0x1a0] sm:$0xff]
      %v449 = vld [vmem:[%s353 + $0x1a8] sm:$0xff]
      %v450 = vld [vmem:[%s353 + $0x1b0] sm:$0xff]
      %v451 = vld [vmem:[%s353 + $0x1b8] sm:$0xff]
      %v452 = vld [vmem:[%s353 + $0x1c0] sm:$0xff]
      %v453 = vld [vmem:[%s353 + $0x1c8] sm:$0xff]
      %v454 = vld [vmem:[%s353 + $0x1d0] sm:$0xff]
      %v455 = vld [vmem:[%s353 + $0x1d8] sm:$0xff]
      %v456 = vld [vmem:[%s353 + $0x1e0] sm:$0xff]
      %v457 = vld [vmem:[%s353 + $0x1e8] sm:$0xff]
      %v458 = vld [vmem:[%s353 + $0x1f0] sm:$0xff]
      %v459 = vld [vmem:[%s353 + $0x1f8] sm:$0xff]
      %v462 = vunpack.c.l.b16 %v394
      %v463 = vunpack.c.h.b16 %v394
      %v464 = vunpack.c.l.b16 %v395
      %v465 = vunpack.c.h.b16 %v395
      %v466 = vpack.c.b16 %v462, %v462
      %v467 = vpack.c.b16 %v463, %v463
      %v468 = vpack.c.b16 %v464, %v464
      %v469 = vpack.c.b16 %v465, %v465
      %v538 = vunpack.c.l.b16 %v396
      %v539 = vunpack.c.h.b16 %v396
      %v540 = vunpack.c.l.b16 %v397
      %v541 = vunpack.c.h.b16 %v397
      %v542 = vunpack.c.l.b16 %v398
      %v543 = vunpack.c.h.b16 %v398
      %v544 = vunpack.c.l.b16 %v399
      %v545 = vunpack.c.h.b16 %v399
      %v546 = vunpack.c.l.b16 %v400
      %v547 = vunpack.c.h.b16 %v400
      %v548 = vunpack.c.l.b16 %v401
      %v549 = vunpack.c.h.b16 %v401
      %v550 = vunpack.c.l.b16 %v402
      %v551 = vunpack.c.h.b16 %v402
      %v552 = vunpack.c.l.b16 %v403
      %v553 = vunpack.c.h.b16 %v403
      %v554 = vunpack.c.l.b16 %v404
      %v555 = vunpack.c.h.b16 %v404
      %v556 = vunpack.c.l.b16 %v405
      %v557 = vunpack.c.h.b16 %v405
      %v558 = vunpack.c.l.b16 %v406
      %v559 = vunpack.c.h.b16 %v406
      %v560 = vunpack.c.l.b16 %v407
      %v561 = vunpack.c.h.b16 %v407
      %v562 = vunpack.c.l.b16 %v408
      %v563 = vunpack.c.h.b16 %v408
      %v564 = vunpack.c.l.b16 %v409
      %v565 = vunpack.c.h.b16 %v409
      %v566 = vunpack.c.l.b16 %v410
      %v567 = vunpack.c.h.b16 %v410
      %v568 = vunpack.c.l.b16 %v411
      %v569 = vunpack.c.h.b16 %v411
      %v570 = vunpack.c.l.b16 %v412
      %v571 = vunpack.c.h.b16 %v412
      %v572 = vunpack.c.l.b16 %v413
      %v573 = vunpack.c.h.b16 %v413
      %v574 = vunpack.c.l.b16 %v414
      %v575 = vunpack.c.h.b16 %v414
      %v576 = vunpack.c.l.b16 %v415
      %v577 = vunpack.c.h.b16 %v415
      %v578 = vunpack.c.l.b16 %v416
      %v579 = vunpack.c.h.b16 %v416
      %v580 = vunpack.c.l.b16 %v417
      %v581 = vunpack.c.h.b16 %v417
      %v582 = vunpack.c.l.b16 %v418
      %v583 = vunpack.c.h.b16 %v418
      %v584 = vunpack.c.l.b16 %v419
      %v585 = vunpack.c.h.b16 %v419
      %v586 = vunpack.c.l.b16 %v420
      %v587 = vunpack.c.h.b16 %v420
      %v588 = vunpack.c.l.b16 %v421
      %v589 = vunpack.c.h.b16 %v421
      %v590 = vunpack.c.l.b16 %v422
      %v591 = vunpack.c.h.b16 %v422
      %v592 = vunpack.c.l.b16 %v423
      %v593 = vunpack.c.h.b16 %v423
      %v594 = vunpack.c.l.b16 %v424
      %v595 = vunpack.c.h.b16 %v424
      %v596 = vunpack.c.l.b16 %v425
      %v597 = vunpack.c.h.b16 %v425
      %v598 = vunpack.c.l.b16 %v426
      %v599 = vunpack.c.h.b16 %v426
      %v600 = vunpack.c.l.b16 %v427
      %v601 = vunpack.c.h.b16 %v427
      %v602 = vunpack.c.l.b16 %v428
      %v603 = vunpack.c.h.b16 %v428
      %v604 = vunpack.c.l.b16 %v429
      %v605 = vunpack.c.h.b16 %v429
      %v606 = vunpack.c.l.b16 %v430
      %v607 = vunpack.c.h.b16 %v430
      %v608 = vunpack.c.l.b16 %v431
      %v609 = vunpack.c.h.b16 %v431
      %v610 = vunpack.c.l.b16 %v432
      %v611 = vunpack.c.h.b16 %v432
      %v612 = vunpack.c.l.b16 %v433
      %v613 = vunpack.c.h.b16 %v433
      %v614 = vunpack.c.l.b16 %v434
      %v615 = vunpack.c.h.b16 %v434
      %v616 = vunpack.c.l.b16 %v435
      %v617 = vunpack.c.h.b16 %v435
      %v618 = vunpack.c.l.b16 %v436
      %v619 = vunpack.c.h.b16 %v436
      %v620 = vunpack.c.l.b16 %v437
      %v621 = vunpack.c.h.b16 %v437
      %v622 = vunpack.c.l.b16 %v438
      %v623 = vunpack.c.h.b16 %v438
      %v624 = vunpack.c.l.b16 %v439
      %v625 = vunpack.c.h.b16 %v439
      %v626 = vunpack.c.l.b16 %v440
      %v627 = vunpack.c.h.b16 %v440
      %v628 = vunpack.c.l.b16 %v441
      %v629 = vunpack.c.h.b16 %v441
      %v630 = vunpack.c.l.b16 %v442
      %v631 = vunpack.c.h.b16 %v442
      %v632 = vunpack.c.l.b16 %v443
      %v633 = vunpack.c.h.b16 %v443
      %v634 = vunpack.c.l.b16 %v444
      %v635 = vunpack.c.h.b16 %v444
      %v636 = vunpack.c.l.b16 %v445
      %v637 = vunpack.c.h.b16 %v445
      %v638 = vunpack.c.l.b16 %v446
      %v639 = vunpack.c.h.b16 %v446
      %v640 = vunpack.c.l.b16 %v447
      %v641 = vunpack.c.h.b16 %v447
      %v642 = vunpack.c.l.b16 %v448
      %v643 = vunpack.c.h.b16 %v448
      %v644 = vunpack.c.l.b16 %v449
      %v645 = vunpack.c.h.b16 %v449
      %v646 = vunpack.c.l.b16 %v450
      %v647 = vunpack.c.h.b16 %v450
      %v648 = vunpack.c.l.b16 %v451
      %v649 = vunpack.c.h.b16 %v451
      %v650 = vunpack.c.l.b16 %v452
      %v651 = vunpack.c.h.b16 %v452
      %v652 = vunpack.c.l.b16 %v453
      %v653 = vunpack.c.h.b16 %v453
      %v654 = vunpack.c.l.b16 %v454
      %v655 = vunpack.c.h.b16 %v454
      %v656 = vunpack.c.l.b16 %v455
      %v657 = vunpack.c.h.b16 %v455
      %v658 = vunpack.c.l.b16 %v456
      %v659 = vunpack.c.h.b16 %v456
      %v660 = vunpack.c.l.b16 %v457
      %v661 = vunpack.c.h.b16 %v457
      %v662 = vunpack.c.l.b16 %v458
      %v663 = vunpack.c.h.b16 %v458
      %v664 = vunpack.c.l.b16 %v459
      %v665 = vunpack.c.h.b16 %v459
      %v666 = vpack.c.b16 %v540, %v538
      %v667 = vpack.c.b16 %v541, %v539
      %v668 = vpack.c.b16 %v544, %v542
      %v669 = vpack.c.b16 %v545, %v543
      %v670 = vpack.c.b16 %v548, %v546
      %v671 = vpack.c.b16 %v549, %v547
      %v672 = vpack.c.b16 %v552, %v550
      %v673 = vpack.c.b16 %v553, %v551
      %v674 = vpack.c.b16 %v556, %v554
      %v675 = vpack.c.b16 %v557, %v555
      %v676 = vpack.c.b16 %v560, %v558
      %v677 = vpack.c.b16 %v561, %v559
      %v678 = vpack.c.b16 %v564, %v562
      %v679 = vpack.c.b16 %v565, %v563
      %v680 = vpack.c.b16 %v568, %v566
      %v681 = vpack.c.b16 %v569, %v567
      %v682 = vpack.c.b16 %v572, %v570
      %v683 = vpack.c.b16 %v573, %v571
      %v684 = vpack.c.b16 %v576, %v574
      %v685 = vpack.c.b16 %v577, %v575
      %v686 = vpack.c.b16 %v580, %v578
      %v687 = vpack.c.b16 %v581, %v579
      %v688 = vpack.c.b16 %v584, %v582
      %v689 = vpack.c.b16 %v585, %v583
      %v690 = vpack.c.b16 %v588, %v586
      %v691 = vpack.c.b16 %v589, %v587
      %v692 = vpack.c.b16 %v592, %v590
      %v693 = vpack.c.b16 %v593, %v591
      %v694 = vpack.c.b16 %v596, %v594
      %v695 = vpack.c.b16 %v597, %v595
      %v696 = vpack.c.b16 %v600, %v598
      %v697 = vpack.c.b16 %v601, %v599
      %v698 = vpack.c.b16 %v604, %v602
      %v699 = vpack.c.b16 %v605, %v603
      %v700 = vpack.c.b16 %v608, %v606
      %v701 = vpack.c.b16 %v609, %v607
      %v702 = vpack.c.b16 %v612, %v610
      %v703 = vpack.c.b16 %v613, %v611
      %v704 = vpack.c.b16 %v616, %v614
      %v705 = vpack.c.b16 %v617, %v615
      %v706 = vpack.c.b16 %v620, %v618
      %v707 = vpack.c.b16 %v621, %v619
      %v708 = vpack.c.b16 %v624, %v622
      %v709 = vpack.c.b16 %v625, %v623
      %v710 = vpack.c.b16 %v628, %v626
      %v711 = vpack.c.b16 %v629, %v627
      %v712 = vpack.c.b16 %v632, %v630
      %v713 = vpack.c.b16 %v633, %v631
      %v714 = vpack.c.b16 %v636, %v634
      %v715 = vpack.c.b16 %v637, %v635
      %v716 = vpack.c.b16 %v640, %v638
      %v717 = vpack.c.b16 %v641, %v639
      %v718 = vpack.c.b16 %v644, %v642
      %v719 = vpack.c.b16 %v645, %v643
      %v720 = vpack.c.b16 %v648, %v646
      %v721 = vpack.c.b16 %v649, %v647
      %v722 = vpack.c.b16 %v652, %v650
      %v723 = vpack.c.b16 %v653, %v651
      %v724 = vpack.c.b16 %v656, %v654
      %v725 = vpack.c.b16 %v657, %v655
      %v726 = vpack.c.b16 %v660, %v658
      %v727 = vpack.c.b16 %v661, %v659
      %v728 = vpack.c.b16 %v664, %v662
      %v729 = vpack.c.b16 %v665, %v663
      %794 = vmatpush.bf16.msra.mxu0 %v680
      %795 = vmatpush.bf16.msra.mxu0 %v678
      %796 = vmatpush.bf16.msra.mxu0 %v676
      %797 = vmatpush.bf16.msra.mxu0 %v674
      %798 = vmatpush.bf16.msra.mxu0 %v672
      %799 = vmatpush.bf16.msra.mxu0 %v670
      %800 = vmatpush.bf16.msra.mxu0 %v668
      %801 = vmatpush.bf16.msra.mxu0 %v666
      %802 = vmatmul.bf16.gmra.mxu0 %v466
      %v803 = vpop.f32.mrf.mxu0
      %v804 = vadd.f32 0.0, %v803
      %v805 = vpop.f32.mrf.mxu0
      %806 = vdwg.mxu0
      %807 = vmatpush.bf16.msra.mxu0 %v696
      %808 = vmatpush.bf16.msra.mxu0 %v694
      %809 = vmatpush.bf16.msra.mxu0 %v692
      %810 = vmatpush.bf16.msra.mxu0 %v690
      %811 = vmatpush.bf16.msra.mxu0 %v688
      %812 = vmatpush.bf16.msra.mxu0 %v686
      %813 = vmatpush.bf16.msra.mxu0 %v684
      %814 = vmatpush.bf16.msra.mxu0 %v682
      %815 = vmatmul.bf16.gmra.mxu0 %v467
      %v816 = vpop.f32.mrf.mxu0
      %v817 = vadd.f32 %v804, %v816
      %v818 = vpop.f32.mrf.mxu0
      %819 = vdwg.mxu0
      %820 = vmatpush.bf16.msra.mxu0 %v712
      %821 = vmatpush.bf16.msra.mxu0 %v710
      %822 = vmatpush.bf16.msra.mxu0 %v708
      %823 = vmatpush.bf16.msra.mxu0 %v706
      %824 = vmatpush.bf16.msra.mxu0 %v704
      %825 = vmatpush.bf16.msra.mxu0 %v702
      %826 = vmatpush.bf16.msra.mxu0 %v700
      %827 = vmatpush.bf16.msra.mxu0 %v698
      %828 = vmatmul.bf16.gmra.mxu0 %v468
      %v829 = vpop.f32.mrf.mxu0
      %v830 = vadd.f32 %v817, %v829
      %v831 = vpop.f32.mrf.mxu0
      %832 = vdwg.mxu0
      %833 = vmatpush.bf16.msra.mxu0 %v728
      %834 = vmatpush.bf16.msra.mxu0 %v726
      %835 = vmatpush.bf16.msra.mxu0 %v724
      %836 = vmatpush.bf16.msra.mxu0 %v722
      %837 = vmatpush.bf16.msra.mxu0 %v720
      %838 = vmatpush.bf16.msra.mxu0 %v718
      %839 = vmatpush.bf16.msra.mxu0 %v716
      %840 = vmatpush.bf16.msra.mxu0 %v714
      %841 = vmatmul.bf16.gmra.mxu0 %v469
      %v842 = vpop.f32.mrf.mxu0
      %v843 = vadd.f32 %v830, %v842
      %v844 = vpop.f32.mrf.mxu0
      %845 = vdwg.mxu0
      %846 = vmatpush.bf16.msra.mxu0 %v681
      %847 = vmatpush.bf16.msra.mxu0 %v679
      %848 = vmatpush.bf16.msra.mxu0 %v677
      %849 = vmatpush.bf16.msra.mxu0 %v675
      %850 = vmatpush.bf16.msra.mxu0 %v673
      %851 = vmatpush.bf16.msra.mxu0 %v671
      %852 = vmatpush.bf16.msra.mxu0 %v669
      %853 = vmatpush.bf16.msra.mxu0 %v667
      %854 = vmatmul.bf16.gmra.mxu0 %v466
      %v855 = vpop.f32.mrf.mxu0
      %v856 = vadd.f32 0.0, %v855
      %v857 = vpop.f32.mrf.mxu0
      %858 = vdwg.mxu0
      %859 = vmatpush.bf16.msra.mxu0 %v697
      %860 = vmatpush.bf16.msra.mxu0 %v695
      %861 = vmatpush.bf16.msra.mxu0 %v693
      %862 = vmatpush.bf16.msra.mxu0 %v691
      %863 = vmatpush.bf16.msra.mxu0 %v689
      %864 = vmatpush.bf16.msra.mxu0 %v687
      %865 = vmatpush.bf16.msra.mxu0 %v685
      %866 = vmatpush.bf16.msra.mxu0 %v683
      %867 = vmatmul.bf16.gmra.mxu0 %v467
      %v868 = vpop.f32.mrf.mxu0
      %v869 = vadd.f32 %v856, %v868
      %v870 = vpop.f32.mrf.mxu0
      %871 = vdwg.mxu0
      %872 = vmatpush.bf16.msra.mxu0 %v713
      %873 = vmatpush.bf16.msra.mxu0 %v711
      %874 = vmatpush.bf16.msra.mxu0 %v709
      %875 = vmatpush.bf16.msra.mxu0 %v707
      %876 = vmatpush.bf16.msra.mxu0 %v705
      %877 = vmatpush.bf16.msra.mxu0 %v703
      %878 = vmatpush.bf16.msra.mxu0 %v701
      %879 = vmatpush.bf16.msra.mxu0 %v699
      %880 = vmatmul.bf16.gmra.mxu0 %v468
      %v881 = vpop.f32.mrf.mxu0
      %v882 = vadd.f32 %v869, %v881
      %v883 = vpop.f32.mrf.mxu0
      %884 = vdwg.mxu0
      %885 = vmatpush.bf16.msra.mxu0 %v729
      %886 = vmatpush.bf16.msra.mxu0 %v727
      %887 = vmatpush.bf16.msra.mxu0 %v725
      %888 = vmatpush.bf16.msra.mxu0 %v723
      %889 = vmatpush.bf16.msra.mxu0 %v721
      %890 = vmatpush.bf16.msra.mxu0 %v719
      %891 = vmatpush.bf16.msra.mxu0 %v717
      %892 = vmatpush.bf16.msra.mxu0 %v715
      %893 = vmatmul.bf16.gmra.mxu0 %v469
      %v894 = vpop.f32.mrf.mxu0
      %v895 = vadd.f32 %v882, %v894
      %v896 = vpop.f32.mrf.mxu0
      %897 = vdwg.mxu0
      %v898 = vadd.f32 %v392, %v843
      %v899 = vadd.f32 %v393, %v895
      %900 = vst [vmem:[#allocation2] sm:$0xff] %v898
      %901 = vst [vmem:[#allocation2 + $0x8] sm:$0xff] %v899
      %p902 = scmp.eq.s32.totalorder %s23, 4
      // Predicated region
      $region45: #{resnet_forward.21} parent=39 // pred_check
        %p903 = pneg %p902
      $region46: #{resnet_forward.21} parent=39 // pred_check_branch
        %905 = sbr.rel (%p903) target = $region48
      $region47: #{resnet_forward.21} parent=39 // pred_region
        %v906 = vld [vmem:[#allocation2] sm:$0xff]
        %v907 = vld [vmem:[#allocation2 + $0x8] sm:$0xff]
        %v908 = vld [vmem:[%s359] sm:$0x3]
        %v910 = vperm.slane %v908, 0
        %v911 = vperm.slane %v908, 1
        %v914 = vmul.f32 %v906, %v910
        %v915 = vmul.f32 %v907, %v911
        %v916 = vld [vmem:[%s364] sm:$0x3]
        %v918 = vperm.slane %v916, 0
        %v919 = vperm.slane %v916, 1
        %v922 = vadd.f32 %v914, %v918
        %v923 = vadd.f32 %v915, %v919
        %v924 = vld [vmem:[%s374] sm:$0xff]
        %v925 = vld [vmem:[%s374 + $0x8] sm:$0xff]
        %v926 = vadd.f32 %v922, %v924
        %v927 = vadd.f32 %v923, %v925
        %v928 = vmax.f32 %v926, 0.0
        %v929 = vmax.f32 %v927, 0.0
        %930 = vst [vmem:[%s384] sm:$0xff] %v928
        %931 = vst [vmem:[%s384 + $0x8] sm:$0xff] %v929
      $region48: #{resnet_forward.21} parent=39 // pred_fallthru
        _
      %s932 = smul.u32 2, %s22
      %p933 = scmp.lt.s32.totalorder %s21, 0
      %s934 = scalar_select %p933, %s21, 0
      %p935 = scmp.lt.s32.totalorder %s932, 1
      %s936 = scalar_select %p935, %s932, 1
      %s937 = smul.addr %s934, 2
      %s938 = sadd.s32 %s936, %s937
      %s939 = smul.addr %s938, 8
      %s940 = scalar_lea.vmem %s5, %s939
      // Predicated region
      $region49: #{resnet_forward.21} parent=39 // pred_check
        %p941 = pneg %p191
      $region50: #{resnet_forward.21} parent=39 // pred_check_branch
        %943 = sbr.rel (%p941) target = $region52
      $region51: #{resnet_forward.21} parent=39 // pred_region
        %s944 = smul.u32 2, %s22
      $region52: #{resnet_forward.21} parent=39 // pred_fallthru
        _
      // Predicated region
      $region53: #{resnet_forward.21} parent=39 // pred_check
        %p945 = pneg %p191
      $region54: #{resnet_forward.21} parent=39 // pred_check_branch
        %947 = sbr.rel (%p945) target = $region56
      $region55: #{resnet_forward.21} parent=39 // pred_region
        %s948 = smul.u32 2, %s22
        %p949 = scmp.lt.s32.totalorder %s21, 0
        %s950 = scalar_select %p949, %s21, 0
        %p951 = scmp.lt.s32.totalorder %s948, 1
        %s952 = scalar_select %p951, %s948, 1
        %s953 = smul.addr %s950, 2
        %s954 = sadd.s32 %s952, %s953
        %s955 = smul.addr %s954, 8
        %s956 = scalar_lea.vmem %s5, %s955
      $region56: #{resnet_forward.21} parent=39 // pred_fallthru
        _
    $region40: #{resnet_forward.21} parent=5 // pred_fallthru
      _
    %p957 = scmp.le.s32.totalorder 2, %s11
    // Predicated region
    $region57: #{resnet_forward.21} parent=5 // pred_check
      %p958 = pneg %p957
    $region58: #{resnet_forward.21} parent=5 // pred_check_branch
      %960 = sbr.rel (%p958) target = $region60
    $region59: #{resnet_forward.21} parent=5 // pred_region
      %s961 = ssub.s32 %s11, 2
    $region60: #{resnet_forward.21} parent=5 // pred_fallthru
      _
  $region6: #{resnet_forward.21} parent=0 // loop_footer
    %s15 = sadd.s32 1, %s11
  $region7: #{resnet_forward.21} parent=0 // loop_footer_branch
    %10 = sbr.rel target = $region3
  $region8: #{resnet_forward.21} parent=0 // loop_exit
    _

// kernel: resnet_forward.22
$region0: #{resnet_forward.22}
  #allocation0 [shape = 'u32[]', space=smem, size = 0x4, offset = 0x4, fixed_abs, tag = 'smem constant byte address 0x4 - core index']
  #allocation1 [shape = 'u32[72,128]{1,0:T(1,128)}', space=vmem, size = 0x9000, scoped, tag = 'internal scratch']
  #allocation2 [shape = 'f32[8,256]{1,0:T(8,128)}', space=vmem, size = 0x2000, scoped, tag = 'scratch operand']
  %s0 = inlined_call_operand.vmem [shape: bf16[8,2560], index: 0, kind: input, shape index: {}]
  %s1 = inlined_call_operand.vmem [shape: bf16[2560,512], index: 1, kind: input, shape index: {}]
  %s2 = inlined_call_operand.vmem [shape: f32[1,512], index: 2, kind: input, shape index: {}]
  %s3 = inlined_call_operand.vmem [shape: f32[1,512], index: 3, kind: input, shape index: {}]
  %s4 = inlined_call_operand.vmem [shape: f32[8,512], index: 4, kind: output, shape index: {}]
  %s5 = sld [smem:[#allocation0]]
  $region95: #{resnet_forward.22} parent=0
    _
  %s7 = ssub.s32 1, %s5
  %s8 = scalar_select 0, %s7, %s5
  $region1: #{resnet_forward.22} parent=0
    #allocation3 [shape = 'u8[524288]{0}', space=vmem, size = 0x80000, scoped, tag = 'input window, operand 1']
    loop: start=0, step=1, limit=12
    $region2: #{resnet_forward.22} parent=1 // loop_pre_header
      _
    $region3: #{resnet_forward.22} parent=1 // loop_header
      %s10 = sphi 0, %s14
      %p11 = scmp.ge.s32.totalorder %s10, 12
      %s17 = sphi 0, %s36
      %s18 = sphi 0, %s32
      %s19 = sphi 0, %s28
      %s20 = sphi 0, %s17
      %s21 = sphi 0, %s18
      %s22 = sphi 0, %s19
      %s23 = sphi 0, %s20
      %s24 = sphi 0, %s21
      %s25 = sphi 0, %s22
      %s41 = sphi 0, %s43
      %s44 = sphi 0, %s41
      %s45 = sphi 0, %s44
      %s61 = sphi 0, %s45
      %s69 = sphi 0, %s71
      %s72 = sphi 0, %s69
      %s73 = sphi 0, %s72
      %s89 = sphi 0, %s73
      %s95 = sphi 0, %s97
      %s98 = sphi 0, %s95
      %s99 = sphi 0, %s98
      %s115 = sphi 0, %s99
      %s121 = sphi 0, %s123
      %s124 = sphi 0, %s121
      %s125 = sphi 0, %s124
      %s141 = sphi 0, %s125
      %s149 = sphi 0, %s151
      %s152 = sphi 0, %s149
      %s153 = sphi 0, %s152
      %s169 = sphi 0, %s153
    $region4: #{resnet_forward.22} parent=1 // loop_header_branch
      %13 = sbr.rel (%p11) target = $region8
    $region5: #{resnet_forward.22} parent=1 // loop_body
      %s15 = ssub.s32 %s10, 1
      %s16 = ssub.s32 %s10, 2
      %s26 = sadd.s32 1, %s19
      %p27 = scmp.ge.s32.totalorder %s26, 5
      %s28 = scalar_select %p27, 0, %s26
      %s29 = sadd.s32 1, %s18
      %s30 = scalar_select %p27, %s29, %s18
      %p31 = scmp.ge.s32.totalorder %s30, 2
      %s32 = scalar_select %p31, 0, %s30
      %s33 = sadd.s32 1, %s17
      %s34 = scalar_select %p31, %s33, %s17
      %p35 = scmp.ge.s32.totalorder %s34, 1
      %s36 = scalar_select %p35, 0, %s34
      %s37 = ssub.s32 %s17, %s36
      %s38 = ssub.s32 %s19, %s28
      %s39 = sor.u32 %s37, %s38
      %p40 = scmp.eq.s32.totalorder %s39, 0
      %s42 = sadd.s32 %s41, 1
      %s43 = scalar_select %p40, %s41, %s42
      %p46 = pneg %p40
      %p47 = scmp.eq.s32.totalorder %s10, 9
      %p48 = por %p46, %p47
      %p49 = scmp.ne.s32.totalorder %s41, %s44
      %p50 = scmp.eq.s32.totalorder %s10, 0
      %p51 = por %p49, %p50
      %p52 = scmp.ne.s32.totalorder %s41, %s44
      %p53 = scmp.eq.s32.totalorder %s15, 9
      %p54 = por %p52, %p53
      %p55 = scmp.ne.s32.totalorder %s44, %s45
      %p56 = scmp.eq.s32.totalorder %s15, 0
      %p57 = por %p55, %p56
      %p58 = scmp.ne.s32.totalorder %s44, %s45
      %p59 = scmp.eq.s32.totalorder %s16, 9
      %p60 = por %p58, %p59
      %p62 = scmp.ne.s32.totalorder %s45, %s61
      %p63 = scmp.eq.s32.totalorder %s16, 0
      %p64 = por %p62, %p63
      %s65 = ssub.s32 %s19, %s28
      %s66 = ssub.s32 %s18, %s32
      %s67 = sor.u32 %s65, %s66
      %p68 = scmp.eq.s32.totalorder %s67, 0
      %s70 = sadd.s32 %s69, 1
      %s71 = scalar_select %p68, %s69, %s70
      %p74 = pneg %p68
      %p75 = scmp.eq.s32.totalorder %s10, 9
      %p76 = por %p74, %p75
      %p77 = scmp.ne.s32.totalorder %s69, %s72
      %p78 = scmp.eq.s32.totalorder %s10, 0
      %p79 = por %p77, %p78
      %p80 = scmp.ne.s32.totalorder %s69, %s72
      %p81 = scmp.eq.s32.totalorder %s15, 9
      %p82 = por %p80, %p81
      %p83 = scmp.ne.s32.totalorder %s72, %s73
      %p84 = scmp.eq.s32.totalorder %s15, 0
      %p85 = por %p83, %p84
      %p86 = scmp.ne.s32.totalorder %s72, %s73
      %p87 = scmp.eq.s32.totalorder %s16, 9
      %p88 = por %p86, %p87
      %p90 = scmp.ne.s32.totalorder %s73, %s89
      %p91 = scmp.eq.s32.totalorder %s16, 0
      %p92 = por %p90, %p91
      %s93 = ssub.s32 %s18, %s32
      %p94 = scmp.eq.s32.totalorder %s93, 0
      %s96 = sadd.s32 %s95, 1
      %s97 = scalar_select %p94, %s95, %s96
      %p100 = pneg %p94
      %p101 = scmp.eq.s32.totalorder %s10, 9
      %p102 = por %p100, %p101
      %p103 = scmp.ne.s32.totalorder %s95, %s98
      %p104 = scmp.eq.s32.totalorder %s10, 0
      %p105 = por %p103, %p104
      %p106 = scmp.ne.s32.totalorder %s95, %s98
      %p107 = scmp.eq.s32.totalorder %s15, 9
      %p108 = por %p106, %p107
      %p109 = scmp.ne.s32.totalorder %s98, %s99
      %p110 = scmp.eq.s32.totalorder %s15, 0
      %p111 = por %p109, %p110
      %p112 = scmp.ne.s32.totalorder %s98, %s99
      %p113 = scmp.eq.s32.totalorder %s16, 9
      %p114 = por %p112, %p113
      %p116 = scmp.ne.s32.totalorder %s99, %s115
      %p117 = scmp.eq.s32.totalorder %s16, 0
      %p118 = por %p116, %p117
      %s119 = ssub.s32 %s18, %s32
      %p120 = scmp.eq.s32.totalorder %s119, 0
      %s122 = sadd.s32 %s121, 1
      %s123 = scalar_select %p120, %s121, %s122
      %p126 = pneg %p120
      %p127 = scmp.eq.s32.totalorder %s10, 9
      %p128 = por %p126, %p127
      %p129 = scmp.ne.s32.totalorder %s121, %s124
      %p130 = scmp.eq.s32.totalorder %s10, 0
      %p131 = por %p129, %p130
      %p132 = scmp.ne.s32.totalorder %s121, %s124
      %p133 = scmp.eq.s32.totalorder %s15, 9
      %p134 = por %p132, %p133
      %p135 = scmp.ne.s32.totalorder %s124, %s125
      %p136 = scmp.eq.s32.totalorder %s15, 0
      %p137 = por %p135, %p136
      %p138 = scmp.ne.s32.totalorder %s124, %s125
      %p139 = scmp.eq.s32.totalorder %s16, 9
      %p140 = por %p138, %p139
      %p142 = scmp.ne.s32.totalorder %s125, %s141
      %p143 = scmp.eq.s32.totalorder %s16, 0
      %p144 = por %p142, %p143
      %s145 = ssub.s32 %s17, %s36
      %s146 = ssub.s32 %s18, %s32
      %s147 = sor.u32 %s145, %s146
      %p148 = scmp.eq.s32.totalorder %s147, 0
      %s150 = sadd.s32 %s149, 1
      %s151 = scalar_select %p148, %s149, %s150
      %p154 = pneg %p148
      %p155 = scmp.eq.s32.totalorder %s10, 9
      %p156 = por %p154, %p155
      %p157 = scmp.ne.s32.totalorder %s149, %s152
      %p158 = scmp.eq.s32.totalorder %s10, 0
      %p159 = por %p157, %p158
      %p160 = scmp.ne.s32.totalorder %s149, %s152
      %p161 = scmp.eq.s32.totalorder %s15, 9
      %p162 = por %p160, %p161
      %p163 = scmp.ne.s32.totalorder %s152, %s153
      %p164 = scmp.eq.s32.totalorder %s15, 0
      %p165 = por %p163, %p164
      %p166 = scmp.ne.s32.totalorder %s152, %s153
      %p167 = scmp.eq.s32.totalorder %s16, 9
      %p168 = por %p166, %p167
      %p170 = scmp.ne.s32.totalorder %s153, %s169
      %p171 = scmp.eq.s32.totalorder %s16, 0
      %p172 = por %p170, %p171
      %p173 = scmp.le.s32.totalorder 1, %s10
      %p174 = scmp.lt.s32.totalorder %s10, 11
      %p175 = pnand %p173, %p174
      %p176 = pneg %p175
      // Predicated region
      $region9: #{resnet_forward.22} parent=5 // pred_check
        _
      $region10: #{resnet_forward.22} parent=5 // pred_check_branch
        %178 = sbr.rel (%p175) target = $region12
      $region11: #{resnet_forward.22} parent=5 // pred_region
        %s179 = ssub.s32 %s10, 1
      $region12: #{resnet_forward.22} parent=5 // pred_fallthru
        _
      %p180 = scmp.lt.s32.totalorder %s10, 10
      // Predicated region
      $region13: #{resnet_forward.22} parent=5 // pred_check
        %p181 = pneg %p180
      $region14: #{resnet_forward.22} parent=5 // pred_check_branch
        %183 = sbr.rel (%p181) target = $region16
      $region15: #{resnet_forward.22} parent=5 // pred_region
        // Predicated region
        $region17: #{resnet_forward.22} parent=15 // pred_check
          %p184 = pneg %p51
        $region18: #{resnet_forward.22} parent=15 // pred_check_branch
          %186 = sbr.rel (%p184) target = $region20
        $region19: #{resnet_forward.22} parent=15 // pred_region
          %s187 = smul.u32 4, %s19
          %p188 = scmp.lt.s32.totalorder %s17, 0
          %s189 = scalar_select %p188, %s17, 0
          %p190 = scmp.lt.s32.totalorder %s187, 19
          %s191 = scalar_select %p190, %s187, 19
          %s192 = smul.addr %s189, 20
          %s193 = sadd.s32 %s191, %s192
          %s194 = smul.addr %s193, 4
          %s195 = scalar_lea.vmem %s0, %s194
          %s196 = smul.u32 4, %s19
        $region20: #{resnet_forward.22} parent=15 // pred_fallthru
          _
        // Predicated region
        $region21: #{resnet_forward.22} parent=15 // pred_check
          %p197 = pneg %p79
        $region22: #{resnet_forward.22} parent=15 // pred_check_branch
          %199 = sbr.rel (%p197) target = $region24
        $region23: #{resnet_forward.22} parent=15 // pred_region
          %s200 = sand.u32 %s69, 1
          %s201 = sand.u32 %s69, 1
          %s202 = smul.addr %s201, 512
          %s203 = scalar_lea.vmem [#allocation3], %s202
          %s204 = smul.u32 64, %s19
          %s205 = smul.u32 2, %s18
          %s206 = smul.addr %s204, 4
          %s207 = sadd.s32 %s205, %s206
          %s208 = smul.addr %s207, 4
          %s209 = scalar_lea.vmem %s1, %s208
          // Predicated region
          $region25: #{resnet_forward.22} parent=23 // pred_check
            _
          $region26: #{resnet_forward.22} parent=23 // pred_check_branch
            %211 = sbr.rel (0) target = $region28
          $region27: #{resnet_forward.22} parent=23 // pred_region
            // Predicated region
            $region29: #{resnet_forward.22} parent=27 // pred_check
              _
            $region30: #{resnet_forward.22} parent=27 // pred_check_branch
              %213 = sbr.rel (0) target = $region32
            $region31: #{resnet_forward.22} parent=27 // pred_region
              // Predicated region
              $region44: #{resnet_forward.22} parent=31 // pred_check
                _
              $region45: #{resnet_forward.22} parent=31 // pred_check_branch
                %355 = sbr.rel (0) target = $region47
              $region46: #{resnet_forward.22} parent=31 // pred_region
                loop: start=0, step=1, limit=1
                $region48: #{resnet_forward.22} parent=46 // loop_pre_header
                  _
                $region49: #{resnet_forward.22} parent=46 // loop_header
                  %s357 = sphi 0, %s361
                  %p358 = scmp.ge.s32.totalorder %s357, 1
                  %s362 = sphi %s209, %s209
                  %s363 = sphi %s203, %s203
                $region50: #{resnet_forward.22} parent=46 // loop_header_branch
                  %360 = sbr.rel (%p358) target = $region54
                $region51: #{resnet_forward.22} parent=46 // loop_body
                  %v364 = vld [vmem:[%s362] sm:$0xff]
                  %365 = vst [vmem:[%s363] sm:$0xff] %v364
                  %v366 = vld [vmem:[%s362 + $0x10] sm:$0xff]
                  %367 = vst [vmem:[%s363 + $0x8] sm:$0xff] %v366
                  %v368 = vld [vmem:[%s362 + $0x20] sm:$0xff]
                  %369 = vst [vmem:[%s363 + $0x10] sm:$0xff] %v368
                  %v370 = vld [vmem:[%s362 + $0x30] sm:$0xff]
                  %371 = vst [vmem:[%s363 + $0x18] sm:$0xff] %v370
                  %v372 = vld [vmem:[%s362 + $0x40] sm:$0xff]
                  %373 = vst [vmem:[%s363 + $0x20] sm:$0xff] %v372
                  %v374 = vld [vmem:[%s362 + $0x50] sm:$0xff]
                  %375 = vst [vmem:[%s363 + $0x28] sm:$0xff] %v374
                  %v376 = vld [vmem:[%s362 + $0x60] sm:$0xff]
                  %377 = vst [vmem:[%s363 + $0x30] sm:$0xff] %v376
                  %v378 = vld [vmem:[%s362 + $0x70] sm:$0xff]
                  %379 = vst [vmem:[%s363 + $0x38] sm:$0xff] %v378
                  %v380 = vld [vmem:[%s362 + $0x80] sm:$0xff]
                  %381 = vst [vmem:[%s363 + $0x40] sm:$0xff] %v380
                  %v382 = vld [vmem:[%s362 + $0x90] sm:$0xff]
                  %383 = vst [vmem:[%s363 + $0x48] sm:$0xff] %v382
                  %v384 = vld [vmem:[%s362 + $0xa0] sm:$0xff]
                  %385 = vst [vmem:[%s363 + $0x50] sm:$0xff] %v384
                  %v386 = vld [vmem:[%s362 + $0xb0] sm:$0xff]
                  %387 = vst [vmem:[%s363 + $0x58] sm:$0xff] %v386
                  %v388 = vld [vmem:[%s362 + $0xc0] sm:$0xff]
                  %389 = vst [vmem:[%s363 + $0x60] sm:$0xff] %v388
                  %v390 = vld [vmem:[%s362 + $0xd0] sm:$0xff]
                  %391 = vst [vmem:[%s363 + $0x68] sm:$0xff] %v390
                  %v392 = vld [vmem:[%s362 + $0xe0] sm:$0xff]
                  %393 = vst [vmem:[%s363 + $0x70] sm:$0xff] %v392
                  %v394 = vld [vmem:[%s362 + $0xf0] sm:$0xff]
                  %395 = vst [vmem:[%s363 + $0x78] sm:$0xff] %v394
                  %v396 = vld [vmem:[%s362 + $0x100] sm:$0xff]
                  %397 = vst [vmem:[%s363 + $0x80] sm:$0xff] %v396
                  %v398 = vld [vmem:[%s362 + $0x110] sm:$0xff]
                  %399 = vst [vmem:[%s363 + $0x88] sm:$0xff] %v398
                  %v400 = vld [vmem:[%s362 + $0x120] sm:$0xff]
                  %401 = vst [vmem:[%s363 + $0x90] sm:$0xff] %v400
                  %v402 = vld [vmem:[%s362 + $0x130] sm:$0xff]
                  %403 = vst [vmem:[%s363 + $0x98] sm:$0xff] %v402
                  %v404 = vld [vmem:[%s362 + $0x140] sm:$0xff]
                  %405 = vst [vmem:[%s363 + $0xa0] sm:$0xff] %v404
                  %v406 = vld [vmem:[%s362 + $0x150] sm:$0xff]
                  %407 = vst [vmem:[%s363 + $0xa8] sm:$0xff] %v406
                  %v408 = vld [vmem:[%s362 + $0x160] sm:$0xff]
                  %409 = vst [vmem:[%s363 + $0xb0] sm:$0xff] %v408
                  %v410 = vld [vmem:[%s362 + $0x170] sm:$0xff]
                  %411 = vst [vmem:[%s363 + $0xb8] sm:$0xff] %v410
                  %v412 = vld [vmem:[%s362 + $0x180] sm:$0xff]
                  %413 = vst [vmem:[%s363 + $0xc0] sm:$0xff] %v412
                  %v414 = vld [vmem:[%s362 + $0x190] sm:$0xff]
                  %415 = vst [vmem:[%s363 + $0xc8] sm:$0xff] %v414
                  %v416 = vld [vmem:[%s362 + $0x1a0] sm:$0xff]
                  %417 = vst [vmem:[%s363 + $0xd0] sm:$0xff] %v416
                  %v418 = vld [vmem:[%s362 + $0x1b0] sm:$0xff]
                  %419 = vst [vmem:[%s363 + $0xd8] sm:$0xff] %v418
                  %v420 = vld [vmem:[%s362 + $0x1c0] sm:$0xff]
                  %421 = vst [vmem:[%s363 + $0xe0] sm:$0xff] %v420
                  %v422 = vld [vmem:[%s362 + $0x1d0] sm:$0xff]
                  %423 = vst [vmem:[%s363 + $0xe8] sm:$0xff] %v422
                  %v424 = vld [vmem:[%s362 + $0x1e0] sm:$0xff]
                  %425 = vst [vmem:[%s363 + $0xf0] sm:$0xff] %v424
                  %v426 = vld [vmem:[%s362 + $0x1f0] sm:$0xff]
                  %427 = vst [vmem:[%s363 + $0xf8] sm:$0xff] %v426
                  %v428 = vld [vmem:[%s362 + $0x200] sm:$0xff]
                  %429 = vst [vmem:[%s363 + $0x100] sm:$0xff] %v428
                  %v430 = vld [vmem:[%s362 + $0x210] sm:$0xff]
                  %431 = vst [vmem:[%s363 + $0x108] sm:$0xff] %v430
                  %v432 = vld [vmem:[%s362 + $0x220] sm:$0xff]
                  %433 = vst [vmem:[%s363 + $0x110] sm:$0xff] %v432
                  %v434 = vld [vmem:[%s362 + $0x230] sm:$0xff]
                  %435 = vst [vmem:[%s363 + $0x118] sm:$0xff] %v434
                  %v436 = vld [vmem:[%s362 + $0x240] sm:$0xff]
                  %437 = vst [vmem:[%s363 + $0x120] sm:$0xff] %v436
                  %v438 = vld [vmem:[%s362 + $0x250] sm:$0xff]
                  %439 = vst [vmem:[%s363 + $0x128] sm:$0xff] %v438
                  %v440 = vld [vmem:[%s362 + $0x260] sm:$0xff]
                  %441 = vst [vmem:[%s363 + $0x130] sm:$0xff] %v440
                  %v442 = vld [vmem:[%s362 + $0x270] sm:$0xff]
                  %443 = vst [vmem:[%s363 + $0x138] sm:$0xff] %v442
                  %v444 = vld [vmem:[%s362 + $0x280] sm:$0xff]
                  %445 = vst [vmem:[%s363 + $0x140] sm:$0xff] %v444
                  %v446 = vld [vmem:[%s362 + $0x290] sm:$0xff]
                  %447 = vst [vmem:[%s363 + $0x148] sm:$0xff] %v446
                  %v448 = vld [vmem:[%s362 + $0x2a0] sm:$0xff]
                  %449 = vst [vmem:[%s363 + $0x150] sm:$0xff] %v448
                  %v450 = vld [vmem:[%s362 + $0x2b0] sm:$0xff]
                  %451 = vst [vmem:[%s363 + $0x158] sm:$0xff] %v450
                  %v452 = vld [vmem:[%s362 + $0x2c0] sm:$0xff]
                  %453 = vst [vmem:[%s363 + $0x160] sm:$0xff] %v452
                  %v454 = vld [vmem:[%s362 + $0x2d0] sm:$0xff]
                  %455 = vst [vmem:[%s363 + $0x168] sm:$0xff] %v454
                  %v456 = vld [vmem:[%s362 + $0x2e0] sm:$0xff]
                  %457 = vst [vmem:[%s363 + $0x170] sm:$0xff] %v456
                  %v458 = vld [vmem:[%s362 + $0x2f0] sm:$0xff]
                  %459 = vst [vmem:[%s363 + $0x178] sm:$0xff] %v458
                  %v460 = vld [vmem:[%s362 + $0x300] sm:$0xff]
                  %461 = vst [vmem:[%s363 + $0x180] sm:$0xff] %v460
                  %v462 = vld [vmem:[%s362 + $0x310] sm:$0xff]
                  %463 = vst [vmem:[%s363 + $0x188] sm:$0xff] %v462
                  %v464 = vld [vmem:[%s362 + $0x320] sm:$0xff]
                  %465 = vst [vmem:[%s363 + $0x190] sm:$0xff] %v464
                  %v466 = vld [vmem:[%s362 + $0x330] sm:$0xff]
                  %467 = vst [vmem:[%s363 + $0x198] sm:$0xff] %v466
                  %v468 = vld [vmem:[%s362 + $0x340] sm:$0xff]
                  %469 = vst [vmem:[%s363 + $0x1a0] sm:$0xff] %v468
                  %v470 = vld [vmem:[%s362 + $0x350] sm:$0xff]
                  %471 = vst [vmem:[%s363 + $0x1a8] sm:$0xff] %v470
                  %v472 = vld [vmem:[%s362 + $0x360] sm:$0xff]
                  %473 = vst [vmem:[%s363 + $0x1b0] sm:$0xff] %v472
                  %v474 = vld [vmem:[%s362 + $0x370] sm:$0xff]
                  %475 = vst [vmem:[%s363 + $0x1b8] sm:$0xff] %v474
                  %v476 = vld [vmem:[%s362 + $0x380] sm:$0xff]
                  %477 = vst [vmem:[%s363 + $0x1c0] sm:$0xff] %v476
                  %v478 = vld [vmem:[%s362 + $0x390] sm:$0xff]
                  %479 = vst [vmem:[%s363 + $0x1c8] sm:$0xff] %v478
                  %v480 = vld [vmem:[%s362 + $0x3a0] sm:$0xff]
                  %481 = vst [vmem:[%s363 + $0x1d0] sm:$0xff] %v480
                  %v482 = vld [vmem:[%s362 + $0x3b0] sm:$0xff]
                  %483 = vst [vmem:[%s363 + $0x1d8] sm:$0xff] %v482
                  %v484 = vld [vmem:[%s362 + $0x3c0] sm:$0xff]
                  %485 = vst [vmem:[%s363 + $0x1e0] sm:$0xff] %v484
                  %v486 = vld [vmem:[%s362 + $0x3d0] sm:$0xff]
                  %487 = vst [vmem:[%s363 + $0x1e8] sm:$0xff] %v486
                  %v488 = vld [vmem:[%s362 + $0x3e0] sm:$0xff]
                  %489 = vst [vmem:[%s363 + $0x1f0] sm:$0xff] %v488
                  %v490 = vld [vmem:[%s362 + $0x3f0] sm:$0xff]
                  %491 = vst [vmem:[%s363 + $0x1f8] sm:$0xff] %v490
                $region52: #{resnet_forward.22} parent=46 // loop_footer
                  %s361 = sadd.s32 1, %s357
                $region53: #{resnet_forward.22} parent=46 // loop_footer_branch
                  %356 = sbr.rel target = $region49
                $region54: #{resnet_forward.22} parent=46 // loop_exit
                  _
              $region47: #{resnet_forward.22} parent=31 // pred_fallthru
                _
              // Predicated region
              $region55: #{resnet_forward.22} parent=31 // pred_check
                _
              $region56: #{resnet_forward.22} parent=31 // pred_check_branch
                %493 = sbr.rel target = $region58
              $region57: #{resnet_forward.22} parent=31 // pred_region
                _
              $region58: #{resnet_forward.22} parent=31 // pred_fallthru
                _
            $region32: #{resnet_forward.22} parent=27 // pred_fallthru
              _
            // Predicated region
            $region33: #{resnet_forward.22} parent=27 // pred_check
              _
            $region34: #{resnet_forward.22} parent=27 // pred_check_branch
              %215 = sbr.rel target = $region36
            $region35: #{resnet_forward.22} parent=27 // pred_region
              %s217 = ssub.s32 256, 1
              loop: start=0, step=1, limit=1
              $region37: #{resnet_forward.22} parent=35 // loop_pre_header
                _
              $region38: #{resnet_forward.22} parent=35 // loop_header
                %s219 = sphi 0, %s223
                %p220 = scmp.ge.s32.totalorder %s219, 1
                %s224 = sphi %s209, %s209
                %s225 = sphi %s203, %s203
              $region39: #{resnet_forward.22} parent=35 // loop_header_branch
                %222 = sbr.rel (%p220) target = $region43
              $region40: #{resnet_forward.22} parent=35 // loop_body
                %v226 = vld [vmem:[%s224] sm:%s217]
                %227 = vst [vmem:[%s225] sm:%s217] %v226
                %v228 = vld [vmem:[%s224 + $0x10] sm:%s217]
                %229 = vst [vmem:[%s225 + $0x8] sm:%s217] %v228
                %v230 = vld [vmem:[%s224 + $0x20] sm:%s217]
                %231 = vst [vmem:[%s225 + $0x10] sm:%s217] %v230
                %v232 = vld [vmem:[%s224 + $0x30] sm:%s217]
                %233 = vst [vmem:[%s225 + $0x18] sm:%s217] %v232
                %v234 = vld [vmem:[%s224 + $0x40] sm:%s217]
                %235 = vst [vmem:[%s225 + $0x20] sm:%s217] %v234
                %v236 = vld [vmem:[%s224 + $0x50] sm:%s217]
                %237 = vst [vmem:[%s225 + $0x28] sm:%s217] %v236
                %v238 = vld [vmem:[%s224 + $0x60] sm:%s217]
                %239 = vst [vmem:[%s225 + $0x30] sm:%s217] %v238
                %v240 = vld [vmem:[%s224 + $0x70] sm:%s217]
                %241 = vst [vmem:[%s225 + $0x38] sm:%s217] %v240
                %v242 = vld [vmem:[%s224 + $0x80] sm:%s217]
                %243 = vst [vmem:[%s225 + $0x40] sm:%s217] %v242
                %v244 = vld [vmem:[%s224 + $0x90] sm:%s217]
                %245 = vst [vmem:[%s225 + $0x48] sm:%s217] %v244
                %v246 = vld [vmem:[%s224 + $0xa0] sm:%s217]
                %247 = vst [vmem:[%s225 + $0x50] sm:%s217] %v246
                %v248 = vld [vmem:[%s224 + $0xb0] sm:%s217]
                %249 = vst [vmem:[%s225 + $0x58] sm:%s217] %v248
                %v250 = vld [vmem:[%s224 + $0xc0] sm:%s217]
                %251 = vst [vmem:[%s225 + $0x60] sm:%s217] %v250
                %v252 = vld [vmem:[%s224 + $0xd0] sm:%s217]
                %253 = vst [vmem:[%s225 + $0x68] sm:%s217] %v252
                %v254 = vld [vmem:[%s224 + $0xe0] sm:%s217]
                %255 = vst [vmem:[%s225 + $0x70] sm:%s217] %v254
                %v256 = vld [vmem:[%s224 + $0xf0] sm:%s217]
                %257 = vst [vmem:[%s225 + $0x78] sm:%s217] %v256
                %v258 = vld [vmem:[%s224 + $0x100] sm:%s217]
                %259 = vst [vmem:[%s225 + $0x80] sm:%s217] %v258
                %v260 = vld [vmem:[%s224 + $0x110] sm:%s217]
                %261 = vst [vmem:[%s225 + $0x88] sm:%s217] %v260
                %v262 = vld [vmem:[%s224 + $0x120] sm:%s217]
                %263 = vst [vmem:[%s225 + $0x90] sm:%s217] %v262
                %v264 = vld [vmem:[%s224 + $0x130] sm:%s217]
                %265 = vst [vmem:[%s225 + $0x98] sm:%s217] %v264
                %v266 = vld [vmem:[%s224 + $0x140] sm:%s217]
                %267 = vst [vmem:[%s225 + $0xa0] sm:%s217] %v266
                %v268 = vld [vmem:[%s224 + $0x150] sm:%s217]
                %269 = vst [vmem:[%s225 + $0xa8] sm:%s217] %v268
                %v270 = vld [vmem:[%s224 + $0x160] sm:%s217]
                %271 = vst [vmem:[%s225 + $0xb0] sm:%s217] %v270
                %v272 = vld [vmem:[%s224 + $0x170] sm:%s217]
                %273 = vst [vmem:[%s225 + $0xb8] sm:%s217] %v272
                %v274 = vld [vmem:[%s224 + $0x180] sm:%s217]
                %275 = vst [vmem:[%s225 + $0xc0] sm:%s217] %v274
                %v276 = vld [vmem:[%s224 + $0x190] sm:%s217]
                %277 = vst [vmem:[%s225 + $0xc8] sm:%s217] %v276
                %v278 = vld [vmem:[%s224 + $0x1a0] sm:%s217]
                %279 = vst [vmem:[%s225 + $0xd0] sm:%s217] %v278
                %v280 = vld [vmem:[%s224 + $0x1b0] sm:%s217]
                %281 = vst [vmem:[%s225 + $0xd8] sm:%s217] %v280
                %v282 = vld [vmem:[%s224 + $0x1c0] sm:%s217]
                %283 = vst [vmem:[%s225 + $0xe0] sm:%s217] %v282
                %v284 = vld [vmem:[%s224 + $0x1d0] sm:%s217]
                %285 = vst [vmem:[%s225 + $0xe8] sm:%s217] %v284
                %v286 = vld [vmem:[%s224 + $0x1e0] sm:%s217]
                %287 = vst [vmem:[%s225 + $0xf0] sm:%s217] %v286
                %v288 = vld [vmem:[%s224 + $0x1f0] sm:%s217]
                %289 = vst [vmem:[%s225 + $0xf8] sm:%s217] %v288
                %v290 = vld [vmem:[%s224 + $0x200] sm:%s217]
                %291 = vst [vmem:[%s225 + $0x100] sm:%s217] %v290
                %v292 = vld [vmem:[%s224 + $0x210] sm:%s217]
                %293 = vst [vmem:[%s225 + $0x108] sm:%s217] %v292
                %v294 = vld [vmem:[%s224 + $0x220] sm:%s217]
                %295 = vst [vmem:[%s225 + $0x110] sm:%s217] %v294
                %v296 = vld [vmem:[%s224 + $0x230] sm:%s217]
                %297 = vst [vmem:[%s225 + $0x118] sm:%s217] %v296
                %v298 = vld [vmem:[%s224 + $0x240] sm:%s217]
                %299 = vst [vmem:[%s225 + $0x120] sm:%s217] %v298
                %v300 = vld [vmem:[%s224 + $0x250] sm:%s217]
                %301 = vst [vmem:[%s225 + $0x128] sm:%s217] %v300
                %v302 = vld [vmem:[%s224 + $0x260] sm:%s217]
                %303 = vst [vmem:[%s225 + $0x130] sm:%s217] %v302
                %v304 = vld [vmem:[%s224 + $0x270] sm:%s217]
                %305 = vst [vmem:[%s225 + $0x138] sm:%s217] %v304
                %v306 = vld [vmem:[%s224 + $0x280] sm:%s217]
                %307 = vst [vmem:[%s225 + $0x140] sm:%s217] %v306
                %v308 = vld [vmem:[%s224 + $0x290] sm:%s217]
                %309 = vst [vmem:[%s225 + $0x148] sm:%s217] %v308
                %v310 = vld [vmem:[%s224 + $0x2a0] sm:%s217]
                %311 = vst [vmem:[%s225 + $0x150] sm:%s217] %v310
                %v312 = vld [vmem:[%s224 + $0x2b0] sm:%s217]
                %313 = vst [vmem:[%s225 + $0x158] sm:%s217] %v312
                %v314 = vld [vmem:[%s224 + $0x2c0] sm:%s217]
                %315 = vst [vmem:[%s225 + $0x160] sm:%s217] %v314
                %v316 = vld [vmem:[%s224 + $0x2d0] sm:%s217]
                %317 = vst [vmem:[%s225 + $0x168] sm:%s217] %v316
                %v318 = vld [vmem:[%s224 + $0x2e0] sm:%s217]
                %319 = vst [vmem:[%s225 + $0x170] sm:%s217] %v318
                %v320 = vld [vmem:[%s224 + $0x2f0] sm:%s217]
                %321 = vst [vmem:[%s225 + $0x178] sm:%s217] %v320
                %v322 = vld [vmem:[%s224 + $0x300] sm:%s217]
                %323 = vst [vmem:[%s225 + $0x180] sm:%s217] %v322
                %v324 = vld [vmem:[%s224 + $0x310] sm:%s217]
                %325 = vst [vmem:[%s225 + $0x188] sm:%s217] %v324
                %v326 = vld [vmem:[%s224 + $0x320] sm:%s217]
                %327 = vst [vmem:[%s225 + $0x190] sm:%s217] %v326
                %v328 = vld [vmem:[%s224 + $0x330] sm:%s217]
                %329 = vst [vmem:[%s225 + $0x198] sm:%s217] %v328
                %v330 = vld [vmem:[%s224 + $0x340] sm:%s217]
                %331 = vst [vmem:[%s225 + $0x1a0] sm:%s217] %v330
                %v332 = vld [vmem:[%s224 + $0x350] sm:%s217]
                %333 = vst [vmem:[%s225 + $0x1a8] sm:%s217] %v332
                %v334 = vld [vmem:[%s224 + $0x360] sm:%s217]
                %335 = vst [vmem:[%s225 + $0x1b0] sm:%s217] %v334
                %v336 = vld [vmem:[%s224 + $0x370] sm:%s217]
                %337 = vst [vmem:[%s225 + $0x1b8] sm:%s217] %v336
                %v338 = vld [vmem:[%s224 + $0x380] sm:%s217]
                %339 = vst [vmem:[%s225 + $0x1c0] sm:%s217] %v338
                %v340 = vld [vmem:[%s224 + $0x390] sm:%s217]
                %341 = vst [vmem:[%s225 + $0x1c8] sm:%s217] %v340
                %v342 = vld [vmem:[%s224 + $0x3a0] sm:%s217]
                %343 = vst [vmem:[%s225 + $0x1d0] sm:%s217] %v342
                %v344 = vld [vmem:[%s224 + $0x3b0] sm:%s217]
                %345 = vst [vmem:[%s225 + $0x1d8] sm:%s217] %v344
                %v346 = vld [vmem:[%s224 + $0x3c0] sm:%s217]
                %347 = vst [vmem:[%s225 + $0x1e0] sm:%s217] %v346
                %v348 = vld [vmem:[%s224 + $0x3d0] sm:%s217]
                %349 = vst [vmem:[%s225 + $0x1e8] sm:%s217] %v348
                %v350 = vld [vmem:[%s224 + $0x3e0] sm:%s217]
                %351 = vst [vmem:[%s225 + $0x1f0] sm:%s217] %v350
                %v352 = vld [vmem:[%s224 + $0x3f0] sm:%s217]
                %353 = vst [vmem:[%s225 + $0x1f8] sm:%s217] %v352
              $region41: #{resnet_forward.22} parent=35 // loop_footer
                %s223 = sadd.s32 1, %s219
              $region42: #{resnet_forward.22} parent=35 // loop_footer_branch
                %218 = sbr.rel target = $region38
              $region43: #{resnet_forward.22} parent=35 // loop_exit
                _
            $region36: #{resnet_forward.22} parent=27 // pred_fallthru
              _
          $region28: #{resnet_forward.22} parent=23 // pred_fallthru
            _
          %494 = vnop
        $region24: #{resnet_forward.22} parent=15 // pred_fallthru
          _
        // Predicated region
        $region59: #{resnet_forward.22} parent=15 // pred_check
          %p495 = pneg %p105
        $region60: #{resnet_forward.22} parent=15 // pred_check_branch
          %497 = sbr.rel (%p495) target = $region62
        $region61: #{resnet_forward.22} parent=15 // pred_region
          %s498 = smul.u32 2, %s18
          %p499 = scmp.lt.s32.totalorder %s498, 3
          %s500 = scalar_select %p499, %s498, 3
          %s501 = scalar_lea.vmem %s2, %s500
          %s502 = smul.u32 2, %s18
        $region62: #{resnet_forward.22} parent=15 // pred_fallthru
          _
        // Predicated region
        $region63: #{resnet_forward.22} parent=15 // pred_check
          %p503 = pneg %p131
        $region64: #{resnet_forward.22} parent=15 // pred_check_branch
          %505 = sbr.rel (%p503) target = $region66
        $region65: #{resnet_forward.22} parent=15 // pred_region
          %s506 = smul.u32 2, %s18
          %p507 = scmp.lt.s32.totalorder %s506, 3
          %s508 = scalar_select %p507, %s506, 3
          %s509 = scalar_lea.vmem %s3, %s508
          %s510 = smul.u32 2, %s18
        $region66: #{resnet_forward.22} parent=15 // pred_fallthru
          _
      $region16: #{resnet_forward.22} parent=5 // pred_fallthru
        _
      %p511 = scmp.le.s32.totalorder 1, %s10
      %p512 = scmp.lt.s32.totalorder %s10, 11
      %p513 = pnand %p511, %p512
      %p514 = pneg %p513
      // Predicated region
      $region67: #{resnet_forward.22} parent=5 // pred_check
        _
      $region68: #{resnet_forward.22} parent=5 // pred_check_branch
        %516 = sbr.rel (%p513) target = $region70
      $region69: #{resnet_forward.22} parent=5 // pred_region
        %s517 = ssub.s32 %s10, 1
        %s518 = sand.u32 %s72, 1
        %s519 = sand.u32 %s72, 1
        %s520 = smul.addr %s519, 512
        %s521 = scalar_lea.vmem [#allocation3], %s520
        // Predicated region
        $region71: #{resnet_forward.22} parent=69 // pred_check
          %p522 = pneg %p85
        $region72: #{resnet_forward.22} parent=69 // pred_check_branch
          %524 = sbr.rel (%p522) target = $region74
        $region73: #{resnet_forward.22} parent=69 // pred_region
          _
        $region74: #{resnet_forward.22} parent=69 // pred_fallthru
          _
        %s525 = smul.u32 4, %s22
        %p526 = scmp.lt.s32.totalorder %s20, 0
        %s527 = scalar_select %p526, %s20, 0
        %p528 = scmp.lt.s32.totalorder %s525, 19
        %s529 = scalar_select %p528, %s525, 19
        %s530 = smul.addr %s527, 20
        %s531 = sadd.s32 %s529, %s530
        %s532 = smul.addr %s531, 4
        %s533 = scalar_lea.vmem %s0, %s532
        %p534 = pneg %p57
        %p535 = pneg %p54
        %s536 = sand.u32 %s72, 1
        %s537 = sand.u32 %s72, 1
        %s538 = smul.addr %s537, 512
        %s539 = scalar_lea.vmem [#allocation3], %s538
        %p540 = pneg %p85
        %p541 = pneg %p82
        %s542 = smul.u32 2, %s21
        %p543 = scmp.lt.s32.totalorder %s542, 3
        %s544 = scalar_select %p543, %s542, 3
        %s545 = scalar_lea.vmem %s2, %s544
        %p546 = pneg %p111
        %p547 = pneg %p108
        %s548 = smul.u32 2, %s21
        %p549 = scmp.lt.s32.totalorder %s548, 3
        %s550 = scalar_select %p549, %s548, 3
        %s551 = scalar_lea.vmem %s3, %s550
        %p552 = pneg %p137
        %p553 = pneg %p134
        %p554 = pneg %p165
        %p555 = pneg %p162
        %s556 = smul.u32 2, %s21
        %p557 = scmp.lt.s32.totalorder %s20, 0
        %s558 = scalar_select %p557, %s20, 0
        %p559 = scmp.lt.s32.totalorder %s556, 3
        %s560 = scalar_select %p559, %s556, 3
        %s561 = smul.addr %s558, 4
        %s562 = sadd.s32 %s560, %s561
        %s563 = smul.addr %s562, 8
        %s564 = scalar_lea.vmem %s4, %s563
        %s565 = smul.u32 4, %s22
        %p566 = scmp.lt.s32.totalorder %s20, 0
        %s567 = scalar_select %p566, %s20, 0
        %p568 = scmp.lt.s32.totalorder %s565, 19
        %s569 = scalar_select %p568, %s565, 19
        %s570 = smul.addr %s567, 20
        %s571 = sadd.s32 %s569, %s570
        %s572 = smul.addr %s571, 4
        %s573 = scalar_lea.vmem %s0, %s572
        %s574 = smul.u32 4, %s22
        %s575 = smul.u32 64, %s22
        %s576 = smul.u32 2, %s21
        %s577 = smul.u32 2, %s21
        %p578 = scmp.lt.s32.totalorder %s577, 3
        %s579 = scalar_select %p578, %s577, 3
        %s580 = scalar_lea.vmem %s2, %s579
        %s581 = smul.u32 2, %s21
        %s582 = smul.u32 2, %s21
        %p583 = scmp.lt.s32.totalorder %s582, 3
        %s584 = scalar_select %p583, %s582, 3
        %s585 = scalar_lea.vmem %s3, %s584
        %s586 = smul.u32 2, %s21
        %s587 = smul.u32 2, %s21
        %p588 = scmp.lt.s32.totalorder %s20, 0
        %s589 = scalar_select %p588, %s20, 0
        %p590 = scmp.lt.s32.totalorder %s587, 3
        %s591 = scalar_select %p590, %s587, 3
        %s592 = smul.addr %s589, 4
        %s593 = sadd.s32 %s591, %s592
        %s594 = smul.addr %s593, 8
        %s595 = scalar_lea.vmem %s4, %s594
        %s596 = smul.u32 2, %s21
        %p597 = scmp.eq.s32.totalorder %s22, 0
        // Predicated region
        $region75: #{resnet_forward.22} parent=69 // pred_check
          %p598 = pneg %p597
        $region76: #{resnet_forward.22} parent=69 // pred_check_branch
          %600 = sbr.rel (%p598) target = $region78
        $region77: #{resnet_forward.22} parent=69 // pred_region
          %601 = vst [vmem:[#allocation2] sm:$0xff] 0.0
          %602 = vst [vmem:[#allocation2 + $0x8] sm:$0xff] 0.0
        $region78: #{resnet_forward.22} parent=69 // pred_fallthru
          _
        %v603 = vld [vmem:[#allocation2] sm:$0xff]
        %v604 = vld [vmem:[#allocation2 + $0x8] sm:$0xff]
        %v605 = vld [vmem:[%s573] sm:$0xff]
        %v606 = vld [vmem:[%s573 + $0x8] sm:$0xff]
        %v607 = vld [vmem:[%s521] sm:$0xff]
        %v608 = vld [vmem:[%s521 + $0x8] sm:$0xff]
        %v609 = vld [vmem:[%s521 + $0x10] sm:$0xff]
        %v610 = vld [vmem:[%s521 + $0x18] sm:$0xff]
        %v611 = vld [vmem:[%s521 + $0x20] sm:$0xff]
        %v612 = vld [vmem:[%s521 + $0x28] sm:$0xff]
        %v613 = vld [vmem:[%s521 + $0x30] sm:$0xff]
        %v614 = vld [vmem:[%s521 + $0x38] sm:$0xff]
        %v615 = vld [vmem:[%s521 + $0x40] sm:$0xff]
        %v616 = vld [vmem:[%s521 + $0x48] sm:$0xff]
        %v617 = vld [vmem:[%s521 + $0x50] sm:$0xff]
        %v618 = vld [vmem:[%s521 + $0x58] sm:$0xff]
        %v619 = vld [vmem:[%s521 + $0x60] sm:$0xff]
        %v620 = vld [vmem:[%s521 + $0x68] sm:$0xff]
        %v621 = vld [vmem:[%s521 + $0x70] sm:$0xff]
        %v622 = vld [vmem:[%s521 + $0x78] sm:$0xff]
        %v623 = vld [vmem:[%s521 + $0x80] sm:$0xff]
        %v624 = vld [vmem:[%s521 + $0x88] sm:$0xff]
        %v625 = vld [vmem:[%s521 + $0x90] sm:$0xff]
        %v626 = vld [vmem:[%s521 + $0x98] sm:$0xff]
        %v627 = vld [vmem:[%s521 + $0xa0] sm:$0xff]
        %v628 = vld [vmem:[%s521 + $0xa8] sm:$0xff]
        %v629 = vld [vmem:[%s521 + $0xb0] sm:$0xff]
        %v630 = vld [vmem:[%s521 + $0xb8] sm:$0xff]
        %v631 = vld [vmem:[%s521 + $0xc0] sm:$0xff]
        %v632 = vld [vmem:[%s521 + $0xc8] sm:$0xff]
        %v633 = vld [vmem:[%s521 + $0xd0] sm:$0xff]
        %v634 = vld [vmem:[%s521 + $0xd8] sm:$0xff]
        %v635 = vld [vmem:[%s521 + $0xe0] sm:$0xff]
        %v636 = vld [vmem:[%s521 + $0xe8] sm:$0xff]
        %v637 = vld [vmem:[%s521 + $0xf0] sm:$0xff]
        %v638 = vld [vmem:[%s521 + $0xf8] sm:$0xff]
        %v639 = vld [vmem:[%s521 + $0x100] sm:$0xff]
        %v640 = vld [vmem:[%s521 + $0x108] sm:$0xff]
        %v641 = vld [vmem:[%s521 + $0x110] sm:$0xff]
        %v642 = vld [vmem:[%s521 + $0x118] sm:$0xff]
        %v643 = vld [vmem:[%s521 + $0x120] sm:$0xff]
        %v644 = vld [vmem:[%s521 + $0x128] sm:$0xff]
        %v645 = vld [vmem:[%s521 + $0x130] sm:$0xff]
        %v646 = vld [vmem:[%s521 + $0x138] sm:$0xff]
        %v647 = vld [vmem:[%s521 + $0x140] sm:$0xff]
        %v648 = vld [vmem:[%s521 + $0x148] sm:$0xff]
        %v649 = vld [vmem:[%s521 + $0x150] sm:$0xff]
        %v650 = vld [vmem:[%s521 + $0x158] sm:$0xff]
        %v651 = vld [vmem:[%s521 + $0x160] sm:$0xff]
        %v652 = vld [vmem:[%s521 + $0x168] sm:$0xff]
        %v653 = vld [vmem:[%s521 + $0x170] sm:$0xff]
        %v654 = vld [vmem:[%s521 + $0x178] sm:$0xff]
        %v655 = vld [vmem:[%s521 + $0x180] sm:$0xff]
        %v656 = vld [vmem:[%s521 + $0x188] sm:$0xff]
        %v657 = vld [vmem:[%s521 + $0x190] sm:$0xff]
        %v658 = vld [vmem:[%s521 + $0x198] sm:$0xff]
        %v659 = vld [vmem:[%s521 + $0x1a0] sm:$0xff]
        %v660 = vld [vmem:[%s521 + $0x1a8] sm:$0xff]
        %v661 = vld [vmem:[%s521 + $0x1b0] sm:$0xff]
        %v662 = vld [vmem:[%s521 + $0x1b8] sm:$0xff]
        %v663 = vld [vmem:[%s521 + $0x1c0] sm:$0xff]
        %v664 = vld [vmem:[%s521 + $0x1c8] sm:$0xff]
        %v665 = vld [vmem:[%s521 + $0x1d0] sm:$0xff]
        %v666 = vld [vmem:[%s521 + $0x1d8] sm:$0xff]
        %v667 = vld [vmem:[%s521 + $0x1e0] sm:$0xff]
        %v668 = vld [vmem:[%s521 + $0x1e8] sm:$0xff]
        %v669 = vld [vmem:[%s521 + $0x1f0] sm:$0xff]
        %v670 = vld [vmem:[%s521 + $0x1f8] sm:$0xff]
        %v673 = vunpack.c.l.b16 %v605
        %v674 = vunpack.c.h.b16 %v605
        %v675 = vunpack.c.l.b16 %v606
        %v676 = vunpack.c.h.b16 %v606
        %v677 = vpack.c.b16 %v673, %v673
        %v678 = vpack.c.b16 %v674, %v674
        %v679 = vpack.c.b16 %v675, %v675
        %v680 = vpack.c.b16 %v676, %v676
        %v749 = vunpack.c.l.b16 %v607
        %v750 = vunpack.c.h.b16 %v607
        %v751 = vunpack.c.l.b16 %v608
        %v752 = vunpack.c.h.b16 %v608
        %v753 = vunpack.c.l.b16 %v609
        %v754 = vunpack.c.h.b16 %v609
        %v755 = vunpack.c.l.b16 %v610
        %v756 = vunpack.c.h.b16 %v610
        %v757 = vunpack.c.l.b16 %v611
        %v758 = vunpack.c.h.b16 %v611
        %v759 = vunpack.c.l.b16 %v612
        %v760 = vunpack.c.h.b16 %v612
        %v761 = vunpack.c.l.b16 %v613
        %v762 = vunpack.c.h.b16 %v613
        %v763 = vunpack.c.l.b16 %v614
        %v764 = vunpack.c.h.b16 %v614
        %v765 = vunpack.c.l.b16 %v615
        %v766 = vunpack.c.h.b16 %v615
        %v767 = vunpack.c.l.b16 %v616
        %v768 = vunpack.c.h.b16 %v616
        %v769 = vunpack.c.l.b16 %v617
        %v770 = vunpack.c.h.b16 %v617
        %v771 = vunpack.c.l.b16 %v618
        %v772 = vunpack.c.h.b16 %v618
        %v773 = vunpack.c.l.b16 %v619
        %v774 = vunpack.c.h.b16 %v619
        %v775 = vunpack.c.l.b16 %v620
        %v776 = vunpack.c.h.b16 %v620
        %v777 = vunpack.c.l.b16 %v621
        %v778 = vunpack.c.h.b16 %v621
        %v779 = vunpack.c.l.b16 %v622
        %v780 = vunpack.c.h.b16 %v622
        %v781 = vunpack.c.l.b16 %v623
        %v782 = vunpack.c.h.b16 %v623
        %v783 = vunpack.c.l.b16 %v624
        %v784 = vunpack.c.h.b16 %v624
        %v785 = vunpack.c.l.b16 %v625
        %v786 = vunpack.c.h.b16 %v625
        %v787 = vunpack.c.l.b16 %v626
        %v788 = vunpack.c.h.b16 %v626
        %v789 = vunpack.c.l.b16 %v627
        %v790 = vunpack.c.h.b16 %v627
        %v791 = vunpack.c.l.b16 %v628
        %v792 = vunpack.c.h.b16 %v628
        %v793 = vunpack.c.l.b16 %v629
        %v794 = vunpack.c.h.b16 %v629
        %v795 = vunpack.c.l.b16 %v630
        %v796 = vunpack.c.h.b16 %v630
        %v797 = vunpack.c.l.b16 %v631
        %v798 = vunpack.c.h.b16 %v631
        %v799 = vunpack.c.l.b16 %v632
        %v800 = vunpack.c.h.b16 %v632
        %v801 = vunpack.c.l.b16 %v633
        %v802 = vunpack.c.h.b16 %v633
        %v803 = vunpack.c.l.b16 %v634
        %v804 = vunpack.c.h.b16 %v634
        %v805 = vunpack.c.l.b16 %v635
        %v806 = vunpack.c.h.b16 %v635
        %v807 = vunpack.c.l.b16 %v636
        %v808 = vunpack.c.h.b16 %v636
        %v809 = vunpack.c.l.b16 %v637
        %v810 = vunpack.c.h.b16 %v637
        %v811 = vunpack.c.l.b16 %v638
        %v812 = vunpack.c.h.b16 %v638
        %v813 = vunpack.c.l.b16 %v639
        %v814 = vunpack.c.h.b16 %v639
        %v815 = vunpack.c.l.b16 %v640
        %v816 = vunpack.c.h.b16 %v640
        %v817 = vunpack.c.l.b16 %v641
        %v818 = vunpack.c.h.b16 %v641
        %v819 = vunpack.c.l.b16 %v642
        %v820 = vunpack.c.h.b16 %v642
        %v821 = vunpack.c.l.b16 %v643
        %v822 = vunpack.c.h.b16 %v643
        %v823 = vunpack.c.l.b16 %v644
        %v824 = vunpack.c.h.b16 %v644
        %v825 = vunpack.c.l.b16 %v645
        %v826 = vunpack.c.h.b16 %v645
        %v827 = vunpack.c.l.b16 %v646
        %v828 = vunpack.c.h.b16 %v646
        %v829 = vunpack.c.l.b16 %v647
        %v830 = vunpack.c.h.b16 %v647
        %v831 = vunpack.c.l.b16 %v648
        %v832 = vunpack.c.h.b16 %v648
        %v833 = vunpack.c.l.b16 %v649
        %v834 = vunpack.c.h.b16 %v649
        %v835 = vunpack.c.l.b16 %v650
        %v836 = vunpack.c.h.b16 %v650
        %v837 = vunpack.c.l.b16 %v651
        %v838 = vunpack.c.h.b16 %v651
        %v839 = vunpack.c.l.b16 %v652
        %v840 = vunpack.c.h.b16 %v652
        %v841 = vunpack.c.l.b16 %v653
        %v842 = vunpack.c.h.b16 %v653
        %v843 = vunpack.c.l.b16 %v654
        %v844 = vunpack.c.h.b16 %v654
        %v845 = vunpack.c.l.b16 %v655
        %v846 = vunpack.c.h.b16 %v655
        %v847 = vunpack.c.l.b16 %v656
        %v848 = vunpack.c.h.b16 %v656
        %v849 = vunpack.c.l.b16 %v657
        %v850 = vunpack.c.h.b16 %v657
        %v851 = vunpack.c.l.b16 %v658
        %v852 = vunpack.c.h.b16 %v658
        %v853 = vunpack.c.l.b16 %v659
        %v854 = vunpack.c.h.b16 %v659
        %v855 = vunpack.c.l.b16 %v660
        %v856 = vunpack.c.h.b16 %v660
        %v857 = vunpack.c.l.b16 %v661
        %v858 = vunpack.c.h.b16 %v661
        %v859 = vunpack.c.l.b16 %v662
        %v860 = vunpack.c.h.b16 %v662
        %v861 = vunpack.c.l.b16 %v663
        %v862 = vunpack.c.h.b16 %v663
        %v863 = vunpack.c.l.b16 %v664
        %v864 = vunpack.c.h.b16 %v664
        %v865 = vunpack.c.l.b16 %v665
        %v866 = vunpack.c.h.b16 %v665
        %v867 = vunpack.c.l.b16 %v666
        %v868 = vunpack.c.h.b16 %v666
        %v869 = vunpack.c.l.b16 %v667
        %v870 = vunpack.c.h.b16 %v667
        %v871 = vunpack.c.l.b16 %v668
        %v872 = vunpack.c.h.b16 %v668
        %v873 = vunpack.c.l.b16 %v669
        %v874 = vunpack.c.h.b16 %v669
        %v875 = vunpack.c.l.b16 %v670
        %v876 = vunpack.c.h.b16 %v670
        %v877 = vpack.c.b16 %v751, %v749
        %v878 = vpack.c.b16 %v752, %v750
        %v879 = vpack.c.b16 %v755, %v753
        %v880 = vpack.c.b16 %v756, %v754
        %v881 = vpack.c.b16 %v759, %v757
        %v882 = vpack.c.b16 %v760, %v758
        %v883 = vpack.c.b16 %v763, %v761
        %v884 = vpack.c.b16 %v764, %v762
        %v885 = vpack.c.b16 %v767, %v765
        %v886 = vpack.c.b16 %v768, %v766
        %v887 = vpack.c.b16 %v771, %v769
        %v888 = vpack.c.b16 %v772, %v770
        %v889 = vpack.c.b16 %v775, %v773
        %v890 = vpack.c.b16 %v776, %v774
        %v891 = vpack.c.b16 %v779, %v777
        %v892 = vpack.c.b16 %v780, %v778
        %v893 = vpack.c.b16 %v783, %v781
        %v894 = vpack.c.b16 %v784, %v782
        %v895 = vpack.c.b16 %v787, %v785
        %v896 = vpack.c.b16 %v788, %v786
        %v897 = vpack.c.b16 %v791, %v789
        %v898 = vpack.c.b16 %v792, %v790
        %v899 = vpack.c.b16 %v795, %v793
        %v900 = vpack.c.b16 %v796, %v794
        %v901 = vpack.c.b16 %v799, %v797
        %v902 = vpack.c.b16 %v800, %v798
        %v903 = vpack.c.b16 %v803, %v801
        %v904 = vpack.c.b16 %v804, %v802
        %v905 = vpack.c.b16 %v807, %v805
        %v906 = vpack.c.b16 %v808, %v806
        %v907 = vpack.c.b16 %v811, %v809
        %v908 = vpack.c.b16 %v812, %v810
        %v909 = vpack.c.b16 %v815, %v813
        %v910 = vpack.c.b16 %v816, %v814
        %v911 = vpack.c.b16 %v819, %v817
        %v912 = vpack.c.b16 %v820, %v818
        %v913 = vpack.c.b16 %v823, %v821
        %v914 = vpack.c.b16 %v824, %v822
        %v915 = vpack.c.b16 %v827, %v825
        %v916 = vpack.c.b16 %v828, %v826
        %v917 = vpack.c.b16 %v831, %v829
        %v918 = vpack.c.b16 %v832, %v830
        %v919 = vpack.c.b16 %v835, %v833
        %v920 = vpack.c.b16 %v836, %v834
        %v921 = vpack.c.b16 %v839, %v837
        %v922 = vpack.c.b16 %v840, %v838
        %v923 = vpack.c.b16 %v843, %v841
        %v924 = vpack.c.b16 %v844, %v842
        %v925 = vpack.c.b16 %v847, %v845
        %v926 = vpack.c.b16 %v848, %v846
        %v927 = vpack.c.b16 %v851, %v849
        %v928 = vpack.c.b16 %v852, %v850
        %v929 = vpack.c.b16 %v855, %v853
        %v930 = vpack.c.b16 %v856, %v854
        %v931 = vpack.c.b16 %v859, %v857
        %v932 = vpack.c.b16 %v860, %v858
        %v933 = vpack.c.b16 %v863, %v861
        %v934 = vpack.c.b16 %v864, %v862
        %v935 = vpack.c.b16 %v867, %v865
        %v936 = vpack.c.b16 %v868, %v866
        %v937 = vpack.c.b16 %v871, %v869
        %v938 = vpack.c.b16 %v872, %v870
        %v939 = vpack.c.b16 %v875, %v873
        %v940 = vpack.c.b16 %v876, %v874
        %1005 = vmatpush.bf16.msra.mxu0 %v891
        %1006 = vmatpush.bf16.msra.mxu0 %v889
        %1007 = vmatpush.bf16.msra.mxu0 %v887
        %1008 = vmatpush.bf16.msra.mxu0 %v885
        %1009 = vmatpush.bf16.msra.mxu0 %v883
        %1010 = vmatpush.bf16.msra.mxu0 %v881
        %1011 = vmatpush.bf16.msra.mxu0 %v879
        %1012 = vmatpush.bf16.msra.mxu0 %v877
        %1013 = vmatmul.bf16.gmra.mxu0 %v677
        %v1014 = vpop.f32.mrf.mxu0
        %v1015 = vadd.f32 0.0, %v1014
        %v1016 = vpop.f32.mrf.mxu0
        %1017 = vdwg.mxu0
        %1018 = vmatpush.bf16.msra.mxu0 %v907
        %1019 = vmatpush.bf16.msra.mxu0 %v905
        %1020 = vmatpush.bf16.msra.mxu0 %v903
        %1021 = vmatpush.bf16.msra.mxu0 %v901
        %1022 = vmatpush.bf16.msra.mxu0 %v899
        %1023 = vmatpush.bf16.msra.mxu0 %v897
        %1024 = vmatpush.bf16.msra.mxu0 %v895
        %1025 = vmatpush.bf16.msra.mxu0 %v893
        %1026 = vmatmul.bf16.gmra.mxu0 %v678
        %v1027 = vpop.f32.mrf.mxu0
        %v1028 = vadd.f32 %v1015, %v1027
        %v1029 = vpop.f32.mrf.mxu0
        %1030 = vdwg.mxu0
        %1031 = vmatpush.bf16.msra.mxu0 %v923
        %1032 = vmatpush.bf16.msra.mxu0 %v921
        %1033 = vmatpush.bf16.msra.mxu0 %v919
        %1034 = vmatpush.bf16.msra.mxu0 %v917
        %1035 = vmatpush.bf16.msra.mxu0 %v915
        %1036 = vmatpush.bf16.msra.mxu0 %v913
        %1037 = vmatpush.bf16.msra.mxu0 %v911
        %1038 = vmatpush.bf16.msra.mxu0 %v909
        %1039 = vmatmul.bf16.gmra.mxu0 %v679
        %v1040 = vpop.f32.mrf.mxu0
        %v1041 = vadd.f32 %v1028, %v1040
        %v1042 = vpop.f32.mrf.mxu0
        %1043 = vdwg.mxu0
        %1044 = vmatpush.bf16.msra.mxu0 %v939
        %1045 = vmatpush.bf16.msra.mxu0 %v937
        %1046 = vmatpush.bf16.msra.mxu0 %v935
        %1047 = vmatpush.bf16.msra.mxu0 %v933
        %1048 = vmatpush.bf16.msra.mxu0 %v931
        %1049 = vmatpush.bf16.msra.mxu0 %v929
        %1050 = vmatpush.bf16.msra.mxu0 %v927
        %1051 = vmatpush.bf16.msra.mxu0 %v925
        %1052 = vmatmul.bf16.gmra.mxu0 %v680
        %v1053 = vpop.f32.mrf.mxu0
        %v1054 = vadd.f32 %v1041, %v1053
        %v1055 = vpop.f32.mrf.mxu0
        %1056 = vdwg.mxu0
        %1057 = vmatpush.bf16.msra.mxu0 %v892
        %1058 = vmatpush.bf16.msra.mxu0 %v890
        %1059 = vmatpush.bf16.msra.mxu0 %v888
        %1060 = vmatpush.bf16.msra.mxu0 %v886
        %1061 = vmatpush.bf16.msra.mxu0 %v884
        %1062 = vmatpush.bf16.msra.mxu0 %v882
        %1063 = vmatpush.bf16.msra.mxu0 %v880
        %1064 = vmatpush.bf16.msra.mxu0 %v878
        %1065 = vmatmul.bf16.gmra.mxu0 %v677
        %v1066 = vpop.f32.mrf.mxu0
        %v1067 = vadd.f32 0.0, %v1066
        %v1068 = vpop.f32.mrf.mxu0
        %1069 = vdwg.mxu0
        %1070 = vmatpush.bf16.msra.mxu0 %v908
        %1071 = vmatpush.bf16.msra.mxu0 %v906
        %1072 = vmatpush.bf16.msra.mxu0 %v904
        %1073 = vmatpush.bf16.msra.mxu0 %v902
        %1074 = vmatpush.bf16.msra.mxu0 %v900
        %1075 = vmatpush.bf16.msra.mxu0 %v898
        %1076 = vmatpush.bf16.msra.mxu0 %v896
        %1077 = vmatpush.bf16.msra.mxu0 %v894
        %1078 = vmatmul.bf16.gmra.mxu0 %v678
        %v1079 = vpop.f32.mrf.mxu0
        %v1080 = vadd.f32 %v1067, %v1079
        %v1081 = vpop.f32.mrf.mxu0
        %1082 = vdwg.mxu0
        %1083 = vmatpush.bf16.msra.mxu0 %v924
        %1084 = vmatpush.bf16.msra.mxu0 %v922
        %1085 = vmatpush.bf16.msra.mxu0 %v920
        %1086 = vmatpush.bf16.msra.mxu0 %v918
        %1087 = vmatpush.bf16.msra.mxu0 %v916
        %1088 = vmatpush.bf16.msra.mxu0 %v914
        %1089 = vmatpush.bf16.msra.mxu0 %v912
        %1090 = vmatpush.bf16.msra.mxu0 %v910
        %1091 = vmatmul.bf16.gmra.mxu0 %v679
        %v1092 = vpop.f32.mrf.mxu0
        %v1093 = vadd.f32 %v1080, %v1092
        %v1094 = vpop.f32.mrf.mxu0
        %1095 = vdwg.mxu0
        %1096 = vmatpush.bf16.msra.mxu0 %v940
        %1097 = vmatpush.bf16.msra.mxu0 %v938
        %1098 = vmatpush.bf16.msra.mxu0 %v936
        %1099 = vmatpush.bf16.msra.mxu0 %v934
        %1100 = vmatpush.bf16.msra.mxu0 %v932
        %1101 = vmatpush.bf16.msra.mxu0 %v930
        %1102 = vmatpush.bf16.msra.mxu0 %v928
        %1103 = vmatpush.bf16.msra.mxu0 %v926
        %1104 = vmatmul.bf16.gmra.mxu0 %v680
        %v1105 = vpop.f32.mrf.mxu0
        %v1106 = vadd.f32 %v1093, %v1105
        %v1107 = vpop.f32.mrf.mxu0
        %1108 = vdwg.mxu0
        %v1109 = vadd.f32 %v603, %v1054
        %v1110 = vadd.f32 %v604, %v1106
        %1111 = vst [vmem:[#allocation2] sm:$0xff] %v1109
        %1112 = vst [vmem:[#allocation2 + $0x8] sm:$0xff] %v1110
        %p1113 = scmp.eq.s32.totalorder %s22, 4
        // Predicated region
        $region79: #{resnet_forward.22} parent=69 // pred_check
          %p1114 = pneg %p1113
        $region80: #{resnet_forward.22} parent=69 // pred_check_branch
          %1116 = sbr.rel (%p1114) target = $region82
        $region81: #{resnet_forward.22} parent=69 // pred_region
          %v1117 = vld [vmem:[#allocation2] sm:$0xff]
          %v1118 = vld [vmem:[#allocation2 + $0x8] sm:$0xff]
          %v1119 = vld [vmem:[%s580] sm:$0x3]
          %v1121 = vperm.slane %v1119, 0
          %v1122 = vperm.slane %v1119, 1
          %v1125 = vmul.f32 %v1117, %v1121
          %v1126 = vmul.f32 %v1118, %v1122
          %v1127 = vld [vmem:[%s585] sm:$0x3]
          %v1129 = vperm.slane %v1127, 0
          %v1130 = vperm.slane %v1127, 1
          %v1133 = vadd.f32 %v1125, %v1129
          %v1134 = vadd.f32 %v1126, %v1130
          %v1135 = vmax.f32 %v1133, 0.0
          %v1136 = vmax.f32 %v1134, 0.0
          %1137 = vst [vmem:[%s595] sm:$0xff] %v1135
          %1138 = vst [vmem:[%s595 + $0x8] sm:$0xff] %v1136
        $region82: #{resnet_forward.22} parent=69 // pred_fallthru
          _
        %s1139 = smul.u32 2, %s21
        %p1140 = scmp.lt.s32.totalorder %s20, 0
        %s1141 = scalar_select %p1140, %s20, 0
        %p1142 = scmp.lt.s32.totalorder %s1139, 3
        %s1143 = scalar_select %p1142, %s1139, 3
        %s1144 = smul.addr %s1141, 4
        %s1145 = sadd.s32 %s1143, %s1144
        %s1146 = smul.addr %s1145, 8
        %s1147 = scalar_lea.vmem %s4, %s1146
        // Predicated region
        $region83: #{resnet_forward.22} parent=69 // pred_check
          %p1148 = pneg %p162
        $region84: #{resnet_forward.22} parent=69 // pred_check_branch
          %1150 = sbr.rel (%p1148) target = $region86
        $region85: #{resnet_forward.22} parent=69 // pred_region
          %s1151 = smul.u32 2, %s21
        $region86: #{resnet_forward.22} parent=69 // pred_fallthru
          _
      $region70: #{resnet_forward.22} parent=5 // pred_fallthru
        _
      %p1152 = scmp.le.s32.totalorder 2, %s10
      // Predicated region
      $region87: #{resnet_forward.22} parent=5 // pred_check
        %p1153 = pneg %p1152
      $region88: #{resnet_forward.22} parent=5 // pred_check_branch
        %1155 = sbr.rel (%p1153) target = $region90
      $region89: #{resnet_forward.22} parent=5 // pred_region
        %s1156 = ssub.s32 %s10, 2
        // Predicated region
        $region91: #{resnet_forward.22} parent=89 // pred_check
          %p1157 = pneg %p168
        $region92: #{resnet_forward.22} parent=89 // pred_check_branch
          %1159 = sbr.rel (%p1157) target = $region94
        $region93: #{resnet_forward.22} parent=89 // pred_region
          %s1160 = smul.u32 2, %s24
          %p1161 = scmp.lt.s32.totalorder %s23, 0
          %s1162 = scalar_select %p1161, %s23, 0
          %p1163 = scmp.lt.s32.totalorder %s1160, 3
          %s1164 = scalar_select %p1163, %s1160, 3
          %s1165 = smul.addr %s1162, 4
          %s1166 = sadd.s32 %s1164, %s1165
          %s1167 = smul.addr %s1166, 8
          %s1168 = scalar_lea.vmem %s4, %s1167
        $region94: #{resnet_forward.22} parent=89 // pred_fallthru
          _
      $region90: #{resnet_forward.22} parent=5 // pred_fallthru
        _
    $region6: #{resnet_forward.22} parent=1 // loop_footer
      %s14 = sadd.s32 1, %s10
    $region7: #{resnet_forward.22} parent=1 // loop_footer_branch
      %9 = sbr.rel target = $region3
    $region8: #{resnet_forward.22} parent=1 // loop_exit
      _

// kernel: resnet_forward.23
$region0: #{resnet_forward.23}
  #allocation0 [shape = 'u32[]', space=smem, size = 0x4, offset = 0x4, fixed_abs, tag = 'smem constant byte address 0x4 - core index']
  #allocation1 [shape = 'u32[72,128]{1,0:T(1,128)}', space=vmem, size = 0x9000, scoped, tag = 'internal scratch']
  #allocation2 [shape = 'f32[8,256]{1,0:T(8,128)}', space=vmem, size = 0x2000, scoped, tag = 'scratch operand']
  %s0 = inlined_call_operand.vmem [shape: bf16[8,256], index: 0, kind: input, shape index: {}]
  %s1 = inlined_call_operand.vmem [shape: bf16[256,512], index: 1, kind: input, shape index: {}]
  %s2 = inlined_call_operand.vmem [shape: f32[1,512], index: 2, kind: input, shape index: {}]
  %s3 = inlined_call_operand.vmem [shape: f32[1,512], index: 3, kind: input, shape index: {}]
  %s4 = inlined_call_operand.vmem [shape: f32[8,512], index: 4, kind: output, shape index: {}]
  %s5 = sld [smem:[#allocation0]]
  $region95: #{resnet_forward.23} parent=0
    _
  %s7 = ssub.s32 1, %s5
  %s8 = scalar_select 0, %s7, %s5
  $region1: #{resnet_forward.23} parent=0
    #allocation3 [shape = 'u8[262144]{0}', space=vmem, size = 0x40000, scoped, tag = 'input window, operand 1']
    loop: start=0, step=1, limit=4
    $region2: #{resnet_forward.23} parent=1 // loop_pre_header
      _
    $region3: #{resnet_forward.23} parent=1 // loop_header
      %s10 = sphi 0, %s14
      %p11 = scmp.ge.s32.totalorder %s10, 4
      %s17 = sphi 0, %s36
      %s18 = sphi 0, %s32
      %s19 = sphi 0, %s28
      %s20 = sphi 0, %s17
      %s21 = sphi 0, %s18
      %s22 = sphi 0, %s19
      %s23 = sphi 0, %s20
      %s24 = sphi 0, %s21
      %s25 = sphi 0, %s22
      %s41 = sphi 0, %s43
      %s44 = sphi 0, %s41
      %s45 = sphi 0, %s44
      %s61 = sphi 0, %s45
      %s69 = sphi 0, %s71
      %s72 = sphi 0, %s69
      %s73 = sphi 0, %s72
      %s89 = sphi 0, %s73
      %s95 = sphi 0, %s97
      %s98 = sphi 0, %s95
      %s99 = sphi 0, %s98
      %s115 = sphi 0, %s99
      %s121 = sphi 0, %s123
      %s124 = sphi 0, %s121
      %s125 = sphi 0, %s124
      %s141 = sphi 0, %s125
      %s149 = sphi 0, %s151
      %s152 = sphi 0, %s149
      %s153 = sphi 0, %s152
      %s169 = sphi 0, %s153
    $region4: #{resnet_forward.23} parent=1 // loop_header_branch
      %13 = sbr.rel (%p11) target = $region8
    $region5: #{resnet_forward.23} parent=1 // loop_body
      %s15 = ssub.s32 %s10, 1
      %s16 = ssub.s32 %s10, 2
      %s26 = sadd.s32 1, %s19
      %p27 = scmp.ge.s32.totalorder %s26, 1
      %s28 = scalar_select %p27, 0, %s26
      %s29 = sadd.s32 1, %s18
      %s30 = scalar_select %p27, %s29, %s18
      %p31 = scmp.ge.s32.totalorder %s30, 2
      %s32 = scalar_select %p31, 0, %s30
      %s33 = sadd.s32 1, %s17
      %s34 = scalar_select %p31, %s33, %s17
      %p35 = scmp.ge.s32.totalorder %s34, 1
      %s36 = scalar_select %p35, 0, %s34
      %s37 = ssub.s32 %s17, %s36
      %s38 = ssub.s32 %s19, %s28
      %s39 = sor.u32 %s37, %s38
      %p40 = scmp.eq.s32.totalorder %s39, 0
      %s42 = sadd.s32 %s41, 1
      %s43 = scalar_select %p40, %s41, %s42
      %p46 = pneg %p40
      %p47 = scmp.eq.s32.totalorder %s10, 1
      %p48 = por %p46, %p47
      %p49 = scmp.ne.s32.totalorder %s41, %s44
      %p50 = scmp.eq.s32.totalorder %s10, 0
      %p51 = por %p49, %p50
      %p52 = scmp.ne.s32.totalorder %s41, %s44
      %p53 = scmp.eq.s32.totalorder %s15, 1
      %p54 = por %p52, %p53
      %p55 = scmp.ne.s32.totalorder %s44, %s45
      %p56 = scmp.eq.s32.totalorder %s15, 0
      %p57 = por %p55, %p56
      %p58 = scmp.ne.s32.totalorder %s44, %s45
      %p59 = scmp.eq.s32.totalorder %s16, 1
      %p60 = por %p58, %p59
      %p62 = scmp.ne.s32.totalorder %s45, %s61
      %p63 = scmp.eq.s32.totalorder %s16, 0
      %p64 = por %p62, %p63
      %s65 = ssub.s32 %s19, %s28
      %s66 = ssub.s32 %s18, %s32
      %s67 = sor.u32 %s65, %s66
      %p68 = scmp.eq.s32.totalorder %s67, 0
      %s70 = sadd.s32 %s69, 1
      %s71 = scalar_select %p68, %s69, %s70
      %p74 = pneg %p68
      %p75 = scmp.eq.s32.totalorder %s10, 1
      %p76 = por %p74, %p75
      %p77 = scmp.ne.s32.totalorder %s69, %s72
      %p78 = scmp.eq.s32.totalorder %s10, 0
      %p79 = por %p77, %p78
      %p80 = scmp.ne.s32.totalorder %s69, %s72
      %p81 = scmp.eq.s32.totalorder %s15, 1
      %p82 = por %p80, %p81
      %p83 = scmp.ne.s32.totalorder %s72, %s73
      %p84 = scmp.eq.s32.totalorder %s15, 0
      %p85 = por %p83, %p84
      %p86 = scmp.ne.s32.totalorder %s72, %s73
      %p87 = scmp.eq.s32.totalorder %s16, 1
      %p88 = por %p86, %p87
      %p90 = scmp.ne.s32.totalorder %s73, %s89
      %p91 = scmp.eq.s32.totalorder %s16, 0
      %p92 = por %p90, %p91
      %s93 = ssub.s32 %s18, %s32
      %p94 = scmp.eq.s32.totalorder %s93, 0
      %s96 = sadd.s32 %s95, 1
      %s97 = scalar_select %p94, %s95, %s96
      %p100 = pneg %p94
      %p101 = scmp.eq.s32.totalorder %s10, 1
      %p102 = por %p100, %p101
      %p103 = scmp.ne.s32.totalorder %s95, %s98
      %p104 = scmp.eq.s32.totalorder %s10, 0
      %p105 = por %p103, %p104
      %p106 = scmp.ne.s32.totalorder %s95, %s98
      %p107 = scmp.eq.s32.totalorder %s15, 1
      %p108 = por %p106, %p107
      %p109 = scmp.ne.s32.totalorder %s98, %s99
      %p110 = scmp.eq.s32.totalorder %s15, 0
      %p111 = por %p109, %p110
      %p112 = scmp.ne.s32.totalorder %s98, %s99
      %p113 = scmp.eq.s32.totalorder %s16, 1
      %p114 = por %p112, %p113
      %p116 = scmp.ne.s32.totalorder %s99, %s115
      %p117 = scmp.eq.s32.totalorder %s16, 0
      %p118 = por %p116, %p117
      %s119 = ssub.s32 %s18, %s32
      %p120 = scmp.eq.s32.totalorder %s119, 0
      %s122 = sadd.s32 %s121, 1
      %s123 = scalar_select %p120, %s121, %s122
      %p126 = pneg %p120
      %p127 = scmp.eq.s32.totalorder %s10, 1
      %p128 = por %p126, %p127
      %p129 = scmp.ne.s32.totalorder %s121, %s124
      %p130 = scmp.eq.s32.totalorder %s10, 0
      %p131 = por %p129, %p130
      %p132 = scmp.ne.s32.totalorder %s121, %s124
      %p133 = scmp.eq.s32.totalorder %s15, 1
      %p134 = por %p132, %p133
      %p135 = scmp.ne.s32.totalorder %s124, %s125
      %p136 = scmp.eq.s32.totalorder %s15, 0
      %p137 = por %p135, %p136
      %p138 = scmp.ne.s32.totalorder %s124, %s125
      %p139 = scmp.eq.s32.totalorder %s16, 1
      %p140 = por %p138, %p139
      %p142 = scmp.ne.s32.totalorder %s125, %s141
      %p143 = scmp.eq.s32.totalorder %s16, 0
      %p144 = por %p142, %p143
      %s145 = ssub.s32 %s17, %s36
      %s146 = ssub.s32 %s18, %s32
      %s147 = sor.u32 %s145, %s146
      %p148 = scmp.eq.s32.totalorder %s147, 0
      %s150 = sadd.s32 %s149, 1
      %s151 = scalar_select %p148, %s149, %s150
      %p154 = pneg %p148
      %p155 = scmp.eq.s32.totalorder %s10, 1
      %p156 = por %p154, %p155
      %p157 = scmp.ne.s32.totalorder %s149, %s152
      %p158 = scmp.eq.s32.totalorder %s10, 0
      %p159 = por %p157, %p158
      %p160 = scmp.ne.s32.totalorder %s149, %s152
      %p161 = scmp.eq.s32.totalorder %s15, 1
      %p162 = por %p160, %p161
      %p163 = scmp.ne.s32.totalorder %s152, %s153
      %p164 = scmp.eq.s32.totalorder %s15, 0
      %p165 = por %p163, %p164
      %p166 = scmp.ne.s32.totalorder %s152, %s153
      %p167 = scmp.eq.s32.totalorder %s16, 1
      %p168 = por %p166, %p167
      %p170 = scmp.ne.s32.totalorder %s153, %s169
      %p171 = scmp.eq.s32.totalorder %s16, 0
      %p172 = por %p170, %p171
      %p173 = scmp.le.s32.totalorder 1, %s10
      %p174 = scmp.lt.s32.totalorder %s10, 3
      %p175 = pnand %p173, %p174
      %p176 = pneg %p175
      // Predicated region
      $region9: #{resnet_forward.23} parent=5 // pred_check
        _
      $region10: #{resnet_forward.23} parent=5 // pred_check_branch
        %178 = sbr.rel (%p175) target = $region12
      $region11: #{resnet_forward.23} parent=5 // pred_region
        %s179 = ssub.s32 %s10, 1
        // Predicated region
        $region13: #{resnet_forward.23} parent=11 // pred_check
          %p180 = pneg %p57
        $region14: #{resnet_forward.23} parent=11 // pred_check_branch
          %182 = sbr.rel (%p180) target = $region16
        $region15: #{resnet_forward.23} parent=11 // pred_region
          %s183 = smul.u32 2, %s22
          %p184 = scmp.lt.s32.totalorder %s20, 0
          %s185 = scalar_select %p184, %s20, 0
          %p186 = scmp.lt.s32.totalorder %s183, 1
          %s187 = scalar_select %p186, %s183, 1
          %s188 = smul.addr %s185, 2
          %s189 = sadd.s32 %s187, %s188
          %s190 = smul.addr %s189, 4
          %s191 = scalar_lea.vmem %s0, %s190
          %s192 = smul.u32 2, %s22
        $region16: #{resnet_forward.23} parent=11 // pred_fallthru
          _
      $region12: #{resnet_forward.23} parent=5 // pred_fallthru
        _
      %p193 = scmp.lt.s32.totalorder %s10, 2
      // Predicated region
      $region17: #{resnet_forward.23} parent=5 // pred_check
        %p194 = pneg %p193
      $region18: #{resnet_forward.23} parent=5 // pred_check_branch
        %196 = sbr.rel (%p194) target = $region20
      $region19: #{resnet_forward.23} parent=5 // pred_region
        // Predicated region
        $region21: #{resnet_forward.23} parent=19 // pred_check
          %p197 = pneg %p79
        $region22: #{resnet_forward.23} parent=19 // pred_check_branch
          %199 = sbr.rel (%p197) target = $region24
        $region23: #{resnet_forward.23} parent=19 // pred_region
          %s200 = sand.u32 %s69, 1
          %s201 = sand.u32 %s69, 1
          %s202 = smul.addr %s201, 256
          %s203 = scalar_lea.vmem [#allocation3], %s202
          %s204 = smul.u32 32, %s19
          %s205 = smul.u32 2, %s18
          %s206 = smul.addr %s204, 4
          %s207 = sadd.s32 %s205, %s206
          %s208 = smul.addr %s207, 4
          %s209 = scalar_lea.vmem %s1, %s208
          // Predicated region
          $region25: #{resnet_forward.23} parent=23 // pred_check
            _
          $region26: #{resnet_forward.23} parent=23 // pred_check_branch
            %211 = sbr.rel (0) target = $region28
          $region27: #{resnet_forward.23} parent=23 // pred_region
            // Predicated region
            $region29: #{resnet_forward.23} parent=27 // pred_check
              _
            $region30: #{resnet_forward.23} parent=27 // pred_check_branch
              %213 = sbr.rel (0) target = $region32
            $region31: #{resnet_forward.23} parent=27 // pred_region
              // Predicated region
              $region44: #{resnet_forward.23} parent=31 // pred_check
                _
              $region45: #{resnet_forward.23} parent=31 // pred_check_branch
                %291 = sbr.rel (0) target = $region47
              $region46: #{resnet_forward.23} parent=31 // pred_region
                loop: start=0, step=1, limit=1
                $region48: #{resnet_forward.23} parent=46 // loop_pre_header
                  _
                $region49: #{resnet_forward.23} parent=46 // loop_header
                  %s293 = sphi 0, %s297
                  %p294 = scmp.ge.s32.totalorder %s293, 1
                  %s298 = sphi %s209, %s209
                  %s299 = sphi %s203, %s203
                $region50: #{resnet_forward.23} parent=46 // loop_header_branch
                  %296 = sbr.rel (%p294) target = $region54
                $region51: #{resnet_forward.23} parent=46 // loop_body
                  %v300 = vld [vmem:[%s298] sm:$0xff]
                  %301 = vst [vmem:[%s299] sm:$0xff] %v300
                  %v302 = vld [vmem:[%s298 + $0x10] sm:$0xff]
                  %303 = vst [vmem:[%s299 + $0x8] sm:$0xff] %v302
                  %v304 = vld [vmem:[%s298 + $0x20] sm:$0xff]
                  %305 = vst [vmem:[%s299 + $0x10] sm:$0xff] %v304
                  %v306 = vld [vmem:[%s298 + $0x30] sm:$0xff]
                  %307 = vst [vmem:[%s299 + $0x18] sm:$0xff] %v306
                  %v308 = vld [vmem:[%s298 + $0x40] sm:$0xff]
                  %309 = vst [vmem:[%s299 + $0x20] sm:$0xff] %v308
                  %v310 = vld [vmem:[%s298 + $0x50] sm:$0xff]
                  %311 = vst [vmem:[%s299 + $0x28] sm:$0xff] %v310
                  %v312 = vld [vmem:[%s298 + $0x60] sm:$0xff]
                  %313 = vst [vmem:[%s299 + $0x30] sm:$0xff] %v312
                  %v314 = vld [vmem:[%s298 + $0x70] sm:$0xff]
                  %315 = vst [vmem:[%s299 + $0x38] sm:$0xff] %v314
                  %v316 = vld [vmem:[%s298 + $0x80] sm:$0xff]
                  %317 = vst [vmem:[%s299 + $0x40] sm:$0xff] %v316
                  %v318 = vld [vmem:[%s298 + $0x90] sm:$0xff]
                  %319 = vst [vmem:[%s299 + $0x48] sm:$0xff] %v318
                  %v320 = vld [vmem:[%s298 + $0xa0] sm:$0xff]
                  %321 = vst [vmem:[%s299 + $0x50] sm:$0xff] %v320
                  %v322 = vld [vmem:[%s298 + $0xb0] sm:$0xff]
                  %323 = vst [vmem:[%s299 + $0x58] sm:$0xff] %v322
                  %v324 = vld [vmem:[%s298 + $0xc0] sm:$0xff]
                  %325 = vst [vmem:[%s299 + $0x60] sm:$0xff] %v324
                  %v326 = vld [vmem:[%s298 + $0xd0] sm:$0xff]
                  %327 = vst [vmem:[%s299 + $0x68] sm:$0xff] %v326
                  %v328 = vld [vmem:[%s298 + $0xe0] sm:$0xff]
                  %329 = vst [vmem:[%s299 + $0x70] sm:$0xff] %v328
                  %v330 = vld [vmem:[%s298 + $0xf0] sm:$0xff]
                  %331 = vst [vmem:[%s299 + $0x78] sm:$0xff] %v330
                  %v332 = vld [vmem:[%s298 + $0x100] sm:$0xff]
                  %333 = vst [vmem:[%s299 + $0x80] sm:$0xff] %v332
                  %v334 = vld [vmem:[%s298 + $0x110] sm:$0xff]
                  %335 = vst [vmem:[%s299 + $0x88] sm:$0xff] %v334
                  %v336 = vld [vmem:[%s298 + $0x120] sm:$0xff]
                  %337 = vst [vmem:[%s299 + $0x90] sm:$0xff] %v336
                  %v338 = vld [vmem:[%s298 + $0x130] sm:$0xff]
                  %339 = vst [vmem:[%s299 + $0x98] sm:$0xff] %v338
                  %v340 = vld [vmem:[%s298 + $0x140] sm:$0xff]
                  %341 = vst [vmem:[%s299 + $0xa0] sm:$0xff] %v340
                  %v342 = vld [vmem:[%s298 + $0x150] sm:$0xff]
                  %343 = vst [vmem:[%s299 + $0xa8] sm:$0xff] %v342
                  %v344 = vld [vmem:[%s298 + $0x160] sm:$0xff]
                  %345 = vst [vmem:[%s299 + $0xb0] sm:$0xff] %v344
                  %v346 = vld [vmem:[%s298 + $0x170] sm:$0xff]
                  %347 = vst [vmem:[%s299 + $0xb8] sm:$0xff] %v346
                  %v348 = vld [vmem:[%s298 + $0x180] sm:$0xff]
                  %349 = vst [vmem:[%s299 + $0xc0] sm:$0xff] %v348
                  %v350 = vld [vmem:[%s298 + $0x190] sm:$0xff]
                  %351 = vst [vmem:[%s299 + $0xc8] sm:$0xff] %v350
                  %v352 = vld [vmem:[%s298 + $0x1a0] sm:$0xff]
                  %353 = vst [vmem:[%s299 + $0xd0] sm:$0xff] %v352
                  %v354 = vld [vmem:[%s298 + $0x1b0] sm:$0xff]
                  %355 = vst [vmem:[%s299 + $0xd8] sm:$0xff] %v354
                  %v356 = vld [vmem:[%s298 + $0x1c0] sm:$0xff]
                  %357 = vst [vmem:[%s299 + $0xe0] sm:$0xff] %v356
                  %v358 = vld [vmem:[%s298 + $0x1d0] sm:$0xff]
                  %359 = vst [vmem:[%s299 + $0xe8] sm:$0xff] %v358
                  %v360 = vld [vmem:[%s298 + $0x1e0] sm:$0xff]
                  %361 = vst [vmem:[%s299 + $0xf0] sm:$0xff] %v360
                  %v362 = vld [vmem:[%s298 + $0x1f0] sm:$0xff]
                  %363 = vst [vmem:[%s299 + $0xf8] sm:$0xff] %v362
                $region52: #{resnet_forward.23} parent=46 // loop_footer
                  %s297 = sadd.s32 1, %s293
                $region53: #{resnet_forward.23} parent=46 // loop_footer_branch
                  %292 = sbr.rel target = $region49
                $region54: #{resnet_forward.23} parent=46 // loop_exit
                  _
              $region47: #{resnet_forward.23} parent=31 // pred_fallthru
                _
              // Predicated region
              $region55: #{resnet_forward.23} parent=31 // pred_check
                _
              $region56: #{resnet_forward.23} parent=31 // pred_check_branch
                %365 = sbr.rel target = $region58
              $region57: #{resnet_forward.23} parent=31 // pred_region
                _
              $region58: #{resnet_forward.23} parent=31 // pred_fallthru
                _
            $region32: #{resnet_forward.23} parent=27 // pred_fallthru
              _
            // Predicated region
            $region33: #{resnet_forward.23} parent=27 // pred_check
              _
            $region34: #{resnet_forward.23} parent=27 // pred_check_branch
              %215 = sbr.rel target = $region36
            $region35: #{resnet_forward.23} parent=27 // pred_region
              %s217 = ssub.s32 256, 1
              loop: start=0, step=1, limit=1
              $region37: #{resnet_forward.23} parent=35 // loop_pre_header
                _
              $region38: #{resnet_forward.23} parent=35 // loop_header
                %s219 = sphi 0, %s223
                %p220 = scmp.ge.s32.totalorder %s219, 1
                %s224 = sphi %s209, %s209
                %s225 = sphi %s203, %s203
              $region39: #{resnet_forward.23} parent=35 // loop_header_branch
                %222 = sbr.rel (%p220) target = $region43
              $region40: #{resnet_forward.23} parent=35 // loop_body
                %v226 = vld [vmem:[%s224] sm:%s217]
                %227 = vst [vmem:[%s225] sm:%s217] %v226
                %v228 = vld [vmem:[%s224 + $0x10] sm:%s217]
                %229 = vst [vmem:[%s225 + $0x8] sm:%s217] %v228
                %v230 = vld [vmem:[%s224 + $0x20] sm:%s217]
                %231 = vst [vmem:[%s225 + $0x10] sm:%s217] %v230
                %v232 = vld [vmem:[%s224 + $0x30] sm:%s217]
                %233 = vst [vmem:[%s225 + $0x18] sm:%s217] %v232
                %v234 = vld [vmem:[%s224 + $0x40] sm:%s217]
                %235 = vst [vmem:[%s225 + $0x20] sm:%s217] %v234
                %v236 = vld [vmem:[%s224 + $0x50] sm:%s217]
                %237 = vst [vmem:[%s225 + $0x28] sm:%s217] %v236
                %v238 = vld [vmem:[%s224 + $0x60] sm:%s217]
                %239 = vst [vmem:[%s225 + $0x30] sm:%s217] %v238
                %v240 = vld [vmem:[%s224 + $0x70] sm:%s217]
                %241 = vst [vmem:[%s225 + $0x38] sm:%s217] %v240
                %v242 = vld [vmem:[%s224 + $0x80] sm:%s217]
                %243 = vst [vmem:[%s225 + $0x40] sm:%s217] %v242
                %v244 = vld [vmem:[%s224 + $0x90] sm:%s217]
                %245 = vst [vmem:[%s225 + $0x48] sm:%s217] %v244
                %v246 = vld [vmem:[%s224 + $0xa0] sm:%s217]
                %247 = vst [vmem:[%s225 + $0x50] sm:%s217] %v246
                %v248 = vld [vmem:[%s224 + $0xb0] sm:%s217]
                %249 = vst [vmem:[%s225 + $0x58] sm:%s217] %v248
                %v250 = vld [vmem:[%s224 + $0xc0] sm:%s217]
                %251 = vst [vmem:[%s225 + $0x60] sm:%s217] %v250
                %v252 = vld [vmem:[%s224 + $0xd0] sm:%s217]
                %253 = vst [vmem:[%s225 + $0x68] sm:%s217] %v252
                %v254 = vld [vmem:[%s224 + $0xe0] sm:%s217]
                %255 = vst [vmem:[%s225 + $0x70] sm:%s217] %v254
                %v256 = vld [vmem:[%s224 + $0xf0] sm:%s217]
                %257 = vst [vmem:[%s225 + $0x78] sm:%s217] %v256
                %v258 = vld [vmem:[%s224 + $0x100] sm:%s217]
                %259 = vst [vmem:[%s225 + $0x80] sm:%s217] %v258
                %v260 = vld [vmem:[%s224 + $0x110] sm:%s217]
                %261 = vst [vmem:[%s225 + $0x88] sm:%s217] %v260
                %v262 = vld [vmem:[%s224 + $0x120] sm:%s217]
                %263 = vst [vmem:[%s225 + $0x90] sm:%s217] %v262
                %v264 = vld [vmem:[%s224 + $0x130] sm:%s217]
                %265 = vst [vmem:[%s225 + $0x98] sm:%s217] %v264
                %v266 = vld [vmem:[%s224 + $0x140] sm:%s217]
                %267 = vst [vmem:[%s225 + $0xa0] sm:%s217] %v266
                %v268 = vld [vmem:[%s224 + $0x150] sm:%s217]
                %269 = vst [vmem:[%s225 + $0xa8] sm:%s217] %v268
                %v270 = vld [vmem:[%s224 + $0x160] sm:%s217]
                %271 = vst [vmem:[%s225 + $0xb0] sm:%s217] %v270
                %v272 = vld [vmem:[%s224 + $0x170] sm:%s217]
                %273 = vst [vmem:[%s225 + $0xb8] sm:%s217] %v272
                %v274 = vld [vmem:[%s224 + $0x180] sm:%s217]
                %275 = vst [vmem:[%s225 + $0xc0] sm:%s217] %v274
                %v276 = vld [vmem:[%s224 + $0x190] sm:%s217]
                %277 = vst [vmem:[%s225 + $0xc8] sm:%s217] %v276
                %v278 = vld [vmem:[%s224 + $0x1a0] sm:%s217]
                %279 = vst [vmem:[%s225 + $0xd0] sm:%s217] %v278
                %v280 = vld [vmem:[%s224 + $0x1b0] sm:%s217]
                %281 = vst [vmem:[%s225 + $0xd8] sm:%s217] %v280
                %v282 = vld [vmem:[%s224 + $0x1c0] sm:%s217]
                %283 = vst [vmem:[%s225 + $0xe0] sm:%s217] %v282
                %v284 = vld [vmem:[%s224 + $0x1d0] sm:%s217]
                %285 = vst [vmem:[%s225 + $0xe8] sm:%s217] %v284
                %v286 = vld [vmem:[%s224 + $0x1e0] sm:%s217]
                %287 = vst [vmem:[%s225 + $0xf0] sm:%s217] %v286
                %v288 = vld [vmem:[%s224 + $0x1f0] sm:%s217]
                %289 = vst [vmem:[%s225 + $0xf8] sm:%s217] %v288
              $region41: #{resnet_forward.23} parent=35 // loop_footer
                %s223 = sadd.s32 1, %s219
              $region42: #{resnet_forward.23} parent=35 // loop_footer_branch
                %218 = sbr.rel target = $region38
              $region43: #{resnet_forward.23} parent=35 // loop_exit
                _
            $region36: #{resnet_forward.23} parent=27 // pred_fallthru
              _
          $region28: #{resnet_forward.23} parent=23 // pred_fallthru
            _
          %366 = vnop
        $region24: #{resnet_forward.23} parent=19 // pred_fallthru
          _
        // Predicated region
        $region59: #{resnet_forward.23} parent=19 // pred_check
          %p367 = pneg %p105
        $region60: #{resnet_forward.23} parent=19 // pred_check_branch
          %369 = sbr.rel (%p367) target = $region62
        $region61: #{resnet_forward.23} parent=19 // pred_region
          %s370 = smul.u32 2, %s18
          %p371 = scmp.lt.s32.totalorder %s370, 3
          %s372 = scalar_select %p371, %s370, 3
          %s373 = scalar_lea.vmem %s2, %s372
          %s374 = smul.u32 2, %s18
        $region62: #{resnet_forward.23} parent=19 // pred_fallthru
          _
        // Predicated region
        $region63: #{resnet_forward.23} parent=19 // pred_check
          %p375 = pneg %p131
        $region64: #{resnet_forward.23} parent=19 // pred_check_branch
          %377 = sbr.rel (%p375) target = $region66
        $region65: #{resnet_forward.23} parent=19 // pred_region
          %s378 = smul.u32 2, %s18
          %p379 = scmp.lt.s32.totalorder %s378, 3
          %s380 = scalar_select %p379, %s378, 3
          %s381 = scalar_lea.vmem %s3, %s380
          %s382 = smul.u32 2, %s18
        $region66: #{resnet_forward.23} parent=19 // pred_fallthru
          _
      $region20: #{resnet_forward.23} parent=5 // pred_fallthru
        _
      %p383 = scmp.le.s32.totalorder 1, %s10
      %p384 = scmp.lt.s32.totalorder %s10, 3
      %p385 = pnand %p383, %p384
      %p386 = pneg %p385
      // Predicated region
      $region67: #{resnet_forward.23} parent=5 // pred_check
        _
      $region68: #{resnet_forward.23} parent=5 // pred_check_branch
        %388 = sbr.rel (%p385) target = $region70
      $region69: #{resnet_forward.23} parent=5 // pred_region
        %s389 = ssub.s32 %s10, 1
        %s390 = sand.u32 %s72, 1
        %s391 = sand.u32 %s72, 1
        %s392 = smul.addr %s391, 256
        %s393 = scalar_lea.vmem [#allocation3], %s392
        // Predicated region
        $region71: #{resnet_forward.23} parent=69 // pred_check
          %p394 = pneg %p85
        $region72: #{resnet_forward.23} parent=69 // pred_check_branch
          %396 = sbr.rel (%p394) target = $region74
        $region73: #{resnet_forward.23} parent=69 // pred_region
          _
        $region74: #{resnet_forward.23} parent=69 // pred_fallthru
          _
        %s397 = smul.u32 2, %s22
        %p398 = scmp.lt.s32.totalorder %s20, 0
        %s399 = scalar_select %p398, %s20, 0
        %p400 = scmp.lt.s32.totalorder %s397, 1
        %s401 = scalar_select %p400, %s397, 1
        %s402 = smul.addr %s399, 2
        %s403 = sadd.s32 %s401, %s402
        %s404 = smul.addr %s403, 4
        %s405 = scalar_lea.vmem %s0, %s404
        %p406 = pneg %p57
        %p407 = pneg %p54
        %s408 = sand.u32 %s72, 1
        %s409 = sand.u32 %s72, 1
        %s410 = smul.addr %s409, 256
        %s411 = scalar_lea.vmem [#allocation3], %s410
        %p412 = pneg %p85
        %p413 = pneg %p82
        %s414 = smul.u32 2, %s21
        %p415 = scmp.lt.s32.totalorder %s414, 3
        %s416 = scalar_select %p415, %s414, 3
        %s417 = scalar_lea.vmem %s2, %s416
        %p418 = pneg %p111
        %p419 = pneg %p108
        %s420 = smul.u32 2, %s21
        %p421 = scmp.lt.s32.totalorder %s420, 3
        %s422 = scalar_select %p421, %s420, 3
        %s423 = scalar_lea.vmem %s3, %s422
        %p424 = pneg %p137
        %p425 = pneg %p134
        %p426 = pneg %p165
        %p427 = pneg %p162
        %s428 = smul.u32 2, %s21
        %p429 = scmp.lt.s32.totalorder %s20, 0
        %s430 = scalar_select %p429, %s20, 0
        %p431 = scmp.lt.s32.totalorder %s428, 3
        %s432 = scalar_select %p431, %s428, 3
        %s433 = smul.addr %s430, 4
        %s434 = sadd.s32 %s432, %s433
        %s435 = smul.addr %s434, 8
        %s436 = scalar_lea.vmem %s4, %s435
        %s437 = smul.u32 2, %s22
        %p438 = scmp.lt.s32.totalorder %s20, 0
        %s439 = scalar_select %p438, %s20, 0
        %p440 = scmp.lt.s32.totalorder %s437, 1
        %s441 = scalar_select %p440, %s437, 1
        %s442 = smul.addr %s439, 2
        %s443 = sadd.s32 %s441, %s442
        %s444 = smul.addr %s443, 4
        %s445 = scalar_lea.vmem %s0, %s444
        %s446 = smul.u32 2, %s22
        %s447 = smul.u32 32, %s22
        %s448 = smul.u32 2, %s21
        %s449 = smul.u32 2, %s21
        %p450 = scmp.lt.s32.totalorder %s449, 3
        %s451 = scalar_select %p450, %s449, 3
        %s452 = scalar_lea.vmem %s2, %s451
        %s453 = smul.u32 2, %s21
        %s454 = smul.u32 2, %s21
        %p455 = scmp.lt.s32.totalorder %s454, 3
        %s456 = scalar_select %p455, %s454, 3
        %s457 = scalar_lea.vmem %s3, %s456
        %s458 = smul.u32 2, %s21
        %s459 = smul.u32 2, %s21
        %p460 = scmp.lt.s32.totalorder %s20, 0
        %s461 = scalar_select %p460, %s20, 0
        %p462 = scmp.lt.s32.totalorder %s459, 3
        %s463 = scalar_select %p462, %s459, 3
        %s464 = smul.addr %s461, 4
        %s465 = sadd.s32 %s463, %s464
        %s466 = smul.addr %s465, 8
        %s467 = scalar_lea.vmem %s4, %s466
        %s468 = smul.u32 2, %s21
        %p469 = scmp.eq.s32.totalorder %s22, 0
        // Predicated region
        $region75: #{resnet_forward.23} parent=69 // pred_check
          %p470 = pneg %p469
        $region76: #{resnet_forward.23} parent=69 // pred_check_branch
          %472 = sbr.rel (%p470) target = $region78
        $region77: #{resnet_forward.23} parent=69 // pred_region
          %473 = vst [vmem:[#allocation2] sm:$0xff] 0.0
          %474 = vst [vmem:[#allocation2 + $0x8] sm:$0xff] 0.0
        $region78: #{resnet_forward.23} parent=69 // pred_fallthru
          _
        %v475 = vld [vmem:[#allocation2] sm:$0xff]
        %v476 = vld [vmem:[#allocation2 + $0x8] sm:$0xff]
        %v477 = vld [vmem:[%s445] sm:$0xff]
        %v478 = vld [vmem:[%s393] sm:$0xff]
        %v479 = vld [vmem:[%s393 + $0x8] sm:$0xff]
        %v480 = vld [vmem:[%s393 + $0x10] sm:$0xff]
        %v481 = vld [vmem:[%s393 + $0x18] sm:$0xff]
        %v482 = vld [vmem:[%s393 + $0x20] sm:$0xff]
        %v483 = vld [vmem:[%s393 + $0x28] sm:$0xff]
        %v484 = vld [vmem:[%s393 + $0x30] sm:$0xff]
        %v485 = vld [vmem:[%s393 + $0x38] sm:$0xff]
        %v486 = vld [vmem:[%s393 + $0x40] sm:$0xff]
        %v487 = vld [vmem:[%s393 + $0x48] sm:$0xff]
        %v488 = vld [vmem:[%s393 + $0x50] sm:$0xff]
        %v489 = vld [vmem:[%s393 + $0x58] sm:$0xff]
        %v490 = vld [vmem:[%s393 + $0x60] sm:$0xff]
        %v491 = vld [vmem:[%s393 + $0x68] sm:$0xff]
        %v492 = vld [vmem:[%s393 + $0x70] sm:$0xff]
        %v493 = vld [vmem:[%s393 + $0x78] sm:$0xff]
        %v494 = vld [vmem:[%s393 + $0x80] sm:$0xff]
        %v495 = vld [vmem:[%s393 + $0x88] sm:$0xff]
        %v496 = vld [vmem:[%s393 + $0x90] sm:$0xff]
        %v497 = vld [vmem:[%s393 + $0x98] sm:$0xff]
        %v498 = vld [vmem:[%s393 + $0xa0] sm:$0xff]
        %v499 = vld [vmem:[%s393 + $0xa8] sm:$0xff]
        %v500 = vld [vmem:[%s393 + $0xb0] sm:$0xff]
        %v501 = vld [vmem:[%s393 + $0xb8] sm:$0xff]
        %v502 = vld [vmem:[%s393 + $0xc0] sm:$0xff]
        %v503 = vld [vmem:[%s393 + $0xc8] sm:$0xff]
        %v504 = vld [vmem:[%s393 + $0xd0] sm:$0xff]
        %v505 = vld [vmem:[%s393 + $0xd8] sm:$0xff]
        %v506 = vld [vmem:[%s393 + $0xe0] sm:$0xff]
        %v507 = vld [vmem:[%s393 + $0xe8] sm:$0xff]
        %v508 = vld [vmem:[%s393 + $0xf0] sm:$0xff]
        %v509 = vld [vmem:[%s393 + $0xf8] sm:$0xff]
        %v511 = vunpack.c.l.b16 %v477
        %v512 = vunpack.c.h.b16 %v477
        %v513 = vpack.c.b16 %v511, %v511
        %v514 = vpack.c.b16 %v512, %v512
        %v549 = vunpack.c.l.b16 %v478
        %v550 = vunpack.c.h.b16 %v478
        %v551 = vunpack.c.l.b16 %v479
        %v552 = vunpack.c.h.b16 %v479
        %v553 = vunpack.c.l.b16 %v480
        %v554 = vunpack.c.h.b16 %v480
        %v555 = vunpack.c.l.b16 %v481
        %v556 = vunpack.c.h.b16 %v481
        %v557 = vunpack.c.l.b16 %v482
        %v558 = vunpack.c.h.b16 %v482
        %v559 = vunpack.c.l.b16 %v483
        %v560 = vunpack.c.h.b16 %v483
        %v561 = vunpack.c.l.b16 %v484
        %v562 = vunpack.c.h.b16 %v484
        %v563 = vunpack.c.l.b16 %v485
        %v564 = vunpack.c.h.b16 %v485
        %v565 = vunpack.c.l.b16 %v486
        %v566 = vunpack.c.h.b16 %v486
        %v567 = vunpack.c.l.b16 %v487
        %v568 = vunpack.c.h.b16 %v487
        %v569 = vunpack.c.l.b16 %v488
        %v570 = vunpack.c.h.b16 %v488
        %v571 = vunpack.c.l.b16 %v489
        %v572 = vunpack.c.h.b16 %v489
        %v573 = vunpack.c.l.b16 %v490
        %v574 = vunpack.c.h.b16 %v490
        %v575 = vunpack.c.l.b16 %v491
        %v576 = vunpack.c.h.b16 %v491
        %v577 = vunpack.c.l.b16 %v492
        %v578 = vunpack.c.h.b16 %v492
        %v579 = vunpack.c.l.b16 %v493
        %v580 = vunpack.c.h.b16 %v493
        %v581 = vunpack.c.l.b16 %v494
        %v582 = vunpack.c.h.b16 %v494
        %v583 = vunpack.c.l.b16 %v495
        %v584 = vunpack.c.h.b16 %v495
        %v585 = vunpack.c.l.b16 %v496
        %v586 = vunpack.c.h.b16 %v496
        %v587 = vunpack.c.l.b16 %v497
        %v588 = vunpack.c.h.b16 %v497
        %v589 = vunpack.c.l.b16 %v498
        %v590 = vunpack.c.h.b16 %v498
        %v591 = vunpack.c.l.b16 %v499
        %v592 = vunpack.c.h.b16 %v499
        %v593 = vunpack.c.l.b16 %v500
        %v594 = vunpack.c.h.b16 %v500
        %v595 = vunpack.c.l.b16 %v501
        %v596 = vunpack.c.h.b16 %v501
        %v597 = vunpack.c.l.b16 %v502
        %v598 = vunpack.c.h.b16 %v502
        %v599 = vunpack.c.l.b16 %v503
        %v600 = vunpack.c.h.b16 %v503
        %v601 = vunpack.c.l.b16 %v504
        %v602 = vunpack.c.h.b16 %v504
        %v603 = vunpack.c.l.b16 %v505
        %v604 = vunpack.c.h.b16 %v505
        %v605 = vunpack.c.l.b16 %v506
        %v606 = vunpack.c.h.b16 %v506
        %v607 = vunpack.c.l.b16 %v507
        %v608 = vunpack.c.h.b16 %v507
        %v609 = vunpack.c.l.b16 %v508
        %v610 = vunpack.c.h.b16 %v508
        %v611 = vunpack.c.l.b16 %v509
        %v612 = vunpack.c.h.b16 %v509
        %v613 = vpack.c.b16 %v551, %v549
        %v614 = vpack.c.b16 %v552, %v550
        %v615 = vpack.c.b16 %v555, %v553
        %v616 = vpack.c.b16 %v556, %v554
        %v617 = vpack.c.b16 %v559, %v557
        %v618 = vpack.c.b16 %v560, %v558
        %v619 = vpack.c.b16 %v563, %v561
        %v620 = vpack.c.b16 %v564, %v562
        %v621 = vpack.c.b16 %v567, %v565
        %v622 = vpack.c.b16 %v568, %v566
        %v623 = vpack.c.b16 %v571, %v569
        %v624 = vpack.c.b16 %v572, %v570
        %v625 = vpack.c.b16 %v575, %v573
        %v626 = vpack.c.b16 %v576, %v574
        %v627 = vpack.c.b16 %v579, %v577
        %v628 = vpack.c.b16 %v580, %v578
        %v629 = vpack.c.b16 %v583, %v581
        %v630 = vpack.c.b16 %v584, %v582
        %v631 = vpack.c.b16 %v587, %v585
        %v632 = vpack.c.b16 %v588, %v586
        %v633 = vpack.c.b16 %v591, %v589
        %v634 = vpack.c.b16 %v592, %v590
        %v635 = vpack.c.b16 %v595, %v593
        %v636 = vpack.c.b16 %v596, %v594
        %v637 = vpack.c.b16 %v599, %v597
        %v638 = vpack.c.b16 %v600, %v598
        %v639 = vpack.c.b16 %v603, %v601
        %v640 = vpack.c.b16 %v604, %v602
        %v641 = vpack.c.b16 %v607, %v605
        %v642 = vpack.c.b16 %v608, %v606
        %v643 = vpack.c.b16 %v611, %v609
        %v644 = vpack.c.b16 %v612, %v610
        %677 = vmatpush.bf16.msra.mxu0 %v627
        %678 = vmatpush.bf16.msra.mxu0 %v625
        %679 = vmatpush.bf16.msra.mxu0 %v623
        %680 = vmatpush.bf16.msra.mxu0 %v621
        %681 = vmatpush.bf16.msra.mxu0 %v619
        %682 = vmatpush.bf16.msra.mxu0 %v617
        %683 = vmatpush.bf16.msra.mxu0 %v615
        %684 = vmatpush.bf16.msra.mxu0 %v613
        %685 = vmatmul.bf16.gmra.mxu0 %v513
        %v686 = vpop.f32.mrf.mxu0
        %v687 = vadd.f32 0.0, %v686
        %v688 = vpop.f32.mrf.mxu0
        %689 = vdwg.mxu0
        %690 = vmatpush.bf16.msra.mxu0 %v643
        %691 = vmatpush.bf16.msra.mxu0 %v641
        %692 = vmatpush.bf16.msra.mxu0 %v639
        %693 = vmatpush.bf16.msra.mxu0 %v637
        %694 = vmatpush.bf16.msra.mxu0 %v635
        %695 = vmatpush.bf16.msra.mxu0 %v633
        %696 = vmatpush.bf16.msra.mxu0 %v631
        %697 = vmatpush.bf16.msra.mxu0 %v629
        %698 = vmatmul.bf16.gmra.mxu0 %v514
        %v699 = vpop.f32.mrf.mxu0
        %v700 = vadd.f32 %v687, %v699
        %v701 = vpop.f32.mrf.mxu0
        %702 = vdwg.mxu0
        %703 = vmatpush.bf16.msra.mxu0 %v628
        %704 = vmatpush.bf16.msra.mxu0 %v626
        %705 = vmatpush.bf16.msra.mxu0 %v624
        %706 = vmatpush.bf16.msra.mxu0 %v622
        %707 = vmatpush.bf16.msra.mxu0 %v620
        %708 = vmatpush.bf16.msra.mxu0 %v618
        %709 = vmatpush.bf16.msra.mxu0 %v616
        %710 = vmatpush.bf16.msra.mxu0 %v614
        %711 = vmatmul.bf16.gmra.mxu0 %v513
        %v712 = vpop.f32.mrf.mxu0
        %v713 = vadd.f32 0.0, %v712
        %v714 = vpop.f32.mrf.mxu0
        %715 = vdwg.mxu0
        %716 = vmatpush.bf16.msra.mxu0 %v644
        %717 = vmatpush.bf16.msra.mxu0 %v642
        %718 = vmatpush.bf16.msra.mxu0 %v640
        %719 = vmatpush.bf16.msra.mxu0 %v638
        %720 = vmatpush.bf16.msra.mxu0 %v636
        %721 = vmatpush.bf16.msra.mxu0 %v634
        %722 = vmatpush.bf16.msra.mxu0 %v632
        %723 = vmatpush.bf16.msra.mxu0 %v630
        %724 = vmatmul.bf16.gmra.mxu0 %v514
        %v725 = vpop.f32.mrf.mxu0
        %v726 = vadd.f32 %v713, %v725
        %v727 = vpop.f32.mrf.mxu0
        %728 = vdwg.mxu0
        %v729 = vadd.f32 %v475, %v700
        %v730 = vadd.f32 %v476, %v726
        %731 = vst [vmem:[#allocation2] sm:$0xff] %v729
        %732 = vst [vmem:[#allocation2 + $0x8] sm:$0xff] %v730
        // Predicated region
        $region79: #{resnet_forward.23} parent=69 // pred_check
          %p733 = pneg %p469
        $region80: #{resnet_forward.23} parent=69 // pred_check_branch
          %735 = sbr.rel (%p733) target = $region82
        $region81: #{resnet_forward.23} parent=69 // pred_region
          %v736 = vld [vmem:[#allocation2] sm:$0xff]
          %v737 = vld [vmem:[#allocation2 + $0x8] sm:$0xff]
          %v738 = vld [vmem:[%s452] sm:$0x3]
          %v740 = vperm.slane %v738, 0
          %v741 = vperm.slane %v738, 1
          %v744 = vmul.f32 %v736, %v740
          %v745 = vmul.f32 %v737, %v741
          %v746 = vld [vmem:[%s457] sm:$0x3]
          %v748 = vperm.slane %v746, 0
          %v749 = vperm.slane %v746, 1
          %v752 = vadd.f32 %v744, %v748
          %v753 = vadd.f32 %v745, %v749
          %754 = vst [vmem:[%s467] sm:$0xff] %v752
          %755 = vst [vmem:[%s467 + $0x8] sm:$0xff] %v753
        $region82: #{resnet_forward.23} parent=69 // pred_fallthru
          _
        %s756 = smul.u32 2, %s21
        %p757 = scmp.lt.s32.totalorder %s20, 0
        %s758 = scalar_select %p757, %s20, 0
        %p759 = scmp.lt.s32.totalorder %s756, 3
        %s760 = scalar_select %p759, %s756, 3
        %s761 = smul.addr %s758, 4
        %s762 = sadd.s32 %s760, %s761
        %s763 = smul.addr %s762, 8
        %s764 = scalar_lea.vmem %s4, %s763
        // Predicated region
        $region83: #{resnet_forward.23} parent=69 // pred_check
          %p765 = pneg %p162
        $region84: #{resnet_forward.23} parent=69 // pred_check_branch
          %767 = sbr.rel (%p765) target = $region86
        $region85: #{resnet_forward.23} parent=69 // pred_region
          %s768 = smul.u32 2, %s21
        $region86: #{resnet_forward.23} parent=69 // pred_fallthru
          _
      $region70: #{resnet_forward.23} parent=5 // pred_fallthru
        _
      %p769 = scmp.le.s32.totalorder 2, %s10
      // Predicated region
      $region87: #{resnet_forward.23} parent=5 // pred_check
        %p770 = pneg %p769
      $region88: #{resnet_forward.23} parent=5 // pred_check_branch
        %772 = sbr.rel (%p770) target = $region90
      $region89: #{resnet_forward.23} parent=5 // pred_region
        %s773 = ssub.s32 %s10, 2
        // Predicated region
        $region91: #{resnet_forward.23} parent=89 // pred_check
          %p774 = pneg %p168
        $region92: #{resnet_forward.23} parent=89 // pred_check_branch
          %776 = sbr.rel (%p774) target = $region94
        $region93: #{resnet_forward.23} parent=89 // pred_region
          %s777 = smul.u32 2, %s24
          %p778 = scmp.lt.s32.totalorder %s23, 0
          %s779 = scalar_select %p778, %s23, 0
          %p780 = scmp.lt.s32.totalorder %s777, 3
          %s781 = scalar_select %p780, %s777, 3
          %s782 = smul.addr %s779, 4
          %s783 = sadd.s32 %s781, %s782
          %s784 = smul.addr %s783, 8
          %s785 = scalar_lea.vmem %s4, %s784
        $region94: #{resnet_forward.23} parent=89 // pred_fallthru
          _
      $region90: #{resnet_forward.23} parent=5 // pred_fallthru
        _
    $region6: #{resnet_forward.23} parent=1 // loop_footer
      %s14 = sadd.s32 1, %s10
    $region7: #{resnet_forward.23} parent=1 // loop_footer_branch
      %9 = sbr.rel target = $region3
    $region8: #{resnet_forward.23} parent=1 // loop_exit
      _

// kernel: resnet_forward.25
$region0: #{resnet_forward.25}
  #allocation0 [shape = 'u32[]', space=smem, size = 0x4, offset = 0x4, fixed_abs, tag = 'smem constant byte address 0x4 - core index']
  #allocation1 [shape = 'u32[72,128]{1,0:T(1,128)}', space=vmem, size = 0x9000, scoped, tag = 'internal scratch']
  %s0 = inlined_call_operand.vmem [shape: f32[2,1,512], index: 0, kind: input, shape index: {}]
  %s1 = inlined_call_operand.vmem [shape: f32[512,128], index: 1, kind: input, shape index: {}]
  %s2 = inlined_call_operand.vmem [shape: f32[1,128], index: 2, kind: input, shape index: {}]
  %s3 = inlined_call_operand.hbm [shape: f32[2,128], index: 3, kind: output, shape index: {}]
  %s4 = sld [smem:[#allocation0]]
  $region22: #{resnet_forward.25} parent=0
    _
  %s6 = ssub.s32 1, %s4
  %s7 = scalar_select 0, %s6, %s4
  $region1: #{resnet_forward.25} parent=0
    #allocation2 [shape = 'u8[1024]{0}', space=vmem, size = 0x400, scoped, tag = 'output window, operand 0, single buffered']
    #allocation3 [shape = 's32[1]{0}', space=sflag, size = 0x4, scoped, tag = 'scoped memory for resnet_forward.25']
    %8 = vsyncpa [#allocation3], 0
    // Predicated region
    $region2: #{resnet_forward.25} parent=1 // pred_check
      _
    $region3: #{resnet_forward.25} parent=1 // pred_check_branch
      %10 = sbr.rel (0) target = $region5
    $region4: #{resnet_forward.25} parent=1 // pred_region
      _
    $region5: #{resnet_forward.25} parent=1 // pred_fallthru
      _
    // Predicated region
    $region6: #{resnet_forward.25} parent=1 // pred_check
      _
    $region7: #{resnet_forward.25} parent=1 // pred_check_branch
      %12 = sbr.rel (0) target = $region9
    $region8: #{resnet_forward.25} parent=1 // pred_region
      _
    $region9: #{resnet_forward.25} parent=1 // pred_fallthru
      _
    // Predicated region
    $region10: #{resnet_forward.25} parent=1 // pred_check
      _
    $region11: #{resnet_forward.25} parent=1 // pred_check_branch
      %14 = sbr.rel (0) target = $region13
    $region12: #{resnet_forward.25} parent=1 // pred_region
      _
    $region13: #{resnet_forward.25} parent=1 // pred_fallthru
      _
    %v15 = vld [vmem:[%s0] sm:$0xf]
    %v16 = vld [vmem:[%s0 + $0x4] sm:$0xf]
    %v17 = vadd.f32 %v15, 0.0
    %v18 = vadd.f32 %v16, 0.0
    %v19 = vld [vmem:[%s1] sm:$0xff]
    %v20 = vld [vmem:[%s1 + $0x8] sm:$0xff]
    %v21 = vld [vmem:[%s1 + $0x10] sm:$0xff]
    %v22 = vld [vmem:[%s1 + $0x18] sm:$0xff]
    %v23 = vld [vmem:[%s1 + $0x20] sm:$0xff]
    %v24 = vld [vmem:[%s1 + $0x28] sm:$0xff]
    %v25 = vld [vmem:[%s1 + $0x30] sm:$0xff]
    %v26 = vld [vmem:[%s1 + $0x38] sm:$0xff]
    %v27 = vld [vmem:[%s1 + $0x40] sm:$0xff]
    %v28 = vld [vmem:[%s1 + $0x48] sm:$0xff]
    %v29 = vld [vmem:[%s1 + $0x50] sm:$0xff]
    %v30 = vld [vmem:[%s1 + $0x58] sm:$0xff]
    %v31 = vld [vmem:[%s1 + $0x60] sm:$0xff]
    %v32 = vld [vmem:[%s1 + $0x68] sm:$0xff]
    %v33 = vld [vmem:[%s1 + $0x70] sm:$0xff]
    %v34 = vld [vmem:[%s1 + $0x78] sm:$0xff]
    %v35 = vld [vmem:[%s1 + $0x80] sm:$0xff]
    %v36 = vld [vmem:[%s1 + $0x88] sm:$0xff]
    %v37 = vld [vmem:[%s1 + $0x90] sm:$0xff]
    %v38 = vld [vmem:[%s1 + $0x98] sm:$0xff]
    %v39 = vld [vmem:[%s1 + $0xa0] sm:$0xff]
    %v40 = vld [vmem:[%s1 + $0xa8] sm:$0xff]
    %v41 = vld [vmem:[%s1 + $0xb0] sm:$0xff]
    %v42 = vld [vmem:[%s1 + $0xb8] sm:$0xff]
    %v43 = vld [vmem:[%s1 + $0xc0] sm:$0xff]
    %v44 = vld [vmem:[%s1 + $0xc8] sm:$0xff]
    %v45 = vld [vmem:[%s1 + $0xd0] sm:$0xff]
    %v46 = vld [vmem:[%s1 + $0xd8] sm:$0xff]
    %v47 = vld [vmem:[%s1 + $0xe0] sm:$0xff]
    %v48 = vld [vmem:[%s1 + $0xe8] sm:$0xff]
    %v49 = vld [vmem:[%s1 + $0xf0] sm:$0xff]
    %v50 = vld [vmem:[%s1 + $0xf8] sm:$0xff]
    %v51 = vld [vmem:[%s1 + $0x100] sm:$0xff]
    %v52 = vld [vmem:[%s1 + $0x108] sm:$0xff]
    %v53 = vld [vmem:[%s1 + $0x110] sm:$0xff]
    %v54 = vld [vmem:[%s1 + $0x118] sm:$0xff]
    %v55 = vld [vmem:[%s1 + $0x120] sm:$0xff]
    %v56 = vld [vmem:[%s1 + $0x128] sm:$0xff]
    %v57 = vld [vmem:[%s1 + $0x130] sm:$0xff]
    %v58 = vld [vmem:[%s1 + $0x138] sm:$0xff]
    %v59 = vld [vmem:[%s1 + $0x140] sm:$0xff]
    %v60 = vld [vmem:[%s1 + $0x148] sm:$0xff]
    %v61 = vld [vmem:[%s1 + $0x150] sm:$0xff]
    %v62 = vld [vmem:[%s1 + $0x158] sm:$0xff]
    %v63 = vld [vmem:[%s1 + $0x160] sm:$0xff]
    %v64 = vld [vmem:[%s1 + $0x168] sm:$0xff]
    %v65 = vld [vmem:[%s1 + $0x170] sm:$0xff]
    %v66 = vld [vmem:[%s1 + $0x178] sm:$0xff]
    %v67 = vld [vmem:[%s1 + $0x180] sm:$0xff]
    %v68 = vld [vmem:[%s1 + $0x188] sm:$0xff]
    %v69 = vld [vmem:[%s1 + $0x190] sm:$0xff]
    %v70 = vld [vmem:[%s1 + $0x198] sm:$0xff]
    %v71 = vld [vmem:[%s1 + $0x1a0] sm:$0xff]
    %v72 = vld [vmem:[%s1 + $0x1a8] sm:$0xff]
    %v73 = vld [vmem:[%s1 + $0x1b0] sm:$0xff]
    %v74 = vld [vmem:[%s1 + $0x1b8] sm:$0xff]
    %v75 = vld [vmem:[%s1 + $0x1c0] sm:$0xff]
    %v76 = vld [vmem:[%s1 + $0x1c8] sm:$0xff]
    %v77 = vld [vmem:[%s1 + $0x1d0] sm:$0xff]
    %v78 = vld [vmem:[%s1 + $0x1d8] sm:$0xff]
    %v79 = vld [vmem:[%s1 + $0x1e0] sm:$0xff]
    %v80 = vld [vmem:[%s1 + $0x1e8] sm:$0xff]
    %v81 = vld [vmem:[%s1 + $0x1f0] sm:$0xff]
    %v82 = vld [vmem:[%s1 + $0x1f8] sm:$0xff]
    %v83 = vld [vmem:[%s2] sm:$0x1]
    %v85 = vperm.slane %v83, 0
    %89 = vst [vmem:[#allocation1] ss:$9 sm:$0xff] %v17
    %s90 = scalar_lea.vmem [#allocation1], 1
    %91 = vst [vmem:[%s90] ss:$9 sm:$0xff] %v18
    %v92 = vld [vmem:[#allocation1] sm:$0xff]
    %v93 = vld [vmem:[#allocation1 + $0x9] sm:$0xff]
    %v94 = vld [vmem:[#allocation1 + $0x12] sm:$0xff]
    %v95 = vld [vmem:[#allocation1 + $0x1b] sm:$0xff]
    %100 = vmatpush.msra.mxu0 %v34
    %101 = vmatpush.msra.mxu0 %v33
    %102 = vmatpush.msra.mxu0 %v32
    %103 = vmatpush.msra.mxu0 %v31
    %104 = vmatpush.msra.mxu0 %v30
    %105 = vmatpush.msra.mxu0 %v29
    %106 = vmatpush.msra.mxu0 %v28
    %107 = vmatpush.msra.mxu0 %v27
    %108 = vmatpush.msra.mxu0 %v26
    %109 = vmatpush.msra.mxu0 %v25
    %110 = vmatpush.msra.mxu0 %v24
    %111 = vmatpush.msra.mxu0 %v23
    %112 = vmatpush.msra.mxu0 %v22
    %113 = vmatpush.msra.mxu0 %v21
    %114 = vmatpush.msra.mxu0 %v20
    %115 = vmatpush.msra.mxu0 %v19
    %116 = vmatmul.f32.gmra.mxu0 %v92
    %v117 = vpop.f32.mrf.mxu0
    %v118 = vadd.f32 %v85, %v117
    %119 = vdwg.mxu0
    %120 = vmatpush.msra.mxu0 %v50
    %121 = vmatpush.msra.mxu0 %v49
    %122 = vmatpush.msra.mxu0 %v48
    %123 = vmatpush.msra.mxu0 %v47
    %124 = vmatpush.msra.mxu0 %v46
    %125 = vmatpush.msra.mxu0 %v45
    %126 = vmatpush.msra.mxu0 %v44
    %127 = vmatpush.msra.mxu0 %v43
    %128 = vmatpush.msra.mxu0 %v42
    %129 = vmatpush.msra.mxu0 %v41
    %130 = vmatpush.msra.mxu0 %v40
    %131 = vmatpush.msra.mxu0 %v39
    %132 = vmatpush.msra.mxu0 %v38
    %133 = vmatpush.msra.mxu0 %v37
    %134 = vmatpush.msra.mxu0 %v36
    %135 = vmatpush.msra.mxu0 %v35
    %136 = vmatmul.f32.gmra.mxu0 %v93
    %v137 = vpop.f32.mrf.mxu0
    %v138 = vadd.f32 %v118, %v137
    %139 = vdwg.mxu0
    %140 = vmatpush.msra.mxu0 %v66
    %141 = vmatpush.msra.mxu0 %v65
    %142 = vmatpush.msra.mxu0 %v64
    %143 = vmatpush.msra.mxu0 %v63
    %144 = vmatpush.msra.mxu0 %v62
    %145 = vmatpush.msra.mxu0 %v61
    %146 = vmatpush.msra.mxu0 %v60
    %147 = vmatpush.msra.mxu0 %v59
    %148 = vmatpush.msra.mxu0 %v58
    %149 = vmatpush.msra.mxu0 %v57
    %150 = vmatpush.msra.mxu0 %v56
    %151 = vmatpush.msra.mxu0 %v55
    %152 = vmatpush.msra.mxu0 %v54
    %153 = vmatpush.msra.mxu0 %v53
    %154 = vmatpush.msra.mxu0 %v52
    %155 = vmatpush.msra.mxu0 %v51
    %156 = vmatmul.f32.gmra.mxu0 %v94
    %v157 = vpop.f32.mrf.mxu0
    %v158 = vadd.f32 %v138, %v157
    %159 = vdwg.mxu0
    %160 = vmatpush.msra.mxu0 %v82
    %161 = vmatpush.msra.mxu0 %v81
    %162 = vmatpush.msra.mxu0 %v80
    %163 = vmatpush.msra.mxu0 %v79
    %164 = vmatpush.msra.mxu0 %v78
    %165 = vmatpush.msra.mxu0 %v77
    %166 = vmatpush.msra.mxu0 %v76
    %167 = vmatpush.msra.mxu0 %v75
    %168 = vmatpush.msra.mxu0 %v74
    %169 = vmatpush.msra.mxu0 %v73
    %170 = vmatpush.msra.mxu0 %v72
    %171 = vmatpush.msra.mxu0 %v71
    %172 = vmatpush.msra.mxu0 %v70
    %173 = vmatpush.msra.mxu0 %v69
    %174 = vmatpush.msra.mxu0 %v68
    %175 = vmatpush.msra.mxu0 %v67
    %176 = vmatmul.f32.gmra.mxu0 %v95
    %v177 = vpop.f32.mrf.mxu0
    %v178 = vadd.f32 %v158, %v177
    %179 = vdwg.mxu0
    %180 = vst [vmem:[#allocation2] sm:$0x3] %v178
    // Predicated region
    $region14: #{resnet_forward.25} parent=1 // pred_check
      _
    $region15: #{resnet_forward.25} parent=1 // pred_check_branch
      %182 = sbr.rel (0) target = $region17
    $region16: #{resnet_forward.25} parent=1 // pred_region
      %184 = vsyncadd [#allocation3], 0
      %s186 = sshll.u32 [#allocation2], 4
      %s187 = int_to_ptr.vmem [resolvable:$true] %s186
      %s188 = sshll.u32 %s3, 4
      %s189 = int_to_ptr.hbm [resolvable:$true] %s188
      %191 = dma.vmem_to_hbm [thread:$0]  %s187, 32, %s189, [#allocation3]
    $region17: #{resnet_forward.25} parent=1 // pred_fallthru
      _
    // Predicated region
    $region18: #{resnet_forward.25} parent=1 // pred_check
      _
    $region19: #{resnet_forward.25} parent=1 // pred_check_branch
      %193 = sbr.rel (0) target = $region21
    $region20: #{resnet_forward.25} parent=1 // pred_region
      %195 = dma.done [#allocation3], 32
    $region21: #{resnet_forward.25} parent=1 // pred_fallthru
      _
    %196 = vsyncpa [#allocation3], 1

// kernel: resnet_forward.24
$region0: #{resnet_forward.24}
  #allocation0 [shape = 'u32[]', space=smem, size = 0x4, offset = 0x4, fixed_abs, tag = 'smem constant byte address 0x4 - core index']
  #allocation1 [shape = 'u32[72,128]{1,0:T(1,128)}', space=vmem, size = 0x9000, scoped, tag = 'internal scratch']
  #allocation2 [shape = 'f32[8,256]{1,0:T(8,128)}', space=vmem, size = 0x2000, scoped, tag = 'scratch operand']
  %s0 = inlined_call_operand.vmem [shape: bf16[8,4608], index: 0, kind: input, shape index: {}]
  %s1 = inlined_call_operand.vmem [shape: bf16[4608,512], index: 1, kind: input, shape index: {}]
  %s2 = inlined_call_operand.vmem [shape: f32[1,512], index: 2, kind: input, shape index: {}]
  %s3 = inlined_call_operand.vmem [shape: f32[1,512], index: 3, kind: input, shape index: {}]
  %s4 = inlined_call_operand.vmem [shape: f32[8,512], index: 4, kind: input, shape index: {}]
  %s5 = inlined_call_operand.vmem [shape: f32[8,512], index: 5, kind: output, shape index: {}]
  %s6 = sld [smem:[#allocation0]]
  $region99: #{resnet_forward.24} parent=0
    _
  %s8 = ssub.s32 1, %s6
  %s9 = scalar_select 0, %s8, %s6
  $region1: #{resnet_forward.24} parent=0
    #allocation3 [shape = 'u8[524288]{0}', space=vmem, size = 0x80000, scoped, tag = 'input window, operand 1']
    loop: start=0, step=1, limit=20
    $region2: #{resnet_forward.24} parent=1 // loop_pre_header
      _
    $region3: #{resnet_forward.24} parent=1 // loop_header
      %s11 = sphi 0, %s15
      %p12 = scmp.ge.s32.totalorder %s11, 20
      %s18 = sphi 0, %s37
      %s19 = sphi 0, %s33
      %s20 = sphi 0, %s29
      %s21 = sphi 0, %s18
      %s22 = sphi 0, %s19
      %s23 = sphi 0, %s20
      %s24 = sphi 0, %s21
      %s25 = sphi 0, %s22
      %s26 = sphi 0, %s23
      %s42 = sphi 0, %s44
      %s45 = sphi 0, %s42
      %s46 = sphi 0, %s45
      %s62 = sphi 0, %s46
      %s70 = sphi 0, %s72
      %s73 = sphi 0, %s70
      %s74 = sphi 0, %s73
      %s90 = sphi 0, %s74
      %s96 = sphi 0, %s98
      %s99 = sphi 0, %s96
      %s100 = sphi 0, %s99
      %s116 = sphi 0, %s100
      %s122 = sphi 0, %s124
      %s125 = sphi 0, %s122
      %s126 = sphi 0, %s125
      %s142 = sphi 0, %s126
      %s150 = sphi 0, %s152
      %s153 = sphi 0, %s150
      %s154 = sphi 0, %s153
      %s170 = sphi 0, %s154
      %s178 = sphi 0, %s180
      %s181 = sphi 0, %s178
      %s182 = sphi 0, %s181
      %s198 = sphi 0, %s182
    $region4: #{resnet_forward.24} parent=1 // loop_header_branch
      %14 = sbr.rel (%p12) target = $region8
    $region5: #{resnet_forward.24} parent=1 // loop_body
      %s16 = ssub.s32 %s11, 1
      %s17 = ssub.s32 %s11, 2
      %s27 = sadd.s32 1, %s20
      %p28 = scmp.ge.s32.totalorder %s27, 9
      %s29 = scalar_select %p28, 0, %s27
      %s30 = sadd.s32 1, %s19
      %s31 = scalar_select %p28, %s30, %s19
      %p32 = scmp.ge.s32.totalorder %s31, 2
      %s33 = scalar_select %p32, 0, %s31
      %s34 = sadd.s32 1, %s18
      %s35 = scalar_select %p32, %s34, %s18
      %p36 = scmp.ge.s32.totalorder %s35, 1
      %s37 = scalar_select %p36, 0, %s35
      %s38 = ssub.s32 %s18, %s37
      %s39 = ssub.s32 %s20, %s29
      %s40 = sor.u32 %s38, %s39
      %p41 = scmp.eq.s32.totalorder %s40, 0
      %s43 = sadd.s32 %s42, 1
      %s44 = scalar_select %p41, %s42, %s43
      %p47 = pneg %p41
      %p48 = scmp.eq.s32.totalorder %s11, 17
      %p49 = por %p47, %p48
      %p50 = scmp.ne.s32.totalorder %s42, %s45
      %p51 = scmp.eq.s32.totalorder %s11, 0
      %p52 = por %p50, %p51
      %p53 = scmp.ne.s32.totalorder %s42, %s45
      %p54 = scmp.eq.s32.totalorder %s16, 17
      %p55 = por %p53, %p54
      %p56 = scmp.ne.s32.totalorder %s45, %s46
      %p57 = scmp.eq.s32.totalorder %s16, 0
      %p58 = por %p56, %p57
      %p59 = scmp.ne.s32.totalorder %s45, %s46
      %p60 = scmp.eq.s32.totalorder %s17, 17
      %p61 = por %p59, %p60
      %p63 = scmp.ne.s32.totalorder %s46, %s62
      %p64 = scmp.eq.s32.totalorder %s17, 0
      %p65 = por %p63, %p64
      %s66 = ssub.s32 %s20, %s29
      %s67 = ssub.s32 %s19, %s33
      %s68 = sor.u32 %s66, %s67
      %p69 = scmp.eq.s32.totalorder %s68, 0
      %s71 = sadd.s32 %s70, 1
      %s72 = scalar_select %p69, %s70, %s71
      %p75 = pneg %p69
      %p76 = scmp.eq.s32.totalorder %s11, 17
      %p77 = por %p75, %p76
      %p78 = scmp.ne.s32.totalorder %s70, %s73
      %p79 = scmp.eq.s32.totalorder %s11, 0
      %p80 = por %p78, %p79
      %p81 = scmp.ne.s32.totalorder %s70, %s73
      %p82 = scmp.eq.s32.totalorder %s16, 17
      %p83 = por %p81, %p82
      %p84 = scmp.ne.s32.totalorder %s73, %s74
      %p85 = scmp.eq.s32.totalorder %s16, 0
      %p86 = por %p84, %p85
      %p87 = scmp.ne.s32.totalorder %s73, %s74
      %p88 = scmp.eq.s32.totalorder %s17, 17
      %p89 = por %p87, %p88
      %p91 = scmp.ne.s32.totalorder %s74, %s90
      %p92 = scmp.eq.s32.totalorder %s17, 0
      %p93 = por %p91, %p92
      %s94 = ssub.s32 %s19, %s33
      %p95 = scmp.eq.s32.totalorder %s94, 0
      %s97 = sadd.s32 %s96, 1
      %s98 = scalar_select %p95, %s96, %s97
      %p101 = pneg %p95
      %p102 = scmp.eq.s32.totalorder %s11, 17
      %p103 = por %p101, %p102
      %p104 = scmp.ne.s32.totalorder %s96, %s99
      %p105 = scmp.eq.s32.totalorder %s11, 0
      %p106 = por %p104, %p105
      %p107 = scmp.ne.s32.totalorder %s96, %s99
      %p108 = scmp.eq.s32.totalorder %s16, 17
      %p109 = por %p107, %p108
      %p110 = scmp.ne.s32.totalorder %s99, %s100
      %p111 = scmp.eq.s32.totalorder %s16, 0
      %p112 = por %p110, %p111
      %p113 = scmp.ne.s32.totalorder %s99, %s100
      %p114 = scmp.eq.s32.totalorder %s17, 17
      %p115 = por %p113, %p114
      %p117 = scmp.ne.s32.totalorder %s100, %s116
      %p118 = scmp.eq.s32.totalorder %s17, 0
      %p119 = por %p117, %p118
      %s120 = ssub.s32 %s19, %s33
      %p121 = scmp.eq.s32.totalorder %s120, 0
      %s123 = sadd.s32 %s122, 1
      %s124 = scalar_select %p121, %s122, %s123
      %p127 = pneg %p121
      %p128 = scmp.eq.s32.totalorder %s11, 17
      %p129 = por %p127, %p128
      %p130 = scmp.ne.s32.totalorder %s122, %s125
      %p131 = scmp.eq.s32.totalorder %s11, 0
      %p132 = por %p130, %p131
      %p133 = scmp.ne.s32.totalorder %s122, %s125
      %p134 = scmp.eq.s32.totalorder %s16, 17
      %p135 = por %p133, %p134
      %p136 = scmp.ne.s32.totalorder %s125, %s126
      %p137 = scmp.eq.s32.totalorder %s16, 0
      %p138 = por %p136, %p137
      %p139 = scmp.ne.s32.totalorder %s125, %s126
      %p140 = scmp.eq.s32.totalorder %s17, 17
      %p141 = por %p139, %p140
      %p143 = scmp.ne.s32.totalorder %s126, %s142
      %p144 = scmp.eq.s32.totalorder %s17, 0
      %p145 = por %p143, %p144
      %s146 = ssub.s32 %s18, %s37
      %s147 = ssub.s32 %s19, %s33
      %s148 = sor.u32 %s146, %s147
      %p149 = scmp.eq.s32.totalorder %s148, 0
      %s151 = sadd.s32 %s150, 1
      %s152 = scalar_select %p149, %s150, %s151
      %p155 = pneg %p149
      %p156 = scmp.eq.s32.totalorder %s11, 17
      %p157 = por %p155, %p156
      %p158 = scmp.ne.s32.totalorder %s150, %s153
      %p159 = scmp.eq.s32.totalorder %s11, 0
      %p160 = por %p158, %p159
      %p161 = scmp.ne.s32.totalorder %s150, %s153
      %p162 = scmp.eq.s32.totalorder %s16, 17
      %p163 = por %p161, %p162
      %p164 = scmp.ne.s32.totalorder %s153, %s154
      %p165 = scmp.eq.s32.totalorder %s16, 0
      %p166 = por %p164, %p165
      %p167 = scmp.ne.s32.totalorder %s153, %s154
      %p168 = scmp.eq.s32.totalorder %s17, 17
      %p169 = por %p167, %p168
      %p171 = scmp.ne.s32.totalorder %s154, %s170
      %p172 = scmp.eq.s32.totalorder %s17, 0
      %p173 = por %p171, %p172
      %s174 = ssub.s32 %s18, %s37
      %s175 = ssub.s32 %s19, %s33
      %s176 = sor.u32 %s174, %s175
      %p177 = scmp.eq.s32.totalorder %s176, 0
      %s179 = sadd.s32 %s178, 1
      %s180 = scalar_select %p177, %s178, %s179
      %p183 = pneg %p177
      %p184 = scmp.eq.s32.totalorder %s11, 17
      %p185 = por %p183, %p184
      %p186 = scmp.ne.s32.totalorder %s178, %s181
      %p187 = scmp.eq.s32.totalorder %s11, 0
      %p188 = por %p186, %p187
      %p189 = scmp.ne.s32.totalorder %s178, %s181
      %p190 = scmp.eq.s32.totalorder %s16, 17
      %p191 = por %p189, %p190
      %p192 = scmp.ne.s32.totalorder %s181, %s182
      %p193 = scmp.eq.s32.totalorder %s16, 0
      %p194 = por %p192, %p193
      %p195 = scmp.ne.s32.totalorder %s181, %s182
      %p196 = scmp.eq.s32.totalorder %s17, 17
      %p197 = por %p195, %p196
      %p199 = scmp.ne.s32.totalorder %s182, %s198
      %p200 = scmp.eq.s32.totalorder %s17, 0
      %p201 = por %p199, %p200
      %p202 = scmp.le.s32.totalorder 1, %s11
      %p203 = scmp.lt.s32.totalorder %s11, 19
      %p204 = pnand %p202, %p203
      %p205 = pneg %p204
      // Predicated region
      $region9: #{resnet_forward.24} parent=5 // pred_check
        _
      $region10: #{resnet_forward.24} parent=5 // pred_check_branch
        %207 = sbr.rel (%p204) target = $region12
      $region11: #{resnet_forward.24} parent=5 // pred_region
        %s208 = ssub.s32 %s11, 1
      $region12: #{resnet_forward.24} parent=5 // pred_fallthru
        _
      %p209 = scmp.lt.s32.totalorder %s11, 18
      // Predicated region
      $region13: #{resnet_forward.24} parent=5 // pred_check
        %p210 = pneg %p209
      $region14: #{resnet_forward.24} parent=5 // pred_check_branch
        %212 = sbr.rel (%p210) target = $region16
      $region15: #{resnet_forward.24} parent=5 // pred_region
        // Predicated region
        $region17: #{resnet_forward.24} parent=15 // pred_check
          %p213 = pneg %p52
        $region18: #{resnet_forward.24} parent=15 // pred_check_branch
          %215 = sbr.rel (%p213) target = $region20
        $region19: #{resnet_forward.24} parent=15 // pred_region
          %s216 = smul.u32 4, %s20
          %p217 = scmp.lt.s32.totalorder %s18, 0
          %s218 = scalar_select %p217, %s18, 0
          %p219 = scmp.lt.s32.totalorder %s216, 35
          %s220 = scalar_select %p219, %s216, 35
          %s221 = smul.addr %s218, 36
          %s222 = sadd.s32 %s220, %s221
          %s223 = smul.addr %s222, 4
          %s224 = scalar_lea.vmem %s0, %s223
          %s225 = smul.u32 4, %s20
        $region20: #{resnet_forward.24} parent=15 // pred_fallthru
          _
        // Predicated region
        $region21: #{resnet_forward.24} parent=15 // pred_check
          %p226 = pneg %p80
        $region22: #{resnet_forward.24} parent=15 // pred_check_branch
          %228 = sbr.rel (%p226) target = $region24
        $region23: #{resnet_forward.24} parent=15 // pred_region
          %s229 = sand.u32 %s70, 1
          %s230 = sand.u32 %s70, 1
          %s231 = smul.addr %s230, 512
          %s232 = scalar_lea.vmem [#allocation3], %s231
          %s233 = smul.u32 64, %s20
          %s234 = smul.u32 2, %s19
          %s235 = smul.addr %s233, 4
          %s236 = sadd.s32 %s234, %s235
          %s237 = smul.addr %s236, 4
          %s238 = scalar_lea.vmem %s1, %s237
          // Predicated region
          $region25: #{resnet_forward.24} parent=23 // pred_check
            _
          $region26: #{resnet_forward.24} parent=23 // pred_check_branch
            %240 = sbr.rel (0) target = $region28
          $region27: #{resnet_forward.24} parent=23 // pred_region
            // Predicated region
            $region29: #{resnet_forward.24} parent=27 // pred_check
              _
            $region30: #{resnet_forward.24} parent=27 // pred_check_branch
              %242 = sbr.rel (0) target = $region32
            $region31: #{resnet_forward.24} parent=27 // pred_region
              // Predicated region
              $region44: #{resnet_forward.24} parent=31 // pred_check
                _
              $region45: #{resnet_forward.24} parent=31 // pred_check_branch
                %384 = sbr.rel (0) target = $region47
              $region46: #{resnet_forward.24} parent=31 // pred_region
                loop: start=0, step=1, limit=1
                $region48: #{resnet_forward.24} parent=46 // loop_pre_header
                  _
                $region49: #{resnet_forward.24} parent=46 // loop_header
                  %s386 = sphi 0, %s390
                  %p387 = scmp.ge.s32.totalorder %s386, 1
                  %s391 = sphi %s238, %s238
                  %s392 = sphi %s232, %s232
                $region50: #{resnet_forward.24} parent=46 // loop_header_branch
                  %389 = sbr.rel (%p387) target = $region54
                $region51: #{resnet_forward.24} parent=46 // loop_body
                  %v393 = vld [vmem:[%s391] sm:$0xff]
                  %394 = vst [vmem:[%s392] sm:$0xff] %v393
                  %v395 = vld [vmem:[%s391 + $0x10] sm:$0xff]
                  %396 = vst [vmem:[%s392 + $0x8] sm:$0xff] %v395
                  %v397 = vld [vmem:[%s391 + $0x20] sm:$0xff]
                  %398 = vst [vmem:[%s392 + $0x10] sm:$0xff] %v397
                  %v399 = vld [vmem:[%s391 + $0x30] sm:$0xff]
                  %400 = vst [vmem:[%s392 + $0x18] sm:$0xff] %v399
                  %v401 = vld [vmem:[%s391 + $0x40] sm:$0xff]
                  %402 = vst [vmem:[%s392 + $0x20] sm:$0xff] %v401
                  %v403 = vld [vmem:[%s391 + $0x50] sm:$0xff]
                  %404 = vst [vmem:[%s392 + $0x28] sm:$0xff] %v403
                  %v405 = vld [vmem:[%s391 + $0x60] sm:$0xff]
                  %406 = vst [vmem:[%s392 + $0x30] sm:$0xff] %v405
                  %v407 = vld [vmem:[%s391 + $0x70] sm:$0xff]
                  %408 = vst [vmem:[%s392 + $0x38] sm:$0xff] %v407
                  %v409 = vld [vmem:[%s391 + $0x80] sm:$0xff]
                  %410 = vst [vmem:[%s392 + $0x40] sm:$0xff] %v409
                  %v411 = vld [vmem:[%s391 + $0x90] sm:$0xff]
                  %412 = vst [vmem:[%s392 + $0x48] sm:$0xff] %v411
                  %v413 = vld [vmem:[%s391 + $0xa0] sm:$0xff]
                  %414 = vst [vmem:[%s392 + $0x50] sm:$0xff] %v413
                  %v415 = vld [vmem:[%s391 + $0xb0] sm:$0xff]
                  %416 = vst [vmem:[%s392 + $0x58] sm:$0xff] %v415
                  %v417 = vld [vmem:[%s391 + $0xc0] sm:$0xff]
                  %418 = vst [vmem:[%s392 + $0x60] sm:$0xff] %v417
                  %v419 = vld [vmem:[%s391 + $0xd0] sm:$0xff]
                  %420 = vst [vmem:[%s392 + $0x68] sm:$0xff] %v419
                  %v421 = vld [vmem:[%s391 + $0xe0] sm:$0xff]
                  %422 = vst [vmem:[%s392 + $0x70] sm:$0xff] %v421
                  %v423 = vld [vmem:[%s391 + $0xf0] sm:$0xff]
                  %424 = vst [vmem:[%s392 + $0x78] sm:$0xff] %v423
                  %v425 = vld [vmem:[%s391 + $0x100] sm:$0xff]
                  %426 = vst [vmem:[%s392 + $0x80] sm:$0xff] %v425
                  %v427 = vld [vmem:[%s391 + $0x110] sm:$0xff]
                  %428 = vst [vmem:[%s392 + $0x88] sm:$0xff] %v427
                  %v429 = vld [vmem:[%s391 + $0x120] sm:$0xff]
                  %430 = vst [vmem:[%s392 + $0x90] sm:$0xff] %v429
                  %v431 = vld [vmem:[%s391 + $0x130] sm:$0xff]
                  %432 = vst [vmem:[%s392 + $0x98] sm:$0xff] %v431
                  %v433 = vld [vmem:[%s391 + $0x140] sm:$0xff]
                  %434 = vst [vmem:[%s392 + $0xa0] sm:$0xff] %v433
                  %v435 = vld [vmem:[%s391 + $0x150] sm:$0xff]
                  %436 = vst [vmem:[%s392 + $0xa8] sm:$0xff] %v435
                  %v437 = vld [vmem:[%s391 + $0x160] sm:$0xff]
                  %438 = vst [vmem:[%s392 + $0xb0] sm:$0xff] %v437
                  %v439 = vld [vmem:[%s391 + $0x170] sm:$0xff]
                  %440 = vst [vmem:[%s392 + $0xb8] sm:$0xff] %v439
                  %v441 = vld [vmem:[%s391 + $0x180] sm:$0xff]
                  %442 = vst [vmem:[%s392 + $0xc0] sm:$0xff] %v441
                  %v443 = vld [vmem:[%s391 + $0x190] sm:$0xff]
                  %444 = vst [vmem:[%s392 + $0xc8] sm:$0xff] %v443
                  %v445 = vld [vmem:[%s391 + $0x1a0] sm:$0xff]
                  %446 = vst [vmem:[%s392 + $0xd0] sm:$0xff] %v445
                  %v447 = vld [vmem:[%s391 + $0x1b0] sm:$0xff]
                  %448 = vst [vmem:[%s392 + $0xd8] sm:$0xff] %v447
                  %v449 = vld [vmem:[%s391 + $0x1c0] sm:$0xff]
                  %450 = vst [vmem:[%s392 + $0xe0] sm:$0xff] %v449
                  %v451 = vld [vmem:[%s391 + $0x1d0] sm:$0xff]
                  %452 = vst [vmem:[%s392 + $0xe8] sm:$0xff] %v451
                  %v453 = vld [vmem:[%s391 + $0x1e0] sm:$0xff]
                  %454 = vst [vmem:[%s392 + $0xf0] sm:$0xff] %v453
                  %v455 = vld [vmem:[%s391 + $0x1f0] sm:$0xff]
                  %456 = vst [vmem:[%s392 + $0xf8] sm:$0xff] %v455
                  %v457 = vld [vmem:[%s391 + $0x200] sm:$0xff]
                  %458 = vst [vmem:[%s392 + $0x100] sm:$0xff] %v457
                  %v459 = vld [vmem:[%s391 + $0x210] sm:$0xff]
                  %460 = vst [vmem:[%s392 + $0x108] sm:$0xff] %v459
                  %v461 = vld [vmem:[%s391 + $0x220] sm:$0xff]
                  %462 = vst [vmem:[%s392 + $0x110] sm:$0xff] %v461
                  %v463 = vld [vmem:[%s391 + $0x230] sm:$0xff]
                  %464 = vst [vmem:[%s392 + $0x118] sm:$0xff] %v463
                  %v465 = vld [vmem:[%s391 + $0x240] sm:$0xff]
                  %466 = vst [vmem:[%s392 + $0x120] sm:$0xff] %v465
                  %v467 = vld [vmem:[%s391 + $0x250] sm:$0xff]
                  %468 = vst [vmem:[%s392 + $0x128] sm:$0xff] %v467
                  %v469 = vld [vmem:[%s391 + $0x260] sm:$0xff]
                  %470 = vst [vmem:[%s392 + $0x130] sm:$0xff] %v469
                  %v471 = vld [vmem:[%s391 + $0x270] sm:$0xff]
                  %472 = vst [vmem:[%s392 + $0x138] sm:$0xff] %v471
                  %v473 = vld [vmem:[%s391 + $0x280] sm:$0xff]
                  %474 = vst [vmem:[%s392 + $0x140] sm:$0xff] %v473
                  %v475 = vld [vmem:[%s391 + $0x290] sm:$0xff]
                  %476 = vst [vmem:[%s392 + $0x148] sm:$0xff] %v475
                  %v477 = vld [vmem:[%s391 + $0x2a0] sm:$0xff]
                  %478 = vst [vmem:[%s392 + $0x150] sm:$0xff] %v477
                  %v479 = vld [vmem:[%s391 + $0x2b0] sm:$0xff]
                  %480 = vst [vmem:[%s392 + $0x158] sm:$0xff] %v479
                  %v481 = vld [vmem:[%s391 + $0x2c0] sm:$0xff]
                  %482 = vst [vmem:[%s392 + $0x160] sm:$0xff] %v481
                  %v483 = vld [vmem:[%s391 + $0x2d0] sm:$0xff]
                  %484 = vst [vmem:[%s392 + $0x168] sm:$0xff] %v483
                  %v485 = vld [vmem:[%s391 + $0x2e0] sm:$0xff]
                  %486 = vst [vmem:[%s392 + $0x170] sm:$0xff] %v485
                  %v487 = vld [vmem:[%s391 + $0x2f0] sm:$0xff]
                  %488 = vst [vmem:[%s392 + $0x178] sm:$0xff] %v487
                  %v489 = vld [vmem:[%s391 + $0x300] sm:$0xff]
                  %490 = vst [vmem:[%s392 + $0x180] sm:$0xff] %v489
                  %v491 = vld [vmem:[%s391 + $0x310] sm:$0xff]
                  %492 = vst [vmem:[%s392 + $0x188] sm:$0xff] %v491
                  %v493 = vld [vmem:[%s391 + $0x320] sm:$0xff]
                  %494 = vst [vmem:[%s392 + $0x190] sm:$0xff] %v493
                  %v495 = vld [vmem:[%s391 + $0x330] sm:$0xff]
                  %496 = vst [vmem:[%s392 + $0x198] sm:$0xff] %v495
                  %v497 = vld [vmem:[%s391 + $0x340] sm:$0xff]
                  %498 = vst [vmem:[%s392 + $0x1a0] sm:$0xff] %v497
                  %v499 = vld [vmem:[%s391 + $0x350] sm:$0xff]
                  %500 = vst [vmem:[%s392 + $0x1a8] sm:$0xff] %v499
                  %v501 = vld [vmem:[%s391 + $0x360] sm:$0xff]
                  %502 = vst [vmem:[%s392 + $0x1b0] sm:$0xff] %v501
                  %v503 = vld [vmem:[%s391 + $0x370] sm:$0xff]
                  %504 = vst [vmem:[%s392 + $0x1b8] sm:$0xff] %v503
                  %v505 = vld [vmem:[%s391 + $0x380] sm:$0xff]
                  %506 = vst [vmem:[%s392 + $0x1c0] sm:$0xff] %v505
                  %v507 = vld [vmem:[%s391 + $0x390] sm:$0xff]
                  %508 = vst [vmem:[%s392 + $0x1c8] sm:$0xff] %v507
                  %v509 = vld [vmem:[%s391 + $0x3a0] sm:$0xff]
                  %510 = vst [vmem:[%s392 + $0x1d0] sm:$0xff] %v509
                  %v511 = vld [vmem:[%s391 + $0x3b0] sm:$0xff]
                  %512 = vst [vmem:[%s392 + $0x1d8] sm:$0xff] %v511
                  %v513 = vld [vmem:[%s391 + $0x3c0] sm:$0xff]
                  %514 = vst [vmem:[%s392 + $0x1e0] sm:$0xff] %v513
                  %v515 = vld [vmem:[%s391 + $0x3d0] sm:$0xff]
                  %516 = vst [vmem:[%s392 + $0x1e8] sm:$0xff] %v515
                  %v517 = vld [vmem:[%s391 + $0x3e0] sm:$0xff]
                  %518 = vst [vmem:[%s392 + $0x1f0] sm:$0xff] %v517
                  %v519 = vld [vmem:[%s391 + $0x3f0] sm:$0xff]
                  %520 = vst [vmem:[%s392 + $0x1f8] sm:$0xff] %v519
                $region52: #{resnet_forward.24} parent=46 // loop_footer
                  %s390 = sadd.s32 1, %s386
                $region53: #{resnet_forward.24} parent=46 // loop_footer_branch
                  %385 = sbr.rel target = $region49
                $region54: #{resnet_forward.24} parent=46 // loop_exit
                  _
              $region47: #{resnet_forward.24} parent=31 // pred_fallthru
                _
              // Predicated region
              $region55: #{resnet_forward.24} parent=31 // pred_check
                _
              $region56: #{resnet_forward.24} parent=31 // pred_check_branch
                %522 = sbr.rel target = $region58
              $region57: #{resnet_forward.24} parent=31 // pred_region
                _
              $region58: #{resnet_forward.24} parent=31 // pred_fallthru
                _
            $region32: #{resnet_forward.24} parent=27 // pred_fallthru
              _
            // Predicated region
            $region33: #{resnet_forward.24} parent=27 // pred_check
              _
            $region34: #{resnet_forward.24} parent=27 // pred_check_branch
              %244 = sbr.rel target = $region36
            $region35: #{resnet_forward.24} parent=27 // pred_region
              %s246 = ssub.s32 256, 1
              loop: start=0, step=1, limit=1
              $region37: #{resnet_forward.24} parent=35 // loop_pre_header
                _
              $region38: #{resnet_forward.24} parent=35 // loop_header
                %s248 = sphi 0, %s252
                %p249 = scmp.ge.s32.totalorder %s248, 1
                %s253 = sphi %s238, %s238
                %s254 = sphi %s232, %s232
              $region39: #{resnet_forward.24} parent=35 // loop_header_branch
                %251 = sbr.rel (%p249) target = $region43
              $region40: #{resnet_forward.24} parent=35 // loop_body
                %v255 = vld [vmem:[%s253] sm:%s246]
                %256 = vst [vmem:[%s254] sm:%s246] %v255
                %v257 = vld [vmem:[%s253 + $0x10] sm:%s246]
                %258 = vst [vmem:[%s254 + $0x8] sm:%s246] %v257
                %v259 = vld [vmem:[%s253 + $0x20] sm:%s246]
                %260 = vst [vmem:[%s254 + $0x10] sm:%s246] %v259
                %v261 = vld [vmem:[%s253 + $0x30] sm:%s246]
                %262 = vst [vmem:[%s254 + $0x18] sm:%s246] %v261
                %v263 = vld [vmem:[%s253 + $0x40] sm:%s246]
                %264 = vst [vmem:[%s254 + $0x20] sm:%s246] %v263
                %v265 = vld [vmem:[%s253 + $0x50] sm:%s246]
                %266 = vst [vmem:[%s254 + $0x28] sm:%s246] %v265
                %v267 = vld [vmem:[%s253 + $0x60] sm:%s246]
                %268 = vst [vmem:[%s254 + $0x30] sm:%s246] %v267
                %v269 = vld [vmem:[%s253 + $0x70] sm:%s246]
                %270 = vst [vmem:[%s254 + $0x38] sm:%s246] %v269
                %v271 = vld [vmem:[%s253 + $0x80] sm:%s246]
                %272 = vst [vmem:[%s254 + $0x40] sm:%s246] %v271
                %v273 = vld [vmem:[%s253 + $0x90] sm:%s246]
                %274 = vst [vmem:[%s254 + $0x48] sm:%s246] %v273
                %v275 = vld [vmem:[%s253 + $0xa0] sm:%s246]
                %276 = vst [vmem:[%s254 + $0x50] sm:%s246] %v275
                %v277 = vld [vmem:[%s253 + $0xb0] sm:%s246]
                %278 = vst [vmem:[%s254 + $0x58] sm:%s246] %v277
                %v279 = vld [vmem:[%s253 + $0xc0] sm:%s246]
                %280 = vst [vmem:[%s254 + $0x60] sm:%s246] %v279
                %v281 = vld [vmem:[%s253 + $0xd0] sm:%s246]
                %282 = vst [vmem:[%s254 + $0x68] sm:%s246] %v281
                %v283 = vld [vmem:[%s253 + $0xe0] sm:%s246]
                %284 = vst [vmem:[%s254 + $0x70] sm:%s246] %v283
                %v285 = vld [vmem:[%s253 + $0xf0] sm:%s246]
                %286 = vst [vmem:[%s254 + $0x78] sm:%s246] %v285
                %v287 = vld [vmem:[%s253 + $0x100] sm:%s246]
                %288 = vst [vmem:[%s254 + $0x80] sm:%s246] %v287
                %v289 = vld [vmem:[%s253 + $0x110] sm:%s246]
                %290 = vst [vmem:[%s254 + $0x88] sm:%s246] %v289
                %v291 = vld [vmem:[%s253 + $0x120] sm:%s246]
                %292 = vst [vmem:[%s254 + $0x90] sm:%s246] %v291
                %v293 = vld [vmem:[%s253 + $0x130] sm:%s246]
                %294 = vst [vmem:[%s254 + $0x98] sm:%s246] %v293
                %v295 = vld [vmem:[%s253 + $0x140] sm:%s246]
                %296 = vst [vmem:[%s254 + $0xa0] sm:%s246] %v295
                %v297 = vld [vmem:[%s253 + $0x150] sm:%s246]
                %298 = vst [vmem:[%s254 + $0xa8] sm:%s246] %v297
                %v299 = vld [vmem:[%s253 + $0x160] sm:%s246]
                %300 = vst [vmem:[%s254 + $0xb0] sm:%s246] %v299
                %v301 = vld [vmem:[%s253 + $0x170] sm:%s246]
                %302 = vst [vmem:[%s254 + $0xb8] sm:%s246] %v301
                %v303 = vld [vmem:[%s253 + $0x180] sm:%s246]
                %304 = vst [vmem:[%s254 + $0xc0] sm:%s246] %v303
                %v305 = vld [vmem:[%s253 + $0x190] sm:%s246]
                %306 = vst [vmem:[%s254 + $0xc8] sm:%s246] %v305
                %v307 = vld [vmem:[%s253 + $0x1a0] sm:%s246]
                %308 = vst [vmem:[%s254 + $0xd0] sm:%s246] %v307
                %v309 = vld [vmem:[%s253 + $0x1b0] sm:%s246]
                %310 = vst [vmem:[%s254 + $0xd8] sm:%s246] %v309
                %v311 = vld [vmem:[%s253 + $0x1c0] sm:%s246]
                %312 = vst [vmem:[%s254 + $0xe0] sm:%s246] %v311
                %v313 = vld [vmem:[%s253 + $0x1d0] sm:%s246]
                %314 = vst [vmem:[%s254 + $0xe8] sm:%s246] %v313
                %v315 = vld [vmem:[%s253 + $0x1e0] sm:%s246]
                %316 = vst [vmem:[%s254 + $0xf0] sm:%s246] %v315
                %v317 = vld [vmem:[%s253 + $0x1f0] sm:%s246]
                %318 = vst [vmem:[%s254 + $0xf8] sm:%s246] %v317
                %v319 = vld [vmem:[%s253 + $0x200] sm:%s246]
                %320 = vst [vmem:[%s254 + $0x100] sm:%s246] %v319
                %v321 = vld [vmem:[%s253 + $0x210] sm:%s246]
                %322 = vst [vmem:[%s254 + $0x108] sm:%s246] %v321
                %v323 = vld [vmem:[%s253 + $0x220] sm:%s246]
                %324 = vst [vmem:[%s254 + $0x110] sm:%s246] %v323
                %v325 = vld [vmem:[%s253 + $0x230] sm:%s246]
                %326 = vst [vmem:[%s254 + $0x118] sm:%s246] %v325
                %v327 = vld [vmem:[%s253 + $0x240] sm:%s246]
                %328 = vst [vmem:[%s254 + $0x120] sm:%s246] %v327
                %v329 = vld [vmem:[%s253 + $0x250] sm:%s246]
                %330 = vst [vmem:[%s254 + $0x128] sm:%s246] %v329
                %v331 = vld [vmem:[%s253 + $0x260] sm:%s246]
                %332 = vst [vmem:[%s254 + $0x130] sm:%s246] %v331
                %v333 = vld [vmem:[%s253 + $0x270] sm:%s246]
                %334 = vst [vmem:[%s254 + $0x138] sm:%s246] %v333
                %v335 = vld [vmem:[%s253 + $0x280] sm:%s246]
                %336 = vst [vmem:[%s254 + $0x140] sm:%s246] %v335
                %v337 = vld [vmem:[%s253 + $0x290] sm:%s246]
                %338 = vst [vmem:[%s254 + $0x148] sm:%s246] %v337
                %v339 = vld [vmem:[%s253 + $0x2a0] sm:%s246]
                %340 = vst [vmem:[%s254 + $0x150] sm:%s246] %v339
                %v341 = vld [vmem:[%s253 + $0x2b0] sm:%s246]
                %342 = vst [vmem:[%s254 + $0x158] sm:%s246] %v341
                %v343 = vld [vmem:[%s253 + $0x2c0] sm:%s246]
                %344 = vst [vmem:[%s254 + $0x160] sm:%s246] %v343
                %v345 = vld [vmem:[%s253 + $0x2d0] sm:%s246]
                %346 = vst [vmem:[%s254 + $0x168] sm:%s246] %v345
                %v347 = vld [vmem:[%s253 + $0x2e0] sm:%s246]
                %348 = vst [vmem:[%s254 + $0x170] sm:%s246] %v347
                %v349 = vld [vmem:[%s253 + $0x2f0] sm:%s246]
                %350 = vst [vmem:[%s254 + $0x178] sm:%s246] %v349
                %v351 = vld [vmem:[%s253 + $0x300] sm:%s246]
                %352 = vst [vmem:[%s254 + $0x180] sm:%s246] %v351
                %v353 = vld [vmem:[%s253 + $0x310] sm:%s246]
                %354 = vst [vmem:[%s254 + $0x188] sm:%s246] %v353
                %v355 = vld [vmem:[%s253 + $0x320] sm:%s246]
                %356 = vst [vmem:[%s254 + $0x190] sm:%s246] %v355
                %v357 = vld [vmem:[%s253 + $0x330] sm:%s246]
                %358 = vst [vmem:[%s254 + $0x198] sm:%s246] %v357
                %v359 = vld [vmem:[%s253 + $0x340] sm:%s246]
                %360 = vst [vmem:[%s254 + $0x1a0] sm:%s246] %v359
                %v361 = vld [vmem:[%s253 + $0x350] sm:%s246]
                %362 = vst [vmem:[%s254 + $0x1a8] sm:%s246] %v361
                %v363 = vld [vmem:[%s253 + $0x360] sm:%s246]
                %364 = vst [vmem:[%s254 + $0x1b0] sm:%s246] %v363
                %v365 = vld [vmem:[%s253 + $0x370] sm:%s246]
                %366 = vst [vmem:[%s254 + $0x1b8] sm:%s246] %v365
                %v367 = vld [vmem:[%s253 + $0x380] sm:%s246]
                %368 = vst [vmem:[%s254 + $0x1c0] sm:%s246] %v367
                %v369 = vld [vmem:[%s253 + $0x390] sm:%s246]
                %370 = vst [vmem:[%s254 + $0x1c8] sm:%s246] %v369
                %v371 = vld [vmem:[%s253 + $0x3a0] sm:%s246]
                %372 = vst [vmem:[%s254 + $0x1d0] sm:%s246] %v371
                %v373 = vld [vmem:[%s253 + $0x3b0] sm:%s246]
                %374 = vst [vmem:[%s254 + $0x1d8] sm:%s246] %v373
                %v375 = vld [vmem:[%s253 + $0x3c0] sm:%s246]
                %376 = vst [vmem:[%s254 + $0x1e0] sm:%s246] %v375
                %v377 = vld [vmem:[%s253 + $0x3d0] sm:%s246]
                %378 = vst [vmem:[%s254 + $0x1e8] sm:%s246] %v377
                %v379 = vld [vmem:[%s253 + $0x3e0] sm:%s246]
                %380 = vst [vmem:[%s254 + $0x1f0] sm:%s246] %v379
                %v381 = vld [vmem:[%s253 + $0x3f0] sm:%s246]
                %382 = vst [vmem:[%s254 + $0x1f8] sm:%s246] %v381
              $region41: #{resnet_forward.24} parent=35 // loop_footer
                %s252 = sadd.s32 1, %s248
              $region42: #{resnet_forward.24} parent=35 // loop_footer_branch
                %247 = sbr.rel target = $region38
              $region43: #{resnet_forward.24} parent=35 // loop_exit
                _
            $region36: #{resnet_forward.24} parent=27 // pred_fallthru
              _
          $region28: #{resnet_forward.24} parent=23 // pred_fallthru
            _
          %523 = vnop
        $region24: #{resnet_forward.24} parent=15 // pred_fallthru
          _
        // Predicated region
        $region59: #{resnet_forward.24} parent=15 // pred_check
          %p524 = pneg %p106
        $region60: #{resnet_forward.24} parent=15 // pred_check_branch
          %526 = sbr.rel (%p524) target = $region62
        $region61: #{resnet_forward.24} parent=15 // pred_region
          %s527 = smul.u32 2, %s19
          %p528 = scmp.lt.s32.totalorder %s527, 3
          %s529 = scalar_select %p528, %s527, 3
          %s530 = scalar_lea.vmem %s2, %s529
          %s531 = smul.u32 2, %s19
        $region62: #{resnet_forward.24} parent=15 // pred_fallthru
          _
        // Predicated region
        $region63: #{resnet_forward.24} parent=15 // pred_check
          %p532 = pneg %p132
        $region64: #{resnet_forward.24} parent=15 // pred_check_branch
          %534 = sbr.rel (%p532) target = $region66
        $region65: #{resnet_forward.24} parent=15 // pred_region
          %s535 = smul.u32 2, %s19
          %p536 = scmp.lt.s32.totalorder %s535, 3
          %s537 = scalar_select %p536, %s535, 3
          %s538 = scalar_lea.vmem %s3, %s537
          %s539 = smul.u32 2, %s19
        $region66: #{resnet_forward.24} parent=15 // pred_fallthru
          _
        // Predicated region
        $region67: #{resnet_forward.24} parent=15 // pred_check
          %p540 = pneg %p160
        $region68: #{resnet_forward.24} parent=15 // pred_check_branch
          %542 = sbr.rel (%p540) target = $region70
        $region69: #{resnet_forward.24} parent=15 // pred_region
          %s543 = smul.u32 2, %s19
          %p544 = scmp.lt.s32.totalorder %s18, 0
          %s545 = scalar_select %p544, %s18, 0
          %p546 = scmp.lt.s32.totalorder %s543, 3
          %s547 = scalar_select %p546, %s543, 3
          %s548 = smul.addr %s545, 4
          %s549 = sadd.s32 %s547, %s548
          %s550 = smul.addr %s549, 8
          %s551 = scalar_lea.vmem %s4, %s550
          %s552 = smul.u32 2, %s19
        $region70: #{resnet_forward.24} parent=15 // pred_fallthru
          _
      $region16: #{resnet_forward.24} parent=5 // pred_fallthru
        _
      %p553 = scmp.le.s32.totalorder 1, %s11
      %p554 = scmp.lt.s32.totalorder %s11, 19
      %p555 = pnand %p553, %p554
      %p556 = pneg %p555
      // Predicated region
      $region71: #{resnet_forward.24} parent=5 // pred_check
        _
      $region72: #{resnet_forward.24} parent=5 // pred_check_branch
        %558 = sbr.rel (%p555) target = $region74
      $region73: #{resnet_forward.24} parent=5 // pred_region
        %s559 = ssub.s32 %s11, 1
        %s560 = sand.u32 %s73, 1
        %s561 = sand.u32 %s73, 1
        %s562 = smul.addr %s561, 512
        %s563 = scalar_lea.vmem [#allocation3], %s562
        // Predicated region
        $region75: #{resnet_forward.24} parent=73 // pred_check
          %p564 = pneg %p86
        $region76: #{resnet_forward.24} parent=73 // pred_check_branch
          %566 = sbr.rel (%p564) target = $region78
        $region77: #{resnet_forward.24} parent=73 // pred_region
          _
        $region78: #{resnet_forward.24} parent=73 // pred_fallthru
          _
        %s567 = smul.u32 4, %s23
        %p568 = scmp.lt.s32.totalorder %s21, 0
        %s569 = scalar_select %p568, %s21, 0
        %p570 = scmp.lt.s32.totalorder %s567, 35
        %s571 = scalar_select %p570, %s567, 35
        %s572 = smul.addr %s569, 36
        %s573 = sadd.s32 %s571, %s572
        %s574 = smul.addr %s573, 4
        %s575 = scalar_lea.vmem %s0, %s574
        %p576 = pneg %p58
        %p577 = pneg %p55
        %s578 = sand.u32 %s73, 1
        %s579 = sand.u32 %s73, 1
        %s580 = smul.addr %s579, 512
        %s581 = scalar_lea.vmem [#allocation3], %s580
        %p582 = pneg %p86
        %p583 = pneg %p83
        %s584 = smul.u32 2, %s22
        %p585 = scmp.lt.s32.totalorder %s584, 3
        %s586 = scalar_select %p585, %s584, 3
        %s587 = scalar_lea.vmem %s2, %s586
        %p588 = pneg %p112
        %p589 = pneg %p109
        %s590 = smul.u32 2, %s22
        %p591 = scmp.lt.s32.totalorder %s590, 3
        %s592 = scalar_select %p591, %s590, 3
        %s593 = scalar_lea.vmem %s3, %s592
        %p594 = pneg %p138
        %p595 = pneg %p135
        %s596 = smul.u32 2, %s22
        %p597 = scmp.lt.s32.totalorder %s21, 0
        %s598 = scalar_select %p597, %s21, 0
        %p599 = scmp.lt.s32.totalorder %s596, 3
        %s600 = scalar_select %p599, %s596, 3
        %s601 = smul.addr %s598, 4
        %s602 = sadd.s32 %s600, %s601
        %s603 = smul.addr %s602, 8
        %s604 = scalar_lea.vmem %s4, %s603
        %p605 = pneg %p166
        %p606 = pneg %p163
        %p607 = pneg %p194
        %p608 = pneg %p191
        %s609 = smul.u32 2, %s22
        %p610 = scmp.lt.s32.totalorder %s21, 0
        %s611 = scalar_select %p610, %s21, 0
        %p612 = scmp.lt.s32.totalorder %s609, 3
        %s613 = scalar_select %p612, %s609, 3
        %s614 = smul.addr %s611, 4
        %s615 = sadd.s32 %s613, %s614
        %s616 = smul.addr %s615, 8
        %s617 = scalar_lea.vmem %s5, %s616
        %s618 = smul.u32 4, %s23
        %p619 = scmp.lt.s32.totalorder %s21, 0
        %s620 = scalar_select %p619, %s21, 0
        %p621 = scmp.lt.s32.totalorder %s618, 35
        %s622 = scalar_select %p621, %s618, 35
        %s623 = smul.addr %s620, 36
        %s624 = sadd.s32 %s622, %s623
        %s625 = smul.addr %s624, 4
        %s626 = scalar_lea.vmem %s0, %s625
        %s627 = smul.u32 4, %s23
        %s628 = smul.u32 64, %s23
        %s629 = smul.u32 2, %s22
        %s630 = smul.u32 2, %s22
        %p631 = scmp.lt.s32.totalorder %s630, 3
        %s632 = scalar_select %p631, %s630, 3
        %s633 = scalar_lea.vmem %s2, %s632
        %s634 = smul.u32 2, %s22
        %s635 = smul.u32 2, %s22
        %p636 = scmp.lt.s32.totalorder %s635, 3
        %s637 = scalar_select %p636, %s635, 3
        %s638 = scalar_lea.vmem %s3, %s637
        %s639 = smul.u32 2, %s22
        %s640 = smul.u32 2, %s22
        %p641 = scmp.lt.s32.totalorder %s21, 0
        %s642 = scalar_select %p641, %s21, 0
        %p643 = scmp.lt.s32.totalorder %s640, 3
        %s644 = scalar_select %p643, %s640, 3
        %s645 = smul.addr %s642, 4
        %s646 = sadd.s32 %s644, %s645
        %s647 = smul.addr %s646, 8
        %s648 = scalar_lea.vmem %s4, %s647
        %s649 = smul.u32 2, %s22
        %s650 = smul.u32 2, %s22
        %p651 = scmp.lt.s32.totalorder %s21, 0
        %s652 = scalar_select %p651, %s21, 0
        %p653 = scmp.lt.s32.totalorder %s650, 3
        %s654 = scalar_select %p653, %s650, 3
        %s655 = smul.addr %s652, 4
        %s656 = sadd.s32 %s654, %s655
        %s657 = smul.addr %s656, 8
        %s658 = scalar_lea.vmem %s5, %s657
        %s659 = smul.u32 2, %s22
        %p660 = scmp.eq.s32.totalorder %s23, 0
        // Predicated region
        $region79: #{resnet_forward.24} parent=73 // pred_check
          %p661 = pneg %p660
        $region80: #{resnet_forward.24} parent=73 // pred_check_branch
          %663 = sbr.rel (%p661) target = $region82
        $region81: #{resnet_forward.24} parent=73 // pred_region
          %664 = vst [vmem:[#allocation2] sm:$0xff] 0.0
          %665 = vst [vmem:[#allocation2 + $0x8] sm:$0xff] 0.0
        $region82: #{resnet_forward.24} parent=73 // pred_fallthru
          _
        %v666 = vld [vmem:[#allocation2] sm:$0xff]
        %v667 = vld [vmem:[#allocation2 + $0x8] sm:$0xff]
        %v668 = vld [vmem:[%s626] sm:$0xff]
        %v669 = vld [vmem:[%s626 + $0x8] sm:$0xff]
        %v670 = vld [vmem:[%s563] sm:$0xff]
        %v671 = vld [vmem:[%s563 + $0x8] sm:$0xff]
        %v672 = vld [vmem:[%s563 + $0x10] sm:$0xff]
        %v673 = vld [vmem:[%s563 + $0x18] sm:$0xff]
        %v674 = vld [vmem:[%s563 + $0x20] sm:$0xff]
        %v675 = vld [vmem:[%s563 + $0x28] sm:$0xff]
        %v676 = vld [vmem:[%s563 + $0x30] sm:$0xff]
        %v677 = vld [vmem:[%s563 + $0x38] sm:$0xff]
        %v678 = vld [vmem:[%s563 + $0x40] sm:$0xff]
        %v679 = vld [vmem:[%s563 + $0x48] sm:$0xff]
        %v680 = vld [vmem:[%s563 + $0x50] sm:$0xff]
        %v681 = vld [vmem:[%s563 + $0x58] sm:$0xff]
        %v682 = vld [vmem:[%s563 + $0x60] sm:$0xff]
        %v683 = vld [vmem:[%s563 + $0x68] sm:$0xff]
        %v684 = vld [vmem:[%s563 + $0x70] sm:$0xff]
        %v685 = vld [vmem:[%s563 + $0x78] sm:$0xff]
        %v686 = vld [vmem:[%s563 + $0x80] sm:$0xff]
        %v687 = vld [vmem:[%s563 + $0x88] sm:$0xff]
        %v688 = vld [vmem:[%s563 + $0x90] sm:$0xff]
        %v689 = vld [vmem:[%s563 + $0x98] sm:$0xff]
        %v690 = vld [vmem:[%s563 + $0xa0] sm:$0xff]
        %v691 = vld [vmem:[%s563 + $0xa8] sm:$0xff]
        %v692 = vld [vmem:[%s563 + $0xb0] sm:$0xff]
        %v693 = vld [vmem:[%s563 + $0xb8] sm:$0xff]
        %v694 = vld [vmem:[%s563 + $0xc0] sm:$0xff]
        %v695 = vld [vmem:[%s563 + $0xc8] sm:$0xff]
        %v696 = vld [vmem:[%s563 + $0xd0] sm:$0xff]
        %v697 = vld [vmem:[%s563 + $0xd8] sm:$0xff]
        %v698 = vld [vmem:[%s563 + $0xe0] sm:$0xff]
        %v699 = vld [vmem:[%s563 + $0xe8] sm:$0xff]
        %v700 = vld [vmem:[%s563 + $0xf0] sm:$0xff]
        %v701 = vld [vmem:[%s563 + $0xf8] sm:$0xff]
        %v702 = vld [vmem:[%s563 + $0x100] sm:$0xff]
        %v703 = vld [vmem:[%s563 + $0x108] sm:$0xff]
        %v704 = vld [vmem:[%s563 + $0x110] sm:$0xff]
        %v705 = vld [vmem:[%s563 + $0x118] sm:$0xff]
        %v706 = vld [vmem:[%s563 + $0x120] sm:$0xff]
        %v707 = vld [vmem:[%s563 + $0x128] sm:$0xff]
        %v708 = vld [vmem:[%s563 + $0x130] sm:$0xff]
        %v709 = vld [vmem:[%s563 + $0x138] sm:$0xff]
        %v710 = vld [vmem:[%s563 + $0x140] sm:$0xff]
        %v711 = vld [vmem:[%s563 + $0x148] sm:$0xff]
        %v712 = vld [vmem:[%s563 + $0x150] sm:$0xff]
        %v713 = vld [vmem:[%s563 + $0x158] sm:$0xff]
        %v714 = vld [vmem:[%s563 + $0x160] sm:$0xff]
        %v715 = vld [vmem:[%s563 + $0x168] sm:$0xff]
        %v716 = vld [vmem:[%s563 + $0x170] sm:$0xff]
        %v717 = vld [vmem:[%s563 + $0x178] sm:$0xff]
        %v718 = vld [vmem:[%s563 + $0x180] sm:$0xff]
        %v719 = vld [vmem:[%s563 + $0x188] sm:$0xff]
        %v720 = vld [vmem:[%s563 + $0x190] sm:$0xff]
        %v721 = vld [vmem:[%s563 + $0x198] sm:$0xff]
        %v722 = vld [vmem:[%s563 + $0x1a0] sm:$0xff]
        %v723 = vld [vmem:[%s563 + $0x1a8] sm:$0xff]
        %v724 = vld [vmem:[%s563 + $0x1b0] sm:$0xff]
        %v725 = vld [vmem:[%s563 + $0x1b8] sm:$0xff]
        %v726 = vld [vmem:[%s563 + $0x1c0] sm:$0xff]
        %v727 = vld [vmem:[%s563 + $0x1c8] sm:$0xff]
        %v728 = vld [vmem:[%s563 + $0x1d0] sm:$0xff]
        %v729 = vld [vmem:[%s563 + $0x1d8] sm:$0xff]
        %v730 = vld [vmem:[%s563 + $0x1e0] sm:$0xff]
        %v731 = vld [vmem:[%s563 + $0x1e8] sm:$0xff]
        %v732 = vld [vmem:[%s563 + $0x1f0] sm:$0xff]
        %v733 = vld [vmem:[%s563 + $0x1f8] sm:$0xff]
        %v736 = vunpack.c.l.b16 %v668
        %v737 = vunpack.c.h.b16 %v668
        %v738 = vunpack.c.l.b16 %v669
        %v739 = vunpack.c.h.b16 %v669
        %v740 = vpack.c.b16 %v736, %v736
        %v741 = vpack.c.b16 %v737, %v737
        %v742 = vpack.c.b16 %v738, %v738
        %v743 = vpack.c.b16 %v739, %v739
        %v812 = vunpack.c.l.b16 %v670
        %v813 = vunpack.c.h.b16 %v670
        %v814 = vunpack.c.l.b16 %v671
        %v815 = vunpack.c.h.b16 %v671
        %v816 = vunpack.c.l.b16 %v672
        %v817 = vunpack.c.h.b16 %v672
        %v818 = vunpack.c.l.b16 %v673
        %v819 = vunpack.c.h.b16 %v673
        %v820 = vunpack.c.l.b16 %v674
        %v821 = vunpack.c.h.b16 %v674
        %v822 = vunpack.c.l.b16 %v675
        %v823 = vunpack.c.h.b16 %v675
        %v824 = vunpack.c.l.b16 %v676
        %v825 = vunpack.c.h.b16 %v676
        %v826 = vunpack.c.l.b16 %v677
        %v827 = vunpack.c.h.b16 %v677
        %v828 = vunpack.c.l.b16 %v678
        %v829 = vunpack.c.h.b16 %v678
        %v830 = vunpack.c.l.b16 %v679
        %v831 = vunpack.c.h.b16 %v679
        %v832 = vunpack.c.l.b16 %v680
        %v833 = vunpack.c.h.b16 %v680
        %v834 = vunpack.c.l.b16 %v681
        %v835 = vunpack.c.h.b16 %v681
        %v836 = vunpack.c.l.b16 %v682
        %v837 = vunpack.c.h.b16 %v682
        %v838 = vunpack.c.l.b16 %v683
        %v839 = vunpack.c.h.b16 %v683
        %v840 = vunpack.c.l.b16 %v684
        %v841 = vunpack.c.h.b16 %v684
        %v842 = vunpack.c.l.b16 %v685
        %v843 = vunpack.c.h.b16 %v685
        %v844 = vunpack.c.l.b16 %v686
        %v845 = vunpack.c.h.b16 %v686
        %v846 = vunpack.c.l.b16 %v687
        %v847 = vunpack.c.h.b16 %v687
        %v848 = vunpack.c.l.b16 %v688
        %v849 = vunpack.c.h.b16 %v688
        %v850 = vunpack.c.l.b16 %v689
        %v851 = vunpack.c.h.b16 %v689
        %v852 = vunpack.c.l.b16 %v690
        %v853 = vunpack.c.h.b16 %v690
        %v854 = vunpack.c.l.b16 %v691
        %v855 = vunpack.c.h.b16 %v691
        %v856 = vunpack.c.l.b16 %v692
        %v857 = vunpack.c.h.b16 %v692
        %v858 = vunpack.c.l.b16 %v693
        %v859 = vunpack.c.h.b16 %v693
        %v860 = vunpack.c.l.b16 %v694
        %v861 = vunpack.c.h.b16 %v694
        %v862 = vunpack.c.l.b16 %v695
        %v863 = vunpack.c.h.b16 %v695
        %v864 = vunpack.c.l.b16 %v696
        %v865 = vunpack.c.h.b16 %v696
        %v866 = vunpack.c.l.b16 %v697
        %v867 = vunpack.c.h.b16 %v697
        %v868 = vunpack.c.l.b16 %v698
        %v869 = vunpack.c.h.b16 %v698
        %v870 = vunpack.c.l.b16 %v699
        %v871 = vunpack.c.h.b16 %v699
        %v872 = vunpack.c.l.b16 %v700
        %v873 = vunpack.c.h.b16 %v700
        %v874 = vunpack.c.l.b16 %v701
        %v875 = vunpack.c.h.b16 %v701
        %v876 = vunpack.c.l.b16 %v702
        %v877 = vunpack.c.h.b16 %v702
        %v878 = vunpack.c.l.b16 %v703
        %v879 = vunpack.c.h.b16 %v703
        %v880 = vunpack.c.l.b16 %v704
        %v881 = vunpack.c.h.b16 %v704
        %v882 = vunpack.c.l.b16 %v705
        %v883 = vunpack.c.h.b16 %v705
        %v884 = vunpack.c.l.b16 %v706
        %v885 = vunpack.c.h.b16 %v706
        %v886 = vunpack.c.l.b16 %v707
        %v887 = vunpack.c.h.b16 %v707
        %v888 = vunpack.c.l.b16 %v708
        %v889 = vunpack.c.h.b16 %v708
        %v890 = vunpack.c.l.b16 %v709
        %v891 = vunpack.c.h.b16 %v709
        %v892 = vunpack.c.l.b16 %v710
        %v893 = vunpack.c.h.b16 %v710
        %v894 = vunpack.c.l.b16 %v711
        %v895 = vunpack.c.h.b16 %v711
        %v896 = vunpack.c.l.b16 %v712
        %v897 = vunpack.c.h.b16 %v712
        %v898 = vunpack.c.l.b16 %v713
        %v899 = vunpack.c.h.b16 %v713
        %v900 = vunpack.c.l.b16 %v714
        %v901 = vunpack.c.h.b16 %v714
        %v902 = vunpack.c.l.b16 %v715
        %v903 = vunpack.c.h.b16 %v715
        %v904 = vunpack.c.l.b16 %v716
        %v905 = vunpack.c.h.b16 %v716
        %v906 = vunpack.c.l.b16 %v717
        %v907 = vunpack.c.h.b16 %v717
        %v908 = vunpack.c.l.b16 %v718
        %v909 = vunpack.c.h.b16 %v718
        %v910 = vunpack.c.l.b16 %v719
        %v911 = vunpack.c.h.b16 %v719
        %v912 = vunpack.c.l.b16 %v720
        %v913 = vunpack.c.h.b16 %v720
        %v914 = vunpack.c.l.b16 %v721
        %v915 = vunpack.c.h.b16 %v721
        %v916 = vunpack.c.l.b16 %v722
        %v917 = vunpack.c.h.b16 %v722
        %v918 = vunpack.c.l.b16 %v723
        %v919 = vunpack.c.h.b16 %v723
        %v920 = vunpack.c.l.b16 %v724
        %v921 = vunpack.c.h.b16 %v724
        %v922 = vunpack.c.l.b16 %v725
        %v923 = vunpack.c.h.b16 %v725
        %v924 = vunpack.c.l.b16 %v726
        %v925 = vunpack.c.h.b16 %v726
        %v926 = vunpack.c.l.b16 %v727
        %v927 = vunpack.c.h.b16 %v727
        %v928 = vunpack.c.l.b16 %v728
        %v929 = vunpack.c.h.b16 %v728
        %v930 = vunpack.c.l.b16 %v729
        %v931 = vunpack.c.h.b16 %v729
        %v932 = vunpack.c.l.b16 %v730
        %v933 = vunpack.c.h.b16 %v730
        %v934 = vunpack.c.l.b16 %v731
        %v935 = vunpack.c.h.b16 %v731
        %v936 = vunpack.c.l.b16 %v732
        %v937 = vunpack.c.h.b16 %v732
        %v938 = vunpack.c.l.b16 %v733
        %v939 = vunpack.c.h.b16 %v733
        %v940 = vpack.c.b16 %v814, %v812
        %v941 = vpack.c.b16 %v815, %v813
        %v942 = vpack.c.b16 %v818, %v816
        %v943 = vpack.c.b16 %v819, %v817
        %v944 = vpack.c.b16 %v822, %v820
        %v945 = vpack.c.b16 %v823, %v821
        %v946 = vpack.c.b16 %v826, %v824
        %v947 = vpack.c.b16 %v827, %v825
        %v948 = vpack.c.b16 %v830, %v828
        %v949 = vpack.c.b16 %v831, %v829
        %v950 = vpack.c.b16 %v834, %v832
        %v951 = vpack.c.b16 %v835, %v833
        %v952 = vpack.c.b16 %v838, %v836
        %v953 = vpack.c.b16 %v839, %v837
        %v954 = vpack.c.b16 %v842, %v840
        %v955 = vpack.c.b16 %v843, %v841
        %v956 = vpack.c.b16 %v846, %v844
        %v957 = vpack.c.b16 %v847, %v845
        %v958 = vpack.c.b16 %v850, %v848
        %v959 = vpack.c.b16 %v851, %v849
        %v960 = vpack.c.b16 %v854, %v852
        %v961 = vpack.c.b16 %v855, %v853
        %v962 = vpack.c.b16 %v858, %v856
        %v963 = vpack.c.b16 %v859, %v857
        %v964 = vpack.c.b16 %v862, %v860
        %v965 = vpack.c.b16 %v863, %v861
        %v966 = vpack.c.b16 %v866, %v864
        %v967 = vpack.c.b16 %v867, %v865
        %v968 = vpack.c.b16 %v870, %v868
        %v969 = vpack.c.b16 %v871, %v869
        %v970 = vpack.c.b16 %v874, %v872
        %v971 = vpack.c.b16 %v875, %v873
        %v972 = vpack.c.b16 %v878, %v876
        %v973 = vpack.c.b16 %v879, %v877
        %v974 = vpack.c.b16 %v882, %v880
        %v975 = vpack.c.b16 %v883, %v881
        %v976 = vpack.c.b16 %v886, %v884
        %v977 = vpack.c.b16 %v887, %v885
        %v978 = vpack.c.b16 %v890, %v888
        %v979 = vpack.c.b16 %v891, %v889
        %v980 = vpack.c.b16 %v894, %v892
        %v981 = vpack.c.b16 %v895, %v893
        %v982 = vpack.c.b16 %v898, %v896
        %v983 = vpack.c.b16 %v899, %v897
        %v984 = vpack.c.b16 %v902, %v900
        %v985 = vpack.c.b16 %v903, %v901
        %v986 = vpack.c.b16 %v906, %v904
        %v987 = vpack.c.b16 %v907, %v905
        %v988 = vpack.c.b16 %v910, %v908
        %v989 = vpack.c.b16 %v911, %v909
        %v990 = vpack.c.b16 %v914, %v912
        %v991 = vpack.c.b16 %v915, %v913
        %v992 = vpack.c.b16 %v918, %v916
        %v993 = vpack.c.b16 %v919, %v917
        %v994 = vpack.c.b16 %v922, %v920
        %v995 = vpack.c.b16 %v923, %v921
        %v996 = vpack.c.b16 %v926, %v924
        %v997 = vpack.c.b16 %v927, %v925
        %v998 = vpack.c.b16 %v930, %v928
        %v999 = vpack.c.b16 %v931, %v929
        %v1000 = vpack.c.b16 %v934, %v932
        %v1001 = vpack.c.b16 %v935, %v933
        %v1002 = vpack.c.b16 %v938, %v936
        %v1003 = vpack.c.b16 %v939, %v937
        %1068 = vmatpush.bf16.msra.mxu0 %v954
        %1069 = vmatpush.bf16.msra.mxu0 %v952
        %1070 = vmatpush.bf16.msra.mxu0 %v950
        %1071 = vmatpush.bf16.msra.mxu0 %v948
        %1072 = vmatpush.bf16.msra.mxu0 %v946
        %1073 = vmatpush.bf16.msra.mxu0 %v944
        %1074 = vmatpush.bf16.msra.mxu0 %v942
        %1075 = vmatpush.bf16.msra.mxu0 %v940
        %1076 = vmatmul.bf16.gmra.mxu0 %v740
        %v1077 = vpop.f32.mrf.mxu0
        %v1078 = vadd.f32 0.0, %v1077
        %v1079 = vpop.f32.mrf.mxu0
        %1080 = vdwg.mxu0
        %1081 = vmatpush.bf16.msra.mxu0 %v970
        %1082 = vmatpush.bf16.msra.mxu0 %v968
        %1083 = vmatpush.bf16.msra.mxu0 %v966
        %1084 = vmatpush.bf16.msra.mxu0 %v964
        %1085 = vmatpush.bf16.msra.mxu0 %v962
        %1086 = vmatpush.bf16.msra.mxu0 %v960
        %1087 = vmatpush.bf16.msra.mxu0 %v958
        %1088 = vmatpush.bf16.msra.mxu0 %v956
        %1089 = vmatmul.bf16.gmra.mxu0 %v741
        %v1090 = vpop.f32.mrf.mxu0
        %v1091 = vadd.f32 %v1078, %v1090
        %v1092 = vpop.f32.mrf.mxu0
        %1093 = vdwg.mxu0
        %1094 = vmatpush.bf16.msra.mxu0 %v986
        %1095 = vmatpush.bf16.msra.mxu0 %v984
        %1096 = vmatpush.bf16.msra.mxu0 %v982
        %1097 = vmatpush.bf16.msra.mxu0 %v980
        %1098 = vmatpush.bf16.msra.mxu0 %v978
        %1099 = vmatpush.bf16.msra.mxu0 %v976
        %1100 = vmatpush.bf16.msra.mxu0 %v974
        %1101 = vmatpush.bf16.msra.mxu0 %v972
        %1102 = vmatmul.bf16.gmra.mxu0 %v742
        %v1103 = vpop.f32.mrf.mxu0
        %v1104 = vadd.f32 %v1091, %v1103
        %v1105 = vpop.f32.mrf.mxu0
        %1106 = vdwg.mxu0
        %1107 = vmatpush.bf16.msra.mxu0 %v1002
        %1108 = vmatpush.bf16.msra.mxu0 %v1000
        %1109 = vmatpush.bf16.msra.mxu0 %v998
        %1110 = vmatpush.bf16.msra.mxu0 %v996
        %1111 = vmatpush.bf16.msra.mxu0 %v994
        %1112 = vmatpush.bf16.msra.mxu0 %v992
        %1113 = vmatpush.bf16.msra.mxu0 %v990
        %1114 = vmatpush.bf16.msra.mxu0 %v988
        %1115 = vmatmul.bf16.gmra.mxu0 %v743
        %v1116 = vpop.f32.mrf.mxu0
        %v1117 = vadd.f32 %v1104, %v1116
        %v1118 = vpop.f32.mrf.mxu0
        %1119 = vdwg.mxu0
        %1120 = vmatpush.bf16.msra.mxu0 %v955
        %1121 = vmatpush.bf16.msra.mxu0 %v953
        %1122 = vmatpush.bf16.msra.mxu0 %v951
        %1123 = vmatpush.bf16.msra.mxu0 %v949
        %1124 = vmatpush.bf16.msra.mxu0 %v947
        %1125 = vmatpush.bf16.msra.mxu0 %v945
        %1126 = vmatpush.bf16.msra.mxu0 %v943
        %1127 = vmatpush.bf16.msra.mxu0 %v941
        %1128 = vmatmul.bf16.gmra.mxu0 %v740
        %v1129 = vpop.f32.mrf.mxu0
        %v1130 = vadd.f32 0.0, %v1129
        %v1131 = vpop.f32.mrf.mxu0
        %1132 = vdwg.mxu0
        %1133 = vmatpush.bf16.msra.mxu0 %v971
        %1134 = vmatpush.bf16.msra.mxu0 %v969
        %1135 = vmatpush.bf16.msra.mxu0 %v967
        %1136 = vmatpush.bf16.msra.mxu0 %v965
        %1137 = vmatpush.bf16.msra.mxu0 %v963
        %1138 = vmatpush.bf16.msra.mxu0 %v961
        %1139 = vmatpush.bf16.msra.mxu0 %v959
        %1140 = vmatpush.bf16.msra.mxu0 %v957
        %1141 = vmatmul.bf16.gmra.mxu0 %v741
        %v1142 = vpop.f32.mrf.mxu0
        %v1143 = vadd.f32 %v1130, %v1142
        %v1144 = vpop.f32.mrf.mxu0
        %1145 = vdwg.mxu0
        %1146 = vmatpush.bf16.msra.mxu0 %v987
        %1147 = vmatpush.bf16.msra.mxu0 %v985
        %1148 = vmatpush.bf16.msra.mxu0 %v983
        %1149 = vmatpush.bf16.msra.mxu0 %v981
        %1150 = vmatpush.bf16.msra.mxu0 %v979
        %1151 = vmatpush.bf16.msra.mxu0 %v977
        %1152 = vmatpush.bf16.msra.mxu0 %v975
        %1153 = vmatpush.bf16.msra.mxu0 %v973
        %1154 = vmatmul.bf16.gmra.mxu0 %v742
        %v1155 = vpop.f32.mrf.mxu0
        %v1156 = vadd.f32 %v1143, %v1155
        %v1157 = vpop.f32.mrf.mxu0
        %1158 = vdwg.mxu0
        %1159 = vmatpush.bf16.msra.mxu0 %v1003
        %1160 = vmatpush.bf16.msra.mxu0 %v1001
        %1161 = vmatpush.bf16.msra.mxu0 %v999
        %1162 = vmatpush.bf16.msra.mxu0 %v997
        %1163 = vmatpush.bf16.msra.mxu0 %v995
        %1164 = vmatpush.bf16.msra.mxu0 %v993
        %1165 = vmatpush.bf16.msra.mxu0 %v991
        %1166 = vmatpush.bf16.msra.mxu0 %v989
        %1167 = vmatmul.bf16.gmra.mxu0 %v743
        %v1168 = vpop.f32.mrf.mxu0
        %v1169 = vadd.f32 %v1156, %v1168
        %v1170 = vpop.f32.mrf.mxu0
        %1171 = vdwg.mxu0
        %v1172 = vadd.f32 %v666, %v1117
        %v1173 = vadd.f32 %v667, %v1169
        %1174 = vst [vmem:[#allocation2] sm:$0xff] %v1172
        %1175 = vst [vmem:[#allocation2 + $0x8] sm:$0xff] %v1173
        %p1176 = scmp.eq.s32.totalorder %s23, 8
        // Predicated region
        $region83: #{resnet_forward.24} parent=73 // pred_check
          %p1177 = pneg %p1176
        $region84: #{resnet_forward.24} parent=73 // pred_check_branch
          %1179 = sbr.rel (%p1177) target = $region86
        $region85: #{resnet_forward.24} parent=73 // pred_region
          %v1180 = vld [vmem:[#allocation2] sm:$0xff]
          %v1181 = vld [vmem:[#allocation2 + $0x8] sm:$0xff]
          %v1182 = vld [vmem:[%s633] sm:$0x3]
          %v1184 = vperm.slane %v1182, 0
          %v1185 = vperm.slane %v1182, 1
          %v1188 = vmul.f32 %v1180, %v1184
          %v1189 = vmul.f32 %v1181, %v1185
          %v1190 = vld [vmem:[%s638] sm:$0x3]
          %v1192 = vperm.slane %v1190, 0
          %v1193 = vperm.slane %v1190, 1
          %v1196 = vadd.f32 %v1188, %v1192
          %v1197 = vadd.f32 %v1189, %v1193
          %v1198 = vld [vmem:[%s648] sm:$0xff]
          %v1199 = vld [vmem:[%s648 + $0x8] sm:$0xff]
          %v1200 = vadd.f32 %v1196, %v1198
          %v1201 = vadd.f32 %v1197, %v1199
          %v1202 = vmax.f32 %v1200, 0.0
          %v1203 = vmax.f32 %v1201, 0.0
          %1204 = vst [vmem:[%s658] sm:$0xff] %v1202
          %1205 = vst [vmem:[%s658 + $0x8] sm:$0xff] %v1203
        $region86: #{resnet_forward.24} parent=73 // pred_fallthru
          _
        %s1206 = smul.u32 2, %s22
        %p1207 = scmp.lt.s32.totalorder %s21, 0
        %s1208 = scalar_select %p1207, %s21, 0
        %p1209 = scmp.lt.s32.totalorder %s1206, 3
        %s1210 = scalar_select %p1209, %s1206, 3
        %s1211 = smul.addr %s1208, 4
        %s1212 = sadd.s32 %s1210, %s1211
        %s1213 = smul.addr %s1212, 8
        %s1214 = scalar_lea.vmem %s5, %s1213
        // Predicated region
        $region87: #{resnet_forward.24} parent=73 // pred_check
          %p1215 = pneg %p191
        $region88: #{resnet_forward.24} parent=73 // pred_check_branch
          %1217 = sbr.rel (%p1215) target = $region90
        $region89: #{resnet_forward.24} parent=73 // pred_region
          %s1218 = smul.u32 2, %s22
        $region90: #{resnet_forward.24} parent=73 // pred_fallthru
          _
      $region74: #{resnet_forward.24} parent=5 // pred_fallthru
        _
      %p1219 = scmp.le.s32.totalorder 2, %s11
      // Predicated region
      $region91: #{resnet_forward.24} parent=5 // pred_check
        %p1220 = pneg %p1219
      $region92: #{resnet_forward.24} parent=5 // pred_check_branch
        %1222 = sbr.rel (%p1220) target = $region94
      $region93: #{resnet_forward.24} parent=5 // pred_region
        %s1223 = ssub.s32 %s11, 2
        // Predicated region
        $region95: #{resnet_forward.24} parent=93 // pred_check
          %p1224 = pneg %p197
        $region96: #{resnet_forward.24} parent=93 // pred_check_branch
          %1226 = sbr.rel (%p1224) target = $region98
        $region97: #{resnet_forward.24} parent=93 // pred_region
          %s1227 = smul.u32 2, %s25
          %p1228 = scmp.lt.s32.totalorder %s24, 0
          %s1229 = scalar_select %p1228, %s24, 0
          %p1230 = scmp.lt.s32.totalorder %s1227, 3
          %s1231 = scalar_select %p1230, %s1227, 3
          %s1232 = smul.addr %s1229, 4
          %s1233 = sadd.s32 %s1231, %s1232
          %s1234 = smul.addr %s1233, 8
          %s1235 = scalar_lea.vmem %s5, %s1234
        $region98: #{resnet_forward.24} parent=93 // pred_fallthru
          _
      $region94: #{resnet_forward.24} parent=5 // pred_fallthru
        _
    $region6: #{resnet_forward.24} parent=1 // loop_footer
      %s15 = sadd.s32 1, %s11
    $region7: #{resnet_forward.24} parent=1 // loop_footer_branch
      %10 = sbr.rel target = $region3
    $region8: #{resnet_forward.24} parent=1 // loop_exit
      _

</llo_original>
